<compile_context>
chip_gen: v7x
topology: tpu7x:2x2x1
jax: 0.10.0
libtpu: 0.0.40
codegen_flags: <defaults>
</compile_context>

<pallas_src>
import functools
import math

import jax
import jax.numpy as jnp
from jax.experimental import pallas as pl
from jax.experimental.pallas import tpu as pltpu

BN_EPS = 1e-5


def _round_up(x, m):
    return ((x + m - 1) // m) * m


def _pick_tk(K):
    """K-reduction tile: largest 128-multiple divisor of K, else pad to 512."""
    if K <= 2048:
        return K, K
    for tk in (512, 384, 256, 128):
        if K % tk == 0:
            return tk, K
    return 512, _round_up(K, 512)


# --------------------------------------------------------------------------
# Pallas kernels
# --------------------------------------------------------------------------
def _conv_mm_kernel(x_ref, w_ref, s_ref, b_ref, o_ref, acc_ref, *, relu):
    """K-tiled matmul with fused BatchNorm affine + ReLU epilogue (f32)."""
    k = pl.program_id(2)

    @pl.when(k == 0)
    def _():
        acc_ref[...] = jnp.zeros_like(acc_ref)

    acc_ref[...] += jnp.dot(x_ref[...], w_ref[...],
                            preferred_element_type=jnp.float32)

    @pl.when(k == pl.num_programs(2) - 1)
    def _():
        acc = acc_ref[...] * s_ref[...] + b_ref[...]   # folded BN (eval mode)
        if relu:
            acc = jnp.maximum(acc, 0.0)
        o_ref[...] = acc.astype(o_ref.dtype)


def _conv_mm_res_kernel(x_ref, w_ref, s_ref, b_ref, r_ref, o_ref, acc_ref, *,
                        relu):
    """Same as _conv_mm_kernel + fused residual add before the activation."""
    k = pl.program_id(2)

    @pl.when(k == 0)
    def _():
        acc_ref[...] = jnp.zeros_like(acc_ref)

    acc_ref[...] += jnp.dot(x_ref[...], w_ref[...],
                            preferred_element_type=jnp.float32)

    @pl.when(k == pl.num_programs(2) - 1)
    def _():
        acc = acc_ref[...] * s_ref[...] + b_ref[...]
        acc = acc + r_ref[...].astype(jnp.float32)     # residual add (f32)
        if relu:
            acc = jnp.maximum(acc, 0.0)
        o_ref[...] = acc.astype(o_ref.dtype)


def _maxpool_kernel(x_ref, o_ref):
    # x_ref: (4, Ho+1, Wo+1, C) -- the 2x2 stride-parity planes of one padded
    #        image (row-parity major), padded with -inf.
    # o_ref: (1, Ho, Wo, C).  3x3 / stride-2 window max; the 9 taps are read
    # directly in-kernel (no (9, M, C) HBM stack).
    Ho, Wo = o_ref.shape[1], o_ref.shape[2]
    acc = None
    for dy in range(3):
        pr, h0 = dy % 2, dy // 2
        for dx in range(3):
            pc, w0 = dx % 2, dx // 2
            tap = x_ref[pr * 2 + pc, pl.ds(h0, Ho), pl.ds(w0, Wo), :]
            acc = tap if acc is None else jnp.maximum(acc, tap)
    o_ref[0] = acc


def _avgpool_fc_kernel(x_ref, w_ref, b_ref, logit_ref, hidden_ref, acc_ref, *,
                       inv_hw):
    # x_ref: (N, t_hw, C) chunk of the feature map.  Sum-reduce over the grid
    # into a VMEM accumulator; mean + linear head on the last step.
    j = pl.program_id(0)

    @pl.when(j == 0)
    def _():
        acc_ref[...] = jnp.zeros_like(acc_ref)

    acc_ref[...] += jnp.sum(x_ref[...].astype(jnp.float32), axis=1)

    @pl.when(j == pl.num_programs(0) - 1)
    def _():
        hidden = acc_ref[...] * inv_hw
        hidden_ref[...] = hidden.astype(hidden_ref.dtype)
        logit = jnp.dot(hidden, w_ref[...], preferred_element_type=jnp.float32)
        logit_ref[...] = (logit + b_ref[...]).astype(logit_ref.dtype)


# --------------------------------------------------------------------------
# Pallas call wrappers
# --------------------------------------------------------------------------
def matmul_bn_act(patches, w_mat, scale, bias, *, relu, residual=None):
    """out = act((patches @ w) * scale + bias (+ residual)), MXU-tiled.

    Grid = (M tiles, Cout tiles, K tiles); K is the reduction axis ("arbitrary")
    accumulated in a VMEM f32 scratch.  MXU operands are bf16, epilogue f32.
    """
    M, K = patches.shape
    Cout = w_mat.shape[1]

    # M tiling: MXU-sized tiles; pad rows to the tile multiple.
    tm = 256 if M >= 256 else _round_up(M, 8)
    Mp = _round_up(M, tm)
    # Cout tiling (>=2 parallel steps on wide layers for megacore sharding).
    tn = 256 if (Cout > 256 and Cout % 256 == 0) else Cout
    # K tiling: largest 128-multiple divisor (no padded reduction for this net).
    tk, Kp = _pick_tk(K)
    nm, nn, nk = Mp // tm, Cout // tn, Kp // tk

    x = patches.astype(jnp.bfloat16)
    w = w_mat.astype(jnp.bfloat16)
    if Mp != M or Kp != K:
        x = jnp.pad(x, ((0, Mp - M), (0, Kp - K)))
    if Kp != K:
        w = jnp.pad(w, ((0, Kp - K), (0, 0)))
    s2 = scale.reshape(1, Cout).astype(jnp.float32)
    b2 = bias.reshape(1, Cout).astype(jnp.float32)

    in_specs = [
        pl.BlockSpec((tm, tk), lambda i, j, k: (i, k)),
        pl.BlockSpec((tk, tn), lambda i, j, k: (k, j)),
        pl.BlockSpec((1, tn), lambda i, j, k: (0, j)),
        pl.BlockSpec((1, tn), lambda i, j, k: (0, j)),
    ]
    args = [x, w, s2, b2]
    if residual is None:
        kernel = functools.partial(_conv_mm_kernel, relu=relu)
    else:
        kernel = functools.partial(_conv_mm_res_kernel, relu=relu)
        r = residual.astype(jnp.bfloat16)
        if Mp != M:
            r = jnp.pad(r, ((0, Mp - M), (0, 0)))
        in_specs.append(pl.BlockSpec((tm, tn), lambda i, j, k: (i, j)))
        args.append(r)

    out = pl.pallas_call(
        kernel,
        out_shape=jax.ShapeDtypeStruct((Mp, Cout), jnp.bfloat16),
        grid=(nm, nn, nk),
        in_specs=in_specs,
        out_specs=pl.BlockSpec((tm, tn), lambda i, j, k: (i, j)),
        scratch_shapes=[pltpu.VMEM((tm, tn), jnp.float32)],
        compiler_params=pltpu.CompilerParams(
            dimension_semantics=("parallel", "parallel", "arbitrary")),
    )(*args)
    if Mp != M:
        out = out[:M]
    return out


def im2col(x_nhwc, kh, kw, stride, pad):
    """Extract conv patches in bf16 (JAX layout plumbing only).
    # TODO(synk): fold the kh*kw tap loop into the matmul kernel (shifted-window
    # DMA per tap) to avoid materializing kh*kw copies of the activation in HBM.
    """
    N, H, W, C = x_nhwc.shape
    if kh == 1 and kw == 1 and pad == 0:
        xs = x_nhwc[:, ::stride, ::stride, :]          # 1x1 conv: strided slice
        Ho, Wo = xs.shape[1], xs.shape[2]
        return xs.reshape(N * Ho * Wo, C), Ho, Wo
    xp = jnp.pad(x_nhwc, ((0, 0), (pad, pad), (pad, pad), (0, 0)))
    Hp, Wp = H + 2 * pad, W + 2 * pad
    Ho = (Hp - kh) // stride + 1
    Wo = (Wp - kw) // stride + 1
    cols = []
    for dy in range(kh):
        for dx in range(kw):
            cols.append(
                xp[:, dy:dy + stride * (Ho - 1) + 1:stride,
                      dx:dx + stride * (Wo - 1) + 1:stride, :])
    patches = jnp.stack(cols, axis=3)                  # (N, Ho, Wo, kh*kw, C)
    return patches.reshape(N * Ho * Wo, kh * kw * C), Ho, Wo


def conv_bn(x_mat, N, H, W, Cin, p, *, stride, relu, residual=None):
    patches, Ho, Wo = im2col(x_mat.reshape(N, H, W, Cin), p["kh"], p["kw"],
                             stride, p["pad"])
    out = matmul_bn_act(patches, p["w"], p["scale"], p["bias"],
                        relu=relu, residual=residual)
    return out, Ho, Wo


def maxpool2d_3x3_s2_p1(x_mat, N, H, W, C):
    Ho = (H + 2 - 3) // 2 + 1
    Wo = (W + 2 - 3) // 2 + 1
    Hp, Wp = 2 * Ho + 2, 2 * Wo + 2
    x = x_mat.reshape(N, H, W, C)
    xp = jnp.pad(x, ((0, 0), (1, Hp - H - 1), (1, Wp - W - 1), (0, 0)),
                 constant_values=float("-inf"))        # implicit -inf padding
    # Parity-split layout (JAX layout plumbing, 1x data): (N*4, Ho+1, Wo+1, C)
    # so the 9 stride-2 window taps become unit-stride in-kernel reads.
    xe = xp.reshape(N, Ho + 1, 2, Wo + 1, 2, C).transpose(0, 2, 4, 1, 3, 5)
    xe = xe.reshape(N * 4, Ho + 1, Wo + 1, C)
    out = pl.pallas_call(
        _maxpool_kernel,
        out_shape=jax.ShapeDtypeStruct((N, Ho, Wo, C), x.dtype),
        grid=(N,),
        in_specs=[pl.BlockSpec((4, Ho + 1, Wo + 1, C),
                               lambda n: (n, 0, 0, 0))],
        out_specs=pl.BlockSpec((1, Ho, Wo, C), lambda n: (n, 0, 0, 0)),
        compiler_params=pltpu.CompilerParams(
            dimension_semantics=("parallel",)),
    )(xe)
    # TODO(synk): also tile over H for very large images (block = full image).
    return out.reshape(N * Ho * Wo, C), Ho, Wo


def global_avgpool_fc(x_mat, N, H, W, C, fc_w, fc_b):
    """GlobalAvgPool -> Dropout(eval = identity) -> Linear, tiled over H*W."""
    HW = H * W
    x3 = x_mat.reshape(N, HW, C)
    if HW <= 512:
        t_hw, HWp = HW, HW
    else:
        t_hw = 512
        HWp = _round_up(HW, t_hw)
        x3 = jnp.pad(x3, ((0, 0), (0, HWp - HW), (0, 0)))
    ncls = fc_w.shape[1]
    logit, hidden = pl.pallas_call(
        functools.partial(_avgpool_fc_kernel, inv_hw=1.0 / HW),
        out_shape=(jax.ShapeDtypeStruct((N, ncls), jnp.float32),
                   jax.ShapeDtypeStruct((N, C), jnp.float32)),
        grid=(HWp // t_hw,),
        in_specs=[pl.BlockSpec((N, t_hw, C), lambda j: (0, j, 0)),
                  pl.BlockSpec((C, ncls), lambda j: (0, 0)),
                  pl.BlockSpec((1, ncls), lambda j: (0, 0))],
        out_specs=(pl.BlockSpec((N, ncls), lambda j: (0, 0)),
                   pl.BlockSpec((N, C), lambda j: (0, 0))),
        scratch_shapes=[pltpu.VMEM((N, C), jnp.float32)],
        compiler_params=pltpu.CompilerParams(
            dimension_semantics=("arbitrary",)),
    )(x3, fc_w, fc_b)
    return logit, hidden


def basic_block(x_mat, N, H, W, Cin, p):
    stride = p["stride"]
    # conv1 3x3 (stride) -> bn1 -> relu
    out, Ho, Wo = conv_bn(x_mat, N, H, W, Cin, p["conv1"],
                          stride=stride, relu=True)
    # residual path (1x1/stride conv + BN when shape changes, else identity)
    if p["downsample"] is not None:
        res, _, _ = conv_bn(x_mat, N, H, W, Cin, p["downsample"],
                            stride=stride, relu=False)
    else:
        res = x_mat
    # conv2 3x3 (stride 1) -> bn2 -> (+ residual) -> relu   (fused in kernel)
    # TODO(synk): deeper fusion (conv1 + downsample sharing one grid) to cut
    # the per-block pallas_call count further on latency-bound shapes.
    out, Ho, Wo = conv_bn(out, N, Ho, Wo, p["conv1"]["cout"], p["conv2"],
                          stride=1, relu=True, residual=res)
    return out, Ho, Wo, p["conv2"]["cout"]


# --------------------------------------------------------------------------
# Parameter construction (deterministic, matches module __init__ shapes/init)
# --------------------------------------------------------------------------
def make_conv_bn_params(key, cin, cout, k, pad):
    n = k * k * cout
    w = jax.random.normal(key, (cout, cin, k, k), jnp.float32) * math.sqrt(2.0 / n)
    # (Cout, Cin, kh, kw) -> (kh*kw*Cin, Cout), matching im2col inner order.
    w_mat = jnp.transpose(w, (2, 3, 1, 0)).reshape(k * k * cin, cout)
    gamma = jnp.ones((cout,), jnp.float32)
    beta = jnp.zeros((cout,), jnp.float32)
    rmean = jnp.zeros((cout,), jnp.float32)
    rvar = jnp.ones((cout,), jnp.float32)
    scale = gamma / jnp.sqrt(rvar + BN_EPS)
    bias = beta - rmean * scale
    return dict(w=w_mat.astype(jnp.bfloat16),     # bf16 MXU operand
                scale=scale, bias=bias, kh=k, kw=k, pad=pad, cout=cout)


def build_params(key, input_dim=4, num_classes=3, widening=1):
    inplanes = max(64 * widening, input_dim)
    keys = jax.random.split(key, 16)
    ki = iter(keys)
    params = {}
    # Downsampler: conv7x7 s2 p3 -> bn -> relu -> maxpool3x3 s2 p1
    params["downsampler"] = make_conv_bn_params(next(ki), input_dim, inplanes, 7, 3)
    # Layer groups: planes 64, 128, 256, 512 (min(prev*2, 1024) rule)
    layer_planes = [inplanes]
    cur = inplanes
    for _ in range(3):
        cur = min(cur * 2, 1024)
        layer_planes.append(cur)
    blocks = []
    inp = inplanes
    for li, planes in enumerate(layer_planes):
        stride = 1 if li == 0 else 2
        blk = {
            "conv1": make_conv_bn_params(next(ki), inp, planes, 3, 1),
            "conv2": make_conv_bn_params(next(ki), planes, planes, 3, 1),
            "downsample": (make_conv_bn_params(next(ki), inp, planes, 1, 0)
                           if (stride != 1 or inp != planes) else None),
            "stride": stride,
        }
        blocks.append(blk)
        inp = planes
    params["blocks"] = blocks
    hidden_dim = inp                      # args.hidden_dim after construction
    bound = 1.0 / math.sqrt(hidden_dim)
    params["fc_w"] = jax.random.uniform(next(ki), (hidden_dim, num_classes),
                                        jnp.float32, -bound, bound)
    params["fc_b"] = jax.random.uniform(next(ki), (1, num_classes),
                                        jnp.float32, -bound, bound)
    return params


# --------------------------------------------------------------------------
# Forward pass (returns (logit, hidden, x) like the PyTorch module)
# --------------------------------------------------------------------------
def resnet_forward(params, x_nchw):
    N, Cin, H, W = x_nchw.shape
    x = jnp.transpose(x_nchw, (0, 2, 3, 1)).astype(jnp.bfloat16)
    x = x.reshape(N * H * W, Cin)

    # Downsampler: conv7x7/s2 (+BN+ReLU fused) -> maxpool 3x3/s2
    x, H, W = conv_bn(x, N, H, W, Cin, params["downsampler"], stride=2, relu=True)
    C = params["downsampler"]["cout"]
    x, H, W = maxpool2d_3x3_s2_p1(x, N, H, W, C)

    # Residual layers (gpu_to_layer_assignments is a no-op on a single device)
    for blk in params["blocks"]:
        x, H, W, C = basic_block(x, N, H, W, C, blk)

    # aggregate_and_classify: GlobalAvgPool -> Dropout(eval=identity) -> fc
    # TODO(synk): RiskFactorPool / other pool registry variants not implemented.
    logit, hidden = global_avgpool_fc(x, N, H, W, C,
                                      params["fc_w"], params["fc_b"])

    feat_nchw = jnp.transpose(x.reshape(N, H, W, C), (0, 3, 1, 2))
    return logit, hidden, feat_nchw.astype(jnp.float32)


if __name__ == "__main__":
    key = jax.random.PRNGKey(0)
    pkey, xkey = jax.random.split(key)
    params = build_params(pkey, input_dim=4, num_classes=3, widening=1)

    x = jax.random.normal(xkey, (2, 4, 16, 16), jnp.float32)   # NCHW input

    fwd = jax.jit(lambda inp: resnet_forward(params, inp))
    logit, hidden, feat = fwd(x)
    jax.block_until_ready((logit, hidden, feat))

    assert logit.shape == (2, 3)
    assert hidden.shape == (2, 512)
    assert feat.shape == (2, 512, 1, 1)
    assert bool(jnp.all(jnp.isfinite(logit)))
    print("KERNEL_OK")
</pallas_src>

<mosaic_0001>
module attributes {stable_mosaic.version = 11 : i64} {
  func.func @_conv_mm_kernel(%arg0: i32, %arg1: i32, %arg2: i32, %arg3: memref<128x196xbf16, #tpu.memory_space<vmem>>, %arg4: memref<196x64xbf16, #tpu.memory_space<vmem>>, %arg5: memref<1x64xf32, #tpu.memory_space<vmem>>, %arg6: memref<1x64xf32, #tpu.memory_space<vmem>>, %arg7: memref<128x64xbf16, #tpu.memory_space<vmem>>, %arg8: memref<128x64xf32, #tpu.memory_space<vmem>>) attributes {dimension_semantics = [#tpu.dimension_semantics<parallel>, #tpu.dimension_semantics<parallel>, #tpu.dimension_semantics<arbitrary>], iteration_bounds = array<i64: 1, 1, 1>, scalar_prefetch = 0 : i64, scratch_operands = 1 : i64, tpu.core_type = #tpu.core_type<tc>, window_params = [{transform_indices = @transform_0, window_bounds = array<i64: 128, 196>}, {transform_indices = @transform_1, window_bounds = array<i64: 196, 64>}, {transform_indices = @transform_2, window_bounds = array<i64: 1, 64>}, {transform_indices = @transform_3, window_bounds = array<i64: 1, 64>}, {transform_indices = @transform_4, window_bounds = array<i64: 128, 64>}]} {
    %c0_i32 = arith.constant 0 : i32
    %0 = arith.cmpi eq, %arg2, %c0_i32 : i32
    %1 = arith.extui %0 : i1 to i32
    %c0_i32_0 = arith.constant 0 : i32
    %2 = arith.cmpi ne, %1, %c0_i32_0 : i32
    scf.if %2 {
      %cst_10 = arith.constant 0.000000e+00 : f32
      %12 = vector.broadcast %cst_10 : f32 to vector<128x64xf32>
      %c0_11 = arith.constant 0 : index
      %c0_12 = arith.constant 0 : index
      %13 = vector.load %arg8[%c0_11, %c0_12] : memref<128x64xf32, #tpu.memory_space<vmem>>, vector<128x64xf32>
      tpu.vector_store %arg8[%c0_11, %c0_12], %12 {strides = array<i32>} : memref<128x64xf32, #tpu.memory_space<vmem>>, vector<128x64xf32>,
    } else {
    }
    %c0 = arith.constant 0 : index
    %c0_1 = arith.constant 0 : index
    %3 = vector.load %arg8[%c0, %c0_1] : memref<128x64xf32, #tpu.memory_space<vmem>>, vector<128x64xf32>
    %c0_2 = arith.constant 0 : index
    %c0_3 = arith.constant 0 : index
    %4 = vector.load %arg3[%c0_2, %c0_3] : memref<128x196xbf16, #tpu.memory_space<vmem>>, vector<128x196xbf16>
    %c0_4 = arith.constant 0 : index
    %c0_5 = arith.constant 0 : index
    %5 = vector.load %arg4[%c0_4, %c0_5] : memref<196x64xbf16, #tpu.memory_space<vmem>>, vector<196x64xbf16>
    %cst = arith.constant dense<0.000000e+00> : vector<128x64xf32>
    %6 = tpu.matmul %4, %5, %cst {dimension_numbers = #tpu.dot_dimension_numbers<[1], [0], [0], [1], [0, 0, 1, 1], [], []>} : vector<128x196xbf16>, vector<196x64xbf16>, vector<128x64xf32> -> vector<128x64xf32>
    %7 = arith.addf %3, %6 : vector<128x64xf32>
    %c0_6 = arith.constant 0 : index
    %c0_7 = arith.constant 0 : index
    %8 = vector.load %arg8[%c0_6, %c0_7] : memref<128x64xf32, #tpu.memory_space<vmem>>, vector<128x64xf32>
    tpu.vector_store %arg8[%c0_6, %c0_7], %7 {strides = array<i32>} : memref<128x64xf32, #tpu.memory_space<vmem>>, vector<128x64xf32>,
    %c0_i32_8 = arith.constant 0 : i32
    %9 = arith.cmpi eq, %arg2, %c0_i32_8 : i32
    %10 = arith.extui %9 : i1 to i32
    %c0_i32_9 = arith.constant 0 : i32
    %11 = arith.cmpi ne, %10, %c0_i32_9 : i32
    scf.if %11 {
      %c0_10 = arith.constant 0 : index
      %c0_11 = arith.constant 0 : index
      %12 = vector.load %arg8[%c0_10, %c0_11] : memref<128x64xf32, #tpu.memory_space<vmem>>, vector<128x64xf32>
      %c0_12 = arith.constant 0 : index
      %c0_13 = arith.constant 0 : index
      %13 = vector.load %arg5[%c0_12, %c0_13] : memref<1x64xf32, #tpu.memory_space<vmem>>, vector<1x64xf32>
      %14 = vector.broadcast %13 : vector<1x64xf32> to vector<128x64xf32>
      %15 = arith.mulf %12, %14 : vector<128x64xf32>
      %c0_14 = arith.constant 0 : index
      %c0_15 = arith.constant 0 : index
      %16 = vector.load %arg6[%c0_14, %c0_15] : memref<1x64xf32, #tpu.memory_space<vmem>>, vector<1x64xf32>
      %17 = vector.broadcast %16 : vector<1x64xf32> to vector<128x64xf32>
      %18 = arith.addf %15, %17 : vector<128x64xf32>
      %cst_16 = arith.constant 0.000000e+00 : f32
      %19 = vector.broadcast %cst_16 : f32 to vector<128x64xf32>
      %20 = arith.maximumf %18, %19 : vector<128x64xf32>
      %21 = arith.truncf %20 : vector<128x64xf32> to vector<128x64xbf16>
      %c0_17 = arith.constant 0 : index
      %c0_18 = arith.constant 0 : index
      %22 = vector.load %arg7[%c0_17, %c0_18] : memref<128x64xbf16, #tpu.memory_space<vmem>>, vector<128x64xbf16>
      tpu.vector_store %arg7[%c0_17, %c0_18], %21 {strides = array<i32>} : memref<128x64xbf16, #tpu.memory_space<vmem>>, vector<128x64xbf16>,
    } else {
    }
    return
  }
  func.func @transform_0(%arg0: i32, %arg1: i32, %arg2: i32) -> (i32, i32) {
    %c0_i32 = arith.constant 0 : i32
    return %arg0, %arg2 : i32, i32
  }
  func.func @transform_1(%arg0: i32, %arg1: i32, %arg2: i32) -> (i32, i32) {
    %c0_i32 = arith.constant 0 : i32
    return %arg2, %arg1 : i32, i32
  }
  func.func @transform_2(%arg0: i32, %arg1: i32, %arg2: i32) -> (i32, i32) {
    %c0_i32 = arith.constant 0 : i32
    %c0_i32_0 = arith.constant 0 : i32
    return %c0_i32, %arg1 : i32, i32
  }
  func.func @transform_3(%arg0: i32, %arg1: i32, %arg2: i32) -> (i32, i32) {
    %c0_i32 = arith.constant 0 : i32
    %c0_i32_0 = arith.constant 0 : i32
    return %c0_i32, %arg1 : i32, i32
  }
  func.func @transform_4(%arg0: i32, %arg1: i32, %arg2: i32) -> (i32, i32) {
    %c0_i32 = arith.constant 0 : i32
    return %arg0, %arg1 : i32, i32
  }
}

module attributes {stable_mosaic.version = 11 : i64} {
  func.func @_maxpool_kernel(%arg0: i32, %arg1: memref<4x5x5x64xbf16, #tpu.memory_space<vmem>>, %arg2: memref<1x4x4x64xbf16, #tpu.memory_space<vmem>>) attributes {dimension_semantics = [#tpu.dimension_semantics<parallel>], iteration_bounds = array<i64: 2>, scalar_prefetch = 0 : i64, scratch_operands = 0 : i64, tpu.core_type = #tpu.core_type<tc>, window_params = [{transform_indices = @transform_0, window_bounds = array<i64: 4, 5, 5, 64>}, {transform_indices = @transform_1, window_bounds = array<i64: 1, 4, 4, 64>}]} {
    %c0 = arith.constant 0 : index
    %c0_0 = arith.constant 0 : index
    %c0_1 = arith.constant 0 : index
    %c0_2 = arith.constant 0 : index
    %0 = vector.load %arg1[%c0, %c0_0, %c0_1, %c0_2] : memref<4x5x5x64xbf16, #tpu.memory_space<vmem>>, vector<1x4x4x64xbf16>
    %1 = vector.shape_cast %0 : vector<1x4x4x64xbf16> to vector<4x4x64xbf16>
    %c1 = arith.constant 1 : index
    %c0_3 = arith.constant 0 : index
    %c0_4 = arith.constant 0 : index
    %c0_5 = arith.constant 0 : index
    %2 = vector.load %arg1[%c1, %c0_3, %c0_4, %c0_5] : memref<4x5x5x64xbf16, #tpu.memory_space<vmem>>, vector<1x4x4x64xbf16>
    %3 = vector.shape_cast %2 : vector<1x4x4x64xbf16> to vector<4x4x64xbf16>
    %4 = arith.maximumf %1, %3 : vector<4x4x64xbf16>
    %c0_6 = arith.constant 0 : index
    %c0_7 = arith.constant 0 : index
    %c1_8 = arith.constant 1 : index
    %c0_9 = arith.constant 0 : index
    %5 = vector.load %arg1[%c0_6, %c0_7, %c1_8, %c0_9] : memref<4x5x5x64xbf16, #tpu.memory_space<vmem>>, vector<1x4x4x64xbf16>
    %6 = vector.shape_cast %5 : vector<1x4x4x64xbf16> to vector<4x4x64xbf16>
    %7 = arith.maximumf %4, %6 : vector<4x4x64xbf16>
    %c2 = arith.constant 2 : index
    %c0_10 = arith.constant 0 : index
    %c0_11 = arith.constant 0 : index
    %c0_12 = arith.constant 0 : index
    %8 = vector.load %arg1[%c2, %c0_10, %c0_11, %c0_12] : memref<4x5x5x64xbf16, #tpu.memory_space<vmem>>, vector<1x4x4x64xbf16>
    %9 = vector.shape_cast %8 : vector<1x4x4x64xbf16> to vector<4x4x64xbf16>
    %10 = arith.maximumf %7, %9 : vector<4x4x64xbf16>
    %c3 = arith.constant 3 : index
    %c0_13 = arith.constant 0 : index
    %c0_14 = arith.constant 0 : index
    %c0_15 = arith.constant 0 : index
    %11 = vector.load %arg1[%c3, %c0_13, %c0_14, %c0_15] : memref<4x5x5x64xbf16, #tpu.memory_space<vmem>>, vector<1x4x4x64xbf16>
    %12 = vector.shape_cast %11 : vector<1x4x4x64xbf16> to vector<4x4x64xbf16>
    %13 = arith.maximumf %10, %12 : vector<4x4x64xbf16>
    %c2_16 = arith.constant 2 : index
    %c0_17 = arith.constant 0 : index
    %c1_18 = arith.constant 1 : index
    %c0_19 = arith.constant 0 : index
    %14 = vector.load %arg1[%c2_16, %c0_17, %c1_18, %c0_19] : memref<4x5x5x64xbf16, #tpu.memory_space<vmem>>, vector<1x4x4x64xbf16>
    %15 = vector.shape_cast %14 : vector<1x4x4x64xbf16> to vector<4x4x64xbf16>
    %16 = arith.maximumf %13, %15 : vector<4x4x64xbf16>
    %c0_20 = arith.constant 0 : index
    %c1_21 = arith.constant 1 : index
    %c0_22 = arith.constant 0 : index
    %c0_23 = arith.constant 0 : index
    %17 = vector.load %arg1[%c0_20, %c1_21, %c0_22, %c0_23] : memref<4x5x5x64xbf16, #tpu.memory_space<vmem>>, vector<1x4x4x64xbf16>
    %18 = vector.shape_cast %17 : vector<1x4x4x64xbf16> to vector<4x4x64xbf16>
    %19 = arith.maximumf %16, %18 : vector<4x4x64xbf16>
    %c1_24 = arith.constant 1 : index
    %c1_25 = arith.constant 1 : index
    %c0_26 = arith.constant 0 : index
    %c0_27 = arith.constant 0 : index
    %20 = vector.load %arg1[%c1_24, %c1_25, %c0_26, %c0_27] : memref<4x5x5x64xbf16, #tpu.memory_space<vmem>>, vector<1x4x4x64xbf16>
    %21 = vector.shape_cast %20 : vector<1x4x4x64xbf16> to vector<4x4x64xbf16>
    %22 = arith.maximumf %19, %21 : vector<4x4x64xbf16>
    %c0_28 = arith.constant 0 : index
    %c1_29 = arith.constant 1 : index
    %c1_30 = arith.constant 1 : index
    %c0_31 = arith.constant 0 : index
    %23 = vector.load %arg1[%c0_28, %c1_29, %c1_30, %c0_31] : memref<4x5x5x64xbf16, #tpu.memory_space<vmem>>, vector<1x4x4x64xbf16>
    %24 = vector.shape_cast %23 : vector<1x4x4x64xbf16> to vector<4x4x64xbf16>
    %25 = arith.maximumf %22, %24 : vector<4x4x64xbf16>
    %c0_32 = arith.constant 0 : index
    %c0_33 = arith.constant 0 : index
    %c0_34 = arith.constant 0 : index
    %c0_35 = arith.constant 0 : index
    %26 = vector.load %arg2[%c0_32, %c0_33, %c0_34, %c0_35] : memref<1x4x4x64xbf16, #tpu.memory_space<vmem>>, vector<1x4x4x64xbf16>
    %27 = vector.shape_cast %26 : vector<1x4x4x64xbf16> to vector<4x4x64xbf16>
    %28 = vector.shape_cast %25 : vector<4x4x64xbf16> to vector<1x4x4x64xbf16>
    tpu.vector_store %arg2[%c0_32, %c0_33, %c0_34, %c0_35], %28 {strides = array<i32>} : memref<1x4x4x64xbf16, #tpu.memory_space<vmem>>, vector<1x4x4x64xbf16>,
    return
  }
  func.func @transform_0(%arg0: i32) -> (i32, i32, i32, i32) {
    %c0_i32 = arith.constant 0 : i32
    %c0_i32_0 = arith.constant 0 : i32
    %c0_i32_1 = arith.constant 0 : i32
    %c0_i32_2 = arith.constant 0 : i32
    return %arg0, %c0_i32, %c0_i32_0, %c0_i32_1 : i32, i32, i32, i32
  }
  func.func @transform_1(%arg0: i32) -> (i32, i32, i32, i32) {
    %c0_i32 = arith.constant 0 : i32
    %c0_i32_0 = arith.constant 0 : i32
    %c0_i32_1 = arith.constant 0 : i32
    %c0_i32_2 = arith.constant 0 : i32
    return %arg0, %c0_i32, %c0_i32_0, %c0_i32_1 : i32, i32, i32, i32
  }
}

module attributes {stable_mosaic.version = 11 : i64} {
  func.func @_conv_mm_kernel(%arg0: i32, %arg1: i32, %arg2: i32, %arg3: memref<32x576xbf16, #tpu.memory_space<vmem>>, %arg4: memref<576x64xbf16, #tpu.memory_space<vmem>>, %arg5: memref<1x64xf32, #tpu.memory_space<vmem>>, %arg6: memref<1x64xf32, #tpu.memory_space<vmem>>, %arg7: memref<32x64xbf16, #tpu.memory_space<vmem>>, %arg8: memref<32x64xf32, #tpu.memory_space<vmem>>) attributes {dimension_semantics = [#tpu.dimension_semantics<parallel>, #tpu.dimension_semantics<parallel>, #tpu.dimension_semantics<arbitrary>], iteration_bounds = array<i64: 1, 1, 1>, scalar_prefetch = 0 : i64, scratch_operands = 1 : i64, tpu.core_type = #tpu.core_type<tc>, window_params = [{transform_indices = @transform_0, window_bounds = array<i64: 32, 576>}, {transform_indices = @transform_1, window_bounds = array<i64: 576, 64>}, {transform_indices = @transform_2, window_bounds = array<i64: 1, 64>}, {transform_indices = @transform_3, window_bounds = array<i64: 1, 64>}, {transform_indices = @transform_4, window_bounds = array<i64: 32, 64>}]} {
    %c0_i32 = arith.constant 0 : i32
    %0 = arith.cmpi eq, %arg2, %c0_i32 : i32
    %1 = arith.extui %0 : i1 to i32
    %c0_i32_0 = arith.constant 0 : i32
    %2 = arith.cmpi ne, %1, %c0_i32_0 : i32
    scf.if %2 {
      %cst_10 = arith.constant 0.000000e+00 : f32
      %12 = vector.broadcast %cst_10 : f32 to vector<32x64xf32>
      %c0_11 = arith.constant 0 : index
      %c0_12 = arith.constant 0 : index
      %13 = vector.load %arg8[%c0_11, %c0_12] : memref<32x64xf32, #tpu.memory_space<vmem>>, vector<32x64xf32>
      tpu.vector_store %arg8[%c0_11, %c0_12], %12 {strides = array<i32>} : memref<32x64xf32, #tpu.memory_space<vmem>>, vector<32x64xf32>,
    } else {
    }
    %c0 = arith.constant 0 : index
    %c0_1 = arith.constant 0 : index
    %3 = vector.load %arg8[%c0, %c0_1] : memref<32x64xf32, #tpu.memory_space<vmem>>, vector<32x64xf32>
    %c0_2 = arith.constant 0 : index
    %c0_3 = arith.constant 0 : index
    %4 = vector.load %arg3[%c0_2, %c0_3] : memref<32x576xbf16, #tpu.memory_space<vmem>>, vector<32x576xbf16>
    %c0_4 = arith.constant 0 : index
    %c0_5 = arith.constant 0 : index
    %5 = vector.load %arg4[%c0_4, %c0_5] : memref<576x64xbf16, #tpu.memory_space<vmem>>, vector<576x64xbf16>
    %cst = arith.constant dense<0.000000e+00> : vector<32x64xf32>
    %6 = tpu.matmul %4, %5, %cst {dimension_numbers = #tpu.dot_dimension_numbers<[1], [0], [0], [1], [0, 0, 1, 1], [], []>} : vector<32x576xbf16>, vector<576x64xbf16>, vector<32x64xf32> -> vector<32x64xf32>
    %7 = arith.addf %3, %6 : vector<32x64xf32>
    %c0_6 = arith.constant 0 : index
    %c0_7 = arith.constant 0 : index
    %8 = vector.load %arg8[%c0_6, %c0_7] : memref<32x64xf32, #tpu.memory_space<vmem>>, vector<32x64xf32>
    tpu.vector_store %arg8[%c0_6, %c0_7], %7 {strides = array<i32>} : memref<32x64xf32, #tpu.memory_space<vmem>>, vector<32x64xf32>,
    %c0_i32_8 = arith.constant 0 : i32
    %9 = arith.cmpi eq, %arg2, %c0_i32_8 : i32
    %10 = arith.extui %9 : i1 to i32
    %c0_i32_9 = arith.constant 0 : i32
    %11 = arith.cmpi ne, %10, %c0_i32_9 : i32
    scf.if %11 {
      %c0_10 = arith.constant 0 : index
      %c0_11 = arith.constant 0 : index
      %12 = vector.load %arg8[%c0_10, %c0_11] : memref<32x64xf32, #tpu.memory_space<vmem>>, vector<32x64xf32>
      %c0_12 = arith.constant 0 : index
      %c0_13 = arith.constant 0 : index
      %13 = vector.load %arg5[%c0_12, %c0_13] : memref<1x64xf32, #tpu.memory_space<vmem>>, vector<1x64xf32>
      %14 = vector.broadcast %13 : vector<1x64xf32> to vector<32x64xf32>
      %15 = arith.mulf %12, %14 : vector<32x64xf32>
      %c0_14 = arith.constant 0 : index
      %c0_15 = arith.constant 0 : index
      %16 = vector.load %arg6[%c0_14, %c0_15] : memref<1x64xf32, #tpu.memory_space<vmem>>, vector<1x64xf32>
      %17 = vector.broadcast %16 : vector<1x64xf32> to vector<32x64xf32>
      %18 = arith.addf %15, %17 : vector<32x64xf32>
      %cst_16 = arith.constant 0.000000e+00 : f32
      %19 = vector.broadcast %cst_16 : f32 to vector<32x64xf32>
      %20 = arith.maximumf %18, %19 : vector<32x64xf32>
      %21 = arith.truncf %20 : vector<32x64xf32> to vector<32x64xbf16>
      %c0_17 = arith.constant 0 : index
      %c0_18 = arith.constant 0 : index
      %22 = vector.load %arg7[%c0_17, %c0_18] : memref<32x64xbf16, #tpu.memory_space<vmem>>, vector<32x64xbf16>
      tpu.vector_store %arg7[%c0_17, %c0_18], %21 {strides = array<i32>} : memref<32x64xbf16, #tpu.memory_space<vmem>>, vector<32x64xbf16>,
    } else {
    }
    return
  }
  func.func @transform_0(%arg0: i32, %arg1: i32, %arg2: i32) -> (i32, i32) {
    %c0_i32 = arith.constant 0 : i32
    return %arg0, %arg2 : i32, i32
  }
  func.func @transform_1(%arg0: i32, %arg1: i32, %arg2: i32) -> (i32, i32) {
    %c0_i32 = arith.constant 0 : i32
    return %arg2, %arg1 : i32, i32
  }
  func.func @transform_2(%arg0: i32, %arg1: i32, %arg2: i32) -> (i32, i32) {
    %c0_i32 = arith.constant 0 : i32
    %c0_i32_0 = arith.constant 0 : i32
    return %c0_i32, %arg1 : i32, i32
  }
  func.func @transform_3(%arg0: i32, %arg1: i32, %arg2: i32) -> (i32, i32) {
    %c0_i32 = arith.constant 0 : i32
    %c0_i32_0 = arith.constant 0 : i32
    return %c0_i32, %arg1 : i32, i32
  }
  func.func @transform_4(%arg0: i32, %arg1: i32, %arg2: i32) -> (i32, i32) {
    %c0_i32 = arith.constant 0 : i32
    return %arg0, %arg1 : i32, i32
  }
}

module attributes {stable_mosaic.version = 11 : i64} {
  func.func @_conv_mm_res_kernel(%arg0: i32, %arg1: i32, %arg2: i32, %arg3: memref<32x576xbf16, #tpu.memory_space<vmem>>, %arg4: memref<576x64xbf16, #tpu.memory_space<vmem>>, %arg5: memref<1x64xf32, #tpu.memory_space<vmem>>, %arg6: memref<1x64xf32, #tpu.memory_space<vmem>>, %arg7: memref<32x64xbf16, #tpu.memory_space<vmem>>, %arg8: memref<32x64xbf16, #tpu.memory_space<vmem>>, %arg9: memref<32x64xf32, #tpu.memory_space<vmem>>) attributes {dimension_semantics = [#tpu.dimension_semantics<parallel>, #tpu.dimension_semantics<parallel>, #tpu.dimension_semantics<arbitrary>], iteration_bounds = array<i64: 1, 1, 1>, scalar_prefetch = 0 : i64, scratch_operands = 1 : i64, tpu.core_type = #tpu.core_type<tc>, window_params = [{transform_indices = @transform_0, window_bounds = array<i64: 32, 576>}, {transform_indices = @transform_1, window_bounds = array<i64: 576, 64>}, {transform_indices = @transform_2, window_bounds = array<i64: 1, 64>}, {transform_indices = @transform_3, window_bounds = array<i64: 1, 64>}, {transform_indices = @transform_4, window_bounds = array<i64: 32, 64>}, {transform_indices = @transform_5, window_bounds = array<i64: 32, 64>}]} {
    %c0_i32 = arith.constant 0 : i32
    %0 = arith.cmpi eq, %arg2, %c0_i32 : i32
    %1 = arith.extui %0 : i1 to i32
    %c0_i32_0 = arith.constant 0 : i32
    %2 = arith.cmpi ne, %1, %c0_i32_0 : i32
    scf.if %2 {
      %cst_10 = arith.constant 0.000000e+00 : f32
      %12 = vector.broadcast %cst_10 : f32 to vector<32x64xf32>
      %c0_11 = arith.constant 0 : index
      %c0_12 = arith.constant 0 : index
      %13 = vector.load %arg9[%c0_11, %c0_12] : memref<32x64xf32, #tpu.memory_space<vmem>>, vector<32x64xf32>
      tpu.vector_store %arg9[%c0_11, %c0_12], %12 {strides = array<i32>} : memref<32x64xf32, #tpu.memory_space<vmem>>, vector<32x64xf32>,
    } else {
    }
    %c0 = arith.constant 0 : index
    %c0_1 = arith.constant 0 : index
    %3 = vector.load %arg9[%c0, %c0_1] : memref<32x64xf32, #tpu.memory_space<vmem>>, vector<32x64xf32>
    %c0_2 = arith.constant 0 : index
    %c0_3 = arith.constant 0 : index
    %4 = vector.load %arg3[%c0_2, %c0_3] : memref<32x576xbf16, #tpu.memory_space<vmem>>, vector<32x576xbf16>
    %c0_4 = arith.constant 0 : index
    %c0_5 = arith.constant 0 : index
    %5 = vector.load %arg4[%c0_4, %c0_5] : memref<576x64xbf16, #tpu.memory_space<vmem>>, vector<576x64xbf16>
    %cst = arith.constant dense<0.000000e+00> : vector<32x64xf32>
    %6 = tpu.matmul %4, %5, %cst {dimension_numbers = #tpu.dot_dimension_numbers<[1], [0], [0], [1], [0, 0, 1, 1], [], []>} : vector<32x576xbf16>, vector<576x64xbf16>, vector<32x64xf32> -> vector<32x64xf32>
    %7 = arith.addf %3, %6 : vector<32x64xf32>
    %c0_6 = arith.constant 0 : index
    %c0_7 = arith.constant 0 : index
    %8 = vector.load %arg9[%c0_6, %c0_7] : memref<32x64xf32, #tpu.memory_space<vmem>>, vector<32x64xf32>
    tpu.vector_store %arg9[%c0_6, %c0_7], %7 {strides = array<i32>} : memref<32x64xf32, #tpu.memory_space<vmem>>, vector<32x64xf32>,
    %c0_i32_8 = arith.constant 0 : i32
    %9 = arith.cmpi eq, %arg2, %c0_i32_8 : i32
    %10 = arith.extui %9 : i1 to i32
    %c0_i32_9 = arith.constant 0 : i32
    %11 = arith.cmpi ne, %10, %c0_i32_9 : i32
    scf.if %11 {
      %c0_10 = arith.constant 0 : index
      %c0_11 = arith.constant 0 : index
      %12 = vector.load %arg9[%c0_10, %c0_11] : memref<32x64xf32, #tpu.memory_space<vmem>>, vector<32x64xf32>
      %c0_12 = arith.constant 0 : index
      %c0_13 = arith.constant 0 : index
      %13 = vector.load %arg5[%c0_12, %c0_13] : memref<1x64xf32, #tpu.memory_space<vmem>>, vector<1x64xf32>
      %14 = vector.broadcast %13 : vector<1x64xf32> to vector<32x64xf32>
      %15 = arith.mulf %12, %14 : vector<32x64xf32>
      %c0_14 = arith.constant 0 : index
      %c0_15 = arith.constant 0 : index
      %16 = vector.load %arg6[%c0_14, %c0_15] : memref<1x64xf32, #tpu.memory_space<vmem>>, vector<1x64xf32>
      %17 = vector.broadcast %16 : vector<1x64xf32> to vector<32x64xf32>
      %18 = arith.addf %15, %17 : vector<32x64xf32>
      %c0_16 = arith.constant 0 : index
      %c0_17 = arith.constant 0 : index
      %19 = vector.load %arg7[%c0_16, %c0_17] : memref<32x64xbf16, #tpu.memory_space<vmem>>, vector<32x64xbf16>
      %20 = arith.extf %19 : vector<32x64xbf16> to vector<32x64xf32>
      %21 = arith.addf %18, %20 : vector<32x64xf32>
      %cst_18 = arith.constant 0.000000e+00 : f32
      %22 = vector.broadcast %cst_18 : f32 to vector<32x64xf32>
      %23 = arith.maximumf %21, %22 : vector<32x64xf32>
      %24 = arith.truncf %23 : vector<32x64xf32> to vector<32x64xbf16>
      %c0_19 = arith.constant 0 : index
      %c0_20 = arith.constant 0 : index
      %25 = vector.load %arg8[%c0_19, %c0_20] : memref<32x64xbf16, #tpu.memory_space<vmem>>, vector<32x64xbf16>
      tpu.vector_store %arg8[%c0_19, %c0_20], %24 {strides = array<i32>} : memref<32x64xbf16, #tpu.memory_space<vmem>>, vector<32x64xbf16>,
    } else {
    }
    return
  }
  func.func @transform_0(%arg0: i32, %arg1: i32, %arg2: i32) -> (i32, i32) {
    %c0_i32 = arith.constant 0 : i32
    return %arg0, %arg2 : i32, i32
  }
  func.func @transform_1(%arg0: i32, %arg1: i32, %arg2: i32) -> (i32, i32) {
    %c0_i32 = arith.constant 0 : i32
    return %arg2, %arg1 : i32, i32
  }
  func.func @transform_2(%arg0: i32, %arg1: i32, %arg2: i32) -> (i32, i32) {
    %c0_i32 = arith.constant 0 : i32
    %c0_i32_0 = arith.constant 0 : i32
    return %c0_i32, %arg1 : i32, i32
  }
  func.func @transform_3(%arg0: i32, %arg1: i32, %arg2: i32) -> (i32, i32) {
    %c0_i32 = arith.constant 0 : i32
    %c0_i32_0 = arith.constant 0 : i32
    return %c0_i32, %arg1 : i32, i32
  }
  func.func @transform_4(%arg0: i32, %arg1: i32, %arg2: i32) -> (i32, i32) {
    %c0_i32 = arith.constant 0 : i32
    return %arg0, %arg1 : i32, i32
  }
  func.func @transform_5(%arg0: i32, %arg1: i32, %arg2: i32) -> (i32, i32) {
    %c0_i32 = arith.constant 0 : i32
    return %arg0, %arg1 : i32, i32
  }
}

module attributes {stable_mosaic.version = 11 : i64} {
  func.func @_conv_mm_kernel(%arg0: i32, %arg1: i32, %arg2: i32, %arg3: memref<8x64xbf16, #tpu.memory_space<vmem>>, %arg4: memref<64x128xbf16, #tpu.memory_space<vmem>>, %arg5: memref<1x128xf32, #tpu.memory_space<vmem>>, %arg6: memref<1x128xf32, #tpu.memory_space<vmem>>, %arg7: memref<8x128xbf16, #tpu.memory_space<vmem>>, %arg8: memref<8x128xf32, #tpu.memory_space<vmem>>) attributes {dimension_semantics = [#tpu.dimension_semantics<parallel>, #tpu.dimension_semantics<parallel>, #tpu.dimension_semantics<arbitrary>], iteration_bounds = array<i64: 1, 1, 1>, scalar_prefetch = 0 : i64, scratch_operands = 1 : i64, tpu.core_type = #tpu.core_type<tc>, window_params = [{transform_indices = @transform_0, window_bounds = array<i64: 8, 64>}, {transform_indices = @transform_1, window_bounds = array<i64: 64, 128>}, {transform_indices = @transform_2, window_bounds = array<i64: 1, 128>}, {transform_indices = @transform_3, window_bounds = array<i64: 1, 128>}, {transform_indices = @transform_4, window_bounds = array<i64: 8, 128>}]} {
    %c0_i32 = arith.constant 0 : i32
    %0 = arith.cmpi eq, %arg2, %c0_i32 : i32
    %1 = arith.extui %0 : i1 to i32
    %c0_i32_0 = arith.constant 0 : i32
    %2 = arith.cmpi ne, %1, %c0_i32_0 : i32
    scf.if %2 {
      %cst_10 = arith.constant 0.000000e+00 : f32
      %12 = vector.broadcast %cst_10 : f32 to vector<8x128xf32>
      %c0_11 = arith.constant 0 : index
      %c0_12 = arith.constant 0 : index
      %13 = vector.load %arg8[%c0_11, %c0_12] : memref<8x128xf32, #tpu.memory_space<vmem>>, vector<8x128xf32>
      tpu.vector_store %arg8[%c0_11, %c0_12], %12 {strides = array<i32>} : memref<8x128xf32, #tpu.memory_space<vmem>>, vector<8x128xf32>,
    } else {
    }
    %c0 = arith.constant 0 : index
    %c0_1 = arith.constant 0 : index
    %3 = vector.load %arg8[%c0, %c0_1] : memref<8x128xf32, #tpu.memory_space<vmem>>, vector<8x128xf32>
    %c0_2 = arith.constant 0 : index
    %c0_3 = arith.constant 0 : index
    %4 = vector.load %arg3[%c0_2, %c0_3] : memref<8x64xbf16, #tpu.memory_space<vmem>>, vector<8x64xbf16>
    %c0_4 = arith.constant 0 : index
    %c0_5 = arith.constant 0 : index
    %5 = vector.load %arg4[%c0_4, %c0_5] : memref<64x128xbf16, #tpu.memory_space<vmem>>, vector<64x128xbf16>
    %cst = arith.constant dense<0.000000e+00> : vector<8x128xf32>
    %6 = tpu.matmul %4, %5, %cst {dimension_numbers = #tpu.dot_dimension_numbers<[1], [0], [0], [1], [0, 0, 1, 1], [], []>} : vector<8x64xbf16>, vector<64x128xbf16>, vector<8x128xf32> -> vector<8x128xf32>
    %7 = arith.addf %3, %6 : vector<8x128xf32>
    %c0_6 = arith.constant 0 : index
    %c0_7 = arith.constant 0 : index
    %8 = vector.load %arg8[%c0_6, %c0_7] : memref<8x128xf32, #tpu.memory_space<vmem>>, vector<8x128xf32>
    tpu.vector_store %arg8[%c0_6, %c0_7], %7 {strides = array<i32>} : memref<8x128xf32, #tpu.memory_space<vmem>>, vector<8x128xf32>,
    %c0_i32_8 = arith.constant 0 : i32
    %9 = arith.cmpi eq, %arg2, %c0_i32_8 : i32
    %10 = arith.extui %9 : i1 to i32
    %c0_i32_9 = arith.constant 0 : i32
    %11 = arith.cmpi ne, %10, %c0_i32_9 : i32
    scf.if %11 {
      %c0_10 = arith.constant 0 : index
      %c0_11 = arith.constant 0 : index
      %12 = vector.load %arg8[%c0_10, %c0_11] : memref<8x128xf32, #tpu.memory_space<vmem>>, vector<8x128xf32>
      %c0_12 = arith.constant 0 : index
      %c0_13 = arith.constant 0 : index
      %13 = vector.load %arg5[%c0_12, %c0_13] : memref<1x128xf32, #tpu.memory_space<vmem>>, vector<1x128xf32>
      %14 = vector.broadcast %13 : vector<1x128xf32> to vector<8x128xf32>
      %15 = arith.mulf %12, %14 : vector<8x128xf32>
      %c0_14 = arith.constant 0 : index
      %c0_15 = arith.constant 0 : index
      %16 = vector.load %arg6[%c0_14, %c0_15] : memref<1x128xf32, #tpu.memory_space<vmem>>, vector<1x128xf32>
      %17 = vector.broadcast %16 : vector<1x128xf32> to vector<8x128xf32>
      %18 = arith.addf %15, %17 : vector<8x128xf32>
      %19 = arith.truncf %18 : vector<8x128xf32> to vector<8x128xbf16>
      %c0_16 = arith.constant 0 : index
      %c0_17 = arith.constant 0 : index
      %20 = vector.load %arg7[%c0_16, %c0_17] : memref<8x128xbf16, #tpu.memory_space<vmem>>, vector<8x128xbf16>
      tpu.vector_store %arg7[%c0_16, %c0_17], %19 {strides = array<i32>} : memref<8x128xbf16, #tpu.memory_space<vmem>>, vector<8x128xbf16>,
    } else {
    }
    return
  }
  func.func @transform_0(%arg0: i32, %arg1: i32, %arg2: i32) -> (i32, i32) {
    %c0_i32 = arith.constant 0 : i32
    return %arg0, %arg2 : i32, i32
  }
  func.func @transform_1(%arg0: i32, %arg1: i32, %arg2: i32) -> (i32, i32) {
    %c0_i32 = arith.constant 0 : i32
    return %arg2, %arg1 : i32, i32
  }
  func.func @transform_2(%arg0: i32, %arg1: i32, %arg2: i32) -> (i32, i32) {
    %c0_i32 = arith.constant 0 : i32
    %c0_i32_0 = arith.constant 0 : i32
    return %c0_i32, %arg1 : i32, i32
  }
  func.func @transform_3(%arg0: i32, %arg1: i32, %arg2: i32) -> (i32, i32) {
    %c0_i32 = arith.constant 0 : i32
    %c0_i32_0 = arith.constant 0 : i32
    return %c0_i32, %arg1 : i32, i32
  }
  func.func @transform_4(%arg0: i32, %arg1: i32, %arg2: i32) -> (i32, i32) {
    %c0_i32 = arith.constant 0 : i32
    return %arg0, %arg1 : i32, i32
  }
}

module attributes {stable_mosaic.version = 11 : i64} {
  func.func @_conv_mm_kernel(%arg0: i32, %arg1: i32, %arg2: i32, %arg3: memref<8x576xbf16, #tpu.memory_space<vmem>>, %arg4: memref<576x128xbf16, #tpu.memory_space<vmem>>, %arg5: memref<1x128xf32, #tpu.memory_space<vmem>>, %arg6: memref<1x128xf32, #tpu.memory_space<vmem>>, %arg7: memref<8x128xbf16, #tpu.memory_space<vmem>>, %arg8: memref<8x128xf32, #tpu.memory_space<vmem>>) attributes {dimension_semantics = [#tpu.dimension_semantics<parallel>, #tpu.dimension_semantics<parallel>, #tpu.dimension_semantics<arbitrary>], iteration_bounds = array<i64: 1, 1, 1>, scalar_prefetch = 0 : i64, scratch_operands = 1 : i64, tpu.core_type = #tpu.core_type<tc>, window_params = [{transform_indices = @transform_0, window_bounds = array<i64: 8, 576>}, {transform_indices = @transform_1, window_bounds = array<i64: 576, 128>}, {transform_indices = @transform_2, window_bounds = array<i64: 1, 128>}, {transform_indices = @transform_3, window_bounds = array<i64: 1, 128>}, {transform_indices = @transform_4, window_bounds = array<i64: 8, 128>}]} {
    %c0_i32 = arith.constant 0 : i32
    %0 = arith.cmpi eq, %arg2, %c0_i32 : i32
    %1 = arith.extui %0 : i1 to i32
    %c0_i32_0 = arith.constant 0 : i32
    %2 = arith.cmpi ne, %1, %c0_i32_0 : i32
    scf.if %2 {
      %cst_10 = arith.constant 0.000000e+00 : f32
      %12 = vector.broadcast %cst_10 : f32 to vector<8x128xf32>
      %c0_11 = arith.constant 0 : index
      %c0_12 = arith.constant 0 : index
      %13 = vector.load %arg8[%c0_11, %c0_12] : memref<8x128xf32, #tpu.memory_space<vmem>>, vector<8x128xf32>
      tpu.vector_store %arg8[%c0_11, %c0_12], %12 {strides = array<i32>} : memref<8x128xf32, #tpu.memory_space<vmem>>, vector<8x128xf32>,
    } else {
    }
    %c0 = arith.constant 0 : index
    %c0_1 = arith.constant 0 : index
    %3 = vector.load %arg8[%c0, %c0_1] : memref<8x128xf32, #tpu.memory_space<vmem>>, vector<8x128xf32>
    %c0_2 = arith.constant 0 : index
    %c0_3 = arith.constant 0 : index
    %4 = vector.load %arg3[%c0_2, %c0_3] : memref<8x576xbf16, #tpu.memory_space<vmem>>, vector<8x576xbf16>
    %c0_4 = arith.constant 0 : index
    %c0_5 = arith.constant 0 : index
    %5 = vector.load %arg4[%c0_4, %c0_5] : memref<576x128xbf16, #tpu.memory_space<vmem>>, vector<576x128xbf16>
    %cst = arith.constant dense<0.000000e+00> : vector<8x128xf32>
    %6 = tpu.matmul %4, %5, %cst {dimension_numbers = #tpu.dot_dimension_numbers<[1], [0], [0], [1], [0, 0, 1, 1], [], []>} : vector<8x576xbf16>, vector<576x128xbf16>, vector<8x128xf32> -> vector<8x128xf32>
    %7 = arith.addf %3, %6 : vector<8x128xf32>
    %c0_6 = arith.constant 0 : index
    %c0_7 = arith.constant 0 : index
    %8 = vector.load %arg8[%c0_6, %c0_7] : memref<8x128xf32, #tpu.memory_space<vmem>>, vector<8x128xf32>
    tpu.vector_store %arg8[%c0_6, %c0_7], %7 {strides = array<i32>} : memref<8x128xf32, #tpu.memory_space<vmem>>, vector<8x128xf32>,
    %c0_i32_8 = arith.constant 0 : i32
    %9 = arith.cmpi eq, %arg2, %c0_i32_8 : i32
    %10 = arith.extui %9 : i1 to i32
    %c0_i32_9 = arith.constant 0 : i32
    %11 = arith.cmpi ne, %10, %c0_i32_9 : i32
    scf.if %11 {
      %c0_10 = arith.constant 0 : index
      %c0_11 = arith.constant 0 : index
      %12 = vector.load %arg8[%c0_10, %c0_11] : memref<8x128xf32, #tpu.memory_space<vmem>>, vector<8x128xf32>
      %c0_12 = arith.constant 0 : index
      %c0_13 = arith.constant 0 : index
      %13 = vector.load %arg5[%c0_12, %c0_13] : memref<1x128xf32, #tpu.memory_space<vmem>>, vector<1x128xf32>
      %14 = vector.broadcast %13 : vector<1x128xf32> to vector<8x128xf32>
      %15 = arith.mulf %12, %14 : vector<8x128xf32>
      %c0_14 = arith.constant 0 : index
      %c0_15 = arith.constant 0 : index
      %16 = vector.load %arg6[%c0_14, %c0_15] : memref<1x128xf32, #tpu.memory_space<vmem>>, vector<1x128xf32>
      %17 = vector.broadcast %16 : vector<1x128xf32> to vector<8x128xf32>
      %18 = arith.addf %15, %17 : vector<8x128xf32>
      %cst_16 = arith.constant 0.000000e+00 : f32
      %19 = vector.broadcast %cst_16 : f32 to vector<8x128xf32>
      %20 = arith.maximumf %18, %19 : vector<8x128xf32>
      %21 = arith.truncf %20 : vector<8x128xf32> to vector<8x128xbf16>
      %c0_17 = arith.constant 0 : index
      %c0_18 = arith.constant 0 : index
      %22 = vector.load %arg7[%c0_17, %c0_18] : memref<8x128xbf16, #tpu.memory_space<vmem>>, vector<8x128xbf16>
      tpu.vector_store %arg7[%c0_17, %c0_18], %21 {strides = array<i32>} : memref<8x128xbf16, #tpu.memory_space<vmem>>, vector<8x128xbf16>,
    } else {
    }
    return
  }
  func.func @transform_0(%arg0: i32, %arg1: i32, %arg2: i32) -> (i32, i32) {
    %c0_i32 = arith.constant 0 : i32
    return %arg0, %arg2 : i32, i32
  }
  func.func @transform_1(%arg0: i32, %arg1: i32, %arg2: i32) -> (i32, i32) {
    %c0_i32 = arith.constant 0 : i32
    return %arg2, %arg1 : i32, i32
  }
  func.func @transform_2(%arg0: i32, %arg1: i32, %arg2: i32) -> (i32, i32) {
    %c0_i32 = arith.constant 0 : i32
    %c0_i32_0 = arith.constant 0 : i32
    return %c0_i32, %arg1 : i32, i32
  }
  func.func @transform_3(%arg0: i32, %arg1: i32, %arg2: i32) -> (i32, i32) {
    %c0_i32 = arith.constant 0 : i32
    %c0_i32_0 = arith.constant 0 : i32
    return %c0_i32, %arg1 : i32, i32
  }
  func.func @transform_4(%arg0: i32, %arg1: i32, %arg2: i32) -> (i32, i32) {
    %c0_i32 = arith.constant 0 : i32
    return %arg0, %arg1 : i32, i32
  }
}

module attributes {stable_mosaic.version = 11 : i64} {
  func.func @_conv_mm_res_kernel(%arg0: i32, %arg1: i32, %arg2: i32, %arg3: memref<8x1152xbf16, #tpu.memory_space<vmem>>, %arg4: memref<1152x128xbf16, #tpu.memory_space<vmem>>, %arg5: memref<1x128xf32, #tpu.memory_space<vmem>>, %arg6: memref<1x128xf32, #tpu.memory_space<vmem>>, %arg7: memref<8x128xbf16, #tpu.memory_space<vmem>>, %arg8: memref<8x128xbf16, #tpu.memory_space<vmem>>, %arg9: memref<8x128xf32, #tpu.memory_space<vmem>>) attributes {dimension_semantics = [#tpu.dimension_semantics<parallel>, #tpu.dimension_semantics<parallel>, #tpu.dimension_semantics<arbitrary>], iteration_bounds = array<i64: 1, 1, 1>, scalar_prefetch = 0 : i64, scratch_operands = 1 : i64, tpu.core_type = #tpu.core_type<tc>, window_params = [{transform_indices = @transform_0, window_bounds = array<i64: 8, 1152>}, {transform_indices = @transform_1, window_bounds = array<i64: 1152, 128>}, {transform_indices = @transform_2, window_bounds = array<i64: 1, 128>}, {transform_indices = @transform_3, window_bounds = array<i64: 1, 128>}, {transform_indices = @transform_4, window_bounds = array<i64: 8, 128>}, {transform_indices = @transform_5, window_bounds = array<i64: 8, 128>}]} {
    %c0_i32 = arith.constant 0 : i32
    %0 = arith.cmpi eq, %arg2, %c0_i32 : i32
    %1 = arith.extui %0 : i1 to i32
    %c0_i32_0 = arith.constant 0 : i32
    %2 = arith.cmpi ne, %1, %c0_i32_0 : i32
    scf.if %2 {
      %cst_10 = arith.constant 0.000000e+00 : f32
      %12 = vector.broadcast %cst_10 : f32 to vector<8x128xf32>
      %c0_11 = arith.constant 0 : index
      %c0_12 = arith.constant 0 : index
      %13 = vector.load %arg9[%c0_11, %c0_12] : memref<8x128xf32, #tpu.memory_space<vmem>>, vector<8x128xf32>
      tpu.vector_store %arg9[%c0_11, %c0_12], %12 {strides = array<i32>} : memref<8x128xf32, #tpu.memory_space<vmem>>, vector<8x128xf32>,
    } else {
    }
    %c0 = arith.constant 0 : index
    %c0_1 = arith.constant 0 : index
    %3 = vector.load %arg9[%c0, %c0_1] : memref<8x128xf32, #tpu.memory_space<vmem>>, vector<8x128xf32>
    %c0_2 = arith.constant 0 : index
    %c0_3 = arith.constant 0 : index
    %4 = vector.load %arg3[%c0_2, %c0_3] : memref<8x1152xbf16, #tpu.memory_space<vmem>>, vector<8x1152xbf16>
    %c0_4 = arith.constant 0 : index
    %c0_5 = arith.constant 0 : index
    %5 = vector.load %arg4[%c0_4, %c0_5] : memref<1152x128xbf16, #tpu.memory_space<vmem>>, vector<1152x128xbf16>
    %cst = arith.constant dense<0.000000e+00> : vector<8x128xf32>
    %6 = tpu.matmul %4, %5, %cst {dimension_numbers = #tpu.dot_dimension_numbers<[1], [0], [0], [1], [0, 0, 1, 1], [], []>} : vector<8x1152xbf16>, vector<1152x128xbf16>, vector<8x128xf32> -> vector<8x128xf32>
    %7 = arith.addf %3, %6 : vector<8x128xf32>
    %c0_6 = arith.constant 0 : index
    %c0_7 = arith.constant 0 : index
    %8 = vector.load %arg9[%c0_6, %c0_7] : memref<8x128xf32, #tpu.memory_space<vmem>>, vector<8x128xf32>
    tpu.vector_store %arg9[%c0_6, %c0_7], %7 {strides = array<i32>} : memref<8x128xf32, #tpu.memory_space<vmem>>, vector<8x128xf32>,
    %c0_i32_8 = arith.constant 0 : i32
    %9 = arith.cmpi eq, %arg2, %c0_i32_8 : i32
    %10 = arith.extui %9 : i1 to i32
    %c0_i32_9 = arith.constant 0 : i32
    %11 = arith.cmpi ne, %10, %c0_i32_9 : i32
    scf.if %11 {
      %c0_10 = arith.constant 0 : index
      %c0_11 = arith.constant 0 : index
      %12 = vector.load %arg9[%c0_10, %c0_11] : memref<8x128xf32, #tpu.memory_space<vmem>>, vector<8x128xf32>
      %c0_12 = arith.constant 0 : index
      %c0_13 = arith.constant 0 : index
      %13 = vector.load %arg5[%c0_12, %c0_13] : memref<1x128xf32, #tpu.memory_space<vmem>>, vector<1x128xf32>
      %14 = vector.broadcast %13 : vector<1x128xf32> to vector<8x128xf32>
      %15 = arith.mulf %12, %14 : vector<8x128xf32>
      %c0_14 = arith.constant 0 : index
      %c0_15 = arith.constant 0 : index
      %16 = vector.load %arg6[%c0_14, %c0_15] : memref<1x128xf32, #tpu.memory_space<vmem>>, vector<1x128xf32>
      %17 = vector.broadcast %16 : vector<1x128xf32> to vector<8x128xf32>
      %18 = arith.addf %15, %17 : vector<8x128xf32>
      %c0_16 = arith.constant 0 : index
      %c0_17 = arith.constant 0 : index
      %19 = vector.load %arg7[%c0_16, %c0_17] : memref<8x128xbf16, #tpu.memory_space<vmem>>, vector<8x128xbf16>
      %20 = arith.extf %19 : vector<8x128xbf16> to vector<8x128xf32>
      %21 = arith.addf %18, %20 : vector<8x128xf32>
      %cst_18 = arith.constant 0.000000e+00 : f32
      %22 = vector.broadcast %cst_18 : f32 to vector<8x128xf32>
      %23 = arith.maximumf %21, %22 : vector<8x128xf32>
      %24 = arith.truncf %23 : vector<8x128xf32> to vector<8x128xbf16>
      %c0_19 = arith.constant 0 : index
      %c0_20 = arith.constant 0 : index
      %25 = vector.load %arg8[%c0_19, %c0_20] : memref<8x128xbf16, #tpu.memory_space<vmem>>, vector<8x128xbf16>
      tpu.vector_store %arg8[%c0_19, %c0_20], %24 {strides = array<i32>} : memref<8x128xbf16, #tpu.memory_space<vmem>>, vector<8x128xbf16>,
    } else {
    }
    return
  }
  func.func @transform_0(%arg0: i32, %arg1: i32, %arg2: i32) -> (i32, i32) {
    %c0_i32 = arith.constant 0 : i32
    return %arg0, %arg2 : i32, i32
  }
  func.func @transform_1(%arg0: i32, %arg1: i32, %arg2: i32) -> (i32, i32) {
    %c0_i32 = arith.constant 0 : i32
    return %arg2, %arg1 : i32, i32
  }
  func.func @transform_2(%arg0: i32, %arg1: i32, %arg2: i32) -> (i32, i32) {
    %c0_i32 = arith.constant 0 : i32
    %c0_i32_0 = arith.constant 0 : i32
    return %c0_i32, %arg1 : i32, i32
  }
  func.func @transform_3(%arg0: i32, %arg1: i32, %arg2: i32) -> (i32, i32) {
    %c0_i32 = arith.constant 0 : i32
    %c0_i32_0 = arith.constant 0 : i32
    return %c0_i32, %arg1 : i32, i32
  }
  func.func @transform_4(%arg0: i32, %arg1: i32, %arg2: i32) -> (i32, i32) {
    %c0_i32 = arith.constant 0 : i32
    return %arg0, %arg1 : i32, i32
  }
  func.func @transform_5(%arg0: i32, %arg1: i32, %arg2: i32) -> (i32, i32) {
    %c0_i32 = arith.constant 0 : i32
    return %arg0, %arg1 : i32, i32
  }
}

module attributes {stable_mosaic.version = 11 : i64} {
  func.func @_conv_mm_kernel(%arg0: i32, %arg1: i32, %arg2: i32, %arg3: memref<8x128xbf16, #tpu.memory_space<vmem>>, %arg4: memref<128x256xbf16, #tpu.memory_space<vmem>>, %arg5: memref<1x256xf32, #tpu.memory_space<vmem>>, %arg6: memref<1x256xf32, #tpu.memory_space<vmem>>, %arg7: memref<8x256xbf16, #tpu.memory_space<vmem>>, %arg8: memref<8x256xf32, #tpu.memory_space<vmem>>) attributes {dimension_semantics = [#tpu.dimension_semantics<parallel>, #tpu.dimension_semantics<parallel>, #tpu.dimension_semantics<arbitrary>], iteration_bounds = array<i64: 1, 1, 1>, scalar_prefetch = 0 : i64, scratch_operands = 1 : i64, tpu.core_type = #tpu.core_type<tc>, window_params = [{transform_indices = @transform_0, window_bounds = array<i64: 8, 128>}, {transform_indices = @transform_1, window_bounds = array<i64: 128, 256>}, {transform_indices = @transform_2, window_bounds = array<i64: 1, 256>}, {transform_indices = @transform_3, window_bounds = array<i64: 1, 256>}, {transform_indices = @transform_4, window_bounds = array<i64: 8, 256>}]} {
    %c0_i32 = arith.constant 0 : i32
    %0 = arith.cmpi eq, %arg2, %c0_i32 : i32
    %1 = arith.extui %0 : i1 to i32
    %c0_i32_0 = arith.constant 0 : i32
    %2 = arith.cmpi ne, %1, %c0_i32_0 : i32
    scf.if %2 {
      %cst_10 = arith.constant 0.000000e+00 : f32
      %12 = vector.broadcast %cst_10 : f32 to vector<8x256xf32>
      %c0_11 = arith.constant 0 : index
      %c0_12 = arith.constant 0 : index
      %13 = vector.load %arg8[%c0_11, %c0_12] : memref<8x256xf32, #tpu.memory_space<vmem>>, vector<8x256xf32>
      tpu.vector_store %arg8[%c0_11, %c0_12], %12 {strides = array<i32>} : memref<8x256xf32, #tpu.memory_space<vmem>>, vector<8x256xf32>,
    } else {
    }
    %c0 = arith.constant 0 : index
    %c0_1 = arith.constant 0 : index
    %3 = vector.load %arg8[%c0, %c0_1] : memref<8x256xf32, #tpu.memory_space<vmem>>, vector<8x256xf32>
    %c0_2 = arith.constant 0 : index
    %c0_3 = arith.constant 0 : index
    %4 = vector.load %arg3[%c0_2, %c0_3] : memref<8x128xbf16, #tpu.memory_space<vmem>>, vector<8x128xbf16>
    %c0_4 = arith.constant 0 : index
    %c0_5 = arith.constant 0 : index
    %5 = vector.load %arg4[%c0_4, %c0_5] : memref<128x256xbf16, #tpu.memory_space<vmem>>, vector<128x256xbf16>
    %cst = arith.constant dense<0.000000e+00> : vector<8x256xf32>
    %6 = tpu.matmul %4, %5, %cst {dimension_numbers = #tpu.dot_dimension_numbers<[1], [0], [0], [1], [0, 0, 1, 1], [], []>} : vector<8x128xbf16>, vector<128x256xbf16>, vector<8x256xf32> -> vector<8x256xf32>
    %7 = arith.addf %3, %6 : vector<8x256xf32>
    %c0_6 = arith.constant 0 : index
    %c0_7 = arith.constant 0 : index
    %8 = vector.load %arg8[%c0_6, %c0_7] : memref<8x256xf32, #tpu.memory_space<vmem>>, vector<8x256xf32>
    tpu.vector_store %arg8[%c0_6, %c0_7], %7 {strides = array<i32>} : memref<8x256xf32, #tpu.memory_space<vmem>>, vector<8x256xf32>,
    %c0_i32_8 = arith.constant 0 : i32
    %9 = arith.cmpi eq, %arg2, %c0_i32_8 : i32
    %10 = arith.extui %9 : i1 to i32
    %c0_i32_9 = arith.constant 0 : i32
    %11 = arith.cmpi ne, %10, %c0_i32_9 : i32
    scf.if %11 {
      %c0_10 = arith.constant 0 : index
      %c0_11 = arith.constant 0 : index
      %12 = vector.load %arg8[%c0_10, %c0_11] : memref<8x256xf32, #tpu.memory_space<vmem>>, vector<8x256xf32>
      %c0_12 = arith.constant 0 : index
      %c0_13 = arith.constant 0 : index
      %13 = vector.load %arg5[%c0_12, %c0_13] : memref<1x256xf32, #tpu.memory_space<vmem>>, vector<1x256xf32>
      %14 = vector.broadcast %13 : vector<1x256xf32> to vector<8x256xf32>
      %15 = arith.mulf %12, %14 : vector<8x256xf32>
      %c0_14 = arith.constant 0 : index
      %c0_15 = arith.constant 0 : index
      %16 = vector.load %arg6[%c0_14, %c0_15] : memref<1x256xf32, #tpu.memory_space<vmem>>, vector<1x256xf32>
      %17 = vector.broadcast %16 : vector<1x256xf32> to vector<8x256xf32>
      %18 = arith.addf %15, %17 : vector<8x256xf32>
      %19 = arith.truncf %18 : vector<8x256xf32> to vector<8x256xbf16>
      %c0_16 = arith.constant 0 : index
      %c0_17 = arith.constant 0 : index
      %20 = vector.load %arg7[%c0_16, %c0_17] : memref<8x256xbf16, #tpu.memory_space<vmem>>, vector<8x256xbf16>
      tpu.vector_store %arg7[%c0_16, %c0_17], %19 {strides = array<i32>} : memref<8x256xbf16, #tpu.memory_space<vmem>>, vector<8x256xbf16>,
    } else {
    }
    return
  }
  func.func @transform_0(%arg0: i32, %arg1: i32, %arg2: i32) -> (i32, i32) {
    %c0_i32 = arith.constant 0 : i32
    return %arg0, %arg2 : i32, i32
  }
  func.func @transform_1(%arg0: i32, %arg1: i32, %arg2: i32) -> (i32, i32) {
    %c0_i32 = arith.constant 0 : i32
    return %arg2, %arg1 : i32, i32
  }
  func.func @transform_2(%arg0: i32, %arg1: i32, %arg2: i32) -> (i32, i32) {
    %c0_i32 = arith.constant 0 : i32
    %c0_i32_0 = arith.constant 0 : i32
    return %c0_i32, %arg1 : i32, i32
  }
  func.func @transform_3(%arg0: i32, %arg1: i32, %arg2: i32) -> (i32, i32) {
    %c0_i32 = arith.constant 0 : i32
    %c0_i32_0 = arith.constant 0 : i32
    return %c0_i32, %arg1 : i32, i32
  }
  func.func @transform_4(%arg0: i32, %arg1: i32, %arg2: i32) -> (i32, i32) {
    %c0_i32 = arith.constant 0 : i32
    return %arg0, %arg1 : i32, i32
  }
}

module attributes {stable_mosaic.version = 11 : i64} {
  func.func @_conv_mm_kernel(%arg0: i32, %arg1: i32, %arg2: i32, %arg3: memref<8x1152xbf16, #tpu.memory_space<vmem>>, %arg4: memref<1152x256xbf16, #tpu.memory_space<vmem>>, %arg5: memref<1x256xf32, #tpu.memory_space<vmem>>, %arg6: memref<1x256xf32, #tpu.memory_space<vmem>>, %arg7: memref<8x256xbf16, #tpu.memory_space<vmem>>, %arg8: memref<8x256xf32, #tpu.memory_space<vmem>>) attributes {dimension_semantics = [#tpu.dimension_semantics<parallel>, #tpu.dimension_semantics<parallel>, #tpu.dimension_semantics<arbitrary>], iteration_bounds = array<i64: 1, 1, 1>, scalar_prefetch = 0 : i64, scratch_operands = 1 : i64, tpu.core_type = #tpu.core_type<tc>, window_params = [{transform_indices = @transform_0, window_bounds = array<i64: 8, 1152>}, {transform_indices = @transform_1, window_bounds = array<i64: 1152, 256>}, {transform_indices = @transform_2, window_bounds = array<i64: 1, 256>}, {transform_indices = @transform_3, window_bounds = array<i64: 1, 256>}, {transform_indices = @transform_4, window_bounds = array<i64: 8, 256>}]} {
    %c0_i32 = arith.constant 0 : i32
    %0 = arith.cmpi eq, %arg2, %c0_i32 : i32
    %1 = arith.extui %0 : i1 to i32
    %c0_i32_0 = arith.constant 0 : i32
    %2 = arith.cmpi ne, %1, %c0_i32_0 : i32
    scf.if %2 {
      %cst_10 = arith.constant 0.000000e+00 : f32
      %12 = vector.broadcast %cst_10 : f32 to vector<8x256xf32>
      %c0_11 = arith.constant 0 : index
      %c0_12 = arith.constant 0 : index
      %13 = vector.load %arg8[%c0_11, %c0_12] : memref<8x256xf32, #tpu.memory_space<vmem>>, vector<8x256xf32>
      tpu.vector_store %arg8[%c0_11, %c0_12], %12 {strides = array<i32>} : memref<8x256xf32, #tpu.memory_space<vmem>>, vector<8x256xf32>,
    } else {
    }
    %c0 = arith.constant 0 : index
    %c0_1 = arith.constant 0 : index
    %3 = vector.load %arg8[%c0, %c0_1] : memref<8x256xf32, #tpu.memory_space<vmem>>, vector<8x256xf32>
    %c0_2 = arith.constant 0 : index
    %c0_3 = arith.constant 0 : index
    %4 = vector.load %arg3[%c0_2, %c0_3] : memref<8x1152xbf16, #tpu.memory_space<vmem>>, vector<8x1152xbf16>
    %c0_4 = arith.constant 0 : index
    %c0_5 = arith.constant 0 : index
    %5 = vector.load %arg4[%c0_4, %c0_5] : memref<1152x256xbf16, #tpu.memory_space<vmem>>, vector<1152x256xbf16>
    %cst = arith.constant dense<0.000000e+00> : vector<8x256xf32>
    %6 = tpu.matmul %4, %5, %cst {dimension_numbers = #tpu.dot_dimension_numbers<[1], [0], [0], [1], [0, 0, 1, 1], [], []>} : vector<8x1152xbf16>, vector<1152x256xbf16>, vector<8x256xf32> -> vector<8x256xf32>
    %7 = arith.addf %3, %6 : vector<8x256xf32>
    %c0_6 = arith.constant 0 : index
    %c0_7 = arith.constant 0 : index
    %8 = vector.load %arg8[%c0_6, %c0_7] : memref<8x256xf32, #tpu.memory_space<vmem>>, vector<8x256xf32>
    tpu.vector_store %arg8[%c0_6, %c0_7], %7 {strides = array<i32>} : memref<8x256xf32, #tpu.memory_space<vmem>>, vector<8x256xf32>,
    %c0_i32_8 = arith.constant 0 : i32
    %9 = arith.cmpi eq, %arg2, %c0_i32_8 : i32
    %10 = arith.extui %9 : i1 to i32
    %c0_i32_9 = arith.constant 0 : i32
    %11 = arith.cmpi ne, %10, %c0_i32_9 : i32
    scf.if %11 {
      %c0_10 = arith.constant 0 : index
      %c0_11 = arith.constant 0 : index
      %12 = vector.load %arg8[%c0_10, %c0_11] : memref<8x256xf32, #tpu.memory_space<vmem>>, vector<8x256xf32>
      %c0_12 = arith.constant 0 : index
      %c0_13 = arith.constant 0 : index
      %13 = vector.load %arg5[%c0_12, %c0_13] : memref<1x256xf32, #tpu.memory_space<vmem>>, vector<1x256xf32>
      %14 = vector.broadcast %13 : vector<1x256xf32> to vector<8x256xf32>
      %15 = arith.mulf %12, %14 : vector<8x256xf32>
      %c0_14 = arith.constant 0 : index
      %c0_15 = arith.constant 0 : index
      %16 = vector.load %arg6[%c0_14, %c0_15] : memref<1x256xf32, #tpu.memory_space<vmem>>, vector<1x256xf32>
      %17 = vector.broadcast %16 : vector<1x256xf32> to vector<8x256xf32>
      %18 = arith.addf %15, %17 : vector<8x256xf32>
      %cst_16 = arith.constant 0.000000e+00 : f32
      %19 = vector.broadcast %cst_16 : f32 to vector<8x256xf32>
      %20 = arith.maximumf %18, %19 : vector<8x256xf32>
      %21 = arith.truncf %20 : vector<8x256xf32> to vector<8x256xbf16>
      %c0_17 = arith.constant 0 : index
      %c0_18 = arith.constant 0 : index
      %22 = vector.load %arg7[%c0_17, %c0_18] : memref<8x256xbf16, #tpu.memory_space<vmem>>, vector<8x256xbf16>
      tpu.vector_store %arg7[%c0_17, %c0_18], %21 {strides = array<i32>} : memref<8x256xbf16, #tpu.memory_space<vmem>>, vector<8x256xbf16>,
    } else {
    }
    return
  }
  func.func @transform_0(%arg0: i32, %arg1: i32, %arg2: i32) -> (i32, i32) {
    %c0_i32 = arith.constant 0 : i32
    return %arg0, %arg2 : i32, i32
  }
  func.func @transform_1(%arg0: i32, %arg1: i32, %arg2: i32) -> (i32, i32) {
    %c0_i32 = arith.constant 0 : i32
    return %arg2, %arg1 : i32, i32
  }
  func.func @transform_2(%arg0: i32, %arg1: i32, %arg2: i32) -> (i32, i32) {
    %c0_i32 = arith.constant 0 : i32
    %c0_i32_0 = arith.constant 0 : i32
    return %c0_i32, %arg1 : i32, i32
  }
  func.func @transform_3(%arg0: i32, %arg1: i32, %arg2: i32) -> (i32, i32) {
    %c0_i32 = arith.constant 0 : i32
    %c0_i32_0 = arith.constant 0 : i32
    return %c0_i32, %arg1 : i32, i32
  }
  func.func @transform_4(%arg0: i32, %arg1: i32, %arg2: i32) -> (i32, i32) {
    %c0_i32 = arith.constant 0 : i32
    return %arg0, %arg1 : i32, i32
  }
}

module attributes {stable_mosaic.version = 11 : i64} {
  func.func @_conv_mm_res_kernel(%arg0: i32, %arg1: i32, %arg2: i32, %arg3: memref<8x384xbf16, #tpu.memory_space<vmem>>, %arg4: memref<384x256xbf16, #tpu.memory_space<vmem>>, %arg5: memref<1x256xf32, #tpu.memory_space<vmem>>, %arg6: memref<1x256xf32, #tpu.memory_space<vmem>>, %arg7: memref<8x256xbf16, #tpu.memory_space<vmem>>, %arg8: memref<8x256xbf16, #tpu.memory_space<vmem>>, %arg9: memref<8x256xf32, #tpu.memory_space<vmem>>) attributes {dimension_semantics = [#tpu.dimension_semantics<parallel>, #tpu.dimension_semantics<parallel>, #tpu.dimension_semantics<arbitrary>], iteration_bounds = array<i64: 1, 1, 6>, scalar_prefetch = 0 : i64, scratch_operands = 1 : i64, tpu.core_type = #tpu.core_type<tc>, window_params = [{transform_indices = @transform_0, window_bounds = array<i64: 8, 384>}, {transform_indices = @transform_1, window_bounds = array<i64: 384, 256>}, {transform_indices = @transform_2, window_bounds = array<i64: 1, 256>}, {transform_indices = @transform_3, window_bounds = array<i64: 1, 256>}, {transform_indices = @transform_4, window_bounds = array<i64: 8, 256>}, {transform_indices = @transform_5, window_bounds = array<i64: 8, 256>}]} {
    %c0_i32 = arith.constant 0 : i32
    %0 = arith.cmpi eq, %arg2, %c0_i32 : i32
    %1 = arith.extui %0 : i1 to i32
    %c0_i32_0 = arith.constant 0 : i32
    %2 = arith.cmpi ne, %1, %c0_i32_0 : i32
    scf.if %2 {
      %cst_9 = arith.constant 0.000000e+00 : f32
      %12 = vector.broadcast %cst_9 : f32 to vector<8x256xf32>
      %c0_10 = arith.constant 0 : index
      %c0_11 = arith.constant 0 : index
      %13 = vector.load %arg9[%c0_10, %c0_11] : memref<8x256xf32, #tpu.memory_space<vmem>>, vector<8x256xf32>
      tpu.vector_store %arg9[%c0_10, %c0_11], %12 {strides = array<i32>} : memref<8x256xf32, #tpu.memory_space<vmem>>, vector<8x256xf32>,
    } else {
    }
    %c0 = arith.constant 0 : index
    %c0_1 = arith.constant 0 : index
    %3 = vector.load %arg9[%c0, %c0_1] : memref<8x256xf32, #tpu.memory_space<vmem>>, vector<8x256xf32>
    %c0_2 = arith.constant 0 : index
    %c0_3 = arith.constant 0 : index
    %4 = vector.load %arg3[%c0_2, %c0_3] : memref<8x384xbf16, #tpu.memory_space<vmem>>, vector<8x384xbf16>
    %c0_4 = arith.constant 0 : index
    %c0_5 = arith.constant 0 : index
    %5 = vector.load %arg4[%c0_4, %c0_5] : memref<384x256xbf16, #tpu.memory_space<vmem>>, vector<384x256xbf16>
    %cst = arith.constant dense<0.000000e+00> : vector<8x256xf32>
    %6 = tpu.matmul %4, %5, %cst {dimension_numbers = #tpu.dot_dimension_numbers<[1], [0], [0], [1], [0, 0, 1, 1], [], []>} : vector<8x384xbf16>, vector<384x256xbf16>, vector<8x256xf32> -> vector<8x256xf32>
    %7 = arith.addf %3, %6 : vector<8x256xf32>
    %c0_6 = arith.constant 0 : index
    %c0_7 = arith.constant 0 : index
    %8 = vector.load %arg9[%c0_6, %c0_7] : memref<8x256xf32, #tpu.memory_space<vmem>>, vector<8x256xf32>
    tpu.vector_store %arg9[%c0_6, %c0_7], %7 {strides = array<i32>} : memref<8x256xf32, #tpu.memory_space<vmem>>, vector<8x256xf32>,
    %c5_i32 = arith.constant 5 : i32
    %9 = arith.cmpi eq, %arg2, %c5_i32 : i32
    %10 = arith.extui %9 : i1 to i32
    %c0_i32_8 = arith.constant 0 : i32
    %11 = arith.cmpi ne, %10, %c0_i32_8 : i32
    scf.if %11 {
      %c0_9 = arith.constant 0 : index
      %c0_10 = arith.constant 0 : index
      %12 = vector.load %arg9[%c0_9, %c0_10] : memref<8x256xf32, #tpu.memory_space<vmem>>, vector<8x256xf32>
      %c0_11 = arith.constant 0 : index
      %c0_12 = arith.constant 0 : index
      %13 = vector.load %arg5[%c0_11, %c0_12] : memref<1x256xf32, #tpu.memory_space<vmem>>, vector<1x256xf32>
      %14 = vector.broadcast %13 : vector<1x256xf32> to vector<8x256xf32>
      %15 = arith.mulf %12, %14 : vector<8x256xf32>
      %c0_13 = arith.constant 0 : index
      %c0_14 = arith.constant 0 : index
      %16 = vector.load %arg6[%c0_13, %c0_14] : memref<1x256xf32, #tpu.memory_space<vmem>>, vector<1x256xf32>
      %17 = vector.broadcast %16 : vector<1x256xf32> to vector<8x256xf32>
      %18 = arith.addf %15, %17 : vector<8x256xf32>
      %c0_15 = arith.constant 0 : index
      %c0_16 = arith.constant 0 : index
      %19 = vector.load %arg7[%c0_15, %c0_16] : memref<8x256xbf16, #tpu.memory_space<vmem>>, vector<8x256xbf16>
      %20 = arith.extf %19 : vector<8x256xbf16> to vector<8x256xf32>
      %21 = arith.addf %18, %20 : vector<8x256xf32>
      %cst_17 = arith.constant 0.000000e+00 : f32
      %22 = vector.broadcast %cst_17 : f32 to vector<8x256xf32>
      %23 = arith.maximumf %21, %22 : vector<8x256xf32>
      %24 = arith.truncf %23 : vector<8x256xf32> to vector<8x256xbf16>
      %c0_18 = arith.constant 0 : index
      %c0_19 = arith.constant 0 : index
      %25 = vector.load %arg8[%c0_18, %c0_19] : memref<8x256xbf16, #tpu.memory_space<vmem>>, vector<8x256xbf16>
      tpu.vector_store %arg8[%c0_18, %c0_19], %24 {strides = array<i32>} : memref<8x256xbf16, #tpu.memory_space<vmem>>, vector<8x256xbf16>,
    } else {
    }
    return
  }
  func.func @transform_0(%arg0: i32, %arg1: i32, %arg2: i32) -> (i32, i32) {
    %c0_i32 = arith.constant 0 : i32
    return %arg0, %arg2 : i32, i32
  }
  func.func @transform_1(%arg0: i32, %arg1: i32, %arg2: i32) -> (i32, i32) {
    %c0_i32 = arith.constant 0 : i32
    return %arg2, %arg1 : i32, i32
  }
  func.func @transform_2(%arg0: i32, %arg1: i32, %arg2: i32) -> (i32, i32) {
    %c0_i32 = arith.constant 0 : i32
    %c0_i32_0 = arith.constant 0 : i32
    return %c0_i32, %arg1 : i32, i32
  }
  func.func @transform_3(%arg0: i32, %arg1: i32, %arg2: i32) -> (i32, i32) {
    %c0_i32 = arith.constant 0 : i32
    %c0_i32_0 = arith.constant 0 : i32
    return %c0_i32, %arg1 : i32, i32
  }
  func.func @transform_4(%arg0: i32, %arg1: i32, %arg2: i32) -> (i32, i32) {
    %c0_i32 = arith.constant 0 : i32
    return %arg0, %arg1 : i32, i32
  }
  func.func @transform_5(%arg0: i32, %arg1: i32, %arg2: i32) -> (i32, i32) {
    %c0_i32 = arith.constant 0 : i32
    return %arg0, %arg1 : i32, i32
  }
}

module attributes {stable_mosaic.version = 11 : i64} {
  func.func @_conv_mm_kernel(%arg0: i32, %arg1: i32, %arg2: i32, %arg3: memref<8x256xbf16, #tpu.memory_space<vmem>>, %arg4: memref<256x256xbf16, #tpu.memory_space<vmem>>, %arg5: memref<1x256xf32, #tpu.memory_space<vmem>>, %arg6: memref<1x256xf32, #tpu.memory_space<vmem>>, %arg7: memref<8x256xbf16, #tpu.memory_space<vmem>>, %arg8: memref<8x256xf32, #tpu.memory_space<vmem>>) attributes {dimension_semantics = [#tpu.dimension_semantics<parallel>, #tpu.dimension_semantics<parallel>, #tpu.dimension_semantics<arbitrary>], iteration_bounds = array<i64: 1, 2, 1>, scalar_prefetch = 0 : i64, scratch_operands = 1 : i64, tpu.core_type = #tpu.core_type<tc>, window_params = [{transform_indices = @transform_0, window_bounds = array<i64: 8, 256>}, {transform_indices = @transform_1, window_bounds = array<i64: 256, 256>}, {transform_indices = @transform_2, window_bounds = array<i64: 1, 256>}, {transform_indices = @transform_3, window_bounds = array<i64: 1, 256>}, {transform_indices = @transform_4, window_bounds = array<i64: 8, 256>}]} {
    %c0_i32 = arith.constant 0 : i32
    %0 = arith.cmpi eq, %arg2, %c0_i32 : i32
    %1 = arith.extui %0 : i1 to i32
    %c0_i32_0 = arith.constant 0 : i32
    %2 = arith.cmpi ne, %1, %c0_i32_0 : i32
    scf.if %2 {
      %cst_10 = arith.constant 0.000000e+00 : f32
      %12 = vector.broadcast %cst_10 : f32 to vector<8x256xf32>
      %c0_11 = arith.constant 0 : index
      %c0_12 = arith.constant 0 : index
      %13 = vector.load %arg8[%c0_11, %c0_12] : memref<8x256xf32, #tpu.memory_space<vmem>>, vector<8x256xf32>
      tpu.vector_store %arg8[%c0_11, %c0_12], %12 {strides = array<i32>} : memref<8x256xf32, #tpu.memory_space<vmem>>, vector<8x256xf32>,
    } else {
    }
    %c0 = arith.constant 0 : index
    %c0_1 = arith.constant 0 : index
    %3 = vector.load %arg8[%c0, %c0_1] : memref<8x256xf32, #tpu.memory_space<vmem>>, vector<8x256xf32>
    %c0_2 = arith.constant 0 : index
    %c0_3 = arith.constant 0 : index
    %4 = vector.load %arg3[%c0_2, %c0_3] : memref<8x256xbf16, #tpu.memory_space<vmem>>, vector<8x256xbf16>
    %c0_4 = arith.constant 0 : index
    %c0_5 = arith.constant 0 : index
    %5 = vector.load %arg4[%c0_4, %c0_5] : memref<256x256xbf16, #tpu.memory_space<vmem>>, vector<256x256xbf16>
    %cst = arith.constant dense<0.000000e+00> : vector<8x256xf32>
    %6 = tpu.matmul %4, %5, %cst {dimension_numbers = #tpu.dot_dimension_numbers<[1], [0], [0], [1], [0, 0, 1, 1], [], []>} : vector<8x256xbf16>, vector<256x256xbf16>, vector<8x256xf32> -> vector<8x256xf32>
    %7 = arith.addf %3, %6 : vector<8x256xf32>
    %c0_6 = arith.constant 0 : index
    %c0_7 = arith.constant 0 : index
    %8 = vector.load %arg8[%c0_6, %c0_7] : memref<8x256xf32, #tpu.memory_space<vmem>>, vector<8x256xf32>
    tpu.vector_store %arg8[%c0_6, %c0_7], %7 {strides = array<i32>} : memref<8x256xf32, #tpu.memory_space<vmem>>, vector<8x256xf32>,
    %c0_i32_8 = arith.constant 0 : i32
    %9 = arith.cmpi eq, %arg2, %c0_i32_8 : i32
    %10 = arith.extui %9 : i1 to i32
    %c0_i32_9 = arith.constant 0 : i32
    %11 = arith.cmpi ne, %10, %c0_i32_9 : i32
    scf.if %11 {
      %c0_10 = arith.constant 0 : index
      %c0_11 = arith.constant 0 : index
      %12 = vector.load %arg8[%c0_10, %c0_11] : memref<8x256xf32, #tpu.memory_space<vmem>>, vector<8x256xf32>
      %c0_12 = arith.constant 0 : index
      %c0_13 = arith.constant 0 : index
      %13 = vector.load %arg5[%c0_12, %c0_13] : memref<1x256xf32, #tpu.memory_space<vmem>>, vector<1x256xf32>
      %14 = vector.broadcast %13 : vector<1x256xf32> to vector<8x256xf32>
      %15 = arith.mulf %12, %14 : vector<8x256xf32>
      %c0_14 = arith.constant 0 : index
      %c0_15 = arith.constant 0 : index
      %16 = vector.load %arg6[%c0_14, %c0_15] : memref<1x256xf32, #tpu.memory_space<vmem>>, vector<1x256xf32>
      %17 = vector.broadcast %16 : vector<1x256xf32> to vector<8x256xf32>
      %18 = arith.addf %15, %17 : vector<8x256xf32>
      %19 = arith.truncf %18 : vector<8x256xf32> to vector<8x256xbf16>
      %c0_16 = arith.constant 0 : index
      %c0_17 = arith.constant 0 : index
      %20 = vector.load %arg7[%c0_16, %c0_17] : memref<8x256xbf16, #tpu.memory_space<vmem>>, vector<8x256xbf16>
      tpu.vector_store %arg7[%c0_16, %c0_17], %19 {strides = array<i32>} : memref<8x256xbf16, #tpu.memory_space<vmem>>, vector<8x256xbf16>,
    } else {
    }
    return
  }
  func.func @transform_0(%arg0: i32, %arg1: i32, %arg2: i32) -> (i32, i32) {
    %c0_i32 = arith.constant 0 : i32
    return %arg0, %arg2 : i32, i32
  }
  func.func @transform_1(%arg0: i32, %arg1: i32, %arg2: i32) -> (i32, i32) {
    %c0_i32 = arith.constant 0 : i32
    return %arg2, %arg1 : i32, i32
  }
  func.func @transform_2(%arg0: i32, %arg1: i32, %arg2: i32) -> (i32, i32) {
    %c0_i32 = arith.constant 0 : i32
    %c0_i32_0 = arith.constant 0 : i32
    return %c0_i32, %arg1 : i32, i32
  }
  func.func @transform_3(%arg0: i32, %arg1: i32, %arg2: i32) -> (i32, i32) {
    %c0_i32 = arith.constant 0 : i32
    %c0_i32_0 = arith.constant 0 : i32
    return %c0_i32, %arg1 : i32, i32
  }
  func.func @transform_4(%arg0: i32, %arg1: i32, %arg2: i32) -> (i32, i32) {
    %c0_i32 = arith.constant 0 : i32
    return %arg0, %arg1 : i32, i32
  }
}

module attributes {stable_mosaic.version = 11 : i64} {
  func.func @_conv_mm_kernel(%arg0: i32, %arg1: i32, %arg2: i32, %arg3: memref<8x384xbf16, #tpu.memory_space<vmem>>, %arg4: memref<384x256xbf16, #tpu.memory_space<vmem>>, %arg5: memref<1x256xf32, #tpu.memory_space<vmem>>, %arg6: memref<1x256xf32, #tpu.memory_space<vmem>>, %arg7: memref<8x256xbf16, #tpu.memory_space<vmem>>, %arg8: memref<8x256xf32, #tpu.memory_space<vmem>>) attributes {dimension_semantics = [#tpu.dimension_semantics<parallel>, #tpu.dimension_semantics<parallel>, #tpu.dimension_semantics<arbitrary>], iteration_bounds = array<i64: 1, 2, 6>, scalar_prefetch = 0 : i64, scratch_operands = 1 : i64, tpu.core_type = #tpu.core_type<tc>, window_params = [{transform_indices = @transform_0, window_bounds = array<i64: 8, 384>}, {transform_indices = @transform_1, window_bounds = array<i64: 384, 256>}, {transform_indices = @transform_2, window_bounds = array<i64: 1, 256>}, {transform_indices = @transform_3, window_bounds = array<i64: 1, 256>}, {transform_indices = @transform_4, window_bounds = array<i64: 8, 256>}]} {
    %c0_i32 = arith.constant 0 : i32
    %0 = arith.cmpi eq, %arg2, %c0_i32 : i32
    %1 = arith.extui %0 : i1 to i32
    %c0_i32_0 = arith.constant 0 : i32
    %2 = arith.cmpi ne, %1, %c0_i32_0 : i32
    scf.if %2 {
      %cst_9 = arith.constant 0.000000e+00 : f32
      %12 = vector.broadcast %cst_9 : f32 to vector<8x256xf32>
      %c0_10 = arith.constant 0 : index
      %c0_11 = arith.constant 0 : index
      %13 = vector.load %arg8[%c0_10, %c0_11] : memref<8x256xf32, #tpu.memory_space<vmem>>, vector<8x256xf32>
      tpu.vector_store %arg8[%c0_10, %c0_11], %12 {strides = array<i32>} : memref<8x256xf32, #tpu.memory_space<vmem>>, vector<8x256xf32>,
    } else {
    }
    %c0 = arith.constant 0 : index
    %c0_1 = arith.constant 0 : index
    %3 = vector.load %arg8[%c0, %c0_1] : memref<8x256xf32, #tpu.memory_space<vmem>>, vector<8x256xf32>
    %c0_2 = arith.constant 0 : index
    %c0_3 = arith.constant 0 : index
    %4 = vector.load %arg3[%c0_2, %c0_3] : memref<8x384xbf16, #tpu.memory_space<vmem>>, vector<8x384xbf16>
    %c0_4 = arith.constant 0 : index
    %c0_5 = arith.constant 0 : index
    %5 = vector.load %arg4[%c0_4, %c0_5] : memref<384x256xbf16, #tpu.memory_space<vmem>>, vector<384x256xbf16>
    %cst = arith.constant dense<0.000000e+00> : vector<8x256xf32>
    %6 = tpu.matmul %4, %5, %cst {dimension_numbers = #tpu.dot_dimension_numbers<[1], [0], [0], [1], [0, 0, 1, 1], [], []>} : vector<8x384xbf16>, vector<384x256xbf16>, vector<8x256xf32> -> vector<8x256xf32>
    %7 = arith.addf %3, %6 : vector<8x256xf32>
    %c0_6 = arith.constant 0 : index
    %c0_7 = arith.constant 0 : index
    %8 = vector.load %arg8[%c0_6, %c0_7] : memref<8x256xf32, #tpu.memory_space<vmem>>, vector<8x256xf32>
    tpu.vector_store %arg8[%c0_6, %c0_7], %7 {strides = array<i32>} : memref<8x256xf32, #tpu.memory_space<vmem>>, vector<8x256xf32>,
    %c5_i32 = arith.constant 5 : i32
    %9 = arith.cmpi eq, %arg2, %c5_i32 : i32
    %10 = arith.extui %9 : i1 to i32
    %c0_i32_8 = arith.constant 0 : i32
    %11 = arith.cmpi ne, %10, %c0_i32_8 : i32
    scf.if %11 {
      %c0_9 = arith.constant 0 : index
      %c0_10 = arith.constant 0 : index
      %12 = vector.load %arg8[%c0_9, %c0_10] : memref<8x256xf32, #tpu.memory_space<vmem>>, vector<8x256xf32>
      %c0_11 = arith.constant 0 : index
      %c0_12 = arith.constant 0 : index
      %13 = vector.load %arg5[%c0_11, %c0_12] : memref<1x256xf32, #tpu.memory_space<vmem>>, vector<1x256xf32>
      %14 = vector.broadcast %13 : vector<1x256xf32> to vector<8x256xf32>
      %15 = arith.mulf %12, %14 : vector<8x256xf32>
      %c0_13 = arith.constant 0 : index
      %c0_14 = arith.constant 0 : index
      %16 = vector.load %arg6[%c0_13, %c0_14] : memref<1x256xf32, #tpu.memory_space<vmem>>, vector<1x256xf32>
      %17 = vector.broadcast %16 : vector<1x256xf32> to vector<8x256xf32>
      %18 = arith.addf %15, %17 : vector<8x256xf32>
      %cst_15 = arith.constant 0.000000e+00 : f32
      %19 = vector.broadcast %cst_15 : f32 to vector<8x256xf32>
      %20 = arith.maximumf %18, %19 : vector<8x256xf32>
      %21 = arith.truncf %20 : vector<8x256xf32> to vector<8x256xbf16>
      %c0_16 = arith.constant 0 : index
      %c0_17 = arith.constant 0 : index
      %22 = vector.load %arg7[%c0_16, %c0_17] : memref<8x256xbf16, #tpu.memory_space<vmem>>, vector<8x256xbf16>
      tpu.vector_store %arg7[%c0_16, %c0_17], %21 {strides = array<i32>} : memref<8x256xbf16, #tpu.memory_space<vmem>>, vector<8x256xbf16>,
    } else {
    }
    return
  }
  func.func @transform_0(%arg0: i32, %arg1: i32, %arg2: i32) -> (i32, i32) {
    %c0_i32 = arith.constant 0 : i32
    return %arg0, %arg2 : i32, i32
  }
  func.func @transform_1(%arg0: i32, %arg1: i32, %arg2: i32) -> (i32, i32) {
    %c0_i32 = arith.constant 0 : i32
    return %arg2, %arg1 : i32, i32
  }
  func.func @transform_2(%arg0: i32, %arg1: i32, %arg2: i32) -> (i32, i32) {
    %c0_i32 = arith.constant 0 : i32
    %c0_i32_0 = arith.constant 0 : i32
    return %c0_i32, %arg1 : i32, i32
  }
  func.func @transform_3(%arg0: i32, %arg1: i32, %arg2: i32) -> (i32, i32) {
    %c0_i32 = arith.constant 0 : i32
    %c0_i32_0 = arith.constant 0 : i32
    return %c0_i32, %arg1 : i32, i32
  }
  func.func @transform_4(%arg0: i32, %arg1: i32, %arg2: i32) -> (i32, i32) {
    %c0_i32 = arith.constant 0 : i32
    return %arg0, %arg1 : i32, i32
  }
}

module attributes {stable_mosaic.version = 11 : i64} {
  func.func @_conv_mm_res_kernel(%arg0: i32, %arg1: i32, %arg2: i32, %arg3: memref<8x512xbf16, #tpu.memory_space<vmem>>, %arg4: memref<512x256xbf16, #tpu.memory_space<vmem>>, %arg5: memref<1x256xf32, #tpu.memory_space<vmem>>, %arg6: memref<1x256xf32, #tpu.memory_space<vmem>>, %arg7: memref<8x256xbf16, #tpu.memory_space<vmem>>, %arg8: memref<8x256xbf16, #tpu.memory_space<vmem>>, %arg9: memref<8x256xf32, #tpu.memory_space<vmem>>) attributes {dimension_semantics = [#tpu.dimension_semantics<parallel>, #tpu.dimension_semantics<parallel>, #tpu.dimension_semantics<arbitrary>], iteration_bounds = array<i64: 1, 2, 9>, scalar_prefetch = 0 : i64, scratch_operands = 1 : i64, tpu.core_type = #tpu.core_type<tc>, window_params = [{transform_indices = @transform_0, window_bounds = array<i64: 8, 512>}, {transform_indices = @transform_1, window_bounds = array<i64: 512, 256>}, {transform_indices = @transform_2, window_bounds = array<i64: 1, 256>}, {transform_indices = @transform_3, window_bounds = array<i64: 1, 256>}, {transform_indices = @transform_4, window_bounds = array<i64: 8, 256>}, {transform_indices = @transform_5, window_bounds = array<i64: 8, 256>}]} {
    %c0_i32 = arith.constant 0 : i32
    %0 = arith.cmpi eq, %arg2, %c0_i32 : i32
    %1 = arith.extui %0 : i1 to i32
    %c0_i32_0 = arith.constant 0 : i32
    %2 = arith.cmpi ne, %1, %c0_i32_0 : i32
    scf.if %2 {
      %cst_9 = arith.constant 0.000000e+00 : f32
      %12 = vector.broadcast %cst_9 : f32 to vector<8x256xf32>
      %c0_10 = arith.constant 0 : index
      %c0_11 = arith.constant 0 : index
      %13 = vector.load %arg9[%c0_10, %c0_11] : memref<8x256xf32, #tpu.memory_space<vmem>>, vector<8x256xf32>
      tpu.vector_store %arg9[%c0_10, %c0_11], %12 {strides = array<i32>} : memref<8x256xf32, #tpu.memory_space<vmem>>, vector<8x256xf32>,
    } else {
    }
    %c0 = arith.constant 0 : index
    %c0_1 = arith.constant 0 : index
    %3 = vector.load %arg9[%c0, %c0_1] : memref<8x256xf32, #tpu.memory_space<vmem>>, vector<8x256xf32>
    %c0_2 = arith.constant 0 : index
    %c0_3 = arith.constant 0 : index
    %4 = vector.load %arg3[%c0_2, %c0_3] : memref<8x512xbf16, #tpu.memory_space<vmem>>, vector<8x512xbf16>
    %c0_4 = arith.constant 0 : index
    %c0_5 = arith.constant 0 : index
    %5 = vector.load %arg4[%c0_4, %c0_5] : memref<512x256xbf16, #tpu.memory_space<vmem>>, vector<512x256xbf16>
    %cst = arith.constant dense<0.000000e+00> : vector<8x256xf32>
    %6 = tpu.matmul %4, %5, %cst {dimension_numbers = #tpu.dot_dimension_numbers<[1], [0], [0], [1], [0, 0, 1, 1], [], []>} : vector<8x512xbf16>, vector<512x256xbf16>, vector<8x256xf32> -> vector<8x256xf32>
    %7 = arith.addf %3, %6 : vector<8x256xf32>
    %c0_6 = arith.constant 0 : index
    %c0_7 = arith.constant 0 : index
    %8 = vector.load %arg9[%c0_6, %c0_7] : memref<8x256xf32, #tpu.memory_space<vmem>>, vector<8x256xf32>
    tpu.vector_store %arg9[%c0_6, %c0_7], %7 {strides = array<i32>} : memref<8x256xf32, #tpu.memory_space<vmem>>, vector<8x256xf32>,
    %c8_i32 = arith.constant 8 : i32
    %9 = arith.cmpi eq, %arg2, %c8_i32 : i32
    %10 = arith.extui %9 : i1 to i32
    %c0_i32_8 = arith.constant 0 : i32
    %11 = arith.cmpi ne, %10, %c0_i32_8 : i32
    scf.if %11 {
      %c0_9 = arith.constant 0 : index
      %c0_10 = arith.constant 0 : index
      %12 = vector.load %arg9[%c0_9, %c0_10] : memref<8x256xf32, #tpu.memory_space<vmem>>, vector<8x256xf32>
      %c0_11 = arith.constant 0 : index
      %c0_12 = arith.constant 0 : index
      %13 = vector.load %arg5[%c0_11, %c0_12] : memref<1x256xf32, #tpu.memory_space<vmem>>, vector<1x256xf32>
      %14 = vector.broadcast %13 : vector<1x256xf32> to vector<8x256xf32>
      %15 = arith.mulf %12, %14 : vector<8x256xf32>
      %c0_13 = arith.constant 0 : index
      %c0_14 = arith.constant 0 : index
      %16 = vector.load %arg6[%c0_13, %c0_14] : memref<1x256xf32, #tpu.memory_space<vmem>>, vector<1x256xf32>
      %17 = vector.broadcast %16 : vector<1x256xf32> to vector<8x256xf32>
      %18 = arith.addf %15, %17 : vector<8x256xf32>
      %c0_15 = arith.constant 0 : index
      %c0_16 = arith.constant 0 : index
      %19 = vector.load %arg7[%c0_15, %c0_16] : memref<8x256xbf16, #tpu.memory_space<vmem>>, vector<8x256xbf16>
      %20 = arith.extf %19 : vector<8x256xbf16> to vector<8x256xf32>
      %21 = arith.addf %18, %20 : vector<8x256xf32>
      %cst_17 = arith.constant 0.000000e+00 : f32
      %22 = vector.broadcast %cst_17 : f32 to vector<8x256xf32>
      %23 = arith.maximumf %21, %22 : vector<8x256xf32>
      %24 = arith.truncf %23 : vector<8x256xf32> to vector<8x256xbf16>
      %c0_18 = arith.constant 0 : index
      %c0_19 = arith.constant 0 : index
      %25 = vector.load %arg8[%c0_18, %c0_19] : memref<8x256xbf16, #tpu.memory_space<vmem>>, vector<8x256xbf16>
      tpu.vector_store %arg8[%c0_18, %c0_19], %24 {strides = array<i32>} : memref<8x256xbf16, #tpu.memory_space<vmem>>, vector<8x256xbf16>,
    } else {
    }
    return
  }
  func.func @transform_0(%arg0: i32, %arg1: i32, %arg2: i32) -> (i32, i32) {
    %c0_i32 = arith.constant 0 : i32
    return %arg0, %arg2 : i32, i32
  }
  func.func @transform_1(%arg0: i32, %arg1: i32, %arg2: i32) -> (i32, i32) {
    %c0_i32 = arith.constant 0 : i32
    return %arg2, %arg1 : i32, i32
  }
  func.func @transform_2(%arg0: i32, %arg1: i32, %arg2: i32) -> (i32, i32) {
    %c0_i32 = arith.constant 0 : i32
    %c0_i32_0 = arith.constant 0 : i32
    return %c0_i32, %arg1 : i32, i32
  }
  func.func @transform_3(%arg0: i32, %arg1: i32, %arg2: i32) -> (i32, i32) {
    %c0_i32 = arith.constant 0 : i32
    %c0_i32_0 = arith.constant 0 : i32
    return %c0_i32, %arg1 : i32, i32
  }
  func.func @transform_4(%arg0: i32, %arg1: i32, %arg2: i32) -> (i32, i32) {
    %c0_i32 = arith.constant 0 : i32
    return %arg0, %arg1 : i32, i32
  }
  func.func @transform_5(%arg0: i32, %arg1: i32, %arg2: i32) -> (i32, i32) {
    %c0_i32 = arith.constant 0 : i32
    return %arg0, %arg1 : i32, i32
  }
}

module attributes {stable_mosaic.version = 11 : i64} {
  func.func @_avgpool_fc_kernel(%arg0: i32, %arg1: memref<2x1x512xbf16, #tpu.memory_space<vmem>>, %arg2: memref<512x3xf32, #tpu.memory_space<vmem>>, %arg3: memref<1x3xf32, #tpu.memory_space<vmem>>, %arg4: memref<2x3xf32, #tpu.memory_space<vmem>>, %arg5: memref<2x512xf32, #tpu.memory_space<vmem>>, %arg6: memref<2x512xf32, #tpu.memory_space<vmem>>) attributes {dimension_semantics = [#tpu.dimension_semantics<arbitrary>], iteration_bounds = array<i64: 1>, scalar_prefetch = 0 : i64, scratch_operands = 1 : i64, tpu.core_type = #tpu.core_type<tc>, window_params = [{transform_indices = @transform_0, window_bounds = array<i64: 2, 1, 512>}, {pipeline_mode = #tpu.pipeline_mode<synchronous>, transform_indices = @transform_1, window_bounds = array<i64: 512, 3>}, {pipeline_mode = #tpu.pipeline_mode<synchronous>, transform_indices = @transform_2, window_bounds = array<i64: 1, 3>}, {pipeline_mode = #tpu.pipeline_mode<synchronous>, transform_indices = @transform_3, window_bounds = array<i64: 2, 3>}, {pipeline_mode = #tpu.pipeline_mode<synchronous>, transform_indices = @transform_4, window_bounds = array<i64: 2, 512>}]} {
    %c0_i32 = arith.constant 0 : i32
    %0 = arith.cmpi eq, %arg0, %c0_i32 : i32
    %1 = arith.extui %0 : i1 to i32
    %c0_i32_0 = arith.constant 0 : i32
    %2 = arith.cmpi ne, %1, %c0_i32_0 : i32
    scf.if %2 {
      %cst_9 = arith.constant 0.000000e+00 : f32
      %12 = vector.broadcast %cst_9 : f32 to vector<2x512xf32>
      %c0_10 = arith.constant 0 : index
      %c0_11 = arith.constant 0 : index
      %13 = vector.load %arg6[%c0_10, %c0_11] : memref<2x512xf32, #tpu.memory_space<vmem>>, vector<2x512xf32>
      tpu.vector_store %arg6[%c0_10, %c0_11], %12 {strides = array<i32>} : memref<2x512xf32, #tpu.memory_space<vmem>>, vector<2x512xf32>,
    } else {
    }
    %c0 = arith.constant 0 : index
    %c0_1 = arith.constant 0 : index
    %3 = vector.load %arg6[%c0, %c0_1] : memref<2x512xf32, #tpu.memory_space<vmem>>, vector<2x512xf32>
    %c0_2 = arith.constant 0 : index
    %c0_3 = arith.constant 0 : index
    %c0_4 = arith.constant 0 : index
    %4 = vector.load %arg1[%c0_2, %c0_3, %c0_4] : memref<2x1x512xbf16, #tpu.memory_space<vmem>>, vector<2x1x512xbf16>
    %5 = arith.extf %4 : vector<2x1x512xbf16> to vector<2x1x512xf32>
    %cst = arith.constant dense<0.000000e+00> : vector<2x512xf32>
    %6 = vector.multi_reduction <add>, %5, %cst [1] : vector<2x1x512xf32> to vector<2x512xf32>
    %7 = arith.addf %3, %6 : vector<2x512xf32>
    %c0_5 = arith.constant 0 : index
    %c0_6 = arith.constant 0 : index
    %8 = vector.load %arg6[%c0_5, %c0_6] : memref<2x512xf32, #tpu.memory_space<vmem>>, vector<2x512xf32>
    tpu.vector_store %arg6[%c0_5, %c0_6], %7 {strides = array<i32>} : memref<2x512xf32, #tpu.memory_space<vmem>>, vector<2x512xf32>,
    %c0_i32_7 = arith.constant 0 : i32
    %9 = arith.cmpi eq, %arg0, %c0_i32_7 : i32
    %10 = arith.extui %9 : i1 to i32
    %c0_i32_8 = arith.constant 0 : i32
    %11 = arith.cmpi ne, %10, %c0_i32_8 : i32
    scf.if %11 {
      %c0_9 = arith.constant 0 : index
      %c0_10 = arith.constant 0 : index
      %12 = vector.load %arg6[%c0_9, %c0_10] : memref<2x512xf32, #tpu.memory_space<vmem>>, vector<2x512xf32>
      %cst_11 = arith.constant 1.000000e+00 : f32
      %13 = vector.broadcast %cst_11 : f32 to vector<2x512xf32>
      %14 = arith.mulf %12, %13 : vector<2x512xf32>
      %c0_12 = arith.constant 0 : index
      %c0_13 = arith.constant 0 : index
      %15 = vector.load %arg5[%c0_12, %c0_13] : memref<2x512xf32, #tpu.memory_space<vmem>>, vector<2x512xf32>
      tpu.vector_store %arg5[%c0_12, %c0_13], %14 {strides = array<i32>} : memref<2x512xf32, #tpu.memory_space<vmem>>, vector<2x512xf32>,
      %c0_14 = arith.constant 0 : index
      %c0_15 = arith.constant 0 : index
      %16 = vector.load %arg2[%c0_14, %c0_15] : memref<512x3xf32, #tpu.memory_space<vmem>>, vector<512x3xf32>
      %cst_16 = arith.constant dense<0.000000e+00> : vector<2x3xf32>
      %17 = tpu.matmul %14, %16, %cst_16 {dimension_numbers = #tpu.dot_dimension_numbers<[1], [0], [0], [1], [0, 0, 1, 1], [], []>} : vector<2x512xf32>, vector<512x3xf32>, vector<2x3xf32> -> vector<2x3xf32>
      %c0_17 = arith.constant 0 : index
      %c0_18 = arith.constant 0 : index
      %18 = vector.load %arg3[%c0_17, %c0_18] : memref<1x3xf32, #tpu.memory_space<vmem>>, vector<1x3xf32>
      %19 = vector.broadcast %18 : vector<1x3xf32> to vector<2x3xf32>
      %20 = arith.addf %17, %19 : vector<2x3xf32>
      %c0_19 = arith.constant 0 : index
      %c0_20 = arith.constant 0 : index
      %21 = vector.load %arg4[%c0_19, %c0_20] : memref<2x3xf32, #tpu.memory_space<vmem>>, vector<2x3xf32>
      tpu.vector_store %arg4[%c0_19, %c0_20], %20 {strides = array<i32>} : memref<2x3xf32, #tpu.memory_space<vmem>>, vector<2x3xf32>,
    } else {
    }
    return
  }
  func.func @transform_0(%arg0: i32) -> (i32, i32, i32) {
    %c0_i32 = arith.constant 0 : i32
    %c0_i32_0 = arith.constant 0 : i32
    %c0_i32_1 = arith.constant 0 : i32
    return %c0_i32, %arg0, %c0_i32_0 : i32, i32, i32
  }
  func.func @transform_1(%arg0: i32) -> (i32, i32) {
    %c0_i32 = arith.constant 0 : i32
    %c0_i32_0 = arith.constant 0 : i32
    %c0_i32_1 = arith.constant 0 : i32
    return %c0_i32, %c0_i32_0 : i32, i32
  }
  func.func @transform_2(%arg0: i32) -> (i32, i32) {
    %c0_i32 = arith.constant 0 : i32
    %c0_i32_0 = arith.constant 0 : i32
    %c0_i32_1 = arith.constant 0 : i32
    return %c0_i32, %c0_i32_0 : i32, i32
  }
  func.func @transform_3(%arg0: i32) -> (i32, i32) {
    %c0_i32 = arith.constant 0 : i32
    %c0_i32_0 = arith.constant 0 : i32
    %c0_i32_1 = arith.constant 0 : i32
    return %c0_i32, %c0_i32_0 : i32, i32
  }
  func.func @transform_4(%arg0: i32) -> (i32, i32) {
    %c0_i32 = arith.constant 0 : i32
    %c0_i32_0 = arith.constant 0 : i32
    %c0_i32_1 = arith.constant 0 : i32
    return %c0_i32, %c0_i32_0 : i32, i32
  }
}

</mosaic_0001>

<llo_original>
// kernel: _lambda_.14
$region0: #{_lambda_.14}
  #allocation0 [shape = 'u32[]', space=smem, size = 0x4, offset = 0x4, fixed_abs, tag = 'smem constant byte address 0x4 - core index']
  #allocation1 [shape = 'u32[144,128]{1,0:T(1,128)}', space=vmem, size = 0x12000, scoped, tag = 'internal scratch']
  #allocation2 [shape = 'f32[128,64]{1,0:T(8,128)}', space=vmem, size = 0x10000, scoped, tag = 'scratch operand']
  %s0 = inlined_call_operand.vmem [shape: bf16[128,196], index: 0, kind: input, shape index: {}]
  %s1 = inlined_call_operand.vmem [shape: bf16[196,64], index: 1, kind: input, shape index: {}]
  %s2 = inlined_call_operand.vmem [shape: f32[1,64], index: 2, kind: input, shape index: {}]
  %s3 = inlined_call_operand.vmem [shape: f32[1,64], index: 3, kind: input, shape index: {}]
  %s4 = inlined_call_operand.vmem [shape: bf16[128,64], index: 4, kind: output, shape index: {}]
  %s5 = sld [smem:[#allocation0]]
  $region34: #{_lambda_.14} parent=0
    _
  %s7 = ssub.s32 1, %s5
  %s8 = scalar_select 0, %s7, %s5
  // Predicated region
  $region2: #{_lambda_.14} parent=0 // pred_check
    _
  $region3: #{_lambda_.14} parent=0 // pred_check_branch
    %10 = sbr.rel (0) target = $region5
  $region4: #{_lambda_.14} parent=0 // pred_region
    _
  $region5: #{_lambda_.14} parent=0 // pred_fallthru
    _
  // Predicated region
  $region6: #{_lambda_.14} parent=0 // pred_check
    _
  $region7: #{_lambda_.14} parent=0 // pred_check_branch
    %12 = sbr.rel (0) target = $region9
  $region8: #{_lambda_.14} parent=0 // pred_region
    _
  $region9: #{_lambda_.14} parent=0 // pred_fallthru
    _
  // Predicated region
  $region10: #{_lambda_.14} parent=0 // pred_check
    _
  $region11: #{_lambda_.14} parent=0 // pred_check_branch
    %14 = sbr.rel (0) target = $region13
  $region12: #{_lambda_.14} parent=0 // pred_region
    _
  $region13: #{_lambda_.14} parent=0 // pred_fallthru
    _
  // Predicated region
  $region14: #{_lambda_.14} parent=0 // pred_check
    _
  $region15: #{_lambda_.14} parent=0 // pred_check_branch
    %16 = sbr.rel (0) target = $region17
  $region16: #{_lambda_.14} parent=0 // pred_region
    _
  $region17: #{_lambda_.14} parent=0 // pred_fallthru
    _
  %p18 = scmp.eq.s32.totalorder 0, 0
  // Predicated region
  $region18: #{_lambda_.14} parent=0 // pred_check
    %p19 = pneg %p18
  $region19: #{_lambda_.14} parent=0 // pred_check_branch
    %21 = sbr.rel (%p19) target = $region21
  $region20: #{_lambda_.14} parent=0 // pred_region
    %vm22 = vcmask 523264
    %23 = vst.msk [vmem:[#allocation2] sm:$0xff] %vm22, 0.0
    %24 = vst.msk [vmem:[#allocation2 + $0x8] sm:$0xff] %vm22, 0.0
    %25 = vst.msk [vmem:[#allocation2 + $0x10] sm:$0xff] %vm22, 0.0
    %26 = vst.msk [vmem:[#allocation2 + $0x18] sm:$0xff] %vm22, 0.0
    %27 = vst.msk [vmem:[#allocation2 + $0x20] sm:$0xff] %vm22, 0.0
    %28 = vst.msk [vmem:[#allocation2 + $0x28] sm:$0xff] %vm22, 0.0
    %29 = vst.msk [vmem:[#allocation2 + $0x30] sm:$0xff] %vm22, 0.0
    %30 = vst.msk [vmem:[#allocation2 + $0x38] sm:$0xff] %vm22, 0.0
    %31 = vst.msk [vmem:[#allocation2 + $0x40] sm:$0xff] %vm22, 0.0
    %32 = vst.msk [vmem:[#allocation2 + $0x48] sm:$0xff] %vm22, 0.0
    %33 = vst.msk [vmem:[#allocation2 + $0x50] sm:$0xff] %vm22, 0.0
    %34 = vst.msk [vmem:[#allocation2 + $0x58] sm:$0xff] %vm22, 0.0
    %35 = vst.msk [vmem:[#allocation2 + $0x60] sm:$0xff] %vm22, 0.0
    %36 = vst.msk [vmem:[#allocation2 + $0x68] sm:$0xff] %vm22, 0.0
    %37 = vst.msk [vmem:[#allocation2 + $0x70] sm:$0xff] %vm22, 0.0
    %38 = vst.msk [vmem:[#allocation2 + $0x78] sm:$0xff] %vm22, 0.0
  $region21: #{_lambda_.14} parent=0 // pred_fallthru
    _
  %v39 = vld [vmem:[#allocation2] sm:$0xff]
  %v40 = vld [vmem:[#allocation2 + $0x8] sm:$0xff]
  %v41 = vld [vmem:[#allocation2 + $0x10] sm:$0xff]
  %v42 = vld [vmem:[#allocation2 + $0x18] sm:$0xff]
  %v43 = vld [vmem:[#allocation2 + $0x20] sm:$0xff]
  %v44 = vld [vmem:[#allocation2 + $0x28] sm:$0xff]
  %v45 = vld [vmem:[#allocation2 + $0x30] sm:$0xff]
  %v46 = vld [vmem:[#allocation2 + $0x38] sm:$0xff]
  %v47 = vld [vmem:[#allocation2 + $0x40] sm:$0xff]
  %v48 = vld [vmem:[#allocation2 + $0x48] sm:$0xff]
  %v49 = vld [vmem:[#allocation2 + $0x50] sm:$0xff]
  %v50 = vld [vmem:[#allocation2 + $0x58] sm:$0xff]
  %v51 = vld [vmem:[#allocation2 + $0x60] sm:$0xff]
  %v52 = vld [vmem:[#allocation2 + $0x68] sm:$0xff]
  %v53 = vld [vmem:[#allocation2 + $0x70] sm:$0xff]
  %v54 = vld [vmem:[#allocation2 + $0x78] sm:$0xff]
  %v55 = vld [vmem:[%s0] sm:$0xff]
  %v56 = vld [vmem:[%s0 + $0x8] sm:$0xff]
  %v57 = vld [vmem:[%s0 + $0x10] sm:$0xff]
  %v58 = vld [vmem:[%s0 + $0x18] sm:$0xff]
  %v59 = vld [vmem:[%s0 + $0x20] sm:$0xff]
  %v60 = vld [vmem:[%s0 + $0x28] sm:$0xff]
  %v61 = vld [vmem:[%s0 + $0x30] sm:$0xff]
  %v62 = vld [vmem:[%s0 + $0x38] sm:$0xff]
  %v63 = vld [vmem:[%s0 + $0x40] sm:$0xff]
  %v64 = vld [vmem:[%s0 + $0x48] sm:$0xff]
  %v65 = vld [vmem:[%s0 + $0x50] sm:$0xff]
  %v66 = vld [vmem:[%s0 + $0x58] sm:$0xff]
  %v67 = vld [vmem:[%s0 + $0x60] sm:$0xff]
  %v68 = vld [vmem:[%s0 + $0x68] sm:$0xff]
  %v69 = vld [vmem:[%s0 + $0x70] sm:$0xff]
  %v70 = vld [vmem:[%s0 + $0x78] sm:$0xff]
  %v71 = vld [vmem:[%s1] sm:$0xf]
  %v72 = vld [vmem:[%s1 + $0x4] sm:$0xf]
  %v73 = vld [vmem:[%s1 + $0x8] sm:$0xf]
  %v74 = vld [vmem:[%s1 + $0xc] sm:$0xf]
  %v75 = vld [vmem:[%s1 + $0x10] sm:$0xf]
  %v76 = vld [vmem:[%s1 + $0x14] sm:$0xf]
  %v77 = vld [vmem:[%s1 + $0x18] sm:$0xf]
  %v78 = vld [vmem:[%s1 + $0x1c] sm:$0xf]
  %v79 = vld [vmem:[%s1 + $0x20] sm:$0xf]
  %v80 = vld [vmem:[%s1 + $0x24] sm:$0xf]
  %v81 = vld [vmem:[%s1 + $0x28] sm:$0xf]
  %v82 = vld [vmem:[%s1 + $0x2c] sm:$0xf]
  %v83 = vld [vmem:[%s1 + $0x30] sm:$0xf]
  %v84 = vld [vmem:[%s1 + $0x34] sm:$0xf]
  %v85 = vld [vmem:[%s1 + $0x38] sm:$0xf]
  %v86 = vld [vmem:[%s1 + $0x3c] sm:$0xf]
  %v87 = vld [vmem:[%s1 + $0x40] sm:$0xf]
  %v88 = vld [vmem:[%s1 + $0x44] sm:$0xf]
  %v89 = vld [vmem:[%s1 + $0x48] sm:$0xf]
  %v90 = vld [vmem:[%s1 + $0x4c] sm:$0xf]
  %v91 = vld [vmem:[%s1 + $0x50] sm:$0xf]
  %v92 = vld [vmem:[%s1 + $0x54] sm:$0xf]
  %v93 = vld [vmem:[%s1 + $0x58] sm:$0xf]
  %v94 = vld [vmem:[%s1 + $0x5c] sm:$0xf]
  %v95 = vld [vmem:[%s1 + $0x60] sm:$0x3]
  %v112 = vunpack.c.l.b16 %v55
  %v113 = vunpack.c.h.b16 %v55
  %v114 = vunpack.c.l.b16 %v56
  %v115 = vunpack.c.h.b16 %v56
  %v116 = vunpack.c.l.b16 %v57
  %v117 = vunpack.c.h.b16 %v57
  %v118 = vunpack.c.l.b16 %v58
  %v119 = vunpack.c.h.b16 %v58
  %v120 = vunpack.c.l.b16 %v59
  %v121 = vunpack.c.h.b16 %v59
  %v122 = vunpack.c.l.b16 %v60
  %v123 = vunpack.c.h.b16 %v60
  %v124 = vunpack.c.l.b16 %v61
  %v125 = vunpack.c.h.b16 %v61
  %v126 = vunpack.c.l.b16 %v62
  %v127 = vunpack.c.h.b16 %v62
  %v128 = vunpack.c.l.b16 %v63
  %v129 = vunpack.c.h.b16 %v63
  %v130 = vunpack.c.l.b16 %v64
  %v131 = vunpack.c.h.b16 %v64
  %v132 = vunpack.c.l.b16 %v65
  %v133 = vunpack.c.h.b16 %v65
  %v134 = vunpack.c.l.b16 %v66
  %v135 = vunpack.c.h.b16 %v66
  %v136 = vunpack.c.l.b16 %v67
  %v137 = vunpack.c.h.b16 %v67
  %v138 = vunpack.c.l.b16 %v68
  %v139 = vunpack.c.h.b16 %v68
  %v140 = vunpack.c.l.b16 %v69
  %v141 = vunpack.c.h.b16 %v69
  %v142 = vunpack.c.l.b16 %v70
  %v143 = vunpack.c.h.b16 %v70
  %v144 = vpack.c.b16 %v114, %v112
  %v145 = vpack.c.b16 %v115, %v113
  %v146 = vpack.c.b16 %v118, %v116
  %v147 = vpack.c.b16 %v119, %v117
  %v148 = vpack.c.b16 %v122, %v120
  %v149 = vpack.c.b16 %v123, %v121
  %v150 = vpack.c.b16 %v126, %v124
  %v151 = vpack.c.b16 %v127, %v125
  %v152 = vpack.c.b16 %v130, %v128
  %v153 = vpack.c.b16 %v131, %v129
  %v154 = vpack.c.b16 %v134, %v132
  %v155 = vpack.c.b16 %v135, %v133
  %v156 = vpack.c.b16 %v138, %v136
  %v157 = vpack.c.b16 %v139, %v137
  %v158 = vpack.c.b16 %v142, %v140
  %v159 = vpack.c.b16 %v143, %v141
  %v193 = vunpack.c.l.b16 %v71
  %v194 = vunpack.c.l.b16 %v72
  %v195 = vunpack.c.l.b16 %v73
  %v196 = vunpack.c.l.b16 %v74
  %v197 = vunpack.c.l.b16 %v75
  %v198 = vunpack.c.l.b16 %v76
  %v199 = vunpack.c.l.b16 %v77
  %v200 = vunpack.c.l.b16 %v78
  %v201 = vunpack.c.l.b16 %v79
  %v202 = vunpack.c.l.b16 %v80
  %v203 = vunpack.c.l.b16 %v81
  %v204 = vunpack.c.l.b16 %v82
  %v205 = vunpack.c.l.b16 %v83
  %v206 = vunpack.c.l.b16 %v84
  %v207 = vunpack.c.l.b16 %v85
  %v208 = vunpack.c.l.b16 %v86
  %v209 = vunpack.c.l.b16 %v87
  %v210 = vunpack.c.l.b16 %v88
  %v211 = vunpack.c.l.b16 %v89
  %v212 = vunpack.c.l.b16 %v90
  %v213 = vunpack.c.l.b16 %v91
  %v214 = vunpack.c.l.b16 %v92
  %v215 = vunpack.c.l.b16 %v93
  %v216 = vunpack.c.l.b16 %v94
  %v217 = vunpack.c.l.b16 %v95
  %v218 = vpack.c.b16 %v194, %v193
  %v219 = vpack.c.b16 %v196, %v195
  %v220 = vpack.c.b16 %v198, %v197
  %v221 = vpack.c.b16 %v200, %v199
  %v222 = vpack.c.b16 %v202, %v201
  %v223 = vpack.c.b16 %v204, %v203
  %v224 = vpack.c.b16 %v206, %v205
  %v225 = vpack.c.b16 %v208, %v207
  %v226 = vpack.c.b16 %v210, %v209
  %v227 = vpack.c.b16 %v212, %v211
  %v228 = vpack.c.b16 %v214, %v213
  %v229 = vpack.c.b16 %v216, %v215
  %v230 = vpack.c.b16 %v217, %v217
  %vm243 = vcmask 556032
  %v245 = vsel %vm243, %v145, 0
  %v248 = vsel %vm243, %v147, 0
  %v251 = vsel %vm243, %v149, 0
  %v254 = vsel %vm243, %v151, 0
  %v257 = vsel %vm243, %v153, 0
  %v260 = vsel %vm243, %v155, 0
  %v263 = vsel %vm243, %v157, 0
  %v266 = vsel %vm243, %v159, 0
  %vm268 = vcmask 1041408
  %v270 = vsel %vm268, %v230, 0
  %272 = vmatprep.subr.bf16.mxu0 0
  %273 = vmatpush1.bf16.msra.mxu0 %v218
  %274 = vmatprep.subr.bf16.mxu0 0
  %275 = vmatpush1.bf16.msra.mxu0 %v219
  %276 = vmatprep.subr.bf16.mxu0 0
  %277 = vmatpush1.bf16.msra.mxu0 %v220
  %278 = vmatprep.subr.bf16.mxu0 0
  %279 = vmatpush1.bf16.msra.mxu0 %v221
  %280 = vmatprep.subr.bf16.mxu0 0
  %281 = vmatpush1.bf16.msra.mxu0 %v222
  %282 = vmatprep.subr.bf16.mxu0 0
  %283 = vmatpush1.bf16.msra.mxu0 %v223
  %284 = vmatprep.subr.bf16.mxu0 0
  %285 = vmatpush1.bf16.msra.mxu0 %v224
  %286 = vmatprep.subr.bf16.mxu0 0
  %287 = vmatpush1.bf16.msra.mxu0 %v225
  %288 = vmatprep.subr.bf16.mxu0 0
  %289 = vmatpush1.bf16.msra.mxu0 %v226
  %290 = vmatprep.subr.bf16.mxu0 0
  %291 = vmatpush1.bf16.msra.mxu0 %v227
  %292 = vmatprep.subr.bf16.mxu0 0
  %293 = vmatpush1.bf16.msra.mxu0 %v228
  %294 = vmatprep.subr.bf16.mxu0 0
  %295 = vmatpush1.bf16.msra.mxu0 %v229
  %296 = vmatprep.subr.bf16.mxu0 0
  %297 = vmatpush1.bf16.msra.mxu0 %v270
  %298 = vmatprep.subr.bf16.mxu0 0
  %299 = vmatpush1.bf16.msra.mxu0 0
  %300 = vmatprep.subr.bf16.mxu0 0
  %301 = vmatpush1.bf16.msra.mxu0 0
  %302 = vmatprep.subr.bf16.mxu0 0
  %303 = vmatpush1.bf16.msra.mxu0 0
  %304 = vmatprep.mubr.bf16.mxu0 %v245
  %305 = vmatmul.mubr.bf16.gmra.mrb[0].mxu0 %v144
  %v306 = vpop.f32.mrb[0].mxu0
  %v307 = vadd.f32 0.0, %v306
  %v308 = vpop.f32.mrb[0].mxu0
  %v309 = vpop.f32.mrb[0].mxu0
  %v310 = vadd.f32 0.0, %v309
  %v311 = vpop.f32.mrb[0].mxu0
  %312 = vmatprep.mubr.bf16.mxu0 %v248
  %313 = vmatmul.mubr.bf16.gmra.mrb[0].mxu0 %v146
  %v314 = vpop.f32.mrb[0].mxu0
  %v315 = vadd.f32 0.0, %v314
  %v316 = vpop.f32.mrb[0].mxu0
  %v317 = vpop.f32.mrb[0].mxu0
  %v318 = vadd.f32 0.0, %v317
  %v319 = vpop.f32.mrb[0].mxu0
  %320 = vmatprep.mubr.bf16.mxu0 %v251
  %321 = vmatmul.mubr.bf16.gmra.mrb[0].mxu0 %v148
  %v322 = vpop.f32.mrb[0].mxu0
  %v323 = vadd.f32 0.0, %v322
  %v324 = vpop.f32.mrb[0].mxu0
  %v325 = vpop.f32.mrb[0].mxu0
  %v326 = vadd.f32 0.0, %v325
  %v327 = vpop.f32.mrb[0].mxu0
  %328 = vmatprep.mubr.bf16.mxu0 %v254
  %329 = vmatmul.mubr.bf16.gmra.mrb[0].mxu0 %v150
  %v330 = vpop.f32.mrb[0].mxu0
  %v331 = vadd.f32 0.0, %v330
  %v332 = vpop.f32.mrb[0].mxu0
  %v333 = vpop.f32.mrb[0].mxu0
  %v334 = vadd.f32 0.0, %v333
  %v335 = vpop.f32.mrb[0].mxu0
  %336 = vmatprep.mubr.bf16.mxu0 %v257
  %337 = vmatmul.mubr.bf16.gmra.mrb[0].mxu0 %v152
  %v338 = vpop.f32.mrb[0].mxu0
  %v339 = vadd.f32 0.0, %v338
  %v340 = vpop.f32.mrb[0].mxu0
  %v341 = vpop.f32.mrb[0].mxu0
  %v342 = vadd.f32 0.0, %v341
  %v343 = vpop.f32.mrb[0].mxu0
  %344 = vmatprep.mubr.bf16.mxu0 %v260
  %345 = vmatmul.mubr.bf16.gmra.mrb[0].mxu0 %v154
  %v346 = vpop.f32.mrb[0].mxu0
  %v347 = vadd.f32 0.0, %v346
  %v348 = vpop.f32.mrb[0].mxu0
  %v349 = vpop.f32.mrb[0].mxu0
  %v350 = vadd.f32 0.0, %v349
  %v351 = vpop.f32.mrb[0].mxu0
  %352 = vmatprep.mubr.bf16.mxu0 %v263
  %353 = vmatmul.mubr.bf16.gmra.mrb[0].mxu0 %v156
  %v354 = vpop.f32.mrb[0].mxu0
  %v355 = vadd.f32 0.0, %v354
  %v356 = vpop.f32.mrb[0].mxu0
  %v357 = vpop.f32.mrb[0].mxu0
  %v358 = vadd.f32 0.0, %v357
  %v359 = vpop.f32.mrb[0].mxu0
  %360 = vmatprep.mubr.bf16.mxu0 %v266
  %361 = vmatmul.mubr.bf16.gmra.mrb[0].mxu0 %v158
  %v362 = vpop.f32.mrb[0].mxu0
  %v363 = vadd.f32 0.0, %v362
  %v364 = vpop.f32.mrb[0].mxu0
  %v365 = vpop.f32.mrb[0].mxu0
  %v366 = vadd.f32 0.0, %v365
  %v367 = vpop.f32.mrb[0].mxu0
  %368 = vdwg.mxu0
  %v369 = vadd.f32 %v39, %v307
  %v370 = vadd.f32 %v40, %v310
  %v371 = vadd.f32 %v41, %v315
  %v372 = vadd.f32 %v42, %v318
  %v373 = vadd.f32 %v43, %v323
  %v374 = vadd.f32 %v44, %v326
  %v375 = vadd.f32 %v45, %v331
  %v376 = vadd.f32 %v46, %v334
  %v377 = vadd.f32 %v47, %v339
  %v378 = vadd.f32 %v48, %v342
  %v379 = vadd.f32 %v49, %v347
  %v380 = vadd.f32 %v50, %v350
  %v381 = vadd.f32 %v51, %v355
  %v382 = vadd.f32 %v52, %v358
  %v383 = vadd.f32 %v53, %v363
  %v384 = vadd.f32 %v54, %v366
  %vm385 = vcmask 523264
  %386 = vst.msk [vmem:[#allocation2] sm:$0xff] %vm385, %v369
  %387 = vst.msk [vmem:[#allocation2 + $0x8] sm:$0xff] %vm385, %v370
  %388 = vst.msk [vmem:[#allocation2 + $0x10] sm:$0xff] %vm385, %v371
  %389 = vst.msk [vmem:[#allocation2 + $0x18] sm:$0xff] %vm385, %v372
  %390 = vst.msk [vmem:[#allocation2 + $0x20] sm:$0xff] %vm385, %v373
  %391 = vst.msk [vmem:[#allocation2 + $0x28] sm:$0xff] %vm385, %v374
  %392 = vst.msk [vmem:[#allocation2 + $0x30] sm:$0xff] %vm385, %v375
  %393 = vst.msk [vmem:[#allocation2 + $0x38] sm:$0xff] %vm385, %v376
  %394 = vst.msk [vmem:[#allocation2 + $0x40] sm:$0xff] %vm385, %v377
  %395 = vst.msk [vmem:[#allocation2 + $0x48] sm:$0xff] %vm385, %v378
  %396 = vst.msk [vmem:[#allocation2 + $0x50] sm:$0xff] %vm385, %v379
  %397 = vst.msk [vmem:[#allocation2 + $0x58] sm:$0xff] %vm385, %v380
  %398 = vst.msk [vmem:[#allocation2 + $0x60] sm:$0xff] %vm385, %v381
  %399 = vst.msk [vmem:[#allocation2 + $0x68] sm:$0xff] %vm385, %v382
  %400 = vst.msk [vmem:[#allocation2 + $0x70] sm:$0xff] %vm385, %v383
  %401 = vst.msk [vmem:[#allocation2 + $0x78] sm:$0xff] %vm385, %v384
  // Predicated region
  $region22: #{_lambda_.14} parent=0 // pred_check
    %p402 = pneg %p18
  $region23: #{_lambda_.14} parent=0 // pred_check_branch
    %404 = sbr.rel (%p402) target = $region25
  $region24: #{_lambda_.14} parent=0 // pred_region
    %v405 = vld [vmem:[#allocation2] sm:$0xff]
    %v406 = vld [vmem:[#allocation2 + $0x8] sm:$0xff]
    %v407 = vld [vmem:[#allocation2 + $0x10] sm:$0xff]
    %v408 = vld [vmem:[#allocation2 + $0x18] sm:$0xff]
    %v409 = vld [vmem:[#allocation2 + $0x20] sm:$0xff]
    %v410 = vld [vmem:[#allocation2 + $0x28] sm:$0xff]
    %v411 = vld [vmem:[#allocation2 + $0x30] sm:$0xff]
    %v412 = vld [vmem:[#allocation2 + $0x38] sm:$0xff]
    %v413 = vld [vmem:[#allocation2 + $0x40] sm:$0xff]
    %v414 = vld [vmem:[#allocation2 + $0x48] sm:$0xff]
    %v415 = vld [vmem:[#allocation2 + $0x50] sm:$0xff]
    %v416 = vld [vmem:[#allocation2 + $0x58] sm:$0xff]
    %v417 = vld [vmem:[#allocation2 + $0x60] sm:$0xff]
    %v418 = vld [vmem:[#allocation2 + $0x68] sm:$0xff]
    %v419 = vld [vmem:[#allocation2 + $0x70] sm:$0xff]
    %v420 = vld [vmem:[#allocation2 + $0x78] sm:$0xff]
    %v421 = vld [vmem:[%s2] sm:$0x1]
    %v423 = vlaneseq
    %v424 = vshrl.u32 %v423, 7
    %v425 = vsub.s32 0, %v424
    %v426 = vrot.slane %v421, %v425
    %v428 = vmul.f32 %v405, %v426
    %v429 = vmul.f32 %v406, %v426
    %v430 = vmul.f32 %v407, %v426
    %v431 = vmul.f32 %v408, %v426
    %v432 = vmul.f32 %v409, %v426
    %v433 = vmul.f32 %v410, %v426
    %v434 = vmul.f32 %v411, %v426
    %v435 = vmul.f32 %v412, %v426
    %v436 = vmul.f32 %v413, %v426
    %v437 = vmul.f32 %v414, %v426
    %v438 = vmul.f32 %v415, %v426
    %v439 = vmul.f32 %v416, %v426
    %v440 = vmul.f32 %v417, %v426
    %v441 = vmul.f32 %v418, %v426
    %v442 = vmul.f32 %v419, %v426
    %v443 = vmul.f32 %v420, %v426
    %v444 = vld [vmem:[%s3] sm:$0x1]
    %v446 = vlaneseq
    %v447 = vshrl.u32 %v446, 7
    %v448 = vsub.s32 0, %v447
    %v449 = vrot.slane %v444, %v448
    %v451 = vadd.f32 %v428, %v449
    %v452 = vadd.f32 %v429, %v449
    %v453 = vadd.f32 %v430, %v449
    %v454 = vadd.f32 %v431, %v449
    %v455 = vadd.f32 %v432, %v449
    %v456 = vadd.f32 %v433, %v449
    %v457 = vadd.f32 %v434, %v449
    %v458 = vadd.f32 %v435, %v449
    %v459 = vadd.f32 %v436, %v449
    %v460 = vadd.f32 %v437, %v449
    %v461 = vadd.f32 %v438, %v449
    %v462 = vadd.f32 %v439, %v449
    %v463 = vadd.f32 %v440, %v449
    %v464 = vadd.f32 %v441, %v449
    %v465 = vadd.f32 %v442, %v449
    %v466 = vadd.f32 %v443, %v449
    %v467 = vmax.f32 %v451, 0.0
    %v468 = vmax.f32 %v452, 0.0
    %v469 = vmax.f32 %v453, 0.0
    %v470 = vmax.f32 %v454, 0.0
    %v471 = vmax.f32 %v455, 0.0
    %v472 = vmax.f32 %v456, 0.0
    %v473 = vmax.f32 %v457, 0.0
    %v474 = vmax.f32 %v458, 0.0
    %v475 = vmax.f32 %v459, 0.0
    %v476 = vmax.f32 %v460, 0.0
    %v477 = vmax.f32 %v461, 0.0
    %v478 = vmax.f32 %v462, 0.0
    %v479 = vmax.f32 %v463, 0.0
    %v480 = vmax.f32 %v464, 0.0
    %v481 = vmax.f32 %v465, 0.0
    %v482 = vmax.f32 %v466, 0.0
    %v483 = vpack.c.bf16 %v468, %v467
    %v484 = vpack.c.bf16 %v470, %v469
    %v485 = vpack.c.bf16 %v472, %v471
    %v486 = vpack.c.bf16 %v474, %v473
    %v487 = vpack.c.bf16 %v476, %v475
    %v488 = vpack.c.bf16 %v478, %v477
    %v489 = vpack.c.bf16 %v480, %v479
    %v490 = vpack.c.bf16 %v482, %v481
    %v499 = vunpack.c.l.b16 %v483
    %v500 = vunpack.c.h.b16 %v483
    %v501 = vunpack.c.l.b16 %v484
    %v502 = vunpack.c.h.b16 %v484
    %v503 = vunpack.c.l.b16 %v485
    %v504 = vunpack.c.h.b16 %v485
    %v505 = vunpack.c.l.b16 %v486
    %v506 = vunpack.c.h.b16 %v486
    %v507 = vunpack.c.l.b16 %v487
    %v508 = vunpack.c.h.b16 %v487
    %v509 = vunpack.c.l.b16 %v488
    %v510 = vunpack.c.h.b16 %v488
    %v511 = vunpack.c.l.b16 %v489
    %v512 = vunpack.c.h.b16 %v489
    %v513 = vunpack.c.l.b16 %v490
    %v514 = vunpack.c.h.b16 %v490
    %v515 = vpack.c.b16 %v499, %v499
    %v516 = vpack.c.b16 %v500, %v500
    %v517 = vpack.c.b16 %v501, %v501
    %v518 = vpack.c.b16 %v502, %v502
    %v519 = vpack.c.b16 %v503, %v503
    %v520 = vpack.c.b16 %v504, %v504
    %v521 = vpack.c.b16 %v505, %v505
    %v522 = vpack.c.b16 %v506, %v506
    %v523 = vpack.c.b16 %v507, %v507
    %v524 = vpack.c.b16 %v508, %v508
    %v525 = vpack.c.b16 %v509, %v509
    %v526 = vpack.c.b16 %v510, %v510
    %v527 = vpack.c.b16 %v511, %v511
    %v528 = vpack.c.b16 %v512, %v512
    %v529 = vpack.c.b16 %v513, %v513
    %v530 = vpack.c.b16 %v514, %v514
    %vm547 = vcmask 519168
    %548 = vst.msk [vmem:[%s4] sm:$0xf] %vm547, %v515
    %549 = vst.msk [vmem:[%s4 + $0x4] sm:$0xf] %vm547, %v516
    %550 = vst.msk [vmem:[%s4 + $0x8] sm:$0xf] %vm547, %v517
    %551 = vst.msk [vmem:[%s4 + $0xc] sm:$0xf] %vm547, %v518
    %552 = vst.msk [vmem:[%s4 + $0x10] sm:$0xf] %vm547, %v519
    %553 = vst.msk [vmem:[%s4 + $0x14] sm:$0xf] %vm547, %v520
    %554 = vst.msk [vmem:[%s4 + $0x18] sm:$0xf] %vm547, %v521
    %555 = vst.msk [vmem:[%s4 + $0x1c] sm:$0xf] %vm547, %v522
    %556 = vst.msk [vmem:[%s4 + $0x20] sm:$0xf] %vm547, %v523
    %557 = vst.msk [vmem:[%s4 + $0x24] sm:$0xf] %vm547, %v524
    %558 = vst.msk [vmem:[%s4 + $0x28] sm:$0xf] %vm547, %v525
    %559 = vst.msk [vmem:[%s4 + $0x2c] sm:$0xf] %vm547, %v526
    %560 = vst.msk [vmem:[%s4 + $0x30] sm:$0xf] %vm547, %v527
    %561 = vst.msk [vmem:[%s4 + $0x34] sm:$0xf] %vm547, %v528
    %562 = vst.msk [vmem:[%s4 + $0x38] sm:$0xf] %vm547, %v529
    %563 = vst.msk [vmem:[%s4 + $0x3c] sm:$0xf] %vm547, %v530
  $region25: #{_lambda_.14} parent=0 // pred_fallthru
    _
  // Predicated region
  $region26: #{_lambda_.14} parent=0 // pred_check
    _
  $region27: #{_lambda_.14} parent=0 // pred_check_branch
    %565 = sbr.rel (0) target = $region29
  $region28: #{_lambda_.14} parent=0 // pred_region
    _
  $region29: #{_lambda_.14} parent=0 // pred_fallthru
    _
  // Predicated region
  $region30: #{_lambda_.14} parent=0 // pred_check
    _
  $region31: #{_lambda_.14} parent=0 // pred_check_branch
    %567 = sbr.rel (0) target = $region33
  $region32: #{_lambda_.14} parent=0 // pred_region
    _
  $region33: #{_lambda_.14} parent=0 // pred_fallthru
    _

// kernel: _lambda_.15
$region0: #{_lambda_.15}
  #allocation0 [shape = 'u32[]', space=smem, size = 0x4, offset = 0x4, fixed_abs, tag = 'smem constant byte address 0x4 - core index']
  #allocation1 [shape = 'u32[144,128]{1,0:T(1,128)}', space=vmem, size = 0x12000, scoped, tag = 'internal scratch']
  %s0 = inlined_call_operand.vmem [shape: bf16[8,5,5,64], index: 0, kind: input, shape index: {}]
  %s1 = inlined_call_operand.vmem [shape: bf16[2,4,4,64], index: 1, kind: output, shape index: {}]
  %s2 = sld [smem:[#allocation0]]
  $region37: #{_lambda_.15} parent=0
    _
  %s4 = ssub.s32 1, %s2
  %s5 = scalar_select 0, %s4, %s2
  loop: start=0, step=1, limit=4
  $region2: #{_lambda_.15} parent=0 // loop_pre_header
    _
  $region3: #{_lambda_.15} parent=0 // loop_header
    %s7 = sphi 0, %s11
    %p8 = scmp.ge.s32.totalorder %s7, 4
    %s17 = sphi 0, %s19
    %s20 = sphi 0, %s17
    %s21 = sphi 0, %s20
    %s37 = sphi 0, %s21
    %s43 = sphi 0, %s45
    %s46 = sphi 0, %s43
    %s47 = sphi 0, %s46
    %s63 = sphi 0, %s47
  $region4: #{_lambda_.15} parent=0 // loop_header_branch
    %10 = sbr.rel (%p8) target = $region8
  $region5: #{_lambda_.15} parent=0 // loop_body
    %s12 = ssub.s32 %s7, 1
    %s13 = ssub.s32 %s7, 2
    %s14 = sadd.s32 %s7, 1
    %s15 = ssub.s32 %s7, %s14
    %p16 = scmp.eq.s32.totalorder %s15, 0
    %s18 = sadd.s32 %s17, 1
    %s19 = scalar_select %p16, %s17, %s18
    %p22 = pneg %p16
    %p23 = scmp.eq.s32.totalorder %s7, 1
    %p24 = por %p22, %p23
    %p25 = scmp.ne.s32.totalorder %s17, %s20
    %p26 = scmp.eq.s32.totalorder %s7, 0
    %p27 = por %p25, %p26
    %p28 = scmp.ne.s32.totalorder %s17, %s20
    %p29 = scmp.eq.s32.totalorder %s12, 1
    %p30 = por %p28, %p29
    %p31 = scmp.ne.s32.totalorder %s20, %s21
    %p32 = scmp.eq.s32.totalorder %s12, 0
    %p33 = por %p31, %p32
    %p34 = scmp.ne.s32.totalorder %s20, %s21
    %p35 = scmp.eq.s32.totalorder %s13, 1
    %p36 = por %p34, %p35
    %p38 = scmp.ne.s32.totalorder %s21, %s37
    %p39 = scmp.eq.s32.totalorder %s13, 0
    %p40 = por %p38, %p39
    %s41 = ssub.s32 %s7, %s14
    %p42 = scmp.eq.s32.totalorder %s41, 0
    %s44 = sadd.s32 %s43, 1
    %s45 = scalar_select %p42, %s43, %s44
    %p48 = pneg %p42
    %p49 = scmp.eq.s32.totalorder %s7, 1
    %p50 = por %p48, %p49
    %p51 = scmp.ne.s32.totalorder %s43, %s46
    %p52 = scmp.eq.s32.totalorder %s7, 0
    %p53 = por %p51, %p52
    %p54 = scmp.ne.s32.totalorder %s43, %s46
    %p55 = scmp.eq.s32.totalorder %s12, 1
    %p56 = por %p54, %p55
    %p57 = scmp.ne.s32.totalorder %s46, %s47
    %p58 = scmp.eq.s32.totalorder %s12, 0
    %p59 = por %p57, %p58
    %p60 = scmp.ne.s32.totalorder %s46, %s47
    %p61 = scmp.eq.s32.totalorder %s13, 1
    %p62 = por %p60, %p61
    %p64 = scmp.ne.s32.totalorder %s47, %s63
    %p65 = scmp.eq.s32.totalorder %s13, 0
    %p66 = por %p64, %p65
    %p67 = scmp.le.s32.totalorder 1, %s7
    %p68 = scmp.lt.s32.totalorder %s7, 3
    %p69 = pnand %p67, %p68
    %p70 = pneg %p69
    // Predicated region
    $region9: #{_lambda_.15} parent=5 // pred_check
      _
    $region10: #{_lambda_.15} parent=5 // pred_check_branch
      %72 = sbr.rel (%p69) target = $region12
    $region11: #{_lambda_.15} parent=5 // pred_region
      %s73 = ssub.s32 %s7, 1
    $region12: #{_lambda_.15} parent=5 // pred_fallthru
      _
    %p74 = scmp.lt.s32.totalorder %s7, 2
    // Predicated region
    $region13: #{_lambda_.15} parent=5 // pred_check
      %p75 = pneg %p74
    $region14: #{_lambda_.15} parent=5 // pred_check_branch
      %77 = sbr.rel (%p75) target = $region16
    $region15: #{_lambda_.15} parent=5 // pred_region
      // Predicated region
      $region17: #{_lambda_.15} parent=15 // pred_check
        %p78 = pneg %p27
      $region18: #{_lambda_.15} parent=15 // pred_check_branch
        %80 = sbr.rel (%p78) target = $region20
      $region19: #{_lambda_.15} parent=15 // pred_region
        %s81 = smul.u32 4, %s7
        %p82 = scmp.lt.s32.totalorder %s81, 7
        %s83 = scalar_select %p82, %s81, 7
        %s84 = smul.addr %s83, 5
        %s85 = smul.addr %s84, 4
        %s86 = scalar_lea.vmem %s0, %s85
        %s87 = smul.u32 4, %s7
      $region20: #{_lambda_.15} parent=15 // pred_fallthru
        _
    $region16: #{_lambda_.15} parent=5 // pred_fallthru
      _
    %p88 = scmp.le.s32.totalorder 1, %s7
    %p89 = scmp.lt.s32.totalorder %s7, 3
    %p90 = pnand %p88, %p89
    %p91 = pneg %p90
    // Predicated region
    $region21: #{_lambda_.15} parent=5 // pred_check
      _
    $region22: #{_lambda_.15} parent=5 // pred_check_branch
      %93 = sbr.rel (%p90) target = $region24
    $region23: #{_lambda_.15} parent=5 // pred_region
      %s94 = ssub.s32 %s7, 1
      %s95 = smul.u32 4, %s12
      %p96 = scmp.lt.s32.totalorder %s95, 7
      %s97 = scalar_select %p96, %s95, 7
      %s98 = smul.addr %s97, 5
      %s99 = smul.addr %s98, 4
      %s100 = scalar_lea.vmem %s0, %s99
      %p101 = pneg %p33
      %p102 = pneg %p30
      %p103 = pneg %p59
      %p104 = pneg %p56
      %p105 = scmp.lt.s32.totalorder %s12, 1
      %s106 = scalar_select %p105, %s12, 1
      %s107 = smul.addr %s106, 4
      %s108 = smul.addr %s107, 2
      %s109 = scalar_lea.vmem %s1, %s108
      %s110 = smul.u32 4, %s12
      %p111 = scmp.lt.s32.totalorder %s110, 7
      %s112 = scalar_select %p111, %s110, 7
      %s113 = smul.addr %s112, 5
      %s114 = smul.addr %s113, 4
      %s115 = scalar_lea.vmem %s0, %s114
      %s116 = smul.u32 4, %s12
      %p117 = scmp.lt.s32.totalorder %s12, 1
      %s118 = scalar_select %p117, %s12, 1
      %s119 = smul.addr %s118, 4
      %s120 = smul.addr %s119, 2
      %s121 = scalar_lea.vmem %s1, %s120
      %v122 = vld [vmem:[%s115] sm:$0x3]
      %v123 = vld [vmem:[%s115 + $0x4] sm:$0x3]
      %v124 = vld [vmem:[%s115 + $0x8] sm:$0x3]
      %v125 = vld [vmem:[%s115 + $0xc] sm:$0x3]
      %s126 = scalar_lea.vmem %s115, 20
      %v127 = vld [vmem:[%s126] sm:$0x3]
      %v128 = vld [vmem:[%s126 + $0x4] sm:$0x3]
      %v129 = vld [vmem:[%s126 + $0x8] sm:$0x3]
      %v130 = vld [vmem:[%s126 + $0xc] sm:$0x3]
      %v131 = vmax.bf16 %v122, %v127
      %v132 = vmax.bf16 %v123, %v128
      %v133 = vmax.bf16 %v124, %v129
      %v134 = vmax.bf16 %v125, %v130
      %v135 = vld [vmem:[%s115] sm:$0x7]
      %v136 = vld [vmem:[%s115 + $0x4] sm:$0x7]
      %v137 = vld [vmem:[%s115 + $0x8] sm:$0x7]
      %v138 = vld [vmem:[%s115 + $0xc] sm:$0x7]
      %v140 = vshrl.u32 %v135, 16
      %v142 = vrot.slane %v140, 4
      %v143 = vshll.u32 %v135, 16
      %v145 = vrot.slane %v143, 5
      %v146 = vor.u32 %v142, %v145
      %v147 = vrot.slane %v146, 4
      %v149 = vshrl.u32 %v136, 16
      %v151 = vrot.slane %v149, 4
      %v152 = vshll.u32 %v136, 16
      %v154 = vrot.slane %v152, 5
      %v155 = vor.u32 %v151, %v154
      %v156 = vrot.slane %v155, 4
      %v158 = vshrl.u32 %v137, 16
      %v160 = vrot.slane %v158, 4
      %v161 = vshll.u32 %v137, 16
      %v163 = vrot.slane %v161, 5
      %v164 = vor.u32 %v160, %v163
      %v165 = vrot.slane %v164, 4
      %v167 = vshrl.u32 %v138, 16
      %v169 = vrot.slane %v167, 4
      %v170 = vshll.u32 %v138, 16
      %v172 = vrot.slane %v170, 5
      %v173 = vor.u32 %v169, %v172
      %v174 = vrot.slane %v173, 4
      %v179 = vmax.bf16 %v131, %v147
      %v180 = vmax.bf16 %v132, %v156
      %v181 = vmax.bf16 %v133, %v165
      %v182 = vmax.bf16 %v134, %v174
      %s183 = scalar_lea.vmem %s115, 40
      %v184 = vld [vmem:[%s183] sm:$0x3]
      %v185 = vld [vmem:[%s183 + $0x4] sm:$0x3]
      %v186 = vld [vmem:[%s183 + $0x8] sm:$0x3]
      %v187 = vld [vmem:[%s183 + $0xc] sm:$0x3]
      %v188 = vmax.bf16 %v179, %v184
      %v189 = vmax.bf16 %v180, %v185
      %v190 = vmax.bf16 %v181, %v186
      %v191 = vmax.bf16 %v182, %v187
      %s192 = scalar_lea.vmem %s115, 60
      %v193 = vld [vmem:[%s192] sm:$0x3]
      %v194 = vld [vmem:[%s192 + $0x4] sm:$0x3]
      %v195 = vld [vmem:[%s192 + $0x8] sm:$0x3]
      %v196 = vld [vmem:[%s192 + $0xc] sm:$0x3]
      %v197 = vmax.bf16 %v188, %v193
      %v198 = vmax.bf16 %v189, %v194
      %v199 = vmax.bf16 %v190, %v195
      %v200 = vmax.bf16 %v191, %v196
      %v201 = vld [vmem:[%s183] sm:$0x7]
      %v202 = vld [vmem:[%s183 + $0x4] sm:$0x7]
      %v203 = vld [vmem:[%s183 + $0x8] sm:$0x7]
      %v204 = vld [vmem:[%s183 + $0xc] sm:$0x7]
      %v206 = vshrl.u32 %v201, 16
      %v208 = vrot.slane %v206, 4
      %v209 = vshll.u32 %v201, 16
      %v211 = vrot.slane %v209, 5
      %v212 = vor.u32 %v208, %v211
      %v213 = vrot.slane %v212, 4
      %v215 = vshrl.u32 %v202, 16
      %v217 = vrot.slane %v215, 4
      %v218 = vshll.u32 %v202, 16
      %v220 = vrot.slane %v218, 5
      %v221 = vor.u32 %v217, %v220
      %v222 = vrot.slane %v221, 4
      %v224 = vshrl.u32 %v203, 16
      %v226 = vrot.slane %v224, 4
      %v227 = vshll.u32 %v203, 16
      %v229 = vrot.slane %v227, 5
      %v230 = vor.u32 %v226, %v229
      %v231 = vrot.slane %v230, 4
      %v233 = vshrl.u32 %v204, 16
      %v235 = vrot.slane %v233, 4
      %v236 = vshll.u32 %v204, 16
      %v238 = vrot.slane %v236, 5
      %v239 = vor.u32 %v235, %v238
      %v240 = vrot.slane %v239, 4
      %v245 = vmax.bf16 %v197, %v213
      %v246 = vmax.bf16 %v198, %v222
      %v247 = vmax.bf16 %v199, %v231
      %v248 = vmax.bf16 %v200, %v240
      %s249 = scalar_lea.vmem %s115, 4
      %v250 = vld [vmem:[%s249] sm:$0x3]
      %v251 = vld [vmem:[%s249 + $0x4] sm:$0x3]
      %v252 = vld [vmem:[%s249 + $0x8] sm:$0x3]
      %v253 = vld [vmem:[%s249 + $0xc] sm:$0x3]
      %v254 = vmax.bf16 %v245, %v250
      %v255 = vmax.bf16 %v246, %v251
      %v256 = vmax.bf16 %v247, %v252
      %v257 = vmax.bf16 %v248, %v253
      %s258 = scalar_lea.vmem %s115, 24
      %v259 = vld [vmem:[%s258] sm:$0x3]
      %v260 = vld [vmem:[%s258 + $0x4] sm:$0x3]
      %v261 = vld [vmem:[%s258 + $0x8] sm:$0x3]
      %v262 = vld [vmem:[%s258 + $0xc] sm:$0x3]
      %v263 = vmax.bf16 %v254, %v259
      %v264 = vmax.bf16 %v255, %v260
      %v265 = vmax.bf16 %v256, %v261
      %v266 = vmax.bf16 %v257, %v262
      %v267 = vld [vmem:[%s249] sm:$0x7]
      %v268 = vld [vmem:[%s249 + $0x4] sm:$0x7]
      %v269 = vld [vmem:[%s249 + $0x8] sm:$0x7]
      %v270 = vld [vmem:[%s249 + $0xc] sm:$0x7]
      %v272 = vshrl.u32 %v267, 16
      %v274 = vrot.slane %v272, 4
      %v275 = vshll.u32 %v267, 16
      %v277 = vrot.slane %v275, 5
      %v278 = vor.u32 %v274, %v277
      %v279 = vrot.slane %v278, 4
      %v281 = vshrl.u32 %v268, 16
      %v283 = vrot.slane %v281, 4
      %v284 = vshll.u32 %v268, 16
      %v286 = vrot.slane %v284, 5
      %v287 = vor.u32 %v283, %v286
      %v288 = vrot.slane %v287, 4
      %v290 = vshrl.u32 %v269, 16
      %v292 = vrot.slane %v290, 4
      %v293 = vshll.u32 %v269, 16
      %v295 = vrot.slane %v293, 5
      %v296 = vor.u32 %v292, %v295
      %v297 = vrot.slane %v296, 4
      %v299 = vshrl.u32 %v270, 16
      %v301 = vrot.slane %v299, 4
      %v302 = vshll.u32 %v270, 16
      %v304 = vrot.slane %v302, 5
      %v305 = vor.u32 %v301, %v304
      %v306 = vrot.slane %v305, 4
      %v311 = vmax.bf16 %v263, %v279
      %v312 = vmax.bf16 %v264, %v288
      %v313 = vmax.bf16 %v265, %v297
      %v314 = vmax.bf16 %v266, %v306
      %vm315 = vcmask 517120
      %316 = vst.msk [vmem:[%s121] sm:$0x3] %vm315, %v311
      %317 = vst.msk [vmem:[%s121 + $0x2] sm:$0x3] %vm315, %v312
      %318 = vst.msk [vmem:[%s121 + $0x4] sm:$0x3] %vm315, %v313
      %319 = vst.msk [vmem:[%s121 + $0x6] sm:$0x3] %vm315, %v314
      %p320 = scmp.lt.s32.totalorder %s12, 1
      %s321 = scalar_select %p320, %s12, 1
      %s322 = smul.addr %s321, 4
      %s323 = smul.addr %s322, 2
      %s324 = scalar_lea.vmem %s1, %s323
      // Predicated region
      $region25: #{_lambda_.15} parent=23 // pred_check
        %p325 = pneg %p56
      $region26: #{_lambda_.15} parent=23 // pred_check_branch
        %327 = sbr.rel (%p325) target = $region28
      $region27: #{_lambda_.15} parent=23 // pred_region
        _
      $region28: #{_lambda_.15} parent=23 // pred_fallthru
        _
    $region24: #{_lambda_.15} parent=5 // pred_fallthru
      _
    %p328 = scmp.le.s32.totalorder 2, %s7
    // Predicated region
    $region29: #{_lambda_.15} parent=5 // pred_check
      %p329 = pneg %p328
    $region30: #{_lambda_.15} parent=5 // pred_check_branch
      %331 = sbr.rel (%p329) target = $region32
    $region31: #{_lambda_.15} parent=5 // pred_region
      %s332 = ssub.s32 %s7, 2
      // Predicated region
      $region33: #{_lambda_.15} parent=31 // pred_check
        %p333 = pneg %p62
      $region34: #{_lambda_.15} parent=31 // pred_check_branch
        %335 = sbr.rel (%p333) target = $region36
      $region35: #{_lambda_.15} parent=31 // pred_region
        %p336 = scmp.lt.s32.totalorder %s13, 1
        %s337 = scalar_select %p336, %s13, 1
        %s338 = smul.addr %s337, 4
        %s339 = smul.addr %s338, 2
        %s340 = scalar_lea.vmem %s1, %s339
      $region36: #{_lambda_.15} parent=31 // pred_fallthru
        _
    $region32: #{_lambda_.15} parent=5 // pred_fallthru
      _
  $region6: #{_lambda_.15} parent=0 // loop_footer
    %s11 = sadd.s32 1, %s7
  $region7: #{_lambda_.15} parent=0 // loop_footer_branch
    %6 = sbr.rel target = $region3
  $region8: #{_lambda_.15} parent=0 // loop_exit
    _

// kernel: _lambda_.16
$region0: #{_lambda_.16}
  #allocation0 [shape = 'u32[]', space=smem, size = 0x4, offset = 0x4, fixed_abs, tag = 'smem constant byte address 0x4 - core index']
  #allocation1 [shape = 'u32[144,128]{1,0:T(1,128)}', space=vmem, size = 0x12000, scoped, tag = 'internal scratch']
  #allocation2 [shape = 'f32[32,64]{1,0:T(8,128)}', space=vmem, size = 0x4000, scoped, tag = 'scratch operand']
  %s0 = inlined_call_operand.vmem [shape: bf16[32,576], index: 0, kind: input, shape index: {}]
  %s1 = inlined_call_operand.vmem [shape: bf16[576,64], index: 1, kind: input, shape index: {}]
  %s2 = inlined_call_operand.vmem [shape: f32[1,64], index: 2, kind: input, shape index: {}]
  %s3 = inlined_call_operand.vmem [shape: f32[1,64], index: 3, kind: input, shape index: {}]
  %s4 = inlined_call_operand.vmem [shape: bf16[32,64], index: 4, kind: output, shape index: {}]
  %s5 = sld [smem:[#allocation0]]
  $region34: #{_lambda_.16} parent=0
    _
  %s7 = ssub.s32 1, %s5
  %s8 = scalar_select 0, %s7, %s5
  // Predicated region
  $region2: #{_lambda_.16} parent=0 // pred_check
    _
  $region3: #{_lambda_.16} parent=0 // pred_check_branch
    %10 = sbr.rel (0) target = $region5
  $region4: #{_lambda_.16} parent=0 // pred_region
    _
  $region5: #{_lambda_.16} parent=0 // pred_fallthru
    _
  // Predicated region
  $region6: #{_lambda_.16} parent=0 // pred_check
    _
  $region7: #{_lambda_.16} parent=0 // pred_check_branch
    %12 = sbr.rel (0) target = $region9
  $region8: #{_lambda_.16} parent=0 // pred_region
    _
  $region9: #{_lambda_.16} parent=0 // pred_fallthru
    _
  // Predicated region
  $region10: #{_lambda_.16} parent=0 // pred_check
    _
  $region11: #{_lambda_.16} parent=0 // pred_check_branch
    %14 = sbr.rel (0) target = $region13
  $region12: #{_lambda_.16} parent=0 // pred_region
    _
  $region13: #{_lambda_.16} parent=0 // pred_fallthru
    _
  // Predicated region
  $region14: #{_lambda_.16} parent=0 // pred_check
    _
  $region15: #{_lambda_.16} parent=0 // pred_check_branch
    %16 = sbr.rel (0) target = $region17
  $region16: #{_lambda_.16} parent=0 // pred_region
    _
  $region17: #{_lambda_.16} parent=0 // pred_fallthru
    _
  %p18 = scmp.eq.s32.totalorder 0, 0
  // Predicated region
  $region18: #{_lambda_.16} parent=0 // pred_check
    %p19 = pneg %p18
  $region19: #{_lambda_.16} parent=0 // pred_check_branch
    %21 = sbr.rel (%p19) target = $region21
  $region20: #{_lambda_.16} parent=0 // pred_region
    %vm22 = vcmask 523264
    %23 = vst.msk [vmem:[#allocation2] sm:$0xff] %vm22, 0.0
    %24 = vst.msk [vmem:[#allocation2 + $0x8] sm:$0xff] %vm22, 0.0
    %25 = vst.msk [vmem:[#allocation2 + $0x10] sm:$0xff] %vm22, 0.0
    %26 = vst.msk [vmem:[#allocation2 + $0x18] sm:$0xff] %vm22, 0.0
  $region21: #{_lambda_.16} parent=0 // pred_fallthru
    _
  %v27 = vld [vmem:[#allocation2] sm:$0xff]
  %v28 = vld [vmem:[#allocation2 + $0x8] sm:$0xff]
  %v29 = vld [vmem:[#allocation2 + $0x10] sm:$0xff]
  %v30 = vld [vmem:[#allocation2 + $0x18] sm:$0xff]
  %v31 = vld [vmem:[%s0] sm:$0xff]
  %v32 = vld [vmem:[%s0 + $0x8] sm:$0xff]
  %v33 = vld [vmem:[%s0 + $0x10] sm:$0xf]
  %v34 = vld [vmem:[%s0 + $0x14] sm:$0xff]
  %v35 = vld [vmem:[%s0 + $0x1c] sm:$0xff]
  %v36 = vld [vmem:[%s0 + $0x24] sm:$0xf]
  %v37 = vld [vmem:[%s0 + $0x28] sm:$0xff]
  %v38 = vld [vmem:[%s0 + $0x30] sm:$0xff]
  %v39 = vld [vmem:[%s0 + $0x38] sm:$0xf]
  %v40 = vld [vmem:[%s0 + $0x3c] sm:$0xff]
  %v41 = vld [vmem:[%s0 + $0x44] sm:$0xff]
  %v42 = vld [vmem:[%s0 + $0x4c] sm:$0xf]
  %v43 = vld [vmem:[%s1] sm:$0xf]
  %v44 = vld [vmem:[%s1 + $0x4] sm:$0xf]
  %v45 = vld [vmem:[%s1 + $0x8] sm:$0xf]
  %v46 = vld [vmem:[%s1 + $0xc] sm:$0xf]
  %v47 = vld [vmem:[%s1 + $0x10] sm:$0xf]
  %v48 = vld [vmem:[%s1 + $0x14] sm:$0xf]
  %v49 = vld [vmem:[%s1 + $0x18] sm:$0xf]
  %v50 = vld [vmem:[%s1 + $0x1c] sm:$0xf]
  %v51 = vld [vmem:[%s1 + $0x20] sm:$0xf]
  %v52 = vld [vmem:[%s1 + $0x24] sm:$0xf]
  %v53 = vld [vmem:[%s1 + $0x28] sm:$0xf]
  %v54 = vld [vmem:[%s1 + $0x2c] sm:$0xf]
  %v55 = vld [vmem:[%s1 + $0x30] sm:$0xf]
  %v56 = vld [vmem:[%s1 + $0x34] sm:$0xf]
  %v57 = vld [vmem:[%s1 + $0x38] sm:$0xf]
  %v58 = vld [vmem:[%s1 + $0x3c] sm:$0xf]
  %v59 = vld [vmem:[%s1 + $0x40] sm:$0xf]
  %v60 = vld [vmem:[%s1 + $0x44] sm:$0xf]
  %v61 = vld [vmem:[%s1 + $0x48] sm:$0xf]
  %v62 = vld [vmem:[%s1 + $0x4c] sm:$0xf]
  %v63 = vld [vmem:[%s1 + $0x50] sm:$0xf]
  %v64 = vld [vmem:[%s1 + $0x54] sm:$0xf]
  %v65 = vld [vmem:[%s1 + $0x58] sm:$0xf]
  %v66 = vld [vmem:[%s1 + $0x5c] sm:$0xf]
  %v67 = vld [vmem:[%s1 + $0x60] sm:$0xf]
  %v68 = vld [vmem:[%s1 + $0x64] sm:$0xf]
  %v69 = vld [vmem:[%s1 + $0x68] sm:$0xf]
  %v70 = vld [vmem:[%s1 + $0x6c] sm:$0xf]
  %v71 = vld [vmem:[%s1 + $0x70] sm:$0xf]
  %v72 = vld [vmem:[%s1 + $0x74] sm:$0xf]
  %v73 = vld [vmem:[%s1 + $0x78] sm:$0xf]
  %v74 = vld [vmem:[%s1 + $0x7c] sm:$0xf]
  %v75 = vld [vmem:[%s1 + $0x80] sm:$0xf]
  %v76 = vld [vmem:[%s1 + $0x84] sm:$0xf]
  %v77 = vld [vmem:[%s1 + $0x88] sm:$0xf]
  %v78 = vld [vmem:[%s1 + $0x8c] sm:$0xf]
  %v79 = vld [vmem:[%s1 + $0x90] sm:$0xf]
  %v80 = vld [vmem:[%s1 + $0x94] sm:$0xf]
  %v81 = vld [vmem:[%s1 + $0x98] sm:$0xf]
  %v82 = vld [vmem:[%s1 + $0x9c] sm:$0xf]
  %v83 = vld [vmem:[%s1 + $0xa0] sm:$0xf]
  %v84 = vld [vmem:[%s1 + $0xa4] sm:$0xf]
  %v85 = vld [vmem:[%s1 + $0xa8] sm:$0xf]
  %v86 = vld [vmem:[%s1 + $0xac] sm:$0xf]
  %v87 = vld [vmem:[%s1 + $0xb0] sm:$0xf]
  %v88 = vld [vmem:[%s1 + $0xb4] sm:$0xf]
  %v89 = vld [vmem:[%s1 + $0xb8] sm:$0xf]
  %v90 = vld [vmem:[%s1 + $0xbc] sm:$0xf]
  %v91 = vld [vmem:[%s1 + $0xc0] sm:$0xf]
  %v92 = vld [vmem:[%s1 + $0xc4] sm:$0xf]
  %v93 = vld [vmem:[%s1 + $0xc8] sm:$0xf]
  %v94 = vld [vmem:[%s1 + $0xcc] sm:$0xf]
  %v95 = vld [vmem:[%s1 + $0xd0] sm:$0xf]
  %v96 = vld [vmem:[%s1 + $0xd4] sm:$0xf]
  %v97 = vld [vmem:[%s1 + $0xd8] sm:$0xf]
  %v98 = vld [vmem:[%s1 + $0xdc] sm:$0xf]
  %v99 = vld [vmem:[%s1 + $0xe0] sm:$0xf]
  %v100 = vld [vmem:[%s1 + $0xe4] sm:$0xf]
  %v101 = vld [vmem:[%s1 + $0xe8] sm:$0xf]
  %v102 = vld [vmem:[%s1 + $0xec] sm:$0xf]
  %v103 = vld [vmem:[%s1 + $0xf0] sm:$0xf]
  %v104 = vld [vmem:[%s1 + $0xf4] sm:$0xf]
  %v105 = vld [vmem:[%s1 + $0xf8] sm:$0xf]
  %v106 = vld [vmem:[%s1 + $0xfc] sm:$0xf]
  %v107 = vld [vmem:[%s1 + $0x100] sm:$0xf]
  %v108 = vld [vmem:[%s1 + $0x104] sm:$0xf]
  %v109 = vld [vmem:[%s1 + $0x108] sm:$0xf]
  %v110 = vld [vmem:[%s1 + $0x10c] sm:$0xf]
  %v111 = vld [vmem:[%s1 + $0x110] sm:$0xf]
  %v112 = vld [vmem:[%s1 + $0x114] sm:$0xf]
  %v113 = vld [vmem:[%s1 + $0x118] sm:$0xf]
  %v114 = vld [vmem:[%s1 + $0x11c] sm:$0xf]
  %v127 = vunpack.c.l.b16 %v31
  %v128 = vunpack.c.h.b16 %v31
  %v129 = vunpack.c.l.b16 %v32
  %v130 = vunpack.c.h.b16 %v32
  %v131 = vunpack.c.l.b16 %v33
  %v132 = vunpack.c.l.b16 %v34
  %v133 = vunpack.c.h.b16 %v34
  %v134 = vunpack.c.l.b16 %v35
  %v135 = vunpack.c.h.b16 %v35
  %v136 = vunpack.c.l.b16 %v36
  %v137 = vunpack.c.l.b16 %v37
  %v138 = vunpack.c.h.b16 %v37
  %v139 = vunpack.c.l.b16 %v38
  %v140 = vunpack.c.h.b16 %v38
  %v141 = vunpack.c.l.b16 %v39
  %v142 = vunpack.c.l.b16 %v40
  %v143 = vunpack.c.h.b16 %v40
  %v144 = vunpack.c.l.b16 %v41
  %v145 = vunpack.c.h.b16 %v41
  %v146 = vunpack.c.l.b16 %v42
  %v147 = vpack.c.b16 %v132, %v127
  %v148 = vpack.c.b16 %v133, %v128
  %v149 = vpack.c.b16 %v134, %v129
  %v150 = vpack.c.b16 %v135, %v130
  %v151 = vpack.c.b16 %v136, %v131
  %v152 = vpack.c.b16 %v142, %v137
  %v153 = vpack.c.b16 %v143, %v138
  %v154 = vpack.c.b16 %v144, %v139
  %v155 = vpack.c.b16 %v145, %v140
  %v156 = vpack.c.b16 %v146, %v141
  %v237 = vunpack.c.l.b16 %v43
  %v238 = vunpack.c.l.b16 %v44
  %v239 = vunpack.c.l.b16 %v45
  %v240 = vunpack.c.l.b16 %v46
  %v241 = vunpack.c.l.b16 %v47
  %v242 = vunpack.c.l.b16 %v48
  %v243 = vunpack.c.l.b16 %v49
  %v244 = vunpack.c.l.b16 %v50
  %v245 = vunpack.c.l.b16 %v51
  %v246 = vunpack.c.l.b16 %v52
  %v247 = vunpack.c.l.b16 %v53
  %v248 = vunpack.c.l.b16 %v54
  %v249 = vunpack.c.l.b16 %v55
  %v250 = vunpack.c.l.b16 %v56
  %v251 = vunpack.c.l.b16 %v57
  %v252 = vunpack.c.l.b16 %v58
  %v253 = vunpack.c.l.b16 %v59
  %v254 = vunpack.c.l.b16 %v60
  %v255 = vunpack.c.l.b16 %v61
  %v256 = vunpack.c.l.b16 %v62
  %v257 = vunpack.c.l.b16 %v63
  %v258 = vunpack.c.l.b16 %v64
  %v259 = vunpack.c.l.b16 %v65
  %v260 = vunpack.c.l.b16 %v66
  %v261 = vunpack.c.l.b16 %v67
  %v262 = vunpack.c.l.b16 %v68
  %v263 = vunpack.c.l.b16 %v69
  %v264 = vunpack.c.l.b16 %v70
  %v265 = vunpack.c.l.b16 %v71
  %v266 = vunpack.c.l.b16 %v72
  %v267 = vunpack.c.l.b16 %v73
  %v268 = vunpack.c.l.b16 %v74
  %v269 = vunpack.c.l.b16 %v75
  %v270 = vunpack.c.l.b16 %v76
  %v271 = vunpack.c.l.b16 %v77
  %v272 = vunpack.c.l.b16 %v78
  %v273 = vunpack.c.l.b16 %v79
  %v274 = vunpack.c.l.b16 %v80
  %v275 = vunpack.c.l.b16 %v81
  %v276 = vunpack.c.l.b16 %v82
  %v277 = vunpack.c.l.b16 %v83
  %v278 = vunpack.c.l.b16 %v84
  %v279 = vunpack.c.l.b16 %v85
  %v280 = vunpack.c.l.b16 %v86
  %v281 = vunpack.c.l.b16 %v87
  %v282 = vunpack.c.l.b16 %v88
  %v283 = vunpack.c.l.b16 %v89
  %v284 = vunpack.c.l.b16 %v90
  %v285 = vunpack.c.l.b16 %v91
  %v286 = vunpack.c.l.b16 %v92
  %v287 = vunpack.c.l.b16 %v93
  %v288 = vunpack.c.l.b16 %v94
  %v289 = vunpack.c.l.b16 %v95
  %v290 = vunpack.c.l.b16 %v96
  %v291 = vunpack.c.l.b16 %v97
  %v292 = vunpack.c.l.b16 %v98
  %v293 = vunpack.c.l.b16 %v99
  %v294 = vunpack.c.l.b16 %v100
  %v295 = vunpack.c.l.b16 %v101
  %v296 = vunpack.c.l.b16 %v102
  %v297 = vunpack.c.l.b16 %v103
  %v298 = vunpack.c.l.b16 %v104
  %v299 = vunpack.c.l.b16 %v105
  %v300 = vunpack.c.l.b16 %v106
  %v301 = vunpack.c.l.b16 %v107
  %v302 = vunpack.c.l.b16 %v108
  %v303 = vunpack.c.l.b16 %v109
  %v304 = vunpack.c.l.b16 %v110
  %v305 = vunpack.c.l.b16 %v111
  %v306 = vunpack.c.l.b16 %v112
  %v307 = vunpack.c.l.b16 %v113
  %v308 = vunpack.c.l.b16 %v114
  %v309 = vpack.c.b16 %v238, %v237
  %v310 = vpack.c.b16 %v240, %v239
  %v311 = vpack.c.b16 %v242, %v241
  %v312 = vpack.c.b16 %v244, %v243
  %v313 = vpack.c.b16 %v246, %v245
  %v314 = vpack.c.b16 %v248, %v247
  %v315 = vpack.c.b16 %v250, %v249
  %v316 = vpack.c.b16 %v252, %v251
  %v317 = vpack.c.b16 %v254, %v253
  %v318 = vpack.c.b16 %v256, %v255
  %v319 = vpack.c.b16 %v258, %v257
  %v320 = vpack.c.b16 %v260, %v259
  %v321 = vpack.c.b16 %v262, %v261
  %v322 = vpack.c.b16 %v264, %v263
  %v323 = vpack.c.b16 %v266, %v265
  %v324 = vpack.c.b16 %v268, %v267
  %v325 = vpack.c.b16 %v270, %v269
  %v326 = vpack.c.b16 %v272, %v271
  %v327 = vpack.c.b16 %v274, %v273
  %v328 = vpack.c.b16 %v276, %v275
  %v329 = vpack.c.b16 %v278, %v277
  %v330 = vpack.c.b16 %v280, %v279
  %v331 = vpack.c.b16 %v282, %v281
  %v332 = vpack.c.b16 %v284, %v283
  %v333 = vpack.c.b16 %v286, %v285
  %v334 = vpack.c.b16 %v288, %v287
  %v335 = vpack.c.b16 %v290, %v289
  %v336 = vpack.c.b16 %v292, %v291
  %v337 = vpack.c.b16 %v294, %v293
  %v338 = vpack.c.b16 %v296, %v295
  %v339 = vpack.c.b16 %v298, %v297
  %v340 = vpack.c.b16 %v300, %v299
  %v341 = vpack.c.b16 %v302, %v301
  %v342 = vpack.c.b16 %v304, %v303
  %v343 = vpack.c.b16 %v306, %v305
  %v344 = vpack.c.b16 %v308, %v307
  %vm381 = vcmask 523264
  %v383 = vsel %vm381, %v151, 0
  %v386 = vsel %vm381, %v156, 0
  %388 = vmatprep.subr.bf16.mxu0 0
  %389 = vmatpush1.bf16.msra.mxu0 %v309
  %390 = vmatprep.subr.bf16.mxu0 0
  %391 = vmatpush1.bf16.msra.mxu0 %v310
  %392 = vmatprep.subr.bf16.mxu0 0
  %393 = vmatpush1.bf16.msra.mxu0 %v311
  %394 = vmatprep.subr.bf16.mxu0 0
  %395 = vmatpush1.bf16.msra.mxu0 %v312
  %396 = vmatprep.subr.bf16.mxu0 0
  %397 = vmatpush1.bf16.msra.mxu0 %v313
  %398 = vmatprep.subr.bf16.mxu0 0
  %399 = vmatpush1.bf16.msra.mxu0 %v314
  %400 = vmatprep.subr.bf16.mxu0 0
  %401 = vmatpush1.bf16.msra.mxu0 %v315
  %402 = vmatprep.subr.bf16.mxu0 0
  %403 = vmatpush1.bf16.msra.mxu0 %v316
  %404 = vmatprep.subr.bf16.mxu0 0
  %405 = vmatpush1.bf16.msra.mxu0 %v317
  %406 = vmatprep.subr.bf16.mxu0 0
  %407 = vmatpush1.bf16.msra.mxu0 %v318
  %408 = vmatprep.subr.bf16.mxu0 0
  %409 = vmatpush1.bf16.msra.mxu0 %v319
  %410 = vmatprep.subr.bf16.mxu0 0
  %411 = vmatpush1.bf16.msra.mxu0 %v320
  %412 = vmatprep.subr.bf16.mxu0 0
  %413 = vmatpush1.bf16.msra.mxu0 %v321
  %414 = vmatprep.subr.bf16.mxu0 0
  %415 = vmatpush1.bf16.msra.mxu0 %v322
  %416 = vmatprep.subr.bf16.mxu0 0
  %417 = vmatpush1.bf16.msra.mxu0 %v323
  %418 = vmatprep.subr.bf16.mxu0 0
  %419 = vmatpush1.bf16.msra.mxu0 %v324
  %420 = vmatprep.mubr.bf16.mxu0 %v148
  %421 = vmatmul.mubr.bf16.gmra.mrb[0].mxu0 %v147
  %v422 = vpop.f32.mrb[0].mxu0
  %v423 = vadd.f32 0.0, %v422
  %v424 = vpop.f32.mrb[0].mxu0
  %v425 = vpop.f32.mrb[0].mxu0
  %v426 = vadd.f32 0.0, %v425
  %v427 = vpop.f32.mrb[0].mxu0
  %428 = vmatprep.mubr.bf16.mxu0 %v153
  %429 = vmatmul.mubr.bf16.gmra.mrb[0].mxu0 %v152
  %v430 = vpop.f32.mrb[0].mxu0
  %v431 = vadd.f32 0.0, %v430
  %v432 = vpop.f32.mrb[0].mxu0
  %v433 = vpop.f32.mrb[0].mxu0
  %v434 = vadd.f32 0.0, %v433
  %v435 = vpop.f32.mrb[0].mxu0
  %436 = vdwg.mxu0
  %437 = vmatprep.subr.bf16.mxu0 0
  %438 = vmatpush1.bf16.msra.mxu0 %v325
  %439 = vmatprep.subr.bf16.mxu0 0
  %440 = vmatpush1.bf16.msra.mxu0 %v326
  %441 = vmatprep.subr.bf16.mxu0 0
  %442 = vmatpush1.bf16.msra.mxu0 %v327
  %443 = vmatprep.subr.bf16.mxu0 0
  %444 = vmatpush1.bf16.msra.mxu0 %v328
  %445 = vmatprep.subr.bf16.mxu0 0
  %446 = vmatpush1.bf16.msra.mxu0 %v329
  %447 = vmatprep.subr.bf16.mxu0 0
  %448 = vmatpush1.bf16.msra.mxu0 %v330
  %449 = vmatprep.subr.bf16.mxu0 0
  %450 = vmatpush1.bf16.msra.mxu0 %v331
  %451 = vmatprep.subr.bf16.mxu0 0
  %452 = vmatpush1.bf16.msra.mxu0 %v332
  %453 = vmatprep.subr.bf16.mxu0 0
  %454 = vmatpush1.bf16.msra.mxu0 %v333
  %455 = vmatprep.subr.bf16.mxu0 0
  %456 = vmatpush1.bf16.msra.mxu0 %v334
  %457 = vmatprep.subr.bf16.mxu0 0
  %458 = vmatpush1.bf16.msra.mxu0 %v335
  %459 = vmatprep.subr.bf16.mxu0 0
  %460 = vmatpush1.bf16.msra.mxu0 %v336
  %461 = vmatprep.subr.bf16.mxu0 0
  %462 = vmatpush1.bf16.msra.mxu0 %v337
  %463 = vmatprep.subr.bf16.mxu0 0
  %464 = vmatpush1.bf16.msra.mxu0 %v338
  %465 = vmatprep.subr.bf16.mxu0 0
  %466 = vmatpush1.bf16.msra.mxu0 %v339
  %467 = vmatprep.subr.bf16.mxu0 0
  %468 = vmatpush1.bf16.msra.mxu0 %v340
  %469 = vmatprep.mubr.bf16.mxu0 %v150
  %470 = vmatmul.mubr.bf16.gmra.mrb[0].mxu0 %v149
  %v471 = vpop.f32.mrb[0].mxu0
  %v472 = vadd.f32 %v423, %v471
  %v473 = vpop.f32.mrb[0].mxu0
  %v474 = vpop.f32.mrb[0].mxu0
  %v475 = vadd.f32 %v426, %v474
  %v476 = vpop.f32.mrb[0].mxu0
  %477 = vmatprep.mubr.bf16.mxu0 %v155
  %478 = vmatmul.mubr.bf16.gmra.mrb[0].mxu0 %v154
  %v479 = vpop.f32.mrb[0].mxu0
  %v480 = vadd.f32 %v431, %v479
  %v481 = vpop.f32.mrb[0].mxu0
  %v482 = vpop.f32.mrb[0].mxu0
  %v483 = vadd.f32 %v434, %v482
  %v484 = vpop.f32.mrb[0].mxu0
  %485 = vdwg.mxu0
  %486 = vmatprep.subr.bf16.mxu0 0
  %487 = vmatpush1.bf16.msra.mxu0 %v341
  %488 = vmatprep.subr.bf16.mxu0 0
  %489 = vmatpush1.bf16.msra.mxu0 %v342
  %490 = vmatprep.subr.bf16.mxu0 0
  %491 = vmatpush1.bf16.msra.mxu0 %v343
  %492 = vmatprep.subr.bf16.mxu0 0
  %493 = vmatpush1.bf16.msra.mxu0 %v344
  %494 = vmatprep.subr.bf16.mxu0 0
  %495 = vmatpush1.bf16.msra.mxu0 0
  %496 = vmatprep.subr.bf16.mxu0 0
  %497 = vmatpush1.bf16.msra.mxu0 0
  %498 = vmatprep.subr.bf16.mxu0 0
  %499 = vmatpush1.bf16.msra.mxu0 0
  %500 = vmatprep.subr.bf16.mxu0 0
  %501 = vmatpush1.bf16.msra.mxu0 0
  %502 = vmatprep.subr.bf16.mxu0 0
  %503 = vmatpush1.bf16.msra.mxu0 0
  %504 = vmatprep.subr.bf16.mxu0 0
  %505 = vmatpush1.bf16.msra.mxu0 0
  %506 = vmatprep.subr.bf16.mxu0 0
  %507 = vmatpush1.bf16.msra.mxu0 0
  %508 = vmatprep.subr.bf16.mxu0 0
  %509 = vmatpush1.bf16.msra.mxu0 0
  %510 = vmatprep.subr.bf16.mxu0 0
  %511 = vmatpush1.bf16.msra.mxu0 0
  %512 = vmatprep.subr.bf16.mxu0 0
  %513 = vmatpush1.bf16.msra.mxu0 0
  %514 = vmatprep.subr.bf16.mxu0 0
  %515 = vmatpush1.bf16.msra.mxu0 0
  %516 = vmatprep.subr.bf16.mxu0 0
  %517 = vmatpush1.bf16.msra.mxu0 0
  %518 = vmatprep.mubr.bf16.mxu0 0
  %519 = vmatmul.mubr.bf16.gmra.mrb[0].mxu0 %v383
  %v520 = vpop.f32.mrb[0].mxu0
  %v521 = vadd.f32 %v472, %v520
  %v522 = vpop.f32.mrb[0].mxu0
  %v523 = vpop.f32.mrb[0].mxu0
  %v524 = vadd.f32 %v475, %v523
  %v525 = vpop.f32.mrb[0].mxu0
  %526 = vmatprep.mubr.bf16.mxu0 0
  %527 = vmatmul.mubr.bf16.gmra.mrb[0].mxu0 %v386
  %v528 = vpop.f32.mrb[0].mxu0
  %v529 = vadd.f32 %v480, %v528
  %v530 = vpop.f32.mrb[0].mxu0
  %v531 = vpop.f32.mrb[0].mxu0
  %v532 = vadd.f32 %v483, %v531
  %v533 = vpop.f32.mrb[0].mxu0
  %534 = vdwg.mxu0
  %v535 = vadd.f32 %v27, %v521
  %v536 = vadd.f32 %v28, %v524
  %v537 = vadd.f32 %v29, %v529
  %v538 = vadd.f32 %v30, %v532
  %539 = vst.msk [vmem:[#allocation2] sm:$0xff] %vm381, %v535
  %540 = vst.msk [vmem:[#allocation2 + $0x8] sm:$0xff] %vm381, %v536
  %541 = vst.msk [vmem:[#allocation2 + $0x10] sm:$0xff] %vm381, %v537
  %542 = vst.msk [vmem:[#allocation2 + $0x18] sm:$0xff] %vm381, %v538
  // Predicated region
  $region22: #{_lambda_.16} parent=0 // pred_check
    %p543 = pneg %p18
  $region23: #{_lambda_.16} parent=0 // pred_check_branch
    %545 = sbr.rel (%p543) target = $region25
  $region24: #{_lambda_.16} parent=0 // pred_region
    %v546 = vld [vmem:[#allocation2] sm:$0xff]
    %v547 = vld [vmem:[#allocation2 + $0x8] sm:$0xff]
    %v548 = vld [vmem:[#allocation2 + $0x10] sm:$0xff]
    %v549 = vld [vmem:[#allocation2 + $0x18] sm:$0xff]
    %v550 = vld [vmem:[%s2] sm:$0x1]
    %v552 = vlaneseq
    %v553 = vshrl.u32 %v552, 7
    %v554 = vsub.s32 0, %v553
    %v555 = vrot.slane %v550, %v554
    %v557 = vmul.f32 %v546, %v555
    %v558 = vmul.f32 %v547, %v555
    %v559 = vmul.f32 %v548, %v555
    %v560 = vmul.f32 %v549, %v555
    %v561 = vld [vmem:[%s3] sm:$0x1]
    %v563 = vlaneseq
    %v564 = vshrl.u32 %v563, 7
    %v565 = vsub.s32 0, %v564
    %v566 = vrot.slane %v561, %v565
    %v568 = vadd.f32 %v557, %v566
    %v569 = vadd.f32 %v558, %v566
    %v570 = vadd.f32 %v559, %v566
    %v571 = vadd.f32 %v560, %v566
    %v572 = vmax.f32 %v568, 0.0
    %v573 = vmax.f32 %v569, 0.0
    %v574 = vmax.f32 %v570, 0.0
    %v575 = vmax.f32 %v571, 0.0
    %v576 = vpack.c.bf16 %v573, %v572
    %v577 = vpack.c.bf16 %v575, %v574
    %v580 = vunpack.c.l.b16 %v576
    %v581 = vunpack.c.h.b16 %v576
    %v582 = vunpack.c.l.b16 %v577
    %v583 = vunpack.c.h.b16 %v577
    %v584 = vpack.c.b16 %v580, %v580
    %v585 = vpack.c.b16 %v581, %v581
    %v586 = vpack.c.b16 %v582, %v582
    %v587 = vpack.c.b16 %v583, %v583
    %vm592 = vcmask 519168
    %593 = vst.msk [vmem:[%s4] sm:$0xf] %vm592, %v584
    %594 = vst.msk [vmem:[%s4 + $0x4] sm:$0xf] %vm592, %v585
    %595 = vst.msk [vmem:[%s4 + $0x8] sm:$0xf] %vm592, %v586
    %596 = vst.msk [vmem:[%s4 + $0xc] sm:$0xf] %vm592, %v587
  $region25: #{_lambda_.16} parent=0 // pred_fallthru
    _
  // Predicated region
  $region26: #{_lambda_.16} parent=0 // pred_check
    _
  $region27: #{_lambda_.16} parent=0 // pred_check_branch
    %598 = sbr.rel (0) target = $region29
  $region28: #{_lambda_.16} parent=0 // pred_region
    _
  $region29: #{_lambda_.16} parent=0 // pred_fallthru
    _
  // Predicated region
  $region30: #{_lambda_.16} parent=0 // pred_check
    _
  $region31: #{_lambda_.16} parent=0 // pred_check_branch
    %600 = sbr.rel (0) target = $region33
  $region32: #{_lambda_.16} parent=0 // pred_region
    _
  $region33: #{_lambda_.16} parent=0 // pred_fallthru
    _

// kernel: _lambda_.17
$region0: #{_lambda_.17}
  #allocation0 [shape = 'u32[]', space=smem, size = 0x4, offset = 0x4, fixed_abs, tag = 'smem constant byte address 0x4 - core index']
  #allocation1 [shape = 'u32[144,128]{1,0:T(1,128)}', space=vmem, size = 0x12000, scoped, tag = 'internal scratch']
  #allocation2 [shape = 'f32[32,64]{1,0:T(8,128)}', space=vmem, size = 0x4000, scoped, tag = 'scratch operand']
  %s0 = inlined_call_operand.vmem [shape: bf16[32,576], index: 0, kind: input, shape index: {}]
  %s1 = inlined_call_operand.vmem [shape: bf16[576,64], index: 1, kind: input, shape index: {}]
  %s2 = inlined_call_operand.vmem [shape: f32[1,64], index: 2, kind: input, shape index: {}]
  %s3 = inlined_call_operand.vmem [shape: f32[1,64], index: 3, kind: input, shape index: {}]
  %s4 = inlined_call_operand.vmem [shape: bf16[32,64], index: 4, kind: input, shape index: {}]
  %s5 = inlined_call_operand.vmem [shape: bf16[32,64], index: 5, kind: output, shape index: {}]
  %s6 = sld [smem:[#allocation0]]
  $region38: #{_lambda_.17} parent=0
    _
  %s8 = ssub.s32 1, %s6
  %s9 = scalar_select 0, %s8, %s6
  // Predicated region
  $region2: #{_lambda_.17} parent=0 // pred_check
    _
  $region3: #{_lambda_.17} parent=0 // pred_check_branch
    %11 = sbr.rel (0) target = $region5
  $region4: #{_lambda_.17} parent=0 // pred_region
    _
  $region5: #{_lambda_.17} parent=0 // pred_fallthru
    _
  // Predicated region
  $region6: #{_lambda_.17} parent=0 // pred_check
    _
  $region7: #{_lambda_.17} parent=0 // pred_check_branch
    %13 = sbr.rel (0) target = $region9
  $region8: #{_lambda_.17} parent=0 // pred_region
    _
  $region9: #{_lambda_.17} parent=0 // pred_fallthru
    _
  // Predicated region
  $region10: #{_lambda_.17} parent=0 // pred_check
    _
  $region11: #{_lambda_.17} parent=0 // pred_check_branch
    %15 = sbr.rel (0) target = $region13
  $region12: #{_lambda_.17} parent=0 // pred_region
    _
  $region13: #{_lambda_.17} parent=0 // pred_fallthru
    _
  // Predicated region
  $region14: #{_lambda_.17} parent=0 // pred_check
    _
  $region15: #{_lambda_.17} parent=0 // pred_check_branch
    %17 = sbr.rel (0) target = $region17
  $region16: #{_lambda_.17} parent=0 // pred_region
    _
  $region17: #{_lambda_.17} parent=0 // pred_fallthru
    _
  // Predicated region
  $region18: #{_lambda_.17} parent=0 // pred_check
    _
  $region19: #{_lambda_.17} parent=0 // pred_check_branch
    %19 = sbr.rel (0) target = $region21
  $region20: #{_lambda_.17} parent=0 // pred_region
    _
  $region21: #{_lambda_.17} parent=0 // pred_fallthru
    _
  %p21 = scmp.eq.s32.totalorder 0, 0
  // Predicated region
  $region22: #{_lambda_.17} parent=0 // pred_check
    %p22 = pneg %p21
  $region23: #{_lambda_.17} parent=0 // pred_check_branch
    %24 = sbr.rel (%p22) target = $region25
  $region24: #{_lambda_.17} parent=0 // pred_region
    %vm25 = vcmask 523264
    %26 = vst.msk [vmem:[#allocation2] sm:$0xff] %vm25, 0.0
    %27 = vst.msk [vmem:[#allocation2 + $0x8] sm:$0xff] %vm25, 0.0
    %28 = vst.msk [vmem:[#allocation2 + $0x10] sm:$0xff] %vm25, 0.0
    %29 = vst.msk [vmem:[#allocation2 + $0x18] sm:$0xff] %vm25, 0.0
  $region25: #{_lambda_.17} parent=0 // pred_fallthru
    _
  %v30 = vld [vmem:[#allocation2] sm:$0xff]
  %v31 = vld [vmem:[#allocation2 + $0x8] sm:$0xff]
  %v32 = vld [vmem:[#allocation2 + $0x10] sm:$0xff]
  %v33 = vld [vmem:[#allocation2 + $0x18] sm:$0xff]
  %v34 = vld [vmem:[%s0] sm:$0xff]
  %v35 = vld [vmem:[%s0 + $0x8] sm:$0xff]
  %v36 = vld [vmem:[%s0 + $0x10] sm:$0xf]
  %v37 = vld [vmem:[%s0 + $0x14] sm:$0xff]
  %v38 = vld [vmem:[%s0 + $0x1c] sm:$0xff]
  %v39 = vld [vmem:[%s0 + $0x24] sm:$0xf]
  %v40 = vld [vmem:[%s0 + $0x28] sm:$0xff]
  %v41 = vld [vmem:[%s0 + $0x30] sm:$0xff]
  %v42 = vld [vmem:[%s0 + $0x38] sm:$0xf]
  %v43 = vld [vmem:[%s0 + $0x3c] sm:$0xff]
  %v44 = vld [vmem:[%s0 + $0x44] sm:$0xff]
  %v45 = vld [vmem:[%s0 + $0x4c] sm:$0xf]
  %v46 = vld [vmem:[%s1] sm:$0xf]
  %v47 = vld [vmem:[%s1 + $0x4] sm:$0xf]
  %v48 = vld [vmem:[%s1 + $0x8] sm:$0xf]
  %v49 = vld [vmem:[%s1 + $0xc] sm:$0xf]
  %v50 = vld [vmem:[%s1 + $0x10] sm:$0xf]
  %v51 = vld [vmem:[%s1 + $0x14] sm:$0xf]
  %v52 = vld [vmem:[%s1 + $0x18] sm:$0xf]
  %v53 = vld [vmem:[%s1 + $0x1c] sm:$0xf]
  %v54 = vld [vmem:[%s1 + $0x20] sm:$0xf]
  %v55 = vld [vmem:[%s1 + $0x24] sm:$0xf]
  %v56 = vld [vmem:[%s1 + $0x28] sm:$0xf]
  %v57 = vld [vmem:[%s1 + $0x2c] sm:$0xf]
  %v58 = vld [vmem:[%s1 + $0x30] sm:$0xf]
  %v59 = vld [vmem:[%s1 + $0x34] sm:$0xf]
  %v60 = vld [vmem:[%s1 + $0x38] sm:$0xf]
  %v61 = vld [vmem:[%s1 + $0x3c] sm:$0xf]
  %v62 = vld [vmem:[%s1 + $0x40] sm:$0xf]
  %v63 = vld [vmem:[%s1 + $0x44] sm:$0xf]
  %v64 = vld [vmem:[%s1 + $0x48] sm:$0xf]
  %v65 = vld [vmem:[%s1 + $0x4c] sm:$0xf]
  %v66 = vld [vmem:[%s1 + $0x50] sm:$0xf]
  %v67 = vld [vmem:[%s1 + $0x54] sm:$0xf]
  %v68 = vld [vmem:[%s1 + $0x58] sm:$0xf]
  %v69 = vld [vmem:[%s1 + $0x5c] sm:$0xf]
  %v70 = vld [vmem:[%s1 + $0x60] sm:$0xf]
  %v71 = vld [vmem:[%s1 + $0x64] sm:$0xf]
  %v72 = vld [vmem:[%s1 + $0x68] sm:$0xf]
  %v73 = vld [vmem:[%s1 + $0x6c] sm:$0xf]
  %v74 = vld [vmem:[%s1 + $0x70] sm:$0xf]
  %v75 = vld [vmem:[%s1 + $0x74] sm:$0xf]
  %v76 = vld [vmem:[%s1 + $0x78] sm:$0xf]
  %v77 = vld [vmem:[%s1 + $0x7c] sm:$0xf]
  %v78 = vld [vmem:[%s1 + $0x80] sm:$0xf]
  %v79 = vld [vmem:[%s1 + $0x84] sm:$0xf]
  %v80 = vld [vmem:[%s1 + $0x88] sm:$0xf]
  %v81 = vld [vmem:[%s1 + $0x8c] sm:$0xf]
  %v82 = vld [vmem:[%s1 + $0x90] sm:$0xf]
  %v83 = vld [vmem:[%s1 + $0x94] sm:$0xf]
  %v84 = vld [vmem:[%s1 + $0x98] sm:$0xf]
  %v85 = vld [vmem:[%s1 + $0x9c] sm:$0xf]
  %v86 = vld [vmem:[%s1 + $0xa0] sm:$0xf]
  %v87 = vld [vmem:[%s1 + $0xa4] sm:$0xf]
  %v88 = vld [vmem:[%s1 + $0xa8] sm:$0xf]
  %v89 = vld [vmem:[%s1 + $0xac] sm:$0xf]
  %v90 = vld [vmem:[%s1 + $0xb0] sm:$0xf]
  %v91 = vld [vmem:[%s1 + $0xb4] sm:$0xf]
  %v92 = vld [vmem:[%s1 + $0xb8] sm:$0xf]
  %v93 = vld [vmem:[%s1 + $0xbc] sm:$0xf]
  %v94 = vld [vmem:[%s1 + $0xc0] sm:$0xf]
  %v95 = vld [vmem:[%s1 + $0xc4] sm:$0xf]
  %v96 = vld [vmem:[%s1 + $0xc8] sm:$0xf]
  %v97 = vld [vmem:[%s1 + $0xcc] sm:$0xf]
  %v98 = vld [vmem:[%s1 + $0xd0] sm:$0xf]
  %v99 = vld [vmem:[%s1 + $0xd4] sm:$0xf]
  %v100 = vld [vmem:[%s1 + $0xd8] sm:$0xf]
  %v101 = vld [vmem:[%s1 + $0xdc] sm:$0xf]
  %v102 = vld [vmem:[%s1 + $0xe0] sm:$0xf]
  %v103 = vld [vmem:[%s1 + $0xe4] sm:$0xf]
  %v104 = vld [vmem:[%s1 + $0xe8] sm:$0xf]
  %v105 = vld [vmem:[%s1 + $0xec] sm:$0xf]
  %v106 = vld [vmem:[%s1 + $0xf0] sm:$0xf]
  %v107 = vld [vmem:[%s1 + $0xf4] sm:$0xf]
  %v108 = vld [vmem:[%s1 + $0xf8] sm:$0xf]
  %v109 = vld [vmem:[%s1 + $0xfc] sm:$0xf]
  %v110 = vld [vmem:[%s1 + $0x100] sm:$0xf]
  %v111 = vld [vmem:[%s1 + $0x104] sm:$0xf]
  %v112 = vld [vmem:[%s1 + $0x108] sm:$0xf]
  %v113 = vld [vmem:[%s1 + $0x10c] sm:$0xf]
  %v114 = vld [vmem:[%s1 + $0x110] sm:$0xf]
  %v115 = vld [vmem:[%s1 + $0x114] sm:$0xf]
  %v116 = vld [vmem:[%s1 + $0x118] sm:$0xf]
  %v117 = vld [vmem:[%s1 + $0x11c] sm:$0xf]
  %v130 = vunpack.c.l.b16 %v34
  %v131 = vunpack.c.h.b16 %v34
  %v132 = vunpack.c.l.b16 %v35
  %v133 = vunpack.c.h.b16 %v35
  %v134 = vunpack.c.l.b16 %v36
  %v135 = vunpack.c.l.b16 %v37
  %v136 = vunpack.c.h.b16 %v37
  %v137 = vunpack.c.l.b16 %v38
  %v138 = vunpack.c.h.b16 %v38
  %v139 = vunpack.c.l.b16 %v39
  %v140 = vunpack.c.l.b16 %v40
  %v141 = vunpack.c.h.b16 %v40
  %v142 = vunpack.c.l.b16 %v41
  %v143 = vunpack.c.h.b16 %v41
  %v144 = vunpack.c.l.b16 %v42
  %v145 = vunpack.c.l.b16 %v43
  %v146 = vunpack.c.h.b16 %v43
  %v147 = vunpack.c.l.b16 %v44
  %v148 = vunpack.c.h.b16 %v44
  %v149 = vunpack.c.l.b16 %v45
  %v150 = vpack.c.b16 %v135, %v130
  %v151 = vpack.c.b16 %v136, %v131
  %v152 = vpack.c.b16 %v137, %v132
  %v153 = vpack.c.b16 %v138, %v133
  %v154 = vpack.c.b16 %v139, %v134
  %v155 = vpack.c.b16 %v145, %v140
  %v156 = vpack.c.b16 %v146, %v141
  %v157 = vpack.c.b16 %v147, %v142
  %v158 = vpack.c.b16 %v148, %v143
  %v159 = vpack.c.b16 %v149, %v144
  %v240 = vunpack.c.l.b16 %v46
  %v241 = vunpack.c.l.b16 %v47
  %v242 = vunpack.c.l.b16 %v48
  %v243 = vunpack.c.l.b16 %v49
  %v244 = vunpack.c.l.b16 %v50
  %v245 = vunpack.c.l.b16 %v51
  %v246 = vunpack.c.l.b16 %v52
  %v247 = vunpack.c.l.b16 %v53
  %v248 = vunpack.c.l.b16 %v54
  %v249 = vunpack.c.l.b16 %v55
  %v250 = vunpack.c.l.b16 %v56
  %v251 = vunpack.c.l.b16 %v57
  %v252 = vunpack.c.l.b16 %v58
  %v253 = vunpack.c.l.b16 %v59
  %v254 = vunpack.c.l.b16 %v60
  %v255 = vunpack.c.l.b16 %v61
  %v256 = vunpack.c.l.b16 %v62
  %v257 = vunpack.c.l.b16 %v63
  %v258 = vunpack.c.l.b16 %v64
  %v259 = vunpack.c.l.b16 %v65
  %v260 = vunpack.c.l.b16 %v66
  %v261 = vunpack.c.l.b16 %v67
  %v262 = vunpack.c.l.b16 %v68
  %v263 = vunpack.c.l.b16 %v69
  %v264 = vunpack.c.l.b16 %v70
  %v265 = vunpack.c.l.b16 %v71
  %v266 = vunpack.c.l.b16 %v72
  %v267 = vunpack.c.l.b16 %v73
  %v268 = vunpack.c.l.b16 %v74
  %v269 = vunpack.c.l.b16 %v75
  %v270 = vunpack.c.l.b16 %v76
  %v271 = vunpack.c.l.b16 %v77
  %v272 = vunpack.c.l.b16 %v78
  %v273 = vunpack.c.l.b16 %v79
  %v274 = vunpack.c.l.b16 %v80
  %v275 = vunpack.c.l.b16 %v81
  %v276 = vunpack.c.l.b16 %v82
  %v277 = vunpack.c.l.b16 %v83
  %v278 = vunpack.c.l.b16 %v84
  %v279 = vunpack.c.l.b16 %v85
  %v280 = vunpack.c.l.b16 %v86
  %v281 = vunpack.c.l.b16 %v87
  %v282 = vunpack.c.l.b16 %v88
  %v283 = vunpack.c.l.b16 %v89
  %v284 = vunpack.c.l.b16 %v90
  %v285 = vunpack.c.l.b16 %v91
  %v286 = vunpack.c.l.b16 %v92
  %v287 = vunpack.c.l.b16 %v93
  %v288 = vunpack.c.l.b16 %v94
  %v289 = vunpack.c.l.b16 %v95
  %v290 = vunpack.c.l.b16 %v96
  %v291 = vunpack.c.l.b16 %v97
  %v292 = vunpack.c.l.b16 %v98
  %v293 = vunpack.c.l.b16 %v99
  %v294 = vunpack.c.l.b16 %v100
  %v295 = vunpack.c.l.b16 %v101
  %v296 = vunpack.c.l.b16 %v102
  %v297 = vunpack.c.l.b16 %v103
  %v298 = vunpack.c.l.b16 %v104
  %v299 = vunpack.c.l.b16 %v105
  %v300 = vunpack.c.l.b16 %v106
  %v301 = vunpack.c.l.b16 %v107
  %v302 = vunpack.c.l.b16 %v108
  %v303 = vunpack.c.l.b16 %v109
  %v304 = vunpack.c.l.b16 %v110
  %v305 = vunpack.c.l.b16 %v111
  %v306 = vunpack.c.l.b16 %v112
  %v307 = vunpack.c.l.b16 %v113
  %v308 = vunpack.c.l.b16 %v114
  %v309 = vunpack.c.l.b16 %v115
  %v310 = vunpack.c.l.b16 %v116
  %v311 = vunpack.c.l.b16 %v117
  %v312 = vpack.c.b16 %v241, %v240
  %v313 = vpack.c.b16 %v243, %v242
  %v314 = vpack.c.b16 %v245, %v244
  %v315 = vpack.c.b16 %v247, %v246
  %v316 = vpack.c.b16 %v249, %v248
  %v317 = vpack.c.b16 %v251, %v250
  %v318 = vpack.c.b16 %v253, %v252
  %v319 = vpack.c.b16 %v255, %v254
  %v320 = vpack.c.b16 %v257, %v256
  %v321 = vpack.c.b16 %v259, %v258
  %v322 = vpack.c.b16 %v261, %v260
  %v323 = vpack.c.b16 %v263, %v262
  %v324 = vpack.c.b16 %v265, %v264
  %v325 = vpack.c.b16 %v267, %v266
  %v326 = vpack.c.b16 %v269, %v268
  %v327 = vpack.c.b16 %v271, %v270
  %v328 = vpack.c.b16 %v273, %v272
  %v329 = vpack.c.b16 %v275, %v274
  %v330 = vpack.c.b16 %v277, %v276
  %v331 = vpack.c.b16 %v279, %v278
  %v332 = vpack.c.b16 %v281, %v280
  %v333 = vpack.c.b16 %v283, %v282
  %v334 = vpack.c.b16 %v285, %v284
  %v335 = vpack.c.b16 %v287, %v286
  %v336 = vpack.c.b16 %v289, %v288
  %v337 = vpack.c.b16 %v291, %v290
  %v338 = vpack.c.b16 %v293, %v292
  %v339 = vpack.c.b16 %v295, %v294
  %v340 = vpack.c.b16 %v297, %v296
  %v341 = vpack.c.b16 %v299, %v298
  %v342 = vpack.c.b16 %v301, %v300
  %v343 = vpack.c.b16 %v303, %v302
  %v344 = vpack.c.b16 %v305, %v304
  %v345 = vpack.c.b16 %v307, %v306
  %v346 = vpack.c.b16 %v309, %v308
  %v347 = vpack.c.b16 %v311, %v310
  %vm384 = vcmask 523264
  %v386 = vsel %vm384, %v154, 0
  %v389 = vsel %vm384, %v159, 0
  %391 = vmatprep.subr.bf16.mxu0 0
  %392 = vmatpush1.bf16.msra.mxu0 %v312
  %393 = vmatprep.subr.bf16.mxu0 0
  %394 = vmatpush1.bf16.msra.mxu0 %v313
  %395 = vmatprep.subr.bf16.mxu0 0
  %396 = vmatpush1.bf16.msra.mxu0 %v314
  %397 = vmatprep.subr.bf16.mxu0 0
  %398 = vmatpush1.bf16.msra.mxu0 %v315
  %399 = vmatprep.subr.bf16.mxu0 0
  %400 = vmatpush1.bf16.msra.mxu0 %v316
  %401 = vmatprep.subr.bf16.mxu0 0
  %402 = vmatpush1.bf16.msra.mxu0 %v317
  %403 = vmatprep.subr.bf16.mxu0 0
  %404 = vmatpush1.bf16.msra.mxu0 %v318
  %405 = vmatprep.subr.bf16.mxu0 0
  %406 = vmatpush1.bf16.msra.mxu0 %v319
  %407 = vmatprep.subr.bf16.mxu0 0
  %408 = vmatpush1.bf16.msra.mxu0 %v320
  %409 = vmatprep.subr.bf16.mxu0 0
  %410 = vmatpush1.bf16.msra.mxu0 %v321
  %411 = vmatprep.subr.bf16.mxu0 0
  %412 = vmatpush1.bf16.msra.mxu0 %v322
  %413 = vmatprep.subr.bf16.mxu0 0
  %414 = vmatpush1.bf16.msra.mxu0 %v323
  %415 = vmatprep.subr.bf16.mxu0 0
  %416 = vmatpush1.bf16.msra.mxu0 %v324
  %417 = vmatprep.subr.bf16.mxu0 0
  %418 = vmatpush1.bf16.msra.mxu0 %v325
  %419 = vmatprep.subr.bf16.mxu0 0
  %420 = vmatpush1.bf16.msra.mxu0 %v326
  %421 = vmatprep.subr.bf16.mxu0 0
  %422 = vmatpush1.bf16.msra.mxu0 %v327
  %423 = vmatprep.mubr.bf16.mxu0 %v151
  %424 = vmatmul.mubr.bf16.gmra.mrb[0].mxu0 %v150
  %v425 = vpop.f32.mrb[0].mxu0
  %v426 = vadd.f32 0.0, %v425
  %v427 = vpop.f32.mrb[0].mxu0
  %v428 = vpop.f32.mrb[0].mxu0
  %v429 = vadd.f32 0.0, %v428
  %v430 = vpop.f32.mrb[0].mxu0
  %431 = vmatprep.mubr.bf16.mxu0 %v156
  %432 = vmatmul.mubr.bf16.gmra.mrb[0].mxu0 %v155
  %v433 = vpop.f32.mrb[0].mxu0
  %v434 = vadd.f32 0.0, %v433
  %v435 = vpop.f32.mrb[0].mxu0
  %v436 = vpop.f32.mrb[0].mxu0
  %v437 = vadd.f32 0.0, %v436
  %v438 = vpop.f32.mrb[0].mxu0
  %439 = vdwg.mxu0
  %440 = vmatprep.subr.bf16.mxu0 0
  %441 = vmatpush1.bf16.msra.mxu0 %v328
  %442 = vmatprep.subr.bf16.mxu0 0
  %443 = vmatpush1.bf16.msra.mxu0 %v329
  %444 = vmatprep.subr.bf16.mxu0 0
  %445 = vmatpush1.bf16.msra.mxu0 %v330
  %446 = vmatprep.subr.bf16.mxu0 0
  %447 = vmatpush1.bf16.msra.mxu0 %v331
  %448 = vmatprep.subr.bf16.mxu0 0
  %449 = vmatpush1.bf16.msra.mxu0 %v332
  %450 = vmatprep.subr.bf16.mxu0 0
  %451 = vmatpush1.bf16.msra.mxu0 %v333
  %452 = vmatprep.subr.bf16.mxu0 0
  %453 = vmatpush1.bf16.msra.mxu0 %v334
  %454 = vmatprep.subr.bf16.mxu0 0
  %455 = vmatpush1.bf16.msra.mxu0 %v335
  %456 = vmatprep.subr.bf16.mxu0 0
  %457 = vmatpush1.bf16.msra.mxu0 %v336
  %458 = vmatprep.subr.bf16.mxu0 0
  %459 = vmatpush1.bf16.msra.mxu0 %v337
  %460 = vmatprep.subr.bf16.mxu0 0
  %461 = vmatpush1.bf16.msra.mxu0 %v338
  %462 = vmatprep.subr.bf16.mxu0 0
  %463 = vmatpush1.bf16.msra.mxu0 %v339
  %464 = vmatprep.subr.bf16.mxu0 0
  %465 = vmatpush1.bf16.msra.mxu0 %v340
  %466 = vmatprep.subr.bf16.mxu0 0
  %467 = vmatpush1.bf16.msra.mxu0 %v341
  %468 = vmatprep.subr.bf16.mxu0 0
  %469 = vmatpush1.bf16.msra.mxu0 %v342
  %470 = vmatprep.subr.bf16.mxu0 0
  %471 = vmatpush1.bf16.msra.mxu0 %v343
  %472 = vmatprep.mubr.bf16.mxu0 %v153
  %473 = vmatmul.mubr.bf16.gmra.mrb[0].mxu0 %v152
  %v474 = vpop.f32.mrb[0].mxu0
  %v475 = vadd.f32 %v426, %v474
  %v476 = vpop.f32.mrb[0].mxu0
  %v477 = vpop.f32.mrb[0].mxu0
  %v478 = vadd.f32 %v429, %v477
  %v479 = vpop.f32.mrb[0].mxu0
  %480 = vmatprep.mubr.bf16.mxu0 %v158
  %481 = vmatmul.mubr.bf16.gmra.mrb[0].mxu0 %v157
  %v482 = vpop.f32.mrb[0].mxu0
  %v483 = vadd.f32 %v434, %v482
  %v484 = vpop.f32.mrb[0].mxu0
  %v485 = vpop.f32.mrb[0].mxu0
  %v486 = vadd.f32 %v437, %v485
  %v487 = vpop.f32.mrb[0].mxu0
  %488 = vdwg.mxu0
  %489 = vmatprep.subr.bf16.mxu0 0
  %490 = vmatpush1.bf16.msra.mxu0 %v344
  %491 = vmatprep.subr.bf16.mxu0 0
  %492 = vmatpush1.bf16.msra.mxu0 %v345
  %493 = vmatprep.subr.bf16.mxu0 0
  %494 = vmatpush1.bf16.msra.mxu0 %v346
  %495 = vmatprep.subr.bf16.mxu0 0
  %496 = vmatpush1.bf16.msra.mxu0 %v347
  %497 = vmatprep.subr.bf16.mxu0 0
  %498 = vmatpush1.bf16.msra.mxu0 0
  %499 = vmatprep.subr.bf16.mxu0 0
  %500 = vmatpush1.bf16.msra.mxu0 0
  %501 = vmatprep.subr.bf16.mxu0 0
  %502 = vmatpush1.bf16.msra.mxu0 0
  %503 = vmatprep.subr.bf16.mxu0 0
  %504 = vmatpush1.bf16.msra.mxu0 0
  %505 = vmatprep.subr.bf16.mxu0 0
  %506 = vmatpush1.bf16.msra.mxu0 0
  %507 = vmatprep.subr.bf16.mxu0 0
  %508 = vmatpush1.bf16.msra.mxu0 0
  %509 = vmatprep.subr.bf16.mxu0 0
  %510 = vmatpush1.bf16.msra.mxu0 0
  %511 = vmatprep.subr.bf16.mxu0 0
  %512 = vmatpush1.bf16.msra.mxu0 0
  %513 = vmatprep.subr.bf16.mxu0 0
  %514 = vmatpush1.bf16.msra.mxu0 0
  %515 = vmatprep.subr.bf16.mxu0 0
  %516 = vmatpush1.bf16.msra.mxu0 0
  %517 = vmatprep.subr.bf16.mxu0 0
  %518 = vmatpush1.bf16.msra.mxu0 0
  %519 = vmatprep.subr.bf16.mxu0 0
  %520 = vmatpush1.bf16.msra.mxu0 0
  %521 = vmatprep.mubr.bf16.mxu0 0
  %522 = vmatmul.mubr.bf16.gmra.mrb[0].mxu0 %v386
  %v523 = vpop.f32.mrb[0].mxu0
  %v524 = vadd.f32 %v475, %v523
  %v525 = vpop.f32.mrb[0].mxu0
  %v526 = vpop.f32.mrb[0].mxu0
  %v527 = vadd.f32 %v478, %v526
  %v528 = vpop.f32.mrb[0].mxu0
  %529 = vmatprep.mubr.bf16.mxu0 0
  %530 = vmatmul.mubr.bf16.gmra.mrb[0].mxu0 %v389
  %v531 = vpop.f32.mrb[0].mxu0
  %v532 = vadd.f32 %v483, %v531
  %v533 = vpop.f32.mrb[0].mxu0
  %v534 = vpop.f32.mrb[0].mxu0
  %v535 = vadd.f32 %v486, %v534
  %v536 = vpop.f32.mrb[0].mxu0
  %537 = vdwg.mxu0
  %v538 = vadd.f32 %v30, %v524
  %v539 = vadd.f32 %v31, %v527
  %v540 = vadd.f32 %v32, %v532
  %v541 = vadd.f32 %v33, %v535
  %542 = vst.msk [vmem:[#allocation2] sm:$0xff] %vm384, %v538
  %543 = vst.msk [vmem:[#allocation2 + $0x8] sm:$0xff] %vm384, %v539
  %544 = vst.msk [vmem:[#allocation2 + $0x10] sm:$0xff] %vm384, %v540
  %545 = vst.msk [vmem:[#allocation2 + $0x18] sm:$0xff] %vm384, %v541
  // Predicated region
  $region26: #{_lambda_.17} parent=0 // pred_check
    %p546 = pneg %p21
  $region27: #{_lambda_.17} parent=0 // pred_check_branch
    %548 = sbr.rel (%p546) target = $region29
  $region28: #{_lambda_.17} parent=0 // pred_region
    %v549 = vld [vmem:[#allocation2] sm:$0xff]
    %v550 = vld [vmem:[#allocation2 + $0x8] sm:$0xff]
    %v551 = vld [vmem:[#allocation2 + $0x10] sm:$0xff]
    %v552 = vld [vmem:[#allocation2 + $0x18] sm:$0xff]
    %v553 = vld [vmem:[%s2] sm:$0x1]
    %v555 = vlaneseq
    %v556 = vshrl.u32 %v555, 7
    %v557 = vsub.s32 0, %v556
    %v558 = vrot.slane %v553, %v557
    %v560 = vmul.f32 %v549, %v558
    %v561 = vmul.f32 %v550, %v558
    %v562 = vmul.f32 %v551, %v558
    %v563 = vmul.f32 %v552, %v558
    %v564 = vld [vmem:[%s3] sm:$0x1]
    %v566 = vlaneseq
    %v567 = vshrl.u32 %v566, 7
    %v568 = vsub.s32 0, %v567
    %v569 = vrot.slane %v564, %v568
    %v571 = vadd.f32 %v560, %v569
    %v572 = vadd.f32 %v561, %v569
    %v573 = vadd.f32 %v562, %v569
    %v574 = vadd.f32 %v563, %v569
    %v575 = vld [vmem:[%s4] sm:$0xf]
    %v576 = vld [vmem:[%s4 + $0x4] sm:$0xf]
    %v577 = vld [vmem:[%s4 + $0x8] sm:$0xf]
    %v578 = vld [vmem:[%s4 + $0xc] sm:$0xf]
    %v579 = vunpack.c.l.bf16 %v575
    %v580 = vunpack.c.l.bf16 %v576
    %v581 = vunpack.c.l.bf16 %v577
    %v582 = vunpack.c.l.bf16 %v578
    %v583 = vadd.f32 %v571, %v579
    %v584 = vadd.f32 %v572, %v580
    %v585 = vadd.f32 %v573, %v581
    %v586 = vadd.f32 %v574, %v582
    %v587 = vmax.f32 %v583, 0.0
    %v588 = vmax.f32 %v584, 0.0
    %v589 = vmax.f32 %v585, 0.0
    %v590 = vmax.f32 %v586, 0.0
    %v591 = vpack.c.bf16 %v588, %v587
    %v592 = vpack.c.bf16 %v590, %v589
    %v595 = vunpack.c.l.b16 %v591
    %v596 = vunpack.c.h.b16 %v591
    %v597 = vunpack.c.l.b16 %v592
    %v598 = vunpack.c.h.b16 %v592
    %v599 = vpack.c.b16 %v595, %v595
    %v600 = vpack.c.b16 %v596, %v596
    %v601 = vpack.c.b16 %v597, %v597
    %v602 = vpack.c.b16 %v598, %v598
    %vm607 = vcmask 519168
    %608 = vst.msk [vmem:[%s5] sm:$0xf] %vm607, %v599
    %609 = vst.msk [vmem:[%s5 + $0x4] sm:$0xf] %vm607, %v600
    %610 = vst.msk [vmem:[%s5 + $0x8] sm:$0xf] %vm607, %v601
    %611 = vst.msk [vmem:[%s5 + $0xc] sm:$0xf] %vm607, %v602
  $region29: #{_lambda_.17} parent=0 // pred_fallthru
    _
  // Predicated region
  $region30: #{_lambda_.17} parent=0 // pred_check
    _
  $region31: #{_lambda_.17} parent=0 // pred_check_branch
    %613 = sbr.rel (0) target = $region33
  $region32: #{_lambda_.17} parent=0 // pred_region
    _
  $region33: #{_lambda_.17} parent=0 // pred_fallthru
    _
  // Predicated region
  $region34: #{_lambda_.17} parent=0 // pred_check
    _
  $region35: #{_lambda_.17} parent=0 // pred_check_branch
    %615 = sbr.rel (0) target = $region37
  $region36: #{_lambda_.17} parent=0 // pred_region
    _
  $region37: #{_lambda_.17} parent=0 // pred_fallthru
    _

// kernel: _lambda_.19
$region0: #{_lambda_.19}
  #allocation0 [shape = 'u32[]', space=smem, size = 0x4, offset = 0x4, fixed_abs, tag = 'smem constant byte address 0x4 - core index']
  #allocation1 [shape = 'u32[144,128]{1,0:T(1,128)}', space=vmem, size = 0x12000, scoped, tag = 'internal scratch']
  #allocation2 [shape = 'f32[8,128]{1,0:T(8,128)}', space=vmem, size = 0x1000, scoped, tag = 'scratch operand']
  %s0 = inlined_call_operand.vmem [shape: bf16[8,64], index: 0, kind: input, shape index: {}]
  %s1 = inlined_call_operand.vmem [shape: bf16[64,128], index: 1, kind: input, shape index: {}]
  %s2 = inlined_call_operand.vmem [shape: f32[1,128], index: 2, kind: input, shape index: {}]
  %s3 = inlined_call_operand.vmem [shape: f32[1,128], index: 3, kind: input, shape index: {}]
  %s4 = inlined_call_operand.vmem [shape: bf16[8,128], index: 4, kind: output, shape index: {}]
  %s5 = sld [smem:[#allocation0]]
  $region34: #{_lambda_.19} parent=0
    _
  %s7 = ssub.s32 1, %s5
  %s8 = scalar_select 0, %s7, %s5
  // Predicated region
  $region2: #{_lambda_.19} parent=0 // pred_check
    _
  $region3: #{_lambda_.19} parent=0 // pred_check_branch
    %10 = sbr.rel (0) target = $region5
  $region4: #{_lambda_.19} parent=0 // pred_region
    _
  $region5: #{_lambda_.19} parent=0 // pred_fallthru
    _
  // Predicated region
  $region6: #{_lambda_.19} parent=0 // pred_check
    _
  $region7: #{_lambda_.19} parent=0 // pred_check_branch
    %12 = sbr.rel (0) target = $region9
  $region8: #{_lambda_.19} parent=0 // pred_region
    _
  $region9: #{_lambda_.19} parent=0 // pred_fallthru
    _
  // Predicated region
  $region10: #{_lambda_.19} parent=0 // pred_check
    _
  $region11: #{_lambda_.19} parent=0 // pred_check_branch
    %14 = sbr.rel (0) target = $region13
  $region12: #{_lambda_.19} parent=0 // pred_region
    _
  $region13: #{_lambda_.19} parent=0 // pred_fallthru
    _
  // Predicated region
  $region14: #{_lambda_.19} parent=0 // pred_check
    _
  $region15: #{_lambda_.19} parent=0 // pred_check_branch
    %16 = sbr.rel (0) target = $region17
  $region16: #{_lambda_.19} parent=0 // pred_region
    _
  $region17: #{_lambda_.19} parent=0 // pred_fallthru
    _
  %p18 = scmp.eq.s32.totalorder 0, 0
  // Predicated region
  $region18: #{_lambda_.19} parent=0 // pred_check
    %p19 = pneg %p18
  $region19: #{_lambda_.19} parent=0 // pred_check_branch
    %21 = sbr.rel (%p19) target = $region21
  $region20: #{_lambda_.19} parent=0 // pred_region
    %22 = vst [vmem:[#allocation2] sm:$0xff] 0.0
  $region21: #{_lambda_.19} parent=0 // pred_fallthru
    _
  %v23 = vld [vmem:[#allocation2] sm:$0xff]
  %v24 = vld [vmem:[%s0] sm:$0xf]
  %v25 = vld [vmem:[%s1] sm:$0xf]
  %v26 = vld [vmem:[%s1 + $0x4] sm:$0xf]
  %v27 = vld [vmem:[%s1 + $0x8] sm:$0xf]
  %v28 = vld [vmem:[%s1 + $0xc] sm:$0xf]
  %v29 = vld [vmem:[%s1 + $0x10] sm:$0xf]
  %v30 = vld [vmem:[%s1 + $0x14] sm:$0xf]
  %v31 = vld [vmem:[%s1 + $0x18] sm:$0xf]
  %v32 = vld [vmem:[%s1 + $0x1c] sm:$0xf]
  %v41 = vunpack.c.l.b16 %v25
  %v42 = vunpack.c.l.b16 %v26
  %v43 = vunpack.c.l.b16 %v27
  %v44 = vunpack.c.l.b16 %v28
  %v45 = vunpack.c.l.b16 %v29
  %v46 = vunpack.c.l.b16 %v30
  %v47 = vunpack.c.l.b16 %v31
  %v48 = vunpack.c.l.b16 %v32
  %v49 = vpack.c.b16 %v42, %v41
  %v50 = vpack.c.b16 %v44, %v43
  %v51 = vpack.c.b16 %v46, %v45
  %v52 = vpack.c.b16 %v48, %v47
  %vm57 = vcmask 523264
  %v59 = vsel %vm57, %v24, 0
  %61 = vmatprep.subr.bf16.mxu0 0
  %62 = vmatpush1.bf16.msra.mxu0 %v49
  %63 = vmatprep.subr.bf16.mxu0 0
  %64 = vmatpush1.bf16.msra.mxu0 %v50
  %65 = vmatprep.subr.bf16.mxu0 0
  %66 = vmatpush1.bf16.msra.mxu0 %v51
  %67 = vmatprep.subr.bf16.mxu0 0
  %68 = vmatpush1.bf16.msra.mxu0 %v52
  %69 = vmatprep.subr.bf16.mxu0 0
  %70 = vmatpush1.bf16.msra.mxu0 0
  %71 = vmatprep.subr.bf16.mxu0 0
  %72 = vmatpush1.bf16.msra.mxu0 0
  %73 = vmatprep.subr.bf16.mxu0 0
  %74 = vmatpush1.bf16.msra.mxu0 0
  %75 = vmatprep.subr.bf16.mxu0 0
  %76 = vmatpush1.bf16.msra.mxu0 0
  %77 = vmatprep.subr.bf16.mxu0 0
  %78 = vmatpush1.bf16.msra.mxu0 0
  %79 = vmatprep.subr.bf16.mxu0 0
  %80 = vmatpush1.bf16.msra.mxu0 0
  %81 = vmatprep.subr.bf16.mxu0 0
  %82 = vmatpush1.bf16.msra.mxu0 0
  %83 = vmatprep.subr.bf16.mxu0 0
  %84 = vmatpush1.bf16.msra.mxu0 0
  %85 = vmatprep.subr.bf16.mxu0 0
  %86 = vmatpush1.bf16.msra.mxu0 0
  %87 = vmatprep.subr.bf16.mxu0 0
  %88 = vmatpush1.bf16.msra.mxu0 0
  %89 = vmatprep.subr.bf16.mxu0 0
  %90 = vmatpush1.bf16.msra.mxu0 0
  %91 = vmatprep.subr.bf16.mxu0 0
  %92 = vmatpush1.bf16.msra.mxu0 0
  %93 = vmatprep.mubr.bf16.mxu0 0
  %94 = vmatmul.mubr.bf16.gmra.mrb[0].mxu0 %v59
  %v95 = vpop.f32.mrb[0].mxu0
  %v96 = vadd.f32 0.0, %v95
  %v97 = vpop.f32.mrb[0].mxu0
  %v98 = vpop.f32.mrb[0].mxu0
  %v99 = vpop.f32.mrb[0].mxu0
  %100 = vdwg.mxu0
  %v101 = vadd.f32 %v23, %v96
  %102 = vst [vmem:[#allocation2] sm:$0xff] %v101
  // Predicated region
  $region22: #{_lambda_.19} parent=0 // pred_check
    %p103 = pneg %p18
  $region23: #{_lambda_.19} parent=0 // pred_check_branch
    %105 = sbr.rel (%p103) target = $region25
  $region24: #{_lambda_.19} parent=0 // pred_region
    %v106 = vld [vmem:[#allocation2] sm:$0xff]
    %v107 = vld [vmem:[%s2] sm:$0x1]
    %v109 = vlaneseq
    %v110 = vshrl.u32 %v109, 7
    %v111 = vsub.s32 0, %v110
    %v112 = vrot.slane %v107, %v111
    %v114 = vmul.f32 %v106, %v112
    %v115 = vld [vmem:[%s3] sm:$0x1]
    %v117 = vlaneseq
    %v118 = vshrl.u32 %v117, 7
    %v119 = vsub.s32 0, %v118
    %v120 = vrot.slane %v115, %v119
    %v122 = vadd.f32 %v114, %v120
    %v123 = vpack.c.bf16 %v122, %v122
    %124 = vst [vmem:[%s4] sm:$0xf] %v123
  $region25: #{_lambda_.19} parent=0 // pred_fallthru
    _
  // Predicated region
  $region26: #{_lambda_.19} parent=0 // pred_check
    _
  $region27: #{_lambda_.19} parent=0 // pred_check_branch
    %126 = sbr.rel (0) target = $region29
  $region28: #{_lambda_.19} parent=0 // pred_region
    _
  $region29: #{_lambda_.19} parent=0 // pred_fallthru
    _
  // Predicated region
  $region30: #{_lambda_.19} parent=0 // pred_check
    _
  $region31: #{_lambda_.19} parent=0 // pred_check_branch
    %128 = sbr.rel (0) target = $region33
  $region32: #{_lambda_.19} parent=0 // pred_region
    _
  $region33: #{_lambda_.19} parent=0 // pred_fallthru
    _

// kernel: _lambda_.18
$region0: #{_lambda_.18}
  #allocation0 [shape = 'u32[]', space=smem, size = 0x4, offset = 0x4, fixed_abs, tag = 'smem constant byte address 0x4 - core index']
  #allocation1 [shape = 'u32[144,128]{1,0:T(1,128)}', space=vmem, size = 0x12000, scoped, tag = 'internal scratch']
  #allocation2 [shape = 'f32[8,128]{1,0:T(8,128)}', space=vmem, size = 0x1000, scoped, tag = 'scratch operand']
  %s0 = inlined_call_operand.vmem [shape: bf16[8,576], index: 0, kind: input, shape index: {}]
  %s1 = inlined_call_operand.vmem [shape: bf16[576,128], index: 1, kind: input, shape index: {}]
  %s2 = inlined_call_operand.vmem [shape: f32[1,128], index: 2, kind: input, shape index: {}]
  %s3 = inlined_call_operand.vmem [shape: f32[1,128], index: 3, kind: input, shape index: {}]
  %s4 = inlined_call_operand.vmem [shape: bf16[8,128], index: 4, kind: output, shape index: {}]
  %s5 = sld [smem:[#allocation0]]
  $region34: #{_lambda_.18} parent=0
    _
  %s7 = ssub.s32 1, %s5
  %s8 = scalar_select 0, %s7, %s5
  // Predicated region
  $region2: #{_lambda_.18} parent=0 // pred_check
    _
  $region3: #{_lambda_.18} parent=0 // pred_check_branch
    %10 = sbr.rel (0) target = $region5
  $region4: #{_lambda_.18} parent=0 // pred_region
    _
  $region5: #{_lambda_.18} parent=0 // pred_fallthru
    _
  // Predicated region
  $region6: #{_lambda_.18} parent=0 // pred_check
    _
  $region7: #{_lambda_.18} parent=0 // pred_check_branch
    %12 = sbr.rel (0) target = $region9
  $region8: #{_lambda_.18} parent=0 // pred_region
    _
  $region9: #{_lambda_.18} parent=0 // pred_fallthru
    _
  // Predicated region
  $region10: #{_lambda_.18} parent=0 // pred_check
    _
  $region11: #{_lambda_.18} parent=0 // pred_check_branch
    %14 = sbr.rel (0) target = $region13
  $region12: #{_lambda_.18} parent=0 // pred_region
    _
  $region13: #{_lambda_.18} parent=0 // pred_fallthru
    _
  // Predicated region
  $region14: #{_lambda_.18} parent=0 // pred_check
    _
  $region15: #{_lambda_.18} parent=0 // pred_check_branch
    %16 = sbr.rel (0) target = $region17
  $region16: #{_lambda_.18} parent=0 // pred_region
    _
  $region17: #{_lambda_.18} parent=0 // pred_fallthru
    _
  %p18 = scmp.eq.s32.totalorder 0, 0
  // Predicated region
  $region18: #{_lambda_.18} parent=0 // pred_check
    %p19 = pneg %p18
  $region19: #{_lambda_.18} parent=0 // pred_check_branch
    %21 = sbr.rel (%p19) target = $region21
  $region20: #{_lambda_.18} parent=0 // pred_region
    %22 = vst [vmem:[#allocation2] sm:$0xff] 0.0
  $region21: #{_lambda_.18} parent=0 // pred_fallthru
    _
  %v23 = vld [vmem:[#allocation2] sm:$0xff]
  %v24 = vld [vmem:[%s0] sm:$0xff]
  %v25 = vld [vmem:[%s0 + $0x8] sm:$0xff]
  %v26 = vld [vmem:[%s0 + $0x10] sm:$0xf]
  %v27 = vld [vmem:[%s1] sm:$0xf]
  %v28 = vld [vmem:[%s1 + $0x4] sm:$0xf]
  %v29 = vld [vmem:[%s1 + $0x8] sm:$0xf]
  %v30 = vld [vmem:[%s1 + $0xc] sm:$0xf]
  %v31 = vld [vmem:[%s1 + $0x10] sm:$0xf]
  %v32 = vld [vmem:[%s1 + $0x14] sm:$0xf]
  %v33 = vld [vmem:[%s1 + $0x18] sm:$0xf]
  %v34 = vld [vmem:[%s1 + $0x1c] sm:$0xf]
  %v35 = vld [vmem:[%s1 + $0x20] sm:$0xf]
  %v36 = vld [vmem:[%s1 + $0x24] sm:$0xf]
  %v37 = vld [vmem:[%s1 + $0x28] sm:$0xf]
  %v38 = vld [vmem:[%s1 + $0x2c] sm:$0xf]
  %v39 = vld [vmem:[%s1 + $0x30] sm:$0xf]
  %v40 = vld [vmem:[%s1 + $0x34] sm:$0xf]
  %v41 = vld [vmem:[%s1 + $0x38] sm:$0xf]
  %v42 = vld [vmem:[%s1 + $0x3c] sm:$0xf]
  %v43 = vld [vmem:[%s1 + $0x40] sm:$0xf]
  %v44 = vld [vmem:[%s1 + $0x44] sm:$0xf]
  %v45 = vld [vmem:[%s1 + $0x48] sm:$0xf]
  %v46 = vld [vmem:[%s1 + $0x4c] sm:$0xf]
  %v47 = vld [vmem:[%s1 + $0x50] sm:$0xf]
  %v48 = vld [vmem:[%s1 + $0x54] sm:$0xf]
  %v49 = vld [vmem:[%s1 + $0x58] sm:$0xf]
  %v50 = vld [vmem:[%s1 + $0x5c] sm:$0xf]
  %v51 = vld [vmem:[%s1 + $0x60] sm:$0xf]
  %v52 = vld [vmem:[%s1 + $0x64] sm:$0xf]
  %v53 = vld [vmem:[%s1 + $0x68] sm:$0xf]
  %v54 = vld [vmem:[%s1 + $0x6c] sm:$0xf]
  %v55 = vld [vmem:[%s1 + $0x70] sm:$0xf]
  %v56 = vld [vmem:[%s1 + $0x74] sm:$0xf]
  %v57 = vld [vmem:[%s1 + $0x78] sm:$0xf]
  %v58 = vld [vmem:[%s1 + $0x7c] sm:$0xf]
  %v59 = vld [vmem:[%s1 + $0x80] sm:$0xf]
  %v60 = vld [vmem:[%s1 + $0x84] sm:$0xf]
  %v61 = vld [vmem:[%s1 + $0x88] sm:$0xf]
  %v62 = vld [vmem:[%s1 + $0x8c] sm:$0xf]
  %v63 = vld [vmem:[%s1 + $0x90] sm:$0xf]
  %v64 = vld [vmem:[%s1 + $0x94] sm:$0xf]
  %v65 = vld [vmem:[%s1 + $0x98] sm:$0xf]
  %v66 = vld [vmem:[%s1 + $0x9c] sm:$0xf]
  %v67 = vld [vmem:[%s1 + $0xa0] sm:$0xf]
  %v68 = vld [vmem:[%s1 + $0xa4] sm:$0xf]
  %v69 = vld [vmem:[%s1 + $0xa8] sm:$0xf]
  %v70 = vld [vmem:[%s1 + $0xac] sm:$0xf]
  %v71 = vld [vmem:[%s1 + $0xb0] sm:$0xf]
  %v72 = vld [vmem:[%s1 + $0xb4] sm:$0xf]
  %v73 = vld [vmem:[%s1 + $0xb8] sm:$0xf]
  %v74 = vld [vmem:[%s1 + $0xbc] sm:$0xf]
  %v75 = vld [vmem:[%s1 + $0xc0] sm:$0xf]
  %v76 = vld [vmem:[%s1 + $0xc4] sm:$0xf]
  %v77 = vld [vmem:[%s1 + $0xc8] sm:$0xf]
  %v78 = vld [vmem:[%s1 + $0xcc] sm:$0xf]
  %v79 = vld [vmem:[%s1 + $0xd0] sm:$0xf]
  %v80 = vld [vmem:[%s1 + $0xd4] sm:$0xf]
  %v81 = vld [vmem:[%s1 + $0xd8] sm:$0xf]
  %v82 = vld [vmem:[%s1 + $0xdc] sm:$0xf]
  %v83 = vld [vmem:[%s1 + $0xe0] sm:$0xf]
  %v84 = vld [vmem:[%s1 + $0xe4] sm:$0xf]
  %v85 = vld [vmem:[%s1 + $0xe8] sm:$0xf]
  %v86 = vld [vmem:[%s1 + $0xec] sm:$0xf]
  %v87 = vld [vmem:[%s1 + $0xf0] sm:$0xf]
  %v88 = vld [vmem:[%s1 + $0xf4] sm:$0xf]
  %v89 = vld [vmem:[%s1 + $0xf8] sm:$0xf]
  %v90 = vld [vmem:[%s1 + $0xfc] sm:$0xf]
  %v91 = vld [vmem:[%s1 + $0x100] sm:$0xf]
  %v92 = vld [vmem:[%s1 + $0x104] sm:$0xf]
  %v93 = vld [vmem:[%s1 + $0x108] sm:$0xf]
  %v94 = vld [vmem:[%s1 + $0x10c] sm:$0xf]
  %v95 = vld [vmem:[%s1 + $0x110] sm:$0xf]
  %v96 = vld [vmem:[%s1 + $0x114] sm:$0xf]
  %v97 = vld [vmem:[%s1 + $0x118] sm:$0xf]
  %v98 = vld [vmem:[%s1 + $0x11c] sm:$0xf]
  %v102 = vunpack.c.l.b16 %v24
  %v103 = vunpack.c.h.b16 %v24
  %v104 = vunpack.c.l.b16 %v25
  %v105 = vunpack.c.h.b16 %v25
  %v106 = vunpack.c.l.b16 %v26
  %v107 = vpack.c.b16 %v102, %v102
  %v108 = vpack.c.b16 %v103, %v103
  %v109 = vpack.c.b16 %v104, %v104
  %v110 = vpack.c.b16 %v105, %v105
  %v111 = vpack.c.b16 %v106, %v106
  %v188 = vunpack.c.l.b16 %v27
  %v189 = vunpack.c.l.b16 %v28
  %v190 = vunpack.c.l.b16 %v29
  %v191 = vunpack.c.l.b16 %v30
  %v192 = vunpack.c.l.b16 %v31
  %v193 = vunpack.c.l.b16 %v32
  %v194 = vunpack.c.l.b16 %v33
  %v195 = vunpack.c.l.b16 %v34
  %v196 = vunpack.c.l.b16 %v35
  %v197 = vunpack.c.l.b16 %v36
  %v198 = vunpack.c.l.b16 %v37
  %v199 = vunpack.c.l.b16 %v38
  %v200 = vunpack.c.l.b16 %v39
  %v201 = vunpack.c.l.b16 %v40
  %v202 = vunpack.c.l.b16 %v41
  %v203 = vunpack.c.l.b16 %v42
  %v204 = vunpack.c.l.b16 %v43
  %v205 = vunpack.c.l.b16 %v44
  %v206 = vunpack.c.l.b16 %v45
  %v207 = vunpack.c.l.b16 %v46
  %v208 = vunpack.c.l.b16 %v47
  %v209 = vunpack.c.l.b16 %v48
  %v210 = vunpack.c.l.b16 %v49
  %v211 = vunpack.c.l.b16 %v50
  %v212 = vunpack.c.l.b16 %v51
  %v213 = vunpack.c.l.b16 %v52
  %v214 = vunpack.c.l.b16 %v53
  %v215 = vunpack.c.l.b16 %v54
  %v216 = vunpack.c.l.b16 %v55
  %v217 = vunpack.c.l.b16 %v56
  %v218 = vunpack.c.l.b16 %v57
  %v219 = vunpack.c.l.b16 %v58
  %v220 = vunpack.c.l.b16 %v59
  %v221 = vunpack.c.l.b16 %v60
  %v222 = vunpack.c.l.b16 %v61
  %v223 = vunpack.c.l.b16 %v62
  %v224 = vunpack.c.l.b16 %v63
  %v225 = vunpack.c.l.b16 %v64
  %v226 = vunpack.c.l.b16 %v65
  %v227 = vunpack.c.l.b16 %v66
  %v228 = vunpack.c.l.b16 %v67
  %v229 = vunpack.c.l.b16 %v68
  %v230 = vunpack.c.l.b16 %v69
  %v231 = vunpack.c.l.b16 %v70
  %v232 = vunpack.c.l.b16 %v71
  %v233 = vunpack.c.l.b16 %v72
  %v234 = vunpack.c.l.b16 %v73
  %v235 = vunpack.c.l.b16 %v74
  %v236 = vunpack.c.l.b16 %v75
  %v237 = vunpack.c.l.b16 %v76
  %v238 = vunpack.c.l.b16 %v77
  %v239 = vunpack.c.l.b16 %v78
  %v240 = vunpack.c.l.b16 %v79
  %v241 = vunpack.c.l.b16 %v80
  %v242 = vunpack.c.l.b16 %v81
  %v243 = vunpack.c.l.b16 %v82
  %v244 = vunpack.c.l.b16 %v83
  %v245 = vunpack.c.l.b16 %v84
  %v246 = vunpack.c.l.b16 %v85
  %v247 = vunpack.c.l.b16 %v86
  %v248 = vunpack.c.l.b16 %v87
  %v249 = vunpack.c.l.b16 %v88
  %v250 = vunpack.c.l.b16 %v89
  %v251 = vunpack.c.l.b16 %v90
  %v252 = vunpack.c.l.b16 %v91
  %v253 = vunpack.c.l.b16 %v92
  %v254 = vunpack.c.l.b16 %v93
  %v255 = vunpack.c.l.b16 %v94
  %v256 = vunpack.c.l.b16 %v95
  %v257 = vunpack.c.l.b16 %v96
  %v258 = vunpack.c.l.b16 %v97
  %v259 = vunpack.c.l.b16 %v98
  %v260 = vpack.c.b16 %v189, %v188
  %v261 = vpack.c.b16 %v191, %v190
  %v262 = vpack.c.b16 %v193, %v192
  %v263 = vpack.c.b16 %v195, %v194
  %v264 = vpack.c.b16 %v197, %v196
  %v265 = vpack.c.b16 %v199, %v198
  %v266 = vpack.c.b16 %v201, %v200
  %v267 = vpack.c.b16 %v203, %v202
  %v268 = vpack.c.b16 %v205, %v204
  %v269 = vpack.c.b16 %v207, %v206
  %v270 = vpack.c.b16 %v209, %v208
  %v271 = vpack.c.b16 %v211, %v210
  %v272 = vpack.c.b16 %v213, %v212
  %v273 = vpack.c.b16 %v215, %v214
  %v274 = vpack.c.b16 %v217, %v216
  %v275 = vpack.c.b16 %v219, %v218
  %v276 = vpack.c.b16 %v221, %v220
  %v277 = vpack.c.b16 %v223, %v222
  %v278 = vpack.c.b16 %v225, %v224
  %v279 = vpack.c.b16 %v227, %v226
  %v280 = vpack.c.b16 %v229, %v228
  %v281 = vpack.c.b16 %v231, %v230
  %v282 = vpack.c.b16 %v233, %v232
  %v283 = vpack.c.b16 %v235, %v234
  %v284 = vpack.c.b16 %v237, %v236
  %v285 = vpack.c.b16 %v239, %v238
  %v286 = vpack.c.b16 %v241, %v240
  %v287 = vpack.c.b16 %v243, %v242
  %v288 = vpack.c.b16 %v245, %v244
  %v289 = vpack.c.b16 %v247, %v246
  %v290 = vpack.c.b16 %v249, %v248
  %v291 = vpack.c.b16 %v251, %v250
  %v292 = vpack.c.b16 %v253, %v252
  %v293 = vpack.c.b16 %v255, %v254
  %v294 = vpack.c.b16 %v257, %v256
  %v295 = vpack.c.b16 %v259, %v258
  %vm332 = vcmask 523264
  %v334 = vsel %vm332, %v111, 0
  %336 = vmatprep.subr.bf16.mxu0 0
  %337 = vmatpush1.bf16.msra.mxu0 %v260
  %338 = vmatprep.subr.bf16.mxu0 0
  %339 = vmatpush1.bf16.msra.mxu0 %v261
  %340 = vmatprep.subr.bf16.mxu0 0
  %341 = vmatpush1.bf16.msra.mxu0 %v262
  %342 = vmatprep.subr.bf16.mxu0 0
  %343 = vmatpush1.bf16.msra.mxu0 %v263
  %344 = vmatprep.subr.bf16.mxu0 0
  %345 = vmatpush1.bf16.msra.mxu0 %v264
  %346 = vmatprep.subr.bf16.mxu0 0
  %347 = vmatpush1.bf16.msra.mxu0 %v265
  %348 = vmatprep.subr.bf16.mxu0 0
  %349 = vmatpush1.bf16.msra.mxu0 %v266
  %350 = vmatprep.subr.bf16.mxu0 0
  %351 = vmatpush1.bf16.msra.mxu0 %v267
  %352 = vmatprep.subr.bf16.mxu0 0
  %353 = vmatpush1.bf16.msra.mxu0 %v268
  %354 = vmatprep.subr.bf16.mxu0 0
  %355 = vmatpush1.bf16.msra.mxu0 %v269
  %356 = vmatprep.subr.bf16.mxu0 0
  %357 = vmatpush1.bf16.msra.mxu0 %v270
  %358 = vmatprep.subr.bf16.mxu0 0
  %359 = vmatpush1.bf16.msra.mxu0 %v271
  %360 = vmatprep.subr.bf16.mxu0 0
  %361 = vmatpush1.bf16.msra.mxu0 %v272
  %362 = vmatprep.subr.bf16.mxu0 0
  %363 = vmatpush1.bf16.msra.mxu0 %v273
  %364 = vmatprep.subr.bf16.mxu0 0
  %365 = vmatpush1.bf16.msra.mxu0 %v274
  %366 = vmatprep.subr.bf16.mxu0 0
  %367 = vmatpush1.bf16.msra.mxu0 %v275
  %368 = vmatprep.mubr.bf16.mxu0 %v108
  %369 = vmatmul.mubr.bf16.gmra.mrb[0].mxu0 %v107
  %v370 = vpop.f32.mrb[0].mxu0
  %v371 = vadd.f32 0.0, %v370
  %v372 = vpop.f32.mrb[0].mxu0
  %v373 = vpop.f32.mrb[0].mxu0
  %v374 = vpop.f32.mrb[0].mxu0
  %375 = vdwg.mxu0
  %376 = vmatprep.subr.bf16.mxu0 0
  %377 = vmatpush1.bf16.msra.mxu0 %v276
  %378 = vmatprep.subr.bf16.mxu0 0
  %379 = vmatpush1.bf16.msra.mxu0 %v277
  %380 = vmatprep.subr.bf16.mxu0 0
  %381 = vmatpush1.bf16.msra.mxu0 %v278
  %382 = vmatprep.subr.bf16.mxu0 0
  %383 = vmatpush1.bf16.msra.mxu0 %v279
  %384 = vmatprep.subr.bf16.mxu0 0
  %385 = vmatpush1.bf16.msra.mxu0 %v280
  %386 = vmatprep.subr.bf16.mxu0 0
  %387 = vmatpush1.bf16.msra.mxu0 %v281
  %388 = vmatprep.subr.bf16.mxu0 0
  %389 = vmatpush1.bf16.msra.mxu0 %v282
  %390 = vmatprep.subr.bf16.mxu0 0
  %391 = vmatpush1.bf16.msra.mxu0 %v283
  %392 = vmatprep.subr.bf16.mxu0 0
  %393 = vmatpush1.bf16.msra.mxu0 %v284
  %394 = vmatprep.subr.bf16.mxu0 0
  %395 = vmatpush1.bf16.msra.mxu0 %v285
  %396 = vmatprep.subr.bf16.mxu0 0
  %397 = vmatpush1.bf16.msra.mxu0 %v286
  %398 = vmatprep.subr.bf16.mxu0 0
  %399 = vmatpush1.bf16.msra.mxu0 %v287
  %400 = vmatprep.subr.bf16.mxu0 0
  %401 = vmatpush1.bf16.msra.mxu0 %v288
  %402 = vmatprep.subr.bf16.mxu0 0
  %403 = vmatpush1.bf16.msra.mxu0 %v289
  %404 = vmatprep.subr.bf16.mxu0 0
  %405 = vmatpush1.bf16.msra.mxu0 %v290
  %406 = vmatprep.subr.bf16.mxu0 0
  %407 = vmatpush1.bf16.msra.mxu0 %v291
  %408 = vmatprep.mubr.bf16.mxu0 %v110
  %409 = vmatmul.mubr.bf16.gmra.mrb[0].mxu0 %v109
  %v410 = vpop.f32.mrb[0].mxu0
  %v411 = vadd.f32 %v371, %v410
  %v412 = vpop.f32.mrb[0].mxu0
  %v413 = vpop.f32.mrb[0].mxu0
  %v414 = vpop.f32.mrb[0].mxu0
  %415 = vdwg.mxu0
  %416 = vmatprep.subr.bf16.mxu0 0
  %417 = vmatpush1.bf16.msra.mxu0 %v292
  %418 = vmatprep.subr.bf16.mxu0 0
  %419 = vmatpush1.bf16.msra.mxu0 %v293
  %420 = vmatprep.subr.bf16.mxu0 0
  %421 = vmatpush1.bf16.msra.mxu0 %v294
  %422 = vmatprep.subr.bf16.mxu0 0
  %423 = vmatpush1.bf16.msra.mxu0 %v295
  %424 = vmatprep.subr.bf16.mxu0 0
  %425 = vmatpush1.bf16.msra.mxu0 0
  %426 = vmatprep.subr.bf16.mxu0 0
  %427 = vmatpush1.bf16.msra.mxu0 0
  %428 = vmatprep.subr.bf16.mxu0 0
  %429 = vmatpush1.bf16.msra.mxu0 0
  %430 = vmatprep.subr.bf16.mxu0 0
  %431 = vmatpush1.bf16.msra.mxu0 0
  %432 = vmatprep.subr.bf16.mxu0 0
  %433 = vmatpush1.bf16.msra.mxu0 0
  %434 = vmatprep.subr.bf16.mxu0 0
  %435 = vmatpush1.bf16.msra.mxu0 0
  %436 = vmatprep.subr.bf16.mxu0 0
  %437 = vmatpush1.bf16.msra.mxu0 0
  %438 = vmatprep.subr.bf16.mxu0 0
  %439 = vmatpush1.bf16.msra.mxu0 0
  %440 = vmatprep.subr.bf16.mxu0 0
  %441 = vmatpush1.bf16.msra.mxu0 0
  %442 = vmatprep.subr.bf16.mxu0 0
  %443 = vmatpush1.bf16.msra.mxu0 0
  %444 = vmatprep.subr.bf16.mxu0 0
  %445 = vmatpush1.bf16.msra.mxu0 0
  %446 = vmatprep.subr.bf16.mxu0 0
  %447 = vmatpush1.bf16.msra.mxu0 0
  %448 = vmatprep.mubr.bf16.mxu0 0
  %449 = vmatmul.mubr.bf16.gmra.mrb[0].mxu0 %v334
  %v450 = vpop.f32.mrb[0].mxu0
  %v451 = vadd.f32 %v411, %v450
  %v452 = vpop.f32.mrb[0].mxu0
  %v453 = vpop.f32.mrb[0].mxu0
  %v454 = vpop.f32.mrb[0].mxu0
  %455 = vdwg.mxu0
  %v456 = vadd.f32 %v23, %v451
  %457 = vst [vmem:[#allocation2] sm:$0xff] %v456
  // Predicated region
  $region22: #{_lambda_.18} parent=0 // pred_check
    %p458 = pneg %p18
  $region23: #{_lambda_.18} parent=0 // pred_check_branch
    %460 = sbr.rel (%p458) target = $region25
  $region24: #{_lambda_.18} parent=0 // pred_region
    %v461 = vld [vmem:[#allocation2] sm:$0xff]
    %v462 = vld [vmem:[%s2] sm:$0x1]
    %v464 = vlaneseq
    %v465 = vshrl.u32 %v464, 7
    %v466 = vsub.s32 0, %v465
    %v467 = vrot.slane %v462, %v466
    %v469 = vmul.f32 %v461, %v467
    %v470 = vld [vmem:[%s3] sm:$0x1]
    %v472 = vlaneseq
    %v473 = vshrl.u32 %v472, 7
    %v474 = vsub.s32 0, %v473
    %v475 = vrot.slane %v470, %v474
    %v477 = vadd.f32 %v469, %v475
    %v478 = vmax.f32 %v477, 0.0
    %v479 = vpack.c.bf16 %v478, %v478
    %480 = vst [vmem:[%s4] sm:$0xf] %v479
  $region25: #{_lambda_.18} parent=0 // pred_fallthru
    _
  // Predicated region
  $region26: #{_lambda_.18} parent=0 // pred_check
    _
  $region27: #{_lambda_.18} parent=0 // pred_check_branch
    %482 = sbr.rel (0) target = $region29
  $region28: #{_lambda_.18} parent=0 // pred_region
    _
  $region29: #{_lambda_.18} parent=0 // pred_fallthru
    _
  // Predicated region
  $region30: #{_lambda_.18} parent=0 // pred_check
    _
  $region31: #{_lambda_.18} parent=0 // pred_check_branch
    %484 = sbr.rel (0) target = $region33
  $region32: #{_lambda_.18} parent=0 // pred_region
    _
  $region33: #{_lambda_.18} parent=0 // pred_fallthru
    _

// kernel: _lambda_.22
$region0: #{_lambda_.22}
  #allocation0 [shape = 'u32[]', space=smem, size = 0x4, offset = 0x4, fixed_abs, tag = 'smem constant byte address 0x4 - core index']
  #allocation1 [shape = 'u32[144,128]{1,0:T(1,128)}', space=vmem, size = 0x12000, scoped, tag = 'internal scratch']
  #allocation2 [shape = 'f32[8,256]{1,0:T(8,128)}', space=vmem, size = 0x2000, scoped, tag = 'scratch operand']
  %s0 = inlined_call_operand.vmem [shape: bf16[8,128], index: 0, kind: input, shape index: {}]
  %s1 = inlined_call_operand.vmem [shape: bf16[128,256], index: 1, kind: input, shape index: {}]
  %s2 = inlined_call_operand.vmem [shape: f32[1,256], index: 2, kind: input, shape index: {}]
  %s3 = inlined_call_operand.vmem [shape: f32[1,256], index: 3, kind: input, shape index: {}]
  %s4 = inlined_call_operand.vmem [shape: bf16[8,256], index: 4, kind: output, shape index: {}]
  %s5 = sld [smem:[#allocation0]]
  $region34: #{_lambda_.22} parent=0
    _
  %s7 = ssub.s32 1, %s5
  %s8 = scalar_select 0, %s7, %s5
  // Predicated region
  $region2: #{_lambda_.22} parent=0 // pred_check
    _
  $region3: #{_lambda_.22} parent=0 // pred_check_branch
    %10 = sbr.rel (0) target = $region5
  $region4: #{_lambda_.22} parent=0 // pred_region
    _
  $region5: #{_lambda_.22} parent=0 // pred_fallthru
    _
  // Predicated region
  $region6: #{_lambda_.22} parent=0 // pred_check
    _
  $region7: #{_lambda_.22} parent=0 // pred_check_branch
    %12 = sbr.rel (0) target = $region9
  $region8: #{_lambda_.22} parent=0 // pred_region
    _
  $region9: #{_lambda_.22} parent=0 // pred_fallthru
    _
  // Predicated region
  $region10: #{_lambda_.22} parent=0 // pred_check
    _
  $region11: #{_lambda_.22} parent=0 // pred_check_branch
    %14 = sbr.rel (0) target = $region13
  $region12: #{_lambda_.22} parent=0 // pred_region
    _
  $region13: #{_lambda_.22} parent=0 // pred_fallthru
    _
  // Predicated region
  $region14: #{_lambda_.22} parent=0 // pred_check
    _
  $region15: #{_lambda_.22} parent=0 // pred_check_branch
    %16 = sbr.rel (0) target = $region17
  $region16: #{_lambda_.22} parent=0 // pred_region
    _
  $region17: #{_lambda_.22} parent=0 // pred_fallthru
    _
  %p18 = scmp.eq.s32.totalorder 0, 0
  // Predicated region
  $region18: #{_lambda_.22} parent=0 // pred_check
    %p19 = pneg %p18
  $region19: #{_lambda_.22} parent=0 // pred_check_branch
    %21 = sbr.rel (%p19) target = $region21
  $region20: #{_lambda_.22} parent=0 // pred_region
    %22 = vst [vmem:[#allocation2] sm:$0xff] 0.0
    %23 = vst [vmem:[#allocation2 + $0x8] sm:$0xff] 0.0
  $region21: #{_lambda_.22} parent=0 // pred_fallthru
    _
  %v24 = vld [vmem:[#allocation2] sm:$0xff]
  %v25 = vld [vmem:[#allocation2 + $0x8] sm:$0xff]
  %v26 = vld [vmem:[%s0] sm:$0xf]
  %v27 = vld [vmem:[%s1] sm:$0xff]
  %v28 = vld [vmem:[%s1 + $0x8] sm:$0xff]
  %v29 = vld [vmem:[%s1 + $0x10] sm:$0xff]
  %v30 = vld [vmem:[%s1 + $0x18] sm:$0xff]
  %v31 = vld [vmem:[%s1 + $0x20] sm:$0xff]
  %v32 = vld [vmem:[%s1 + $0x28] sm:$0xff]
  %v33 = vld [vmem:[%s1 + $0x30] sm:$0xff]
  %v34 = vld [vmem:[%s1 + $0x38] sm:$0xff]
  %v35 = vld [vmem:[%s1 + $0x40] sm:$0xff]
  %v36 = vld [vmem:[%s1 + $0x48] sm:$0xff]
  %v37 = vld [vmem:[%s1 + $0x50] sm:$0xff]
  %v38 = vld [vmem:[%s1 + $0x58] sm:$0xff]
  %v39 = vld [vmem:[%s1 + $0x60] sm:$0xff]
  %v40 = vld [vmem:[%s1 + $0x68] sm:$0xff]
  %v41 = vld [vmem:[%s1 + $0x70] sm:$0xff]
  %v42 = vld [vmem:[%s1 + $0x78] sm:$0xff]
  %v59 = vunpack.c.l.b16 %v27
  %v60 = vunpack.c.h.b16 %v27
  %v61 = vunpack.c.l.b16 %v28
  %v62 = vunpack.c.h.b16 %v28
  %v63 = vunpack.c.l.b16 %v29
  %v64 = vunpack.c.h.b16 %v29
  %v65 = vunpack.c.l.b16 %v30
  %v66 = vunpack.c.h.b16 %v30
  %v67 = vunpack.c.l.b16 %v31
  %v68 = vunpack.c.h.b16 %v31
  %v69 = vunpack.c.l.b16 %v32
  %v70 = vunpack.c.h.b16 %v32
  %v71 = vunpack.c.l.b16 %v33
  %v72 = vunpack.c.h.b16 %v33
  %v73 = vunpack.c.l.b16 %v34
  %v74 = vunpack.c.h.b16 %v34
  %v75 = vunpack.c.l.b16 %v35
  %v76 = vunpack.c.h.b16 %v35
  %v77 = vunpack.c.l.b16 %v36
  %v78 = vunpack.c.h.b16 %v36
  %v79 = vunpack.c.l.b16 %v37
  %v80 = vunpack.c.h.b16 %v37
  %v81 = vunpack.c.l.b16 %v38
  %v82 = vunpack.c.h.b16 %v38
  %v83 = vunpack.c.l.b16 %v39
  %v84 = vunpack.c.h.b16 %v39
  %v85 = vunpack.c.l.b16 %v40
  %v86 = vunpack.c.h.b16 %v40
  %v87 = vunpack.c.l.b16 %v41
  %v88 = vunpack.c.h.b16 %v41
  %v89 = vunpack.c.l.b16 %v42
  %v90 = vunpack.c.h.b16 %v42
  %v91 = vpack.c.b16 %v61, %v59
  %v92 = vpack.c.b16 %v62, %v60
  %v93 = vpack.c.b16 %v65, %v63
  %v94 = vpack.c.b16 %v66, %v64
  %v95 = vpack.c.b16 %v69, %v67
  %v96 = vpack.c.b16 %v70, %v68
  %v97 = vpack.c.b16 %v73, %v71
  %v98 = vpack.c.b16 %v74, %v72
  %v99 = vpack.c.b16 %v77, %v75
  %v100 = vpack.c.b16 %v78, %v76
  %v101 = vpack.c.b16 %v81, %v79
  %v102 = vpack.c.b16 %v82, %v80
  %v103 = vpack.c.b16 %v85, %v83
  %v104 = vpack.c.b16 %v86, %v84
  %v105 = vpack.c.b16 %v89, %v87
  %v106 = vpack.c.b16 %v90, %v88
  %123 = vmatprep.subr.bf16.mxu0 %v92
  %124 = vmatpush1.bf16.msra.mxu0 %v91
  %125 = vmatprep.subr.bf16.mxu0 %v94
  %126 = vmatpush1.bf16.msra.mxu0 %v93
  %127 = vmatprep.subr.bf16.mxu0 %v96
  %128 = vmatpush1.bf16.msra.mxu0 %v95
  %129 = vmatprep.subr.bf16.mxu0 %v98
  %130 = vmatpush1.bf16.msra.mxu0 %v97
  %131 = vmatprep.subr.bf16.mxu0 %v100
  %132 = vmatpush1.bf16.msra.mxu0 %v99
  %133 = vmatprep.subr.bf16.mxu0 %v102
  %134 = vmatpush1.bf16.msra.mxu0 %v101
  %135 = vmatprep.subr.bf16.mxu0 %v104
  %136 = vmatpush1.bf16.msra.mxu0 %v103
  %137 = vmatprep.subr.bf16.mxu0 %v106
  %138 = vmatpush1.bf16.msra.mxu0 %v105
  %139 = vmatprep.subr.bf16.mxu0 0
  %140 = vmatpush1.bf16.msra.mxu0 0
  %141 = vmatprep.subr.bf16.mxu0 0
  %142 = vmatpush1.bf16.msra.mxu0 0
  %143 = vmatprep.subr.bf16.mxu0 0
  %144 = vmatpush1.bf16.msra.mxu0 0
  %145 = vmatprep.subr.bf16.mxu0 0
  %146 = vmatpush1.bf16.msra.mxu0 0
  %147 = vmatprep.subr.bf16.mxu0 0
  %148 = vmatpush1.bf16.msra.mxu0 0
  %149 = vmatprep.subr.bf16.mxu0 0
  %150 = vmatpush1.bf16.msra.mxu0 0
  %151 = vmatprep.subr.bf16.mxu0 0
  %152 = vmatpush1.bf16.msra.mxu0 0
  %153 = vmatprep.subr.bf16.mxu0 0
  %154 = vmatpush1.bf16.msra.mxu0 0
  %155 = vmatprep.mubr.bf16.mxu0 0
  %156 = vmatmul.mubr.bf16.gmra.mrb[0].mxu0 %v26
  %v157 = vpop.f32.mrb[0].mxu0
  %v158 = vadd.f32 0.0, %v157
  %v159 = vpop.f32.mrb[0].mxu0
  %v160 = vadd.f32 0.0, %v159
  %v161 = vpop.f32.mrb[0].mxu0
  %v162 = vpop.f32.mrb[0].mxu0
  %163 = vdwg.mxu0
  %v164 = vadd.f32 %v24, %v158
  %v165 = vadd.f32 %v25, %v160
  %166 = vst [vmem:[#allocation2] sm:$0xff] %v164
  %167 = vst [vmem:[#allocation2 + $0x8] sm:$0xff] %v165
  // Predicated region
  $region22: #{_lambda_.22} parent=0 // pred_check
    %p168 = pneg %p18
  $region23: #{_lambda_.22} parent=0 // pred_check_branch
    %170 = sbr.rel (%p168) target = $region25
  $region24: #{_lambda_.22} parent=0 // pred_region
    %v171 = vld [vmem:[#allocation2] sm:$0xff]
    %v172 = vld [vmem:[#allocation2 + $0x8] sm:$0xff]
    %v173 = vld [vmem:[%s2] sm:$0x3]
    %v175 = vlaneseq
    %v176 = vshrl.u32 %v175, 7
    %v177 = vsub.s32 0, %v176
    %v178 = vrot.slane %v173, %v177
    %v179 = vlaneseq
    %v180 = vshrl.u32 %v179, 7
    %v181 = vsub.s32 1, %v180
    %v182 = vrot.slane %v173, %v181
    %v185 = vmul.f32 %v171, %v178
    %v186 = vmul.f32 %v172, %v182
    %v187 = vld [vmem:[%s3] sm:$0x3]
    %v189 = vlaneseq
    %v190 = vshrl.u32 %v189, 7
    %v191 = vsub.s32 0, %v190
    %v192 = vrot.slane %v187, %v191
    %v193 = vlaneseq
    %v194 = vshrl.u32 %v193, 7
    %v195 = vsub.s32 1, %v194
    %v196 = vrot.slane %v187, %v195
    %v199 = vadd.f32 %v185, %v192
    %v200 = vadd.f32 %v186, %v196
    %v201 = vpack.c.bf16 %v199, %v199
    %v202 = vpack.c.bf16 %v200, %v200
    %v205 = vunpack.c.l.b16 %v201
    %v206 = vunpack.c.l.b16 %v202
    %v207 = vpack.c.b16 %v206, %v205
    %209 = vst [vmem:[%s4] sm:$0xff] %v207
  $region25: #{_lambda_.22} parent=0 // pred_fallthru
    _
  // Predicated region
  $region26: #{_lambda_.22} parent=0 // pred_check
    _
  $region27: #{_lambda_.22} parent=0 // pred_check_branch
    %211 = sbr.rel (0) target = $region29
  $region28: #{_lambda_.22} parent=0 // pred_region
    _
  $region29: #{_lambda_.22} parent=0 // pred_fallthru
    _
  // Predicated region
  $region30: #{_lambda_.22} parent=0 // pred_check
    _
  $region31: #{_lambda_.22} parent=0 // pred_check_branch
    %213 = sbr.rel (0) target = $region33
  $region32: #{_lambda_.22} parent=0 // pred_region
    _
  $region33: #{_lambda_.22} parent=0 // pred_fallthru
    _

// kernel: _lambda_.20
$region0: #{_lambda_.20}
  #allocation0 [shape = 'u32[]', space=smem, size = 0x4, offset = 0x4, fixed_abs, tag = 'smem constant byte address 0x4 - core index']
  #allocation1 [shape = 'u32[144,128]{1,0:T(1,128)}', space=vmem, size = 0x12000, scoped, tag = 'internal scratch']
  #allocation2 [shape = 'f32[8,128]{1,0:T(8,128)}', space=vmem, size = 0x1000, scoped, tag = 'scratch operand']
  %s0 = inlined_call_operand.vmem [shape: bf16[8,1152], index: 0, kind: input, shape index: {}]
  %s1 = inlined_call_operand.vmem [shape: bf16[1152,128], index: 1, kind: input, shape index: {}]
  %s2 = inlined_call_operand.vmem [shape: f32[1,128], index: 2, kind: input, shape index: {}]
  %s3 = inlined_call_operand.vmem [shape: f32[1,128], index: 3, kind: input, shape index: {}]
  %s4 = inlined_call_operand.vmem [shape: bf16[8,128], index: 4, kind: input, shape index: {}]
  %s5 = inlined_call_operand.vmem [shape: bf16[8,128], index: 5, kind: output, shape index: {}]
  %s6 = sld [smem:[#allocation0]]
  $region38: #{_lambda_.20} parent=0
    _
  %s8 = ssub.s32 1, %s6
  %s9 = scalar_select 0, %s8, %s6
  // Predicated region
  $region2: #{_lambda_.20} parent=0 // pred_check
    _
  $region3: #{_lambda_.20} parent=0 // pred_check_branch
    %11 = sbr.rel (0) target = $region5
  $region4: #{_lambda_.20} parent=0 // pred_region
    _
  $region5: #{_lambda_.20} parent=0 // pred_fallthru
    _
  // Predicated region
  $region6: #{_lambda_.20} parent=0 // pred_check
    _
  $region7: #{_lambda_.20} parent=0 // pred_check_branch
    %13 = sbr.rel (0) target = $region9
  $region8: #{_lambda_.20} parent=0 // pred_region
    _
  $region9: #{_lambda_.20} parent=0 // pred_fallthru
    _
  // Predicated region
  $region10: #{_lambda_.20} parent=0 // pred_check
    _
  $region11: #{_lambda_.20} parent=0 // pred_check_branch
    %15 = sbr.rel (0) target = $region13
  $region12: #{_lambda_.20} parent=0 // pred_region
    _
  $region13: #{_lambda_.20} parent=0 // pred_fallthru
    _
  // Predicated region
  $region14: #{_lambda_.20} parent=0 // pred_check
    _
  $region15: #{_lambda_.20} parent=0 // pred_check_branch
    %17 = sbr.rel (0) target = $region17
  $region16: #{_lambda_.20} parent=0 // pred_region
    _
  $region17: #{_lambda_.20} parent=0 // pred_fallthru
    _
  // Predicated region
  $region18: #{_lambda_.20} parent=0 // pred_check
    _
  $region19: #{_lambda_.20} parent=0 // pred_check_branch
    %19 = sbr.rel (0) target = $region21
  $region20: #{_lambda_.20} parent=0 // pred_region
    _
  $region21: #{_lambda_.20} parent=0 // pred_fallthru
    _
  %p21 = scmp.eq.s32.totalorder 0, 0
  // Predicated region
  $region22: #{_lambda_.20} parent=0 // pred_check
    %p22 = pneg %p21
  $region23: #{_lambda_.20} parent=0 // pred_check_branch
    %24 = sbr.rel (%p22) target = $region25
  $region24: #{_lambda_.20} parent=0 // pred_region
    %25 = vst [vmem:[#allocation2] sm:$0xff] 0.0
  $region25: #{_lambda_.20} parent=0 // pred_fallthru
    _
  %v26 = vld [vmem:[#allocation2] sm:$0xff]
  %v27 = vld [vmem:[%s0] sm:$0xff]
  %v28 = vld [vmem:[%s0 + $0x8] sm:$0xff]
  %v29 = vld [vmem:[%s0 + $0x10] sm:$0xff]
  %v30 = vld [vmem:[%s0 + $0x18] sm:$0xff]
  %v31 = vld [vmem:[%s0 + $0x20] sm:$0xf]
  %v32 = vld [vmem:[%s1] sm:$0xf]
  %v33 = vld [vmem:[%s1 + $0x4] sm:$0xf]
  %v34 = vld [vmem:[%s1 + $0x8] sm:$0xf]
  %v35 = vld [vmem:[%s1 + $0xc] sm:$0xf]
  %v36 = vld [vmem:[%s1 + $0x10] sm:$0xf]
  %v37 = vld [vmem:[%s1 + $0x14] sm:$0xf]
  %v38 = vld [vmem:[%s1 + $0x18] sm:$0xf]
  %v39 = vld [vmem:[%s1 + $0x1c] sm:$0xf]
  %v40 = vld [vmem:[%s1 + $0x20] sm:$0xf]
  %v41 = vld [vmem:[%s1 + $0x24] sm:$0xf]
  %v42 = vld [vmem:[%s1 + $0x28] sm:$0xf]
  %v43 = vld [vmem:[%s1 + $0x2c] sm:$0xf]
  %v44 = vld [vmem:[%s1 + $0x30] sm:$0xf]
  %v45 = vld [vmem:[%s1 + $0x34] sm:$0xf]
  %v46 = vld [vmem:[%s1 + $0x38] sm:$0xf]
  %v47 = vld [vmem:[%s1 + $0x3c] sm:$0xf]
  %v48 = vld [vmem:[%s1 + $0x40] sm:$0xf]
  %v49 = vld [vmem:[%s1 + $0x44] sm:$0xf]
  %v50 = vld [vmem:[%s1 + $0x48] sm:$0xf]
  %v51 = vld [vmem:[%s1 + $0x4c] sm:$0xf]
  %v52 = vld [vmem:[%s1 + $0x50] sm:$0xf]
  %v53 = vld [vmem:[%s1 + $0x54] sm:$0xf]
  %v54 = vld [vmem:[%s1 + $0x58] sm:$0xf]
  %v55 = vld [vmem:[%s1 + $0x5c] sm:$0xf]
  %v56 = vld [vmem:[%s1 + $0x60] sm:$0xf]
  %v57 = vld [vmem:[%s1 + $0x64] sm:$0xf]
  %v58 = vld [vmem:[%s1 + $0x68] sm:$0xf]
  %v59 = vld [vmem:[%s1 + $0x6c] sm:$0xf]
  %v60 = vld [vmem:[%s1 + $0x70] sm:$0xf]
  %v61 = vld [vmem:[%s1 + $0x74] sm:$0xf]
  %v62 = vld [vmem:[%s1 + $0x78] sm:$0xf]
  %v63 = vld [vmem:[%s1 + $0x7c] sm:$0xf]
  %v64 = vld [vmem:[%s1 + $0x80] sm:$0xf]
  %v65 = vld [vmem:[%s1 + $0x84] sm:$0xf]
  %v66 = vld [vmem:[%s1 + $0x88] sm:$0xf]
  %v67 = vld [vmem:[%s1 + $0x8c] sm:$0xf]
  %v68 = vld [vmem:[%s1 + $0x90] sm:$0xf]
  %v69 = vld [vmem:[%s1 + $0x94] sm:$0xf]
  %v70 = vld [vmem:[%s1 + $0x98] sm:$0xf]
  %v71 = vld [vmem:[%s1 + $0x9c] sm:$0xf]
  %v72 = vld [vmem:[%s1 + $0xa0] sm:$0xf]
  %v73 = vld [vmem:[%s1 + $0xa4] sm:$0xf]
  %v74 = vld [vmem:[%s1 + $0xa8] sm:$0xf]
  %v75 = vld [vmem:[%s1 + $0xac] sm:$0xf]
  %v76 = vld [vmem:[%s1 + $0xb0] sm:$0xf]
  %v77 = vld [vmem:[%s1 + $0xb4] sm:$0xf]
  %v78 = vld [vmem:[%s1 + $0xb8] sm:$0xf]
  %v79 = vld [vmem:[%s1 + $0xbc] sm:$0xf]
  %v80 = vld [vmem:[%s1 + $0xc0] sm:$0xf]
  %v81 = vld [vmem:[%s1 + $0xc4] sm:$0xf]
  %v82 = vld [vmem:[%s1 + $0xc8] sm:$0xf]
  %v83 = vld [vmem:[%s1 + $0xcc] sm:$0xf]
  %v84 = vld [vmem:[%s1 + $0xd0] sm:$0xf]
  %v85 = vld [vmem:[%s1 + $0xd4] sm:$0xf]
  %v86 = vld [vmem:[%s1 + $0xd8] sm:$0xf]
  %v87 = vld [vmem:[%s1 + $0xdc] sm:$0xf]
  %v88 = vld [vmem:[%s1 + $0xe0] sm:$0xf]
  %v89 = vld [vmem:[%s1 + $0xe4] sm:$0xf]
  %v90 = vld [vmem:[%s1 + $0xe8] sm:$0xf]
  %v91 = vld [vmem:[%s1 + $0xec] sm:$0xf]
  %v92 = vld [vmem:[%s1 + $0xf0] sm:$0xf]
  %v93 = vld [vmem:[%s1 + $0xf4] sm:$0xf]
  %v94 = vld [vmem:[%s1 + $0xf8] sm:$0xf]
  %v95 = vld [vmem:[%s1 + $0xfc] sm:$0xf]
  %v96 = vld [vmem:[%s1 + $0x100] sm:$0xf]
  %v97 = vld [vmem:[%s1 + $0x104] sm:$0xf]
  %v98 = vld [vmem:[%s1 + $0x108] sm:$0xf]
  %v99 = vld [vmem:[%s1 + $0x10c] sm:$0xf]
  %v100 = vld [vmem:[%s1 + $0x110] sm:$0xf]
  %v101 = vld [vmem:[%s1 + $0x114] sm:$0xf]
  %v102 = vld [vmem:[%s1 + $0x118] sm:$0xf]
  %v103 = vld [vmem:[%s1 + $0x11c] sm:$0xf]
  %v104 = vld [vmem:[%s1 + $0x120] sm:$0xf]
  %v105 = vld [vmem:[%s1 + $0x124] sm:$0xf]
  %v106 = vld [vmem:[%s1 + $0x128] sm:$0xf]
  %v107 = vld [vmem:[%s1 + $0x12c] sm:$0xf]
  %v108 = vld [vmem:[%s1 + $0x130] sm:$0xf]
  %v109 = vld [vmem:[%s1 + $0x134] sm:$0xf]
  %v110 = vld [vmem:[%s1 + $0x138] sm:$0xf]
  %v111 = vld [vmem:[%s1 + $0x13c] sm:$0xf]
  %v112 = vld [vmem:[%s1 + $0x140] sm:$0xf]
  %v113 = vld [vmem:[%s1 + $0x144] sm:$0xf]
  %v114 = vld [vmem:[%s1 + $0x148] sm:$0xf]
  %v115 = vld [vmem:[%s1 + $0x14c] sm:$0xf]
  %v116 = vld [vmem:[%s1 + $0x150] sm:$0xf]
  %v117 = vld [vmem:[%s1 + $0x154] sm:$0xf]
  %v118 = vld [vmem:[%s1 + $0x158] sm:$0xf]
  %v119 = vld [vmem:[%s1 + $0x15c] sm:$0xf]
  %v120 = vld [vmem:[%s1 + $0x160] sm:$0xf]
  %v121 = vld [vmem:[%s1 + $0x164] sm:$0xf]
  %v122 = vld [vmem:[%s1 + $0x168] sm:$0xf]
  %v123 = vld [vmem:[%s1 + $0x16c] sm:$0xf]
  %v124 = vld [vmem:[%s1 + $0x170] sm:$0xf]
  %v125 = vld [vmem:[%s1 + $0x174] sm:$0xf]
  %v126 = vld [vmem:[%s1 + $0x178] sm:$0xf]
  %v127 = vld [vmem:[%s1 + $0x17c] sm:$0xf]
  %v128 = vld [vmem:[%s1 + $0x180] sm:$0xf]
  %v129 = vld [vmem:[%s1 + $0x184] sm:$0xf]
  %v130 = vld [vmem:[%s1 + $0x188] sm:$0xf]
  %v131 = vld [vmem:[%s1 + $0x18c] sm:$0xf]
  %v132 = vld [vmem:[%s1 + $0x190] sm:$0xf]
  %v133 = vld [vmem:[%s1 + $0x194] sm:$0xf]
  %v134 = vld [vmem:[%s1 + $0x198] sm:$0xf]
  %v135 = vld [vmem:[%s1 + $0x19c] sm:$0xf]
  %v136 = vld [vmem:[%s1 + $0x1a0] sm:$0xf]
  %v137 = vld [vmem:[%s1 + $0x1a4] sm:$0xf]
  %v138 = vld [vmem:[%s1 + $0x1a8] sm:$0xf]
  %v139 = vld [vmem:[%s1 + $0x1ac] sm:$0xf]
  %v140 = vld [vmem:[%s1 + $0x1b0] sm:$0xf]
  %v141 = vld [vmem:[%s1 + $0x1b4] sm:$0xf]
  %v142 = vld [vmem:[%s1 + $0x1b8] sm:$0xf]
  %v143 = vld [vmem:[%s1 + $0x1bc] sm:$0xf]
  %v144 = vld [vmem:[%s1 + $0x1c0] sm:$0xf]
  %v145 = vld [vmem:[%s1 + $0x1c4] sm:$0xf]
  %v146 = vld [vmem:[%s1 + $0x1c8] sm:$0xf]
  %v147 = vld [vmem:[%s1 + $0x1cc] sm:$0xf]
  %v148 = vld [vmem:[%s1 + $0x1d0] sm:$0xf]
  %v149 = vld [vmem:[%s1 + $0x1d4] sm:$0xf]
  %v150 = vld [vmem:[%s1 + $0x1d8] sm:$0xf]
  %v151 = vld [vmem:[%s1 + $0x1dc] sm:$0xf]
  %v152 = vld [vmem:[%s1 + $0x1e0] sm:$0xf]
  %v153 = vld [vmem:[%s1 + $0x1e4] sm:$0xf]
  %v154 = vld [vmem:[%s1 + $0x1e8] sm:$0xf]
  %v155 = vld [vmem:[%s1 + $0x1ec] sm:$0xf]
  %v156 = vld [vmem:[%s1 + $0x1f0] sm:$0xf]
  %v157 = vld [vmem:[%s1 + $0x1f4] sm:$0xf]
  %v158 = vld [vmem:[%s1 + $0x1f8] sm:$0xf]
  %v159 = vld [vmem:[%s1 + $0x1fc] sm:$0xf]
  %v160 = vld [vmem:[%s1 + $0x200] sm:$0xf]
  %v161 = vld [vmem:[%s1 + $0x204] sm:$0xf]
  %v162 = vld [vmem:[%s1 + $0x208] sm:$0xf]
  %v163 = vld [vmem:[%s1 + $0x20c] sm:$0xf]
  %v164 = vld [vmem:[%s1 + $0x210] sm:$0xf]
  %v165 = vld [vmem:[%s1 + $0x214] sm:$0xf]
  %v166 = vld [vmem:[%s1 + $0x218] sm:$0xf]
  %v167 = vld [vmem:[%s1 + $0x21c] sm:$0xf]
  %v168 = vld [vmem:[%s1 + $0x220] sm:$0xf]
  %v169 = vld [vmem:[%s1 + $0x224] sm:$0xf]
  %v170 = vld [vmem:[%s1 + $0x228] sm:$0xf]
  %v171 = vld [vmem:[%s1 + $0x22c] sm:$0xf]
  %v172 = vld [vmem:[%s1 + $0x230] sm:$0xf]
  %v173 = vld [vmem:[%s1 + $0x234] sm:$0xf]
  %v174 = vld [vmem:[%s1 + $0x238] sm:$0xf]
  %v175 = vld [vmem:[%s1 + $0x23c] sm:$0xf]
  %v181 = vunpack.c.l.b16 %v27
  %v182 = vunpack.c.h.b16 %v27
  %v183 = vunpack.c.l.b16 %v28
  %v184 = vunpack.c.h.b16 %v28
  %v185 = vunpack.c.l.b16 %v29
  %v186 = vunpack.c.h.b16 %v29
  %v187 = vunpack.c.l.b16 %v30
  %v188 = vunpack.c.h.b16 %v30
  %v189 = vunpack.c.l.b16 %v31
  %v190 = vpack.c.b16 %v181, %v181
  %v191 = vpack.c.b16 %v182, %v182
  %v192 = vpack.c.b16 %v183, %v183
  %v193 = vpack.c.b16 %v184, %v184
  %v194 = vpack.c.b16 %v185, %v185
  %v195 = vpack.c.b16 %v186, %v186
  %v196 = vpack.c.b16 %v187, %v187
  %v197 = vpack.c.b16 %v188, %v188
  %v198 = vpack.c.b16 %v189, %v189
  %v352 = vunpack.c.l.b16 %v32
  %v353 = vunpack.c.l.b16 %v33
  %v354 = vunpack.c.l.b16 %v34
  %v355 = vunpack.c.l.b16 %v35
  %v356 = vunpack.c.l.b16 %v36
  %v357 = vunpack.c.l.b16 %v37
  %v358 = vunpack.c.l.b16 %v38
  %v359 = vunpack.c.l.b16 %v39
  %v360 = vunpack.c.l.b16 %v40
  %v361 = vunpack.c.l.b16 %v41
  %v362 = vunpack.c.l.b16 %v42
  %v363 = vunpack.c.l.b16 %v43
  %v364 = vunpack.c.l.b16 %v44
  %v365 = vunpack.c.l.b16 %v45
  %v366 = vunpack.c.l.b16 %v46
  %v367 = vunpack.c.l.b16 %v47
  %v368 = vunpack.c.l.b16 %v48
  %v369 = vunpack.c.l.b16 %v49
  %v370 = vunpack.c.l.b16 %v50
  %v371 = vunpack.c.l.b16 %v51
  %v372 = vunpack.c.l.b16 %v52
  %v373 = vunpack.c.l.b16 %v53
  %v374 = vunpack.c.l.b16 %v54
  %v375 = vunpack.c.l.b16 %v55
  %v376 = vunpack.c.l.b16 %v56
  %v377 = vunpack.c.l.b16 %v57
  %v378 = vunpack.c.l.b16 %v58
  %v379 = vunpack.c.l.b16 %v59
  %v380 = vunpack.c.l.b16 %v60
  %v381 = vunpack.c.l.b16 %v61
  %v382 = vunpack.c.l.b16 %v62
  %v383 = vunpack.c.l.b16 %v63
  %v384 = vunpack.c.l.b16 %v64
  %v385 = vunpack.c.l.b16 %v65
  %v386 = vunpack.c.l.b16 %v66
  %v387 = vunpack.c.l.b16 %v67
  %v388 = vunpack.c.l.b16 %v68
  %v389 = vunpack.c.l.b16 %v69
  %v390 = vunpack.c.l.b16 %v70
  %v391 = vunpack.c.l.b16 %v71
  %v392 = vunpack.c.l.b16 %v72
  %v393 = vunpack.c.l.b16 %v73
  %v394 = vunpack.c.l.b16 %v74
  %v395 = vunpack.c.l.b16 %v75
  %v396 = vunpack.c.l.b16 %v76
  %v397 = vunpack.c.l.b16 %v77
  %v398 = vunpack.c.l.b16 %v78
  %v399 = vunpack.c.l.b16 %v79
  %v400 = vunpack.c.l.b16 %v80
  %v401 = vunpack.c.l.b16 %v81
  %v402 = vunpack.c.l.b16 %v82
  %v403 = vunpack.c.l.b16 %v83
  %v404 = vunpack.c.l.b16 %v84
  %v405 = vunpack.c.l.b16 %v85
  %v406 = vunpack.c.l.b16 %v86
  %v407 = vunpack.c.l.b16 %v87
  %v408 = vunpack.c.l.b16 %v88
  %v409 = vunpack.c.l.b16 %v89
  %v410 = vunpack.c.l.b16 %v90
  %v411 = vunpack.c.l.b16 %v91
  %v412 = vunpack.c.l.b16 %v92
  %v413 = vunpack.c.l.b16 %v93
  %v414 = vunpack.c.l.b16 %v94
  %v415 = vunpack.c.l.b16 %v95
  %v416 = vunpack.c.l.b16 %v96
  %v417 = vunpack.c.l.b16 %v97
  %v418 = vunpack.c.l.b16 %v98
  %v419 = vunpack.c.l.b16 %v99
  %v420 = vunpack.c.l.b16 %v100
  %v421 = vunpack.c.l.b16 %v101
  %v422 = vunpack.c.l.b16 %v102
  %v423 = vunpack.c.l.b16 %v103
  %v424 = vunpack.c.l.b16 %v104
  %v425 = vunpack.c.l.b16 %v105
  %v426 = vunpack.c.l.b16 %v106
  %v427 = vunpack.c.l.b16 %v107
  %v428 = vunpack.c.l.b16 %v108
  %v429 = vunpack.c.l.b16 %v109
  %v430 = vunpack.c.l.b16 %v110
  %v431 = vunpack.c.l.b16 %v111
  %v432 = vunpack.c.l.b16 %v112
  %v433 = vunpack.c.l.b16 %v113
  %v434 = vunpack.c.l.b16 %v114
  %v435 = vunpack.c.l.b16 %v115
  %v436 = vunpack.c.l.b16 %v116
  %v437 = vunpack.c.l.b16 %v117
  %v438 = vunpack.c.l.b16 %v118
  %v439 = vunpack.c.l.b16 %v119
  %v440 = vunpack.c.l.b16 %v120
  %v441 = vunpack.c.l.b16 %v121
  %v442 = vunpack.c.l.b16 %v122
  %v443 = vunpack.c.l.b16 %v123
  %v444 = vunpack.c.l.b16 %v124
  %v445 = vunpack.c.l.b16 %v125
  %v446 = vunpack.c.l.b16 %v126
  %v447 = vunpack.c.l.b16 %v127
  %v448 = vunpack.c.l.b16 %v128
  %v449 = vunpack.c.l.b16 %v129
  %v450 = vunpack.c.l.b16 %v130
  %v451 = vunpack.c.l.b16 %v131
  %v452 = vunpack.c.l.b16 %v132
  %v453 = vunpack.c.l.b16 %v133
  %v454 = vunpack.c.l.b16 %v134
  %v455 = vunpack.c.l.b16 %v135
  %v456 = vunpack.c.l.b16 %v136
  %v457 = vunpack.c.l.b16 %v137
  %v458 = vunpack.c.l.b16 %v138
  %v459 = vunpack.c.l.b16 %v139
  %v460 = vunpack.c.l.b16 %v140
  %v461 = vunpack.c.l.b16 %v141
  %v462 = vunpack.c.l.b16 %v142
  %v463 = vunpack.c.l.b16 %v143
  %v464 = vunpack.c.l.b16 %v144
  %v465 = vunpack.c.l.b16 %v145
  %v466 = vunpack.c.l.b16 %v146
  %v467 = vunpack.c.l.b16 %v147
  %v468 = vunpack.c.l.b16 %v148
  %v469 = vunpack.c.l.b16 %v149
  %v470 = vunpack.c.l.b16 %v150
  %v471 = vunpack.c.l.b16 %v151
  %v472 = vunpack.c.l.b16 %v152
  %v473 = vunpack.c.l.b16 %v153
  %v474 = vunpack.c.l.b16 %v154
  %v475 = vunpack.c.l.b16 %v155
  %v476 = vunpack.c.l.b16 %v156
  %v477 = vunpack.c.l.b16 %v157
  %v478 = vunpack.c.l.b16 %v158
  %v479 = vunpack.c.l.b16 %v159
  %v480 = vunpack.c.l.b16 %v160
  %v481 = vunpack.c.l.b16 %v161
  %v482 = vunpack.c.l.b16 %v162
  %v483 = vunpack.c.l.b16 %v163
  %v484 = vunpack.c.l.b16 %v164
  %v485 = vunpack.c.l.b16 %v165
  %v486 = vunpack.c.l.b16 %v166
  %v487 = vunpack.c.l.b16 %v167
  %v488 = vunpack.c.l.b16 %v168
  %v489 = vunpack.c.l.b16 %v169
  %v490 = vunpack.c.l.b16 %v170
  %v491 = vunpack.c.l.b16 %v171
  %v492 = vunpack.c.l.b16 %v172
  %v493 = vunpack.c.l.b16 %v173
  %v494 = vunpack.c.l.b16 %v174
  %v495 = vunpack.c.l.b16 %v175
  %v496 = vpack.c.b16 %v353, %v352
  %v497 = vpack.c.b16 %v355, %v354
  %v498 = vpack.c.b16 %v357, %v356
  %v499 = vpack.c.b16 %v359, %v358
  %v500 = vpack.c.b16 %v361, %v360
  %v501 = vpack.c.b16 %v363, %v362
  %v502 = vpack.c.b16 %v365, %v364
  %v503 = vpack.c.b16 %v367, %v366
  %v504 = vpack.c.b16 %v369, %v368
  %v505 = vpack.c.b16 %v371, %v370
  %v506 = vpack.c.b16 %v373, %v372
  %v507 = vpack.c.b16 %v375, %v374
  %v508 = vpack.c.b16 %v377, %v376
  %v509 = vpack.c.b16 %v379, %v378
  %v510 = vpack.c.b16 %v381, %v380
  %v511 = vpack.c.b16 %v383, %v382
  %v512 = vpack.c.b16 %v385, %v384
  %v513 = vpack.c.b16 %v387, %v386
  %v514 = vpack.c.b16 %v389, %v388
  %v515 = vpack.c.b16 %v391, %v390
  %v516 = vpack.c.b16 %v393, %v392
  %v517 = vpack.c.b16 %v395, %v394
  %v518 = vpack.c.b16 %v397, %v396
  %v519 = vpack.c.b16 %v399, %v398
  %v520 = vpack.c.b16 %v401, %v400
  %v521 = vpack.c.b16 %v403, %v402
  %v522 = vpack.c.b16 %v405, %v404
  %v523 = vpack.c.b16 %v407, %v406
  %v524 = vpack.c.b16 %v409, %v408
  %v525 = vpack.c.b16 %v411, %v410
  %v526 = vpack.c.b16 %v413, %v412
  %v527 = vpack.c.b16 %v415, %v414
  %v528 = vpack.c.b16 %v417, %v416
  %v529 = vpack.c.b16 %v419, %v418
  %v530 = vpack.c.b16 %v421, %v420
  %v531 = vpack.c.b16 %v423, %v422
  %v532 = vpack.c.b16 %v425, %v424
  %v533 = vpack.c.b16 %v427, %v426
  %v534 = vpack.c.b16 %v429, %v428
  %v535 = vpack.c.b16 %v431, %v430
  %v536 = vpack.c.b16 %v433, %v432
  %v537 = vpack.c.b16 %v435, %v434
  %v538 = vpack.c.b16 %v437, %v436
  %v539 = vpack.c.b16 %v439, %v438
  %v540 = vpack.c.b16 %v441, %v440
  %v541 = vpack.c.b16 %v443, %v442
  %v542 = vpack.c.b16 %v445, %v444
  %v543 = vpack.c.b16 %v447, %v446
  %v544 = vpack.c.b16 %v449, %v448
  %v545 = vpack.c.b16 %v451, %v450
  %v546 = vpack.c.b16 %v453, %v452
  %v547 = vpack.c.b16 %v455, %v454
  %v548 = vpack.c.b16 %v457, %v456
  %v549 = vpack.c.b16 %v459, %v458
  %v550 = vpack.c.b16 %v461, %v460
  %v551 = vpack.c.b16 %v463, %v462
  %v552 = vpack.c.b16 %v465, %v464
  %v553 = vpack.c.b16 %v467, %v466
  %v554 = vpack.c.b16 %v469, %v468
  %v555 = vpack.c.b16 %v471, %v470
  %v556 = vpack.c.b16 %v473, %v472
  %v557 = vpack.c.b16 %v475, %v474
  %v558 = vpack.c.b16 %v477, %v476
  %v559 = vpack.c.b16 %v479, %v478
  %v560 = vpack.c.b16 %v481, %v480
  %v561 = vpack.c.b16 %v483, %v482
  %v562 = vpack.c.b16 %v485, %v484
  %v563 = vpack.c.b16 %v487, %v486
  %v564 = vpack.c.b16 %v489, %v488
  %v565 = vpack.c.b16 %v491, %v490
  %v566 = vpack.c.b16 %v493, %v492
  %v567 = vpack.c.b16 %v495, %v494
  %640 = vmatprep.subr.bf16.mxu0 0
  %641 = vmatpush1.bf16.msra.mxu0 %v496
  %642 = vmatprep.subr.bf16.mxu0 0
  %643 = vmatpush1.bf16.msra.mxu0 %v497
  %644 = vmatprep.subr.bf16.mxu0 0
  %645 = vmatpush1.bf16.msra.mxu0 %v498
  %646 = vmatprep.subr.bf16.mxu0 0
  %647 = vmatpush1.bf16.msra.mxu0 %v499
  %648 = vmatprep.subr.bf16.mxu0 0
  %649 = vmatpush1.bf16.msra.mxu0 %v500
  %650 = vmatprep.subr.bf16.mxu0 0
  %651 = vmatpush1.bf16.msra.mxu0 %v501
  %652 = vmatprep.subr.bf16.mxu0 0
  %653 = vmatpush1.bf16.msra.mxu0 %v502
  %654 = vmatprep.subr.bf16.mxu0 0
  %655 = vmatpush1.bf16.msra.mxu0 %v503
  %656 = vmatprep.subr.bf16.mxu0 0
  %657 = vmatpush1.bf16.msra.mxu0 %v504
  %658 = vmatprep.subr.bf16.mxu0 0
  %659 = vmatpush1.bf16.msra.mxu0 %v505
  %660 = vmatprep.subr.bf16.mxu0 0
  %661 = vmatpush1.bf16.msra.mxu0 %v506
  %662 = vmatprep.subr.bf16.mxu0 0
  %663 = vmatpush1.bf16.msra.mxu0 %v507
  %664 = vmatprep.subr.bf16.mxu0 0
  %665 = vmatpush1.bf16.msra.mxu0 %v508
  %666 = vmatprep.subr.bf16.mxu0 0
  %667 = vmatpush1.bf16.msra.mxu0 %v509
  %668 = vmatprep.subr.bf16.mxu0 0
  %669 = vmatpush1.bf16.msra.mxu0 %v510
  %670 = vmatprep.subr.bf16.mxu0 0
  %671 = vmatpush1.bf16.msra.mxu0 %v511
  %672 = vmatprep.mubr.bf16.mxu0 %v191
  %673 = vmatmul.mubr.bf16.gmra.mrb[0].mxu0 %v190
  %v674 = vpop.f32.mrb[0].mxu0
  %v675 = vadd.f32 0.0, %v674
  %v676 = vpop.f32.mrb[0].mxu0
  %v677 = vpop.f32.mrb[0].mxu0
  %v678 = vpop.f32.mrb[0].mxu0
  %679 = vdwg.mxu0
  %680 = vmatprep.subr.bf16.mxu0 0
  %681 = vmatpush1.bf16.msra.mxu0 %v512
  %682 = vmatprep.subr.bf16.mxu0 0
  %683 = vmatpush1.bf16.msra.mxu0 %v513
  %684 = vmatprep.subr.bf16.mxu0 0
  %685 = vmatpush1.bf16.msra.mxu0 %v514
  %686 = vmatprep.subr.bf16.mxu0 0
  %687 = vmatpush1.bf16.msra.mxu0 %v515
  %688 = vmatprep.subr.bf16.mxu0 0
  %689 = vmatpush1.bf16.msra.mxu0 %v516
  %690 = vmatprep.subr.bf16.mxu0 0
  %691 = vmatpush1.bf16.msra.mxu0 %v517
  %692 = vmatprep.subr.bf16.mxu0 0
  %693 = vmatpush1.bf16.msra.mxu0 %v518
  %694 = vmatprep.subr.bf16.mxu0 0
  %695 = vmatpush1.bf16.msra.mxu0 %v519
  %696 = vmatprep.subr.bf16.mxu0 0
  %697 = vmatpush1.bf16.msra.mxu0 %v520
  %698 = vmatprep.subr.bf16.mxu0 0
  %699 = vmatpush1.bf16.msra.mxu0 %v521
  %700 = vmatprep.subr.bf16.mxu0 0
  %701 = vmatpush1.bf16.msra.mxu0 %v522
  %702 = vmatprep.subr.bf16.mxu0 0
  %703 = vmatpush1.bf16.msra.mxu0 %v523
  %704 = vmatprep.subr.bf16.mxu0 0
  %705 = vmatpush1.bf16.msra.mxu0 %v524
  %706 = vmatprep.subr.bf16.mxu0 0
  %707 = vmatpush1.bf16.msra.mxu0 %v525
  %708 = vmatprep.subr.bf16.mxu0 0
  %709 = vmatpush1.bf16.msra.mxu0 %v526
  %710 = vmatprep.subr.bf16.mxu0 0
  %711 = vmatpush1.bf16.msra.mxu0 %v527
  %712 = vmatprep.mubr.bf16.mxu0 %v193
  %713 = vmatmul.mubr.bf16.gmra.mrb[0].mxu0 %v192
  %v714 = vpop.f32.mrb[0].mxu0
  %v715 = vadd.f32 %v675, %v714
  %v716 = vpop.f32.mrb[0].mxu0
  %v717 = vpop.f32.mrb[0].mxu0
  %v718 = vpop.f32.mrb[0].mxu0
  %719 = vdwg.mxu0
  %720 = vmatprep.subr.bf16.mxu0 0
  %721 = vmatpush1.bf16.msra.mxu0 %v528
  %722 = vmatprep.subr.bf16.mxu0 0
  %723 = vmatpush1.bf16.msra.mxu0 %v529
  %724 = vmatprep.subr.bf16.mxu0 0
  %725 = vmatpush1.bf16.msra.mxu0 %v530
  %726 = vmatprep.subr.bf16.mxu0 0
  %727 = vmatpush1.bf16.msra.mxu0 %v531
  %728 = vmatprep.subr.bf16.mxu0 0
  %729 = vmatpush1.bf16.msra.mxu0 %v532
  %730 = vmatprep.subr.bf16.mxu0 0
  %731 = vmatpush1.bf16.msra.mxu0 %v533
  %732 = vmatprep.subr.bf16.mxu0 0
  %733 = vmatpush1.bf16.msra.mxu0 %v534
  %734 = vmatprep.subr.bf16.mxu0 0
  %735 = vmatpush1.bf16.msra.mxu0 %v535
  %736 = vmatprep.subr.bf16.mxu0 0
  %737 = vmatpush1.bf16.msra.mxu0 %v536
  %738 = vmatprep.subr.bf16.mxu0 0
  %739 = vmatpush1.bf16.msra.mxu0 %v537
  %740 = vmatprep.subr.bf16.mxu0 0
  %741 = vmatpush1.bf16.msra.mxu0 %v538
  %742 = vmatprep.subr.bf16.mxu0 0
  %743 = vmatpush1.bf16.msra.mxu0 %v539
  %744 = vmatprep.subr.bf16.mxu0 0
  %745 = vmatpush1.bf16.msra.mxu0 %v540
  %746 = vmatprep.subr.bf16.mxu0 0
  %747 = vmatpush1.bf16.msra.mxu0 %v541
  %748 = vmatprep.subr.bf16.mxu0 0
  %749 = vmatpush1.bf16.msra.mxu0 %v542
  %750 = vmatprep.subr.bf16.mxu0 0
  %751 = vmatpush1.bf16.msra.mxu0 %v543
  %752 = vmatprep.mubr.bf16.mxu0 %v195
  %753 = vmatmul.mubr.bf16.gmra.mrb[0].mxu0 %v194
  %v754 = vpop.f32.mrb[0].mxu0
  %v755 = vadd.f32 %v715, %v754
  %v756 = vpop.f32.mrb[0].mxu0
  %v757 = vpop.f32.mrb[0].mxu0
  %v758 = vpop.f32.mrb[0].mxu0
  %759 = vdwg.mxu0
  %760 = vmatprep.subr.bf16.mxu0 0
  %761 = vmatpush1.bf16.msra.mxu0 %v544
  %762 = vmatprep.subr.bf16.mxu0 0
  %763 = vmatpush1.bf16.msra.mxu0 %v545
  %764 = vmatprep.subr.bf16.mxu0 0
  %765 = vmatpush1.bf16.msra.mxu0 %v546
  %766 = vmatprep.subr.bf16.mxu0 0
  %767 = vmatpush1.bf16.msra.mxu0 %v547
  %768 = vmatprep.subr.bf16.mxu0 0
  %769 = vmatpush1.bf16.msra.mxu0 %v548
  %770 = vmatprep.subr.bf16.mxu0 0
  %771 = vmatpush1.bf16.msra.mxu0 %v549
  %772 = vmatprep.subr.bf16.mxu0 0
  %773 = vmatpush1.bf16.msra.mxu0 %v550
  %774 = vmatprep.subr.bf16.mxu0 0
  %775 = vmatpush1.bf16.msra.mxu0 %v551
  %776 = vmatprep.subr.bf16.mxu0 0
  %777 = vmatpush1.bf16.msra.mxu0 %v552
  %778 = vmatprep.subr.bf16.mxu0 0
  %779 = vmatpush1.bf16.msra.mxu0 %v553
  %780 = vmatprep.subr.bf16.mxu0 0
  %781 = vmatpush1.bf16.msra.mxu0 %v554
  %782 = vmatprep.subr.bf16.mxu0 0
  %783 = vmatpush1.bf16.msra.mxu0 %v555
  %784 = vmatprep.subr.bf16.mxu0 0
  %785 = vmatpush1.bf16.msra.mxu0 %v556
  %786 = vmatprep.subr.bf16.mxu0 0
  %787 = vmatpush1.bf16.msra.mxu0 %v557
  %788 = vmatprep.subr.bf16.mxu0 0
  %789 = vmatpush1.bf16.msra.mxu0 %v558
  %790 = vmatprep.subr.bf16.mxu0 0
  %791 = vmatpush1.bf16.msra.mxu0 %v559
  %792 = vmatprep.mubr.bf16.mxu0 %v197
  %793 = vmatmul.mubr.bf16.gmra.mrb[0].mxu0 %v196
  %v794 = vpop.f32.mrb[0].mxu0
  %v795 = vadd.f32 %v755, %v794
  %v796 = vpop.f32.mrb[0].mxu0
  %v797 = vpop.f32.mrb[0].mxu0
  %v798 = vpop.f32.mrb[0].mxu0
  %799 = vdwg.mxu0
  %800 = vmatprep.subr.bf16.mxu0 0
  %801 = vmatpush1.bf16.msra.mxu0 %v560
  %802 = vmatprep.subr.bf16.mxu0 0
  %803 = vmatpush1.bf16.msra.mxu0 %v561
  %804 = vmatprep.subr.bf16.mxu0 0
  %805 = vmatpush1.bf16.msra.mxu0 %v562
  %806 = vmatprep.subr.bf16.mxu0 0
  %807 = vmatpush1.bf16.msra.mxu0 %v563
  %808 = vmatprep.subr.bf16.mxu0 0
  %809 = vmatpush1.bf16.msra.mxu0 %v564
  %810 = vmatprep.subr.bf16.mxu0 0
  %811 = vmatpush1.bf16.msra.mxu0 %v565
  %812 = vmatprep.subr.bf16.mxu0 0
  %813 = vmatpush1.bf16.msra.mxu0 %v566
  %814 = vmatprep.subr.bf16.mxu0 0
  %815 = vmatpush1.bf16.msra.mxu0 %v567
  %816 = vmatprep.subr.bf16.mxu0 0
  %817 = vmatpush1.bf16.msra.mxu0 0
  %818 = vmatprep.subr.bf16.mxu0 0
  %819 = vmatpush1.bf16.msra.mxu0 0
  %820 = vmatprep.subr.bf16.mxu0 0
  %821 = vmatpush1.bf16.msra.mxu0 0
  %822 = vmatprep.subr.bf16.mxu0 0
  %823 = vmatpush1.bf16.msra.mxu0 0
  %824 = vmatprep.subr.bf16.mxu0 0
  %825 = vmatpush1.bf16.msra.mxu0 0
  %826 = vmatprep.subr.bf16.mxu0 0
  %827 = vmatpush1.bf16.msra.mxu0 0
  %828 = vmatprep.subr.bf16.mxu0 0
  %829 = vmatpush1.bf16.msra.mxu0 0
  %830 = vmatprep.subr.bf16.mxu0 0
  %831 = vmatpush1.bf16.msra.mxu0 0
  %832 = vmatprep.mubr.bf16.mxu0 0
  %833 = vmatmul.mubr.bf16.gmra.mrb[0].mxu0 %v198
  %v834 = vpop.f32.mrb[0].mxu0
  %v835 = vadd.f32 %v795, %v834
  %v836 = vpop.f32.mrb[0].mxu0
  %v837 = vpop.f32.mrb[0].mxu0
  %v838 = vpop.f32.mrb[0].mxu0
  %839 = vdwg.mxu0
  %v840 = vadd.f32 %v26, %v835
  %841 = vst [vmem:[#allocation2] sm:$0xff] %v840
  // Predicated region
  $region26: #{_lambda_.20} parent=0 // pred_check
    %p842 = pneg %p21
  $region27: #{_lambda_.20} parent=0 // pred_check_branch
    %844 = sbr.rel (%p842) target = $region29
  $region28: #{_lambda_.20} parent=0 // pred_region
    %v845 = vld [vmem:[#allocation2] sm:$0xff]
    %v846 = vld [vmem:[%s2] sm:$0x1]
    %v848 = vlaneseq
    %v849 = vshrl.u32 %v848, 7
    %v850 = vsub.s32 0, %v849
    %v851 = vrot.slane %v846, %v850
    %v853 = vmul.f32 %v845, %v851
    %v854 = vld [vmem:[%s3] sm:$0x1]
    %v856 = vlaneseq
    %v857 = vshrl.u32 %v856, 7
    %v858 = vsub.s32 0, %v857
    %v859 = vrot.slane %v854, %v858
    %v861 = vadd.f32 %v853, %v859
    %v862 = vld [vmem:[%s4] sm:$0xf]
    %v863 = vunpack.c.l.bf16 %v862
    %v864 = vadd.f32 %v861, %v863
    %v865 = vmax.f32 %v864, 0.0
    %v866 = vpack.c.bf16 %v865, %v865
    %867 = vst [vmem:[%s5] sm:$0xf] %v866
  $region29: #{_lambda_.20} parent=0 // pred_fallthru
    _
  // Predicated region
  $region30: #{_lambda_.20} parent=0 // pred_check
    _
  $region31: #{_lambda_.20} parent=0 // pred_check_branch
    %869 = sbr.rel (0) target = $region33
  $region32: #{_lambda_.20} parent=0 // pred_region
    _
  $region33: #{_lambda_.20} parent=0 // pred_fallthru
    _
  // Predicated region
  $region34: #{_lambda_.20} parent=0 // pred_check
    _
  $region35: #{_lambda_.20} parent=0 // pred_check_branch
    %871 = sbr.rel (0) target = $region37
  $region36: #{_lambda_.20} parent=0 // pred_region
    _
  $region37: #{_lambda_.20} parent=0 // pred_fallthru
    _

// kernel: _lambda_.23
$region0: #{_lambda_.23}
  #allocation0 [shape = 'u32[]', space=smem, size = 0x4, offset = 0x4, fixed_abs, tag = 'smem constant byte address 0x4 - core index']
  #allocation1 [shape = 'u32[144,128]{1,0:T(1,128)}', space=vmem, size = 0x12000, scoped, tag = 'internal scratch']
  #allocation2 [shape = 'f32[8,256]{1,0:T(8,128)}', space=vmem, size = 0x2000, scoped, tag = 'scratch operand']
  %s0 = inlined_call_operand.vmem [shape: bf16[8,2304], index: 0, kind: input, shape index: {}]
  %s1 = inlined_call_operand.vmem [shape: bf16[2304,256], index: 1, kind: input, shape index: {}]
  %s2 = inlined_call_operand.vmem [shape: f32[1,256], index: 2, kind: input, shape index: {}]
  %s3 = inlined_call_operand.vmem [shape: f32[1,256], index: 3, kind: input, shape index: {}]
  %s4 = inlined_call_operand.vmem [shape: bf16[8,256], index: 4, kind: input, shape index: {}]
  %s5 = inlined_call_operand.vmem [shape: bf16[8,256], index: 5, kind: output, shape index: {}]
  %s6 = sld [smem:[#allocation0]]
  $region61: #{_lambda_.23} parent=0
    _
  %s8 = ssub.s32 1, %s6
  %s9 = scalar_select 0, %s8, %s6
  loop: start=0, step=1, limit=8
  $region2: #{_lambda_.23} parent=0 // loop_pre_header
    _
  $region3: #{_lambda_.23} parent=0 // loop_header
    %s11 = sphi 0, %s15
    %p12 = scmp.ge.s32.totalorder %s11, 8
    %s18 = sphi 0, %s37
    %s19 = sphi 0, %s33
    %s20 = sphi 0, %s29
    %s21 = sphi 0, %s18
    %s22 = sphi 0, %s19
    %s23 = sphi 0, %s20
    %s24 = sphi 0, %s21
    %s25 = sphi 0, %s22
    %s26 = sphi 0, %s23
    %s42 = sphi 0, %s44
    %s45 = sphi 0, %s42
    %s46 = sphi 0, %s45
    %s62 = sphi 0, %s46
    %s70 = sphi 0, %s72
    %s73 = sphi 0, %s70
    %s74 = sphi 0, %s73
    %s90 = sphi 0, %s74
    %s96 = sphi 0, %s98
    %s99 = sphi 0, %s96
    %s100 = sphi 0, %s99
    %s116 = sphi 0, %s100
    %s122 = sphi 0, %s124
    %s125 = sphi 0, %s122
    %s126 = sphi 0, %s125
    %s142 = sphi 0, %s126
    %s150 = sphi 0, %s152
    %s153 = sphi 0, %s150
    %s154 = sphi 0, %s153
    %s170 = sphi 0, %s154
    %s178 = sphi 0, %s180
    %s181 = sphi 0, %s178
    %s182 = sphi 0, %s181
    %s198 = sphi 0, %s182
  $region4: #{_lambda_.23} parent=0 // loop_header_branch
    %14 = sbr.rel (%p12) target = $region8
  $region5: #{_lambda_.23} parent=0 // loop_body
    %s16 = ssub.s32 %s11, 1
    %s17 = ssub.s32 %s11, 2
    %s27 = sadd.s32 1, %s20
    %p28 = scmp.ge.s32.totalorder %s27, 6
    %s29 = scalar_select %p28, 0, %s27
    %s30 = sadd.s32 1, %s19
    %s31 = scalar_select %p28, %s30, %s19
    %p32 = scmp.ge.s32.totalorder %s31, 1
    %s33 = scalar_select %p32, 0, %s31
    %s34 = sadd.s32 1, %s18
    %s35 = scalar_select %p32, %s34, %s18
    %p36 = scmp.ge.s32.totalorder %s35, 1
    %s37 = scalar_select %p36, 0, %s35
    %s38 = ssub.s32 %s18, %s37
    %s39 = ssub.s32 %s20, %s29
    %s40 = sor.u32 %s38, %s39
    %p41 = scmp.eq.s32.totalorder %s40, 0
    %s43 = sadd.s32 %s42, 1
    %s44 = scalar_select %p41, %s42, %s43
    %p47 = pneg %p41
    %p48 = scmp.eq.s32.totalorder %s11, 5
    %p49 = por %p47, %p48
    %p50 = scmp.ne.s32.totalorder %s42, %s45
    %p51 = scmp.eq.s32.totalorder %s11, 0
    %p52 = por %p50, %p51
    %p53 = scmp.ne.s32.totalorder %s42, %s45
    %p54 = scmp.eq.s32.totalorder %s16, 5
    %p55 = por %p53, %p54
    %p56 = scmp.ne.s32.totalorder %s45, %s46
    %p57 = scmp.eq.s32.totalorder %s16, 0
    %p58 = por %p56, %p57
    %p59 = scmp.ne.s32.totalorder %s45, %s46
    %p60 = scmp.eq.s32.totalorder %s17, 5
    %p61 = por %p59, %p60
    %p63 = scmp.ne.s32.totalorder %s46, %s62
    %p64 = scmp.eq.s32.totalorder %s17, 0
    %p65 = por %p63, %p64
    %s66 = ssub.s32 %s20, %s29
    %s67 = ssub.s32 %s19, %s33
    %s68 = sor.u32 %s66, %s67
    %p69 = scmp.eq.s32.totalorder %s68, 0
    %s71 = sadd.s32 %s70, 1
    %s72 = scalar_select %p69, %s70, %s71
    %p75 = pneg %p69
    %p76 = scmp.eq.s32.totalorder %s11, 5
    %p77 = por %p75, %p76
    %p78 = scmp.ne.s32.totalorder %s70, %s73
    %p79 = scmp.eq.s32.totalorder %s11, 0
    %p80 = por %p78, %p79
    %p81 = scmp.ne.s32.totalorder %s70, %s73
    %p82 = scmp.eq.s32.totalorder %s16, 5
    %p83 = por %p81, %p82
    %p84 = scmp.ne.s32.totalorder %s73, %s74
    %p85 = scmp.eq.s32.totalorder %s16, 0
    %p86 = por %p84, %p85
    %p87 = scmp.ne.s32.totalorder %s73, %s74
    %p88 = scmp.eq.s32.totalorder %s17, 5
    %p89 = por %p87, %p88
    %p91 = scmp.ne.s32.totalorder %s74, %s90
    %p92 = scmp.eq.s32.totalorder %s17, 0
    %p93 = por %p91, %p92
    %s94 = ssub.s32 %s19, %s33
    %p95 = scmp.eq.s32.totalorder %s94, 0
    %s97 = sadd.s32 %s96, 1
    %s98 = scalar_select %p95, %s96, %s97
    %p101 = pneg %p95
    %p102 = scmp.eq.s32.totalorder %s11, 5
    %p103 = por %p101, %p102
    %p104 = scmp.ne.s32.totalorder %s96, %s99
    %p105 = scmp.eq.s32.totalorder %s11, 0
    %p106 = por %p104, %p105
    %p107 = scmp.ne.s32.totalorder %s96, %s99
    %p108 = scmp.eq.s32.totalorder %s16, 5
    %p109 = por %p107, %p108
    %p110 = scmp.ne.s32.totalorder %s99, %s100
    %p111 = scmp.eq.s32.totalorder %s16, 0
    %p112 = por %p110, %p111
    %p113 = scmp.ne.s32.totalorder %s99, %s100
    %p114 = scmp.eq.s32.totalorder %s17, 5
    %p115 = por %p113, %p114
    %p117 = scmp.ne.s32.totalorder %s100, %s116
    %p118 = scmp.eq.s32.totalorder %s17, 0
    %p119 = por %p117, %p118
    %s120 = ssub.s32 %s19, %s33
    %p121 = scmp.eq.s32.totalorder %s120, 0
    %s123 = sadd.s32 %s122, 1
    %s124 = scalar_select %p121, %s122, %s123
    %p127 = pneg %p121
    %p128 = scmp.eq.s32.totalorder %s11, 5
    %p129 = por %p127, %p128
    %p130 = scmp.ne.s32.totalorder %s122, %s125
    %p131 = scmp.eq.s32.totalorder %s11, 0
    %p132 = por %p130, %p131
    %p133 = scmp.ne.s32.totalorder %s122, %s125
    %p134 = scmp.eq.s32.totalorder %s16, 5
    %p135 = por %p133, %p134
    %p136 = scmp.ne.s32.totalorder %s125, %s126
    %p137 = scmp.eq.s32.totalorder %s16, 0
    %p138 = por %p136, %p137
    %p139 = scmp.ne.s32.totalorder %s125, %s126
    %p140 = scmp.eq.s32.totalorder %s17, 5
    %p141 = por %p139, %p140
    %p143 = scmp.ne.s32.totalorder %s126, %s142
    %p144 = scmp.eq.s32.totalorder %s17, 0
    %p145 = por %p143, %p144
    %s146 = ssub.s32 %s18, %s37
    %s147 = ssub.s32 %s19, %s33
    %s148 = sor.u32 %s146, %s147
    %p149 = scmp.eq.s32.totalorder %s148, 0
    %s151 = sadd.s32 %s150, 1
    %s152 = scalar_select %p149, %s150, %s151
    %p155 = pneg %p149
    %p156 = scmp.eq.s32.totalorder %s11, 5
    %p157 = por %p155, %p156
    %p158 = scmp.ne.s32.totalorder %s150, %s153
    %p159 = scmp.eq.s32.totalorder %s11, 0
    %p160 = por %p158, %p159
    %p161 = scmp.ne.s32.totalorder %s150, %s153
    %p162 = scmp.eq.s32.totalorder %s16, 5
    %p163 = por %p161, %p162
    %p164 = scmp.ne.s32.totalorder %s153, %s154
    %p165 = scmp.eq.s32.totalorder %s16, 0
    %p166 = por %p164, %p165
    %p167 = scmp.ne.s32.totalorder %s153, %s154
    %p168 = scmp.eq.s32.totalorder %s17, 5
    %p169 = por %p167, %p168
    %p171 = scmp.ne.s32.totalorder %s154, %s170
    %p172 = scmp.eq.s32.totalorder %s17, 0
    %p173 = por %p171, %p172
    %s174 = ssub.s32 %s18, %s37
    %s175 = ssub.s32 %s19, %s33
    %s176 = sor.u32 %s174, %s175
    %p177 = scmp.eq.s32.totalorder %s176, 0
    %s179 = sadd.s32 %s178, 1
    %s180 = scalar_select %p177, %s178, %s179
    %p183 = pneg %p177
    %p184 = scmp.eq.s32.totalorder %s11, 5
    %p185 = por %p183, %p184
    %p186 = scmp.ne.s32.totalorder %s178, %s181
    %p187 = scmp.eq.s32.totalorder %s11, 0
    %p188 = por %p186, %p187
    %p189 = scmp.ne.s32.totalorder %s178, %s181
    %p190 = scmp.eq.s32.totalorder %s16, 5
    %p191 = por %p189, %p190
    %p192 = scmp.ne.s32.totalorder %s181, %s182
    %p193 = scmp.eq.s32.totalorder %s16, 0
    %p194 = por %p192, %p193
    %p195 = scmp.ne.s32.totalorder %s181, %s182
    %p196 = scmp.eq.s32.totalorder %s17, 5
    %p197 = por %p195, %p196
    %p199 = scmp.ne.s32.totalorder %s182, %s198
    %p200 = scmp.eq.s32.totalorder %s17, 0
    %p201 = por %p199, %p200
    %p202 = scmp.le.s32.totalorder 1, %s11
    %p203 = scmp.lt.s32.totalorder %s11, 7
    %p204 = pnand %p202, %p203
    %p205 = pneg %p204
    // Predicated region
    $region9: #{_lambda_.23} parent=5 // pred_check
      _
    $region10: #{_lambda_.23} parent=5 // pred_check_branch
      %207 = sbr.rel (%p204) target = $region12
    $region11: #{_lambda_.23} parent=5 // pred_region
      %s208 = ssub.s32 %s11, 1
      // Predicated region
      $region13: #{_lambda_.23} parent=11 // pred_check
        %p209 = pneg %p112
      $region14: #{_lambda_.23} parent=11 // pred_check_branch
        %211 = sbr.rel (%p209) target = $region16
      $region15: #{_lambda_.23} parent=11 // pred_region
        %s212 = smul.u32 2, %s22
        %p213 = scmp.lt.s32.totalorder %s212, 1
        %s214 = scalar_select %p213, %s212, 1
        %s215 = scalar_lea.vmem %s2, %s214
        %s216 = smul.u32 2, %s22
      $region16: #{_lambda_.23} parent=11 // pred_fallthru
        _
      // Predicated region
      $region17: #{_lambda_.23} parent=11 // pred_check
        %p217 = pneg %p138
      $region18: #{_lambda_.23} parent=11 // pred_check_branch
        %219 = sbr.rel (%p217) target = $region20
      $region19: #{_lambda_.23} parent=11 // pred_region
        %s220 = smul.u32 2, %s22
        %p221 = scmp.lt.s32.totalorder %s220, 1
        %s222 = scalar_select %p221, %s220, 1
        %s223 = scalar_lea.vmem %s3, %s222
        %s224 = smul.u32 2, %s22
      $region20: #{_lambda_.23} parent=11 // pred_fallthru
        _
      // Predicated region
      $region21: #{_lambda_.23} parent=11 // pred_check
        %p225 = pneg %p166
      $region22: #{_lambda_.23} parent=11 // pred_check_branch
        %227 = sbr.rel (%p225) target = $region24
      $region23: #{_lambda_.23} parent=11 // pred_region
        %s228 = smul.u32 2, %s22
        %p229 = scmp.lt.s32.totalorder %s21, 0
        %s230 = scalar_select %p229, %s21, 0
        %p231 = scmp.lt.s32.totalorder %s228, 1
        %s232 = scalar_select %p231, %s228, 1
        %s233 = smul.addr %s230, 2
        %s234 = sadd.s32 %s232, %s233
        %s235 = smul.addr %s234, 4
        %s236 = scalar_lea.vmem %s4, %s235
        %s237 = smul.u32 2, %s22
      $region24: #{_lambda_.23} parent=11 // pred_fallthru
        _
    $region12: #{_lambda_.23} parent=5 // pred_fallthru
      _
    %p238 = scmp.lt.s32.totalorder %s11, 6
    // Predicated region
    $region25: #{_lambda_.23} parent=5 // pred_check
      %p239 = pneg %p238
    $region26: #{_lambda_.23} parent=5 // pred_check_branch
      %241 = sbr.rel (%p239) target = $region28
    $region27: #{_lambda_.23} parent=5 // pred_region
      // Predicated region
      $region29: #{_lambda_.23} parent=27 // pred_check
        %p242 = pneg %p52
      $region30: #{_lambda_.23} parent=27 // pred_check_branch
        %244 = sbr.rel (%p242) target = $region32
      $region31: #{_lambda_.23} parent=27 // pred_region
        %s245 = smul.u32 3, %s20
        %p246 = scmp.lt.s32.totalorder %s18, 0
        %s247 = scalar_select %p246, %s18, 0
        %p248 = scmp.lt.s32.totalorder %s245, 17
        %s249 = scalar_select %p248, %s245, 17
        %s250 = smul.addr %s247, 18
        %s251 = sadd.s32 %s249, %s250
        %s252 = smul.addr %s251, 4
        %s253 = scalar_lea.vmem %s0, %s252
        %s254 = smul.u32 3, %s20
      $region32: #{_lambda_.23} parent=27 // pred_fallthru
        _
      // Predicated region
      $region33: #{_lambda_.23} parent=27 // pred_check
        %p255 = pneg %p80
      $region34: #{_lambda_.23} parent=27 // pred_check_branch
        %257 = sbr.rel (%p255) target = $region36
      $region35: #{_lambda_.23} parent=27 // pred_region
        %s258 = smul.u32 48, %s20
        %s259 = smul.u32 2, %s19
        %p260 = scmp.lt.s32.totalorder %s258, 287
        %s261 = scalar_select %p260, %s258, 287
        %p262 = scmp.lt.s32.totalorder %s259, 1
        %s263 = scalar_select %p262, %s259, 1
        %s264 = smul.addr %s261, 2
        %s265 = sadd.s32 %s263, %s264
        %s266 = smul.addr %s265, 4
        %s267 = scalar_lea.vmem %s1, %s266
        %s268 = smul.u32 48, %s20
        %s269 = smul.u32 2, %s19
      $region36: #{_lambda_.23} parent=27 // pred_fallthru
        _
    $region28: #{_lambda_.23} parent=5 // pred_fallthru
      _
    %p270 = scmp.le.s32.totalorder 1, %s11
    %p271 = scmp.lt.s32.totalorder %s11, 7
    %p272 = pnand %p270, %p271
    %p273 = pneg %p272
    // Predicated region
    $region37: #{_lambda_.23} parent=5 // pred_check
      _
    $region38: #{_lambda_.23} parent=5 // pred_check_branch
      %275 = sbr.rel (%p272) target = $region40
    $region39: #{_lambda_.23} parent=5 // pred_region
      %s276 = ssub.s32 %s11, 1
      %s277 = smul.u32 3, %s23
      %p278 = scmp.lt.s32.totalorder %s21, 0
      %s279 = scalar_select %p278, %s21, 0
      %p280 = scmp.lt.s32.totalorder %s277, 17
      %s281 = scalar_select %p280, %s277, 17
      %s282 = smul.addr %s279, 18
      %s283 = sadd.s32 %s281, %s282
      %s284 = smul.addr %s283, 4
      %s285 = scalar_lea.vmem %s0, %s284
      %p286 = pneg %p58
      %p287 = pneg %p55
      %s288 = smul.u32 48, %s23
      %s289 = smul.u32 2, %s22
      %p290 = scmp.lt.s32.totalorder %s288, 287
      %s291 = scalar_select %p290, %s288, 287
      %p292 = scmp.lt.s32.totalorder %s289, 1
      %s293 = scalar_select %p292, %s289, 1
      %s294 = smul.addr %s291, 2
      %s295 = sadd.s32 %s293, %s294
      %s296 = smul.addr %s295, 4
      %s297 = scalar_lea.vmem %s1, %s296
      %p298 = pneg %p86
      %p299 = pneg %p83
      %s300 = smul.u32 2, %s22
      %p301 = scmp.lt.s32.totalorder %s300, 1
      %s302 = scalar_select %p301, %s300, 1
      %s303 = scalar_lea.vmem %s2, %s302
      %p304 = pneg %p112
      %p305 = pneg %p109
      %s306 = smul.u32 2, %s22
      %p307 = scmp.lt.s32.totalorder %s306, 1
      %s308 = scalar_select %p307, %s306, 1
      %s309 = scalar_lea.vmem %s3, %s308
      %p310 = pneg %p138
      %p311 = pneg %p135
      %s312 = smul.u32 2, %s22
      %p313 = scmp.lt.s32.totalorder %s21, 0
      %s314 = scalar_select %p313, %s21, 0
      %p315 = scmp.lt.s32.totalorder %s312, 1
      %s316 = scalar_select %p315, %s312, 1
      %s317 = smul.addr %s314, 2
      %s318 = sadd.s32 %s316, %s317
      %s319 = smul.addr %s318, 4
      %s320 = scalar_lea.vmem %s4, %s319
      %p321 = pneg %p166
      %p322 = pneg %p163
      %p323 = pneg %p194
      %p324 = pneg %p191
      %s325 = smul.u32 2, %s22
      %p326 = scmp.lt.s32.totalorder %s21, 0
      %s327 = scalar_select %p326, %s21, 0
      %p328 = scmp.lt.s32.totalorder %s325, 1
      %s329 = scalar_select %p328, %s325, 1
      %s330 = smul.addr %s327, 2
      %s331 = sadd.s32 %s329, %s330
      %s332 = smul.addr %s331, 4
      %s333 = scalar_lea.vmem %s5, %s332
      %s334 = smul.u32 3, %s23
      %p335 = scmp.lt.s32.totalorder %s21, 0
      %s336 = scalar_select %p335, %s21, 0
      %p337 = scmp.lt.s32.totalorder %s334, 17
      %s338 = scalar_select %p337, %s334, 17
      %s339 = smul.addr %s336, 18
      %s340 = sadd.s32 %s338, %s339
      %s341 = smul.addr %s340, 4
      %s342 = scalar_lea.vmem %s0, %s341
      %s343 = smul.u32 3, %s23
      %s344 = smul.u32 48, %s23
      %s345 = smul.u32 2, %s22
      %p346 = scmp.lt.s32.totalorder %s344, 287
      %s347 = scalar_select %p346, %s344, 287
      %p348 = scmp.lt.s32.totalorder %s345, 1
      %s349 = scalar_select %p348, %s345, 1
      %s350 = smul.addr %s347, 2
      %s351 = sadd.s32 %s349, %s350
      %s352 = smul.addr %s351, 4
      %s353 = scalar_lea.vmem %s1, %s352
      %s354 = smul.u32 48, %s23
      %s355 = smul.u32 2, %s22
      %s356 = smul.u32 2, %s22
      %p357 = scmp.lt.s32.totalorder %s356, 1
      %s358 = scalar_select %p357, %s356, 1
      %s359 = scalar_lea.vmem %s2, %s358
      %s360 = smul.u32 2, %s22
      %s361 = smul.u32 2, %s22
      %p362 = scmp.lt.s32.totalorder %s361, 1
      %s363 = scalar_select %p362, %s361, 1
      %s364 = scalar_lea.vmem %s3, %s363
      %s365 = smul.u32 2, %s22
      %s366 = smul.u32 2, %s22
      %p367 = scmp.lt.s32.totalorder %s21, 0
      %s368 = scalar_select %p367, %s21, 0
      %p369 = scmp.lt.s32.totalorder %s366, 1
      %s370 = scalar_select %p369, %s366, 1
      %s371 = smul.addr %s368, 2
      %s372 = sadd.s32 %s370, %s371
      %s373 = smul.addr %s372, 4
      %s374 = scalar_lea.vmem %s4, %s373
      %s375 = smul.u32 2, %s22
      %s376 = smul.u32 2, %s22
      %p377 = scmp.lt.s32.totalorder %s21, 0
      %s378 = scalar_select %p377, %s21, 0
      %p379 = scmp.lt.s32.totalorder %s376, 1
      %s380 = scalar_select %p379, %s376, 1
      %s381 = smul.addr %s378, 2
      %s382 = sadd.s32 %s380, %s381
      %s383 = smul.addr %s382, 4
      %s384 = scalar_lea.vmem %s5, %s383
      %s385 = smul.u32 2, %s22
      %p387 = scmp.eq.s32.totalorder %s23, 0
      // Predicated region
      $region41: #{_lambda_.23} parent=39 // pred_check
        %p388 = pneg %p387
      $region42: #{_lambda_.23} parent=39 // pred_check_branch
        %390 = sbr.rel (%p388) target = $region44
      $region43: #{_lambda_.23} parent=39 // pred_region
        %391 = vst [vmem:[#allocation2] sm:$0xff] 0.0
        %392 = vst [vmem:[#allocation2 + $0x8] sm:$0xff] 0.0
      $region44: #{_lambda_.23} parent=39 // pred_fallthru
        _
      %v393 = vld [vmem:[#allocation2] sm:$0xff]
      %v394 = vld [vmem:[#allocation2 + $0x8] sm:$0xff]
      %v395 = vld [vmem:[%s342] sm:$0xff]
      %v396 = vld [vmem:[%s342 + $0x8] sm:$0xf]
      %v397 = vld [vmem:[%s353] sm:$0xff]
      %v398 = vld [vmem:[%s353 + $0x8] sm:$0xff]
      %v399 = vld [vmem:[%s353 + $0x10] sm:$0xff]
      %v400 = vld [vmem:[%s353 + $0x18] sm:$0xff]
      %v401 = vld [vmem:[%s353 + $0x20] sm:$0xff]
      %v402 = vld [vmem:[%s353 + $0x28] sm:$0xff]
      %v403 = vld [vmem:[%s353 + $0x30] sm:$0xff]
      %v404 = vld [vmem:[%s353 + $0x38] sm:$0xff]
      %v405 = vld [vmem:[%s353 + $0x40] sm:$0xff]
      %v406 = vld [vmem:[%s353 + $0x48] sm:$0xff]
      %v407 = vld [vmem:[%s353 + $0x50] sm:$0xff]
      %v408 = vld [vmem:[%s353 + $0x58] sm:$0xff]
      %v409 = vld [vmem:[%s353 + $0x60] sm:$0xff]
      %v410 = vld [vmem:[%s353 + $0x68] sm:$0xff]
      %v411 = vld [vmem:[%s353 + $0x70] sm:$0xff]
      %v412 = vld [vmem:[%s353 + $0x78] sm:$0xff]
      %v413 = vld [vmem:[%s353 + $0x80] sm:$0xff]
      %v414 = vld [vmem:[%s353 + $0x88] sm:$0xff]
      %v415 = vld [vmem:[%s353 + $0x90] sm:$0xff]
      %v416 = vld [vmem:[%s353 + $0x98] sm:$0xff]
      %v417 = vld [vmem:[%s353 + $0xa0] sm:$0xff]
      %v418 = vld [vmem:[%s353 + $0xa8] sm:$0xff]
      %v419 = vld [vmem:[%s353 + $0xb0] sm:$0xff]
      %v420 = vld [vmem:[%s353 + $0xb8] sm:$0xff]
      %v421 = vld [vmem:[%s353 + $0xc0] sm:$0xff]
      %v422 = vld [vmem:[%s353 + $0xc8] sm:$0xff]
      %v423 = vld [vmem:[%s353 + $0xd0] sm:$0xff]
      %v424 = vld [vmem:[%s353 + $0xd8] sm:$0xff]
      %v425 = vld [vmem:[%s353 + $0xe0] sm:$0xff]
      %v426 = vld [vmem:[%s353 + $0xe8] sm:$0xff]
      %v427 = vld [vmem:[%s353 + $0xf0] sm:$0xff]
      %v428 = vld [vmem:[%s353 + $0xf8] sm:$0xff]
      %v429 = vld [vmem:[%s353 + $0x100] sm:$0xff]
      %v430 = vld [vmem:[%s353 + $0x108] sm:$0xff]
      %v431 = vld [vmem:[%s353 + $0x110] sm:$0xff]
      %v432 = vld [vmem:[%s353 + $0x118] sm:$0xff]
      %v433 = vld [vmem:[%s353 + $0x120] sm:$0xff]
      %v434 = vld [vmem:[%s353 + $0x128] sm:$0xff]
      %v435 = vld [vmem:[%s353 + $0x130] sm:$0xff]
      %v436 = vld [vmem:[%s353 + $0x138] sm:$0xff]
      %v437 = vld [vmem:[%s353 + $0x140] sm:$0xff]
      %v438 = vld [vmem:[%s353 + $0x148] sm:$0xff]
      %v439 = vld [vmem:[%s353 + $0x150] sm:$0xff]
      %v440 = vld [vmem:[%s353 + $0x158] sm:$0xff]
      %v441 = vld [vmem:[%s353 + $0x160] sm:$0xff]
      %v442 = vld [vmem:[%s353 + $0x168] sm:$0xff]
      %v443 = vld [vmem:[%s353 + $0x170] sm:$0xff]
      %v444 = vld [vmem:[%s353 + $0x178] sm:$0xff]
      %v447 = vunpack.c.l.b16 %v395
      %v448 = vunpack.c.h.b16 %v395
      %v449 = vunpack.c.l.b16 %v396
      %v450 = vpack.c.b16 %v447, %v447
      %v451 = vpack.c.b16 %v448, %v448
      %v452 = vpack.c.b16 %v449, %v449
      %v504 = vunpack.c.l.b16 %v397
      %v505 = vunpack.c.h.b16 %v397
      %v506 = vunpack.c.l.b16 %v398
      %v507 = vunpack.c.h.b16 %v398
      %v508 = vunpack.c.l.b16 %v399
      %v509 = vunpack.c.h.b16 %v399
      %v510 = vunpack.c.l.b16 %v400
      %v511 = vunpack.c.h.b16 %v400
      %v512 = vunpack.c.l.b16 %v401
      %v513 = vunpack.c.h.b16 %v401
      %v514 = vunpack.c.l.b16 %v402
      %v515 = vunpack.c.h.b16 %v402
      %v516 = vunpack.c.l.b16 %v403
      %v517 = vunpack.c.h.b16 %v403
      %v518 = vunpack.c.l.b16 %v404
      %v519 = vunpack.c.h.b16 %v404
      %v520 = vunpack.c.l.b16 %v405
      %v521 = vunpack.c.h.b16 %v405
      %v522 = vunpack.c.l.b16 %v406
      %v523 = vunpack.c.h.b16 %v406
      %v524 = vunpack.c.l.b16 %v407
      %v525 = vunpack.c.h.b16 %v407
      %v526 = vunpack.c.l.b16 %v408
      %v527 = vunpack.c.h.b16 %v408
      %v528 = vunpack.c.l.b16 %v409
      %v529 = vunpack.c.h.b16 %v409
      %v530 = vunpack.c.l.b16 %v410
      %v531 = vunpack.c.h.b16 %v410
      %v532 = vunpack.c.l.b16 %v411
      %v533 = vunpack.c.h.b16 %v411
      %v534 = vunpack.c.l.b16 %v412
      %v535 = vunpack.c.h.b16 %v412
      %v536 = vunpack.c.l.b16 %v413
      %v537 = vunpack.c.h.b16 %v413
      %v538 = vunpack.c.l.b16 %v414
      %v539 = vunpack.c.h.b16 %v414
      %v540 = vunpack.c.l.b16 %v415
      %v541 = vunpack.c.h.b16 %v415
      %v542 = vunpack.c.l.b16 %v416
      %v543 = vunpack.c.h.b16 %v416
      %v544 = vunpack.c.l.b16 %v417
      %v545 = vunpack.c.h.b16 %v417
      %v546 = vunpack.c.l.b16 %v418
      %v547 = vunpack.c.h.b16 %v418
      %v548 = vunpack.c.l.b16 %v419
      %v549 = vunpack.c.h.b16 %v419
      %v550 = vunpack.c.l.b16 %v420
      %v551 = vunpack.c.h.b16 %v420
      %v552 = vunpack.c.l.b16 %v421
      %v553 = vunpack.c.h.b16 %v421
      %v554 = vunpack.c.l.b16 %v422
      %v555 = vunpack.c.h.b16 %v422
      %v556 = vunpack.c.l.b16 %v423
      %v557 = vunpack.c.h.b16 %v423
      %v558 = vunpack.c.l.b16 %v424
      %v559 = vunpack.c.h.b16 %v424
      %v560 = vunpack.c.l.b16 %v425
      %v561 = vunpack.c.h.b16 %v425
      %v562 = vunpack.c.l.b16 %v426
      %v563 = vunpack.c.h.b16 %v426
      %v564 = vunpack.c.l.b16 %v427
      %v565 = vunpack.c.h.b16 %v427
      %v566 = vunpack.c.l.b16 %v428
      %v567 = vunpack.c.h.b16 %v428
      %v568 = vunpack.c.l.b16 %v429
      %v569 = vunpack.c.h.b16 %v429
      %v570 = vunpack.c.l.b16 %v430
      %v571 = vunpack.c.h.b16 %v430
      %v572 = vunpack.c.l.b16 %v431
      %v573 = vunpack.c.h.b16 %v431
      %v574 = vunpack.c.l.b16 %v432
      %v575 = vunpack.c.h.b16 %v432
      %v576 = vunpack.c.l.b16 %v433
      %v577 = vunpack.c.h.b16 %v433
      %v578 = vunpack.c.l.b16 %v434
      %v579 = vunpack.c.h.b16 %v434
      %v580 = vunpack.c.l.b16 %v435
      %v581 = vunpack.c.h.b16 %v435
      %v582 = vunpack.c.l.b16 %v436
      %v583 = vunpack.c.h.b16 %v436
      %v584 = vunpack.c.l.b16 %v437
      %v585 = vunpack.c.h.b16 %v437
      %v586 = vunpack.c.l.b16 %v438
      %v587 = vunpack.c.h.b16 %v438
      %v588 = vunpack.c.l.b16 %v439
      %v589 = vunpack.c.h.b16 %v439
      %v590 = vunpack.c.l.b16 %v440
      %v591 = vunpack.c.h.b16 %v440
      %v592 = vunpack.c.l.b16 %v441
      %v593 = vunpack.c.h.b16 %v441
      %v594 = vunpack.c.l.b16 %v442
      %v595 = vunpack.c.h.b16 %v442
      %v596 = vunpack.c.l.b16 %v443
      %v597 = vunpack.c.h.b16 %v443
      %v598 = vunpack.c.l.b16 %v444
      %v599 = vunpack.c.h.b16 %v444
      %v600 = vpack.c.b16 %v506, %v504
      %v601 = vpack.c.b16 %v507, %v505
      %v602 = vpack.c.b16 %v510, %v508
      %v603 = vpack.c.b16 %v511, %v509
      %v604 = vpack.c.b16 %v514, %v512
      %v605 = vpack.c.b16 %v515, %v513
      %v606 = vpack.c.b16 %v518, %v516
      %v607 = vpack.c.b16 %v519, %v517
      %v608 = vpack.c.b16 %v522, %v520
      %v609 = vpack.c.b16 %v523, %v521
      %v610 = vpack.c.b16 %v526, %v524
      %v611 = vpack.c.b16 %v527, %v525
      %v612 = vpack.c.b16 %v530, %v528
      %v613 = vpack.c.b16 %v531, %v529
      %v614 = vpack.c.b16 %v534, %v532
      %v615 = vpack.c.b16 %v535, %v533
      %v616 = vpack.c.b16 %v538, %v536
      %v617 = vpack.c.b16 %v539, %v537
      %v618 = vpack.c.b16 %v542, %v540
      %v619 = vpack.c.b16 %v543, %v541
      %v620 = vpack.c.b16 %v546, %v544
      %v621 = vpack.c.b16 %v547, %v545
      %v622 = vpack.c.b16 %v550, %v548
      %v623 = vpack.c.b16 %v551, %v549
      %v624 = vpack.c.b16 %v554, %v552
      %v625 = vpack.c.b16 %v555, %v553
      %v626 = vpack.c.b16 %v558, %v556
      %v627 = vpack.c.b16 %v559, %v557
      %v628 = vpack.c.b16 %v562, %v560
      %v629 = vpack.c.b16 %v563, %v561
      %v630 = vpack.c.b16 %v566, %v564
      %v631 = vpack.c.b16 %v567, %v565
      %v632 = vpack.c.b16 %v570, %v568
      %v633 = vpack.c.b16 %v571, %v569
      %v634 = vpack.c.b16 %v574, %v572
      %v635 = vpack.c.b16 %v575, %v573
      %v636 = vpack.c.b16 %v578, %v576
      %v637 = vpack.c.b16 %v579, %v577
      %v638 = vpack.c.b16 %v582, %v580
      %v639 = vpack.c.b16 %v583, %v581
      %v640 = vpack.c.b16 %v586, %v584
      %v641 = vpack.c.b16 %v587, %v585
      %v642 = vpack.c.b16 %v590, %v588
      %v643 = vpack.c.b16 %v591, %v589
      %v644 = vpack.c.b16 %v594, %v592
      %v645 = vpack.c.b16 %v595, %v593
      %v646 = vpack.c.b16 %v598, %v596
      %v647 = vpack.c.b16 %v599, %v597
      %696 = vmatprep.subr.bf16.mxu0 %v601
      %697 = vmatpush1.bf16.msra.mxu0 %v600
      %698 = vmatprep.subr.bf16.mxu0 %v603
      %699 = vmatpush1.bf16.msra.mxu0 %v602
      %700 = vmatprep.subr.bf16.mxu0 %v605
      %701 = vmatpush1.bf16.msra.mxu0 %v604
      %702 = vmatprep.subr.bf16.mxu0 %v607
      %703 = vmatpush1.bf16.msra.mxu0 %v606
      %704 = vmatprep.subr.bf16.mxu0 %v609
      %705 = vmatpush1.bf16.msra.mxu0 %v608
      %706 = vmatprep.subr.bf16.mxu0 %v611
      %707 = vmatpush1.bf16.msra.mxu0 %v610
      %708 = vmatprep.subr.bf16.mxu0 %v613
      %709 = vmatpush1.bf16.msra.mxu0 %v612
      %710 = vmatprep.subr.bf16.mxu0 %v615
      %711 = vmatpush1.bf16.msra.mxu0 %v614
      %712 = vmatprep.subr.bf16.mxu0 %v617
      %713 = vmatpush1.bf16.msra.mxu0 %v616
      %714 = vmatprep.subr.bf16.mxu0 %v619
      %715 = vmatpush1.bf16.msra.mxu0 %v618
      %716 = vmatprep.subr.bf16.mxu0 %v621
      %717 = vmatpush1.bf16.msra.mxu0 %v620
      %718 = vmatprep.subr.bf16.mxu0 %v623
      %719 = vmatpush1.bf16.msra.mxu0 %v622
      %720 = vmatprep.subr.bf16.mxu0 %v625
      %721 = vmatpush1.bf16.msra.mxu0 %v624
      %722 = vmatprep.subr.bf16.mxu0 %v627
      %723 = vmatpush1.bf16.msra.mxu0 %v626
      %724 = vmatprep.subr.bf16.mxu0 %v629
      %725 = vmatpush1.bf16.msra.mxu0 %v628
      %726 = vmatprep.subr.bf16.mxu0 %v631
      %727 = vmatpush1.bf16.msra.mxu0 %v630
      %728 = vmatprep.mubr.bf16.mxu0 %v451
      %729 = vmatmul.mubr.bf16.gmra.mrb[0].mxu0 %v450
      %v730 = vpop.f32.mrb[0].mxu0
      %v731 = vadd.f32 0.0, %v730
      %v732 = vpop.f32.mrb[0].mxu0
      %v733 = vadd.f32 0.0, %v732
      %v734 = vpop.f32.mrb[0].mxu0
      %v735 = vpop.f32.mrb[0].mxu0
      %736 = vdwg.mxu0
      %737 = vmatprep.subr.bf16.mxu0 %v633
      %738 = vmatpush1.bf16.msra.mxu0 %v632
      %739 = vmatprep.subr.bf16.mxu0 %v635
      %740 = vmatpush1.bf16.msra.mxu0 %v634
      %741 = vmatprep.subr.bf16.mxu0 %v637
      %742 = vmatpush1.bf16.msra.mxu0 %v636
      %743 = vmatprep.subr.bf16.mxu0 %v639
      %744 = vmatpush1.bf16.msra.mxu0 %v638
      %745 = vmatprep.subr.bf16.mxu0 %v641
      %746 = vmatpush1.bf16.msra.mxu0 %v640
      %747 = vmatprep.subr.bf16.mxu0 %v643
      %748 = vmatpush1.bf16.msra.mxu0 %v642
      %749 = vmatprep.subr.bf16.mxu0 %v645
      %750 = vmatpush1.bf16.msra.mxu0 %v644
      %751 = vmatprep.subr.bf16.mxu0 %v647
      %752 = vmatpush1.bf16.msra.mxu0 %v646
      %753 = vmatprep.subr.bf16.mxu0 0
      %754 = vmatpush1.bf16.msra.mxu0 0
      %755 = vmatprep.subr.bf16.mxu0 0
      %756 = vmatpush1.bf16.msra.mxu0 0
      %757 = vmatprep.subr.bf16.mxu0 0
      %758 = vmatpush1.bf16.msra.mxu0 0
      %759 = vmatprep.subr.bf16.mxu0 0
      %760 = vmatpush1.bf16.msra.mxu0 0
      %761 = vmatprep.subr.bf16.mxu0 0
      %762 = vmatpush1.bf16.msra.mxu0 0
      %763 = vmatprep.subr.bf16.mxu0 0
      %764 = vmatpush1.bf16.msra.mxu0 0
      %765 = vmatprep.subr.bf16.mxu0 0
      %766 = vmatpush1.bf16.msra.mxu0 0
      %767 = vmatprep.subr.bf16.mxu0 0
      %768 = vmatpush1.bf16.msra.mxu0 0
      %769 = vmatprep.mubr.bf16.mxu0 0
      %770 = vmatmul.mubr.bf16.gmra.mrb[0].mxu0 %v452
      %v771 = vpop.f32.mrb[0].mxu0
      %v772 = vadd.f32 %v731, %v771
      %v773 = vpop.f32.mrb[0].mxu0
      %v774 = vadd.f32 %v733, %v773
      %v775 = vpop.f32.mrb[0].mxu0
      %v776 = vpop.f32.mrb[0].mxu0
      %777 = vdwg.mxu0
      %v778 = vadd.f32 %v393, %v772
      %v779 = vadd.f32 %v394, %v774
      %780 = vst [vmem:[#allocation2] sm:$0xff] %v778
      %781 = vst [vmem:[#allocation2 + $0x8] sm:$0xff] %v779
      %p782 = scmp.eq.s32.totalorder %s23, 5
      // Predicated region
      $region45: #{_lambda_.23} parent=39 // pred_check
        %p783 = pneg %p782
      $region46: #{_lambda_.23} parent=39 // pred_check_branch
        %785 = sbr.rel (%p783) target = $region48
      $region47: #{_lambda_.23} parent=39 // pred_region
        %v786 = vld [vmem:[#allocation2] sm:$0xff]
        %v787 = vld [vmem:[#allocation2 + $0x8] sm:$0xff]
        %v788 = vld [vmem:[%s359] sm:$0x3]
        %v790 = vlaneseq
        %v791 = vshrl.u32 %v790, 7
        %v792 = vsub.s32 0, %v791
        %v793 = vrot.slane %v788, %v792
        %v794 = vlaneseq
        %v795 = vshrl.u32 %v794, 7
        %v796 = vsub.s32 1, %v795
        %v797 = vrot.slane %v788, %v796
        %v800 = vmul.f32 %v786, %v793
        %v801 = vmul.f32 %v787, %v797
        %v802 = vld [vmem:[%s364] sm:$0x3]
        %v804 = vlaneseq
        %v805 = vshrl.u32 %v804, 7
        %v806 = vsub.s32 0, %v805
        %v807 = vrot.slane %v802, %v806
        %v808 = vlaneseq
        %v809 = vshrl.u32 %v808, 7
        %v810 = vsub.s32 1, %v809
        %v811 = vrot.slane %v802, %v810
        %v814 = vadd.f32 %v800, %v807
        %v815 = vadd.f32 %v801, %v811
        %v816 = vld [vmem:[%s374] sm:$0xff]
        %v817 = vunpack.c.l.bf16 %v816
        %v818 = vunpack.c.h.bf16 %v816
        %v819 = vadd.f32 %v814, %v817
        %v820 = vadd.f32 %v815, %v818
        %v821 = vmax.f32 %v819, 0.0
        %v822 = vmax.f32 %v820, 0.0
        %v823 = vpack.c.bf16 %v821, %v821
        %v824 = vpack.c.bf16 %v822, %v822
        %v827 = vunpack.c.l.b16 %v823
        %v828 = vunpack.c.l.b16 %v824
        %v829 = vpack.c.b16 %v828, %v827
        %831 = vst [vmem:[%s384] sm:$0xff] %v829
      $region48: #{_lambda_.23} parent=39 // pred_fallthru
        _
      %s832 = smul.u32 2, %s22
      %p833 = scmp.lt.s32.totalorder %s21, 0
      %s834 = scalar_select %p833, %s21, 0
      %p835 = scmp.lt.s32.totalorder %s832, 1
      %s836 = scalar_select %p835, %s832, 1
      %s837 = smul.addr %s834, 2
      %s838 = sadd.s32 %s836, %s837
      %s839 = smul.addr %s838, 4
      %s840 = scalar_lea.vmem %s5, %s839
      // Predicated region
      $region49: #{_lambda_.23} parent=39 // pred_check
        %p841 = pneg %p191
      $region50: #{_lambda_.23} parent=39 // pred_check_branch
        %843 = sbr.rel (%p841) target = $region52
      $region51: #{_lambda_.23} parent=39 // pred_region
        %s844 = smul.u32 2, %s22
      $region52: #{_lambda_.23} parent=39 // pred_fallthru
        _
      // Predicated region
      $region53: #{_lambda_.23} parent=39 // pred_check
        %p845 = pneg %p191
      $region54: #{_lambda_.23} parent=39 // pred_check_branch
        %847 = sbr.rel (%p845) target = $region56
      $region55: #{_lambda_.23} parent=39 // pred_region
        %s848 = smul.u32 2, %s22
        %p849 = scmp.lt.s32.totalorder %s21, 0
        %s850 = scalar_select %p849, %s21, 0
        %p851 = scmp.lt.s32.totalorder %s848, 1
        %s852 = scalar_select %p851, %s848, 1
        %s853 = smul.addr %s850, 2
        %s854 = sadd.s32 %s852, %s853
        %s855 = smul.addr %s854, 4
        %s856 = scalar_lea.vmem %s5, %s855
      $region56: #{_lambda_.23} parent=39 // pred_fallthru
        _
    $region40: #{_lambda_.23} parent=5 // pred_fallthru
      _
    %p857 = scmp.le.s32.totalorder 2, %s11
    // Predicated region
    $region57: #{_lambda_.23} parent=5 // pred_check
      %p858 = pneg %p857
    $region58: #{_lambda_.23} parent=5 // pred_check_branch
      %860 = sbr.rel (%p858) target = $region60
    $region59: #{_lambda_.23} parent=5 // pred_region
      %s861 = ssub.s32 %s11, 2
    $region60: #{_lambda_.23} parent=5 // pred_fallthru
      _
  $region6: #{_lambda_.23} parent=0 // loop_footer
    %s15 = sadd.s32 1, %s11
  $region7: #{_lambda_.23} parent=0 // loop_footer_branch
    %10 = sbr.rel target = $region3
  $region8: #{_lambda_.23} parent=0 // loop_exit
    _

// kernel: _lambda_.21
$region0: #{_lambda_.21}
  #allocation0 [shape = 'u32[]', space=smem, size = 0x4, offset = 0x4, fixed_abs, tag = 'smem constant byte address 0x4 - core index']
  #allocation1 [shape = 'u32[144,128]{1,0:T(1,128)}', space=vmem, size = 0x12000, scoped, tag = 'internal scratch']
  #allocation2 [shape = 'f32[8,256]{1,0:T(8,128)}', space=vmem, size = 0x2000, scoped, tag = 'scratch operand']
  %s0 = inlined_call_operand.vmem [shape: bf16[8,1152], index: 0, kind: input, shape index: {}]
  %s1 = inlined_call_operand.vmem [shape: bf16[1152,256], index: 1, kind: input, shape index: {}]
  %s2 = inlined_call_operand.vmem [shape: f32[1,256], index: 2, kind: input, shape index: {}]
  %s3 = inlined_call_operand.vmem [shape: f32[1,256], index: 3, kind: input, shape index: {}]
  %s4 = inlined_call_operand.vmem [shape: bf16[8,256], index: 4, kind: output, shape index: {}]
  %s5 = sld [smem:[#allocation0]]
  $region34: #{_lambda_.21} parent=0
    _
  %s7 = ssub.s32 1, %s5
  %s8 = scalar_select 0, %s7, %s5
  // Predicated region
  $region2: #{_lambda_.21} parent=0 // pred_check
    _
  $region3: #{_lambda_.21} parent=0 // pred_check_branch
    %10 = sbr.rel (0) target = $region5
  $region4: #{_lambda_.21} parent=0 // pred_region
    _
  $region5: #{_lambda_.21} parent=0 // pred_fallthru
    _
  // Predicated region
  $region6: #{_lambda_.21} parent=0 // pred_check
    _
  $region7: #{_lambda_.21} parent=0 // pred_check_branch
    %12 = sbr.rel (0) target = $region9
  $region8: #{_lambda_.21} parent=0 // pred_region
    _
  $region9: #{_lambda_.21} parent=0 // pred_fallthru
    _
  // Predicated region
  $region10: #{_lambda_.21} parent=0 // pred_check
    _
  $region11: #{_lambda_.21} parent=0 // pred_check_branch
    %14 = sbr.rel (0) target = $region13
  $region12: #{_lambda_.21} parent=0 // pred_region
    _
  $region13: #{_lambda_.21} parent=0 // pred_fallthru
    _
  // Predicated region
  $region14: #{_lambda_.21} parent=0 // pred_check
    _
  $region15: #{_lambda_.21} parent=0 // pred_check_branch
    %16 = sbr.rel (0) target = $region17
  $region16: #{_lambda_.21} parent=0 // pred_region
    _
  $region17: #{_lambda_.21} parent=0 // pred_fallthru
    _
  %p18 = scmp.eq.s32.totalorder 0, 0
  // Predicated region
  $region18: #{_lambda_.21} parent=0 // pred_check
    %p19 = pneg %p18
  $region19: #{_lambda_.21} parent=0 // pred_check_branch
    %21 = sbr.rel (%p19) target = $region21
  $region20: #{_lambda_.21} parent=0 // pred_region
    %22 = vst [vmem:[#allocation2] sm:$0xff] 0.0
    %23 = vst [vmem:[#allocation2 + $0x8] sm:$0xff] 0.0
  $region21: #{_lambda_.21} parent=0 // pred_fallthru
    _
  %v24 = vld [vmem:[#allocation2] sm:$0xff]
  %v25 = vld [vmem:[#allocation2 + $0x8] sm:$0xff]
  %v26 = vld [vmem:[%s0] sm:$0xff]
  %v27 = vld [vmem:[%s0 + $0x8] sm:$0xff]
  %v28 = vld [vmem:[%s0 + $0x10] sm:$0xff]
  %v29 = vld [vmem:[%s0 + $0x18] sm:$0xff]
  %v30 = vld [vmem:[%s0 + $0x20] sm:$0xf]
  %v31 = vld [vmem:[%s1] sm:$0xff]
  %v32 = vld [vmem:[%s1 + $0x8] sm:$0xff]
  %v33 = vld [vmem:[%s1 + $0x10] sm:$0xff]
  %v34 = vld [vmem:[%s1 + $0x18] sm:$0xff]
  %v35 = vld [vmem:[%s1 + $0x20] sm:$0xff]
  %v36 = vld [vmem:[%s1 + $0x28] sm:$0xff]
  %v37 = vld [vmem:[%s1 + $0x30] sm:$0xff]
  %v38 = vld [vmem:[%s1 + $0x38] sm:$0xff]
  %v39 = vld [vmem:[%s1 + $0x40] sm:$0xff]
  %v40 = vld [vmem:[%s1 + $0x48] sm:$0xff]
  %v41 = vld [vmem:[%s1 + $0x50] sm:$0xff]
  %v42 = vld [vmem:[%s1 + $0x58] sm:$0xff]
  %v43 = vld [vmem:[%s1 + $0x60] sm:$0xff]
  %v44 = vld [vmem:[%s1 + $0x68] sm:$0xff]
  %v45 = vld [vmem:[%s1 + $0x70] sm:$0xff]
  %v46 = vld [vmem:[%s1 + $0x78] sm:$0xff]
  %v47 = vld [vmem:[%s1 + $0x80] sm:$0xff]
  %v48 = vld [vmem:[%s1 + $0x88] sm:$0xff]
  %v49 = vld [vmem:[%s1 + $0x90] sm:$0xff]
  %v50 = vld [vmem:[%s1 + $0x98] sm:$0xff]
  %v51 = vld [vmem:[%s1 + $0xa0] sm:$0xff]
  %v52 = vld [vmem:[%s1 + $0xa8] sm:$0xff]
  %v53 = vld [vmem:[%s1 + $0xb0] sm:$0xff]
  %v54 = vld [vmem:[%s1 + $0xb8] sm:$0xff]
  %v55 = vld [vmem:[%s1 + $0xc0] sm:$0xff]
  %v56 = vld [vmem:[%s1 + $0xc8] sm:$0xff]
  %v57 = vld [vmem:[%s1 + $0xd0] sm:$0xff]
  %v58 = vld [vmem:[%s1 + $0xd8] sm:$0xff]
  %v59 = vld [vmem:[%s1 + $0xe0] sm:$0xff]
  %v60 = vld [vmem:[%s1 + $0xe8] sm:$0xff]
  %v61 = vld [vmem:[%s1 + $0xf0] sm:$0xff]
  %v62 = vld [vmem:[%s1 + $0xf8] sm:$0xff]
  %v63 = vld [vmem:[%s1 + $0x100] sm:$0xff]
  %v64 = vld [vmem:[%s1 + $0x108] sm:$0xff]
  %v65 = vld [vmem:[%s1 + $0x110] sm:$0xff]
  %v66 = vld [vmem:[%s1 + $0x118] sm:$0xff]
  %v67 = vld [vmem:[%s1 + $0x120] sm:$0xff]
  %v68 = vld [vmem:[%s1 + $0x128] sm:$0xff]
  %v69 = vld [vmem:[%s1 + $0x130] sm:$0xff]
  %v70 = vld [vmem:[%s1 + $0x138] sm:$0xff]
  %v71 = vld [vmem:[%s1 + $0x140] sm:$0xff]
  %v72 = vld [vmem:[%s1 + $0x148] sm:$0xff]
  %v73 = vld [vmem:[%s1 + $0x150] sm:$0xff]
  %v74 = vld [vmem:[%s1 + $0x158] sm:$0xff]
  %v75 = vld [vmem:[%s1 + $0x160] sm:$0xff]
  %v76 = vld [vmem:[%s1 + $0x168] sm:$0xff]
  %v77 = vld [vmem:[%s1 + $0x170] sm:$0xff]
  %v78 = vld [vmem:[%s1 + $0x178] sm:$0xff]
  %v79 = vld [vmem:[%s1 + $0x180] sm:$0xff]
  %v80 = vld [vmem:[%s1 + $0x188] sm:$0xff]
  %v81 = vld [vmem:[%s1 + $0x190] sm:$0xff]
  %v82 = vld [vmem:[%s1 + $0x198] sm:$0xff]
  %v83 = vld [vmem:[%s1 + $0x1a0] sm:$0xff]
  %v84 = vld [vmem:[%s1 + $0x1a8] sm:$0xff]
  %v85 = vld [vmem:[%s1 + $0x1b0] sm:$0xff]
  %v86 = vld [vmem:[%s1 + $0x1b8] sm:$0xff]
  %v87 = vld [vmem:[%s1 + $0x1c0] sm:$0xff]
  %v88 = vld [vmem:[%s1 + $0x1c8] sm:$0xff]
  %v89 = vld [vmem:[%s1 + $0x1d0] sm:$0xff]
  %v90 = vld [vmem:[%s1 + $0x1d8] sm:$0xff]
  %v91 = vld [vmem:[%s1 + $0x1e0] sm:$0xff]
  %v92 = vld [vmem:[%s1 + $0x1e8] sm:$0xff]
  %v93 = vld [vmem:[%s1 + $0x1f0] sm:$0xff]
  %v94 = vld [vmem:[%s1 + $0x1f8] sm:$0xff]
  %v95 = vld [vmem:[%s1 + $0x200] sm:$0xff]
  %v96 = vld [vmem:[%s1 + $0x208] sm:$0xff]
  %v97 = vld [vmem:[%s1 + $0x210] sm:$0xff]
  %v98 = vld [vmem:[%s1 + $0x218] sm:$0xff]
  %v99 = vld [vmem:[%s1 + $0x220] sm:$0xff]
  %v100 = vld [vmem:[%s1 + $0x228] sm:$0xff]
  %v101 = vld [vmem:[%s1 + $0x230] sm:$0xff]
  %v102 = vld [vmem:[%s1 + $0x238] sm:$0xff]
  %v103 = vld [vmem:[%s1 + $0x240] sm:$0xff]
  %v104 = vld [vmem:[%s1 + $0x248] sm:$0xff]
  %v105 = vld [vmem:[%s1 + $0x250] sm:$0xff]
  %v106 = vld [vmem:[%s1 + $0x258] sm:$0xff]
  %v107 = vld [vmem:[%s1 + $0x260] sm:$0xff]
  %v108 = vld [vmem:[%s1 + $0x268] sm:$0xff]
  %v109 = vld [vmem:[%s1 + $0x270] sm:$0xff]
  %v110 = vld [vmem:[%s1 + $0x278] sm:$0xff]
  %v111 = vld [vmem:[%s1 + $0x280] sm:$0xff]
  %v112 = vld [vmem:[%s1 + $0x288] sm:$0xff]
  %v113 = vld [vmem:[%s1 + $0x290] sm:$0xff]
  %v114 = vld [vmem:[%s1 + $0x298] sm:$0xff]
  %v115 = vld [vmem:[%s1 + $0x2a0] sm:$0xff]
  %v116 = vld [vmem:[%s1 + $0x2a8] sm:$0xff]
  %v117 = vld [vmem:[%s1 + $0x2b0] sm:$0xff]
  %v118 = vld [vmem:[%s1 + $0x2b8] sm:$0xff]
  %v119 = vld [vmem:[%s1 + $0x2c0] sm:$0xff]
  %v120 = vld [vmem:[%s1 + $0x2c8] sm:$0xff]
  %v121 = vld [vmem:[%s1 + $0x2d0] sm:$0xff]
  %v122 = vld [vmem:[%s1 + $0x2d8] sm:$0xff]
  %v123 = vld [vmem:[%s1 + $0x2e0] sm:$0xff]
  %v124 = vld [vmem:[%s1 + $0x2e8] sm:$0xff]
  %v125 = vld [vmem:[%s1 + $0x2f0] sm:$0xff]
  %v126 = vld [vmem:[%s1 + $0x2f8] sm:$0xff]
  %v127 = vld [vmem:[%s1 + $0x300] sm:$0xff]
  %v128 = vld [vmem:[%s1 + $0x308] sm:$0xff]
  %v129 = vld [vmem:[%s1 + $0x310] sm:$0xff]
  %v130 = vld [vmem:[%s1 + $0x318] sm:$0xff]
  %v131 = vld [vmem:[%s1 + $0x320] sm:$0xff]
  %v132 = vld [vmem:[%s1 + $0x328] sm:$0xff]
  %v133 = vld [vmem:[%s1 + $0x330] sm:$0xff]
  %v134 = vld [vmem:[%s1 + $0x338] sm:$0xff]
  %v135 = vld [vmem:[%s1 + $0x340] sm:$0xff]
  %v136 = vld [vmem:[%s1 + $0x348] sm:$0xff]
  %v137 = vld [vmem:[%s1 + $0x350] sm:$0xff]
  %v138 = vld [vmem:[%s1 + $0x358] sm:$0xff]
  %v139 = vld [vmem:[%s1 + $0x360] sm:$0xff]
  %v140 = vld [vmem:[%s1 + $0x368] sm:$0xff]
  %v141 = vld [vmem:[%s1 + $0x370] sm:$0xff]
  %v142 = vld [vmem:[%s1 + $0x378] sm:$0xff]
  %v143 = vld [vmem:[%s1 + $0x380] sm:$0xff]
  %v144 = vld [vmem:[%s1 + $0x388] sm:$0xff]
  %v145 = vld [vmem:[%s1 + $0x390] sm:$0xff]
  %v146 = vld [vmem:[%s1 + $0x398] sm:$0xff]
  %v147 = vld [vmem:[%s1 + $0x3a0] sm:$0xff]
  %v148 = vld [vmem:[%s1 + $0x3a8] sm:$0xff]
  %v149 = vld [vmem:[%s1 + $0x3b0] sm:$0xff]
  %v150 = vld [vmem:[%s1 + $0x3b8] sm:$0xff]
  %v151 = vld [vmem:[%s1 + $0x3c0] sm:$0xff]
  %v152 = vld [vmem:[%s1 + $0x3c8] sm:$0xff]
  %v153 = vld [vmem:[%s1 + $0x3d0] sm:$0xff]
  %v154 = vld [vmem:[%s1 + $0x3d8] sm:$0xff]
  %v155 = vld [vmem:[%s1 + $0x3e0] sm:$0xff]
  %v156 = vld [vmem:[%s1 + $0x3e8] sm:$0xff]
  %v157 = vld [vmem:[%s1 + $0x3f0] sm:$0xff]
  %v158 = vld [vmem:[%s1 + $0x3f8] sm:$0xff]
  %v159 = vld [vmem:[%s1 + $0x400] sm:$0xff]
  %v160 = vld [vmem:[%s1 + $0x408] sm:$0xff]
  %v161 = vld [vmem:[%s1 + $0x410] sm:$0xff]
  %v162 = vld [vmem:[%s1 + $0x418] sm:$0xff]
  %v163 = vld [vmem:[%s1 + $0x420] sm:$0xff]
  %v164 = vld [vmem:[%s1 + $0x428] sm:$0xff]
  %v165 = vld [vmem:[%s1 + $0x430] sm:$0xff]
  %v166 = vld [vmem:[%s1 + $0x438] sm:$0xff]
  %v167 = vld [vmem:[%s1 + $0x440] sm:$0xff]
  %v168 = vld [vmem:[%s1 + $0x448] sm:$0xff]
  %v169 = vld [vmem:[%s1 + $0x450] sm:$0xff]
  %v170 = vld [vmem:[%s1 + $0x458] sm:$0xff]
  %v171 = vld [vmem:[%s1 + $0x460] sm:$0xff]
  %v172 = vld [vmem:[%s1 + $0x468] sm:$0xff]
  %v173 = vld [vmem:[%s1 + $0x470] sm:$0xff]
  %v174 = vld [vmem:[%s1 + $0x478] sm:$0xff]
  %v180 = vunpack.c.l.b16 %v26
  %v181 = vunpack.c.h.b16 %v26
  %v182 = vunpack.c.l.b16 %v27
  %v183 = vunpack.c.h.b16 %v27
  %v184 = vunpack.c.l.b16 %v28
  %v185 = vunpack.c.h.b16 %v28
  %v186 = vunpack.c.l.b16 %v29
  %v187 = vunpack.c.h.b16 %v29
  %v188 = vunpack.c.l.b16 %v30
  %v189 = vpack.c.b16 %v180, %v180
  %v190 = vpack.c.b16 %v181, %v181
  %v191 = vpack.c.b16 %v182, %v182
  %v192 = vpack.c.b16 %v183, %v183
  %v193 = vpack.c.b16 %v184, %v184
  %v194 = vpack.c.b16 %v185, %v185
  %v195 = vpack.c.b16 %v186, %v186
  %v196 = vpack.c.b16 %v187, %v187
  %v197 = vpack.c.b16 %v188, %v188
  %v351 = vunpack.c.l.b16 %v31
  %v352 = vunpack.c.h.b16 %v31
  %v353 = vunpack.c.l.b16 %v32
  %v354 = vunpack.c.h.b16 %v32
  %v355 = vunpack.c.l.b16 %v33
  %v356 = vunpack.c.h.b16 %v33
  %v357 = vunpack.c.l.b16 %v34
  %v358 = vunpack.c.h.b16 %v34
  %v359 = vunpack.c.l.b16 %v35
  %v360 = vunpack.c.h.b16 %v35
  %v361 = vunpack.c.l.b16 %v36
  %v362 = vunpack.c.h.b16 %v36
  %v363 = vunpack.c.l.b16 %v37
  %v364 = vunpack.c.h.b16 %v37
  %v365 = vunpack.c.l.b16 %v38
  %v366 = vunpack.c.h.b16 %v38
  %v367 = vunpack.c.l.b16 %v39
  %v368 = vunpack.c.h.b16 %v39
  %v369 = vunpack.c.l.b16 %v40
  %v370 = vunpack.c.h.b16 %v40
  %v371 = vunpack.c.l.b16 %v41
  %v372 = vunpack.c.h.b16 %v41
  %v373 = vunpack.c.l.b16 %v42
  %v374 = vunpack.c.h.b16 %v42
  %v375 = vunpack.c.l.b16 %v43
  %v376 = vunpack.c.h.b16 %v43
  %v377 = vunpack.c.l.b16 %v44
  %v378 = vunpack.c.h.b16 %v44
  %v379 = vunpack.c.l.b16 %v45
  %v380 = vunpack.c.h.b16 %v45
  %v381 = vunpack.c.l.b16 %v46
  %v382 = vunpack.c.h.b16 %v46
  %v383 = vunpack.c.l.b16 %v47
  %v384 = vunpack.c.h.b16 %v47
  %v385 = vunpack.c.l.b16 %v48
  %v386 = vunpack.c.h.b16 %v48
  %v387 = vunpack.c.l.b16 %v49
  %v388 = vunpack.c.h.b16 %v49
  %v389 = vunpack.c.l.b16 %v50
  %v390 = vunpack.c.h.b16 %v50
  %v391 = vunpack.c.l.b16 %v51
  %v392 = vunpack.c.h.b16 %v51
  %v393 = vunpack.c.l.b16 %v52
  %v394 = vunpack.c.h.b16 %v52
  %v395 = vunpack.c.l.b16 %v53
  %v396 = vunpack.c.h.b16 %v53
  %v397 = vunpack.c.l.b16 %v54
  %v398 = vunpack.c.h.b16 %v54
  %v399 = vunpack.c.l.b16 %v55
  %v400 = vunpack.c.h.b16 %v55
  %v401 = vunpack.c.l.b16 %v56
  %v402 = vunpack.c.h.b16 %v56
  %v403 = vunpack.c.l.b16 %v57
  %v404 = vunpack.c.h.b16 %v57
  %v405 = vunpack.c.l.b16 %v58
  %v406 = vunpack.c.h.b16 %v58
  %v407 = vunpack.c.l.b16 %v59
  %v408 = vunpack.c.h.b16 %v59
  %v409 = vunpack.c.l.b16 %v60
  %v410 = vunpack.c.h.b16 %v60
  %v411 = vunpack.c.l.b16 %v61
  %v412 = vunpack.c.h.b16 %v61
  %v413 = vunpack.c.l.b16 %v62
  %v414 = vunpack.c.h.b16 %v62
  %v415 = vunpack.c.l.b16 %v63
  %v416 = vunpack.c.h.b16 %v63
  %v417 = vunpack.c.l.b16 %v64
  %v418 = vunpack.c.h.b16 %v64
  %v419 = vunpack.c.l.b16 %v65
  %v420 = vunpack.c.h.b16 %v65
  %v421 = vunpack.c.l.b16 %v66
  %v422 = vunpack.c.h.b16 %v66
  %v423 = vunpack.c.l.b16 %v67
  %v424 = vunpack.c.h.b16 %v67
  %v425 = vunpack.c.l.b16 %v68
  %v426 = vunpack.c.h.b16 %v68
  %v427 = vunpack.c.l.b16 %v69
  %v428 = vunpack.c.h.b16 %v69
  %v429 = vunpack.c.l.b16 %v70
  %v430 = vunpack.c.h.b16 %v70
  %v431 = vunpack.c.l.b16 %v71
  %v432 = vunpack.c.h.b16 %v71
  %v433 = vunpack.c.l.b16 %v72
  %v434 = vunpack.c.h.b16 %v72
  %v435 = vunpack.c.l.b16 %v73
  %v436 = vunpack.c.h.b16 %v73
  %v437 = vunpack.c.l.b16 %v74
  %v438 = vunpack.c.h.b16 %v74
  %v439 = vunpack.c.l.b16 %v75
  %v440 = vunpack.c.h.b16 %v75
  %v441 = vunpack.c.l.b16 %v76
  %v442 = vunpack.c.h.b16 %v76
  %v443 = vunpack.c.l.b16 %v77
  %v444 = vunpack.c.h.b16 %v77
  %v445 = vunpack.c.l.b16 %v78
  %v446 = vunpack.c.h.b16 %v78
  %v447 = vunpack.c.l.b16 %v79
  %v448 = vunpack.c.h.b16 %v79
  %v449 = vunpack.c.l.b16 %v80
  %v450 = vunpack.c.h.b16 %v80
  %v451 = vunpack.c.l.b16 %v81
  %v452 = vunpack.c.h.b16 %v81
  %v453 = vunpack.c.l.b16 %v82
  %v454 = vunpack.c.h.b16 %v82
  %v455 = vunpack.c.l.b16 %v83
  %v456 = vunpack.c.h.b16 %v83
  %v457 = vunpack.c.l.b16 %v84
  %v458 = vunpack.c.h.b16 %v84
  %v459 = vunpack.c.l.b16 %v85
  %v460 = vunpack.c.h.b16 %v85
  %v461 = vunpack.c.l.b16 %v86
  %v462 = vunpack.c.h.b16 %v86
  %v463 = vunpack.c.l.b16 %v87
  %v464 = vunpack.c.h.b16 %v87
  %v465 = vunpack.c.l.b16 %v88
  %v466 = vunpack.c.h.b16 %v88
  %v467 = vunpack.c.l.b16 %v89
  %v468 = vunpack.c.h.b16 %v89
  %v469 = vunpack.c.l.b16 %v90
  %v470 = vunpack.c.h.b16 %v90
  %v471 = vunpack.c.l.b16 %v91
  %v472 = vunpack.c.h.b16 %v91
  %v473 = vunpack.c.l.b16 %v92
  %v474 = vunpack.c.h.b16 %v92
  %v475 = vunpack.c.l.b16 %v93
  %v476 = vunpack.c.h.b16 %v93
  %v477 = vunpack.c.l.b16 %v94
  %v478 = vunpack.c.h.b16 %v94
  %v479 = vunpack.c.l.b16 %v95
  %v480 = vunpack.c.h.b16 %v95
  %v481 = vunpack.c.l.b16 %v96
  %v482 = vunpack.c.h.b16 %v96
  %v483 = vunpack.c.l.b16 %v97
  %v484 = vunpack.c.h.b16 %v97
  %v485 = vunpack.c.l.b16 %v98
  %v486 = vunpack.c.h.b16 %v98
  %v487 = vunpack.c.l.b16 %v99
  %v488 = vunpack.c.h.b16 %v99
  %v489 = vunpack.c.l.b16 %v100
  %v490 = vunpack.c.h.b16 %v100
  %v491 = vunpack.c.l.b16 %v101
  %v492 = vunpack.c.h.b16 %v101
  %v493 = vunpack.c.l.b16 %v102
  %v494 = vunpack.c.h.b16 %v102
  %v495 = vunpack.c.l.b16 %v103
  %v496 = vunpack.c.h.b16 %v103
  %v497 = vunpack.c.l.b16 %v104
  %v498 = vunpack.c.h.b16 %v104
  %v499 = vunpack.c.l.b16 %v105
  %v500 = vunpack.c.h.b16 %v105
  %v501 = vunpack.c.l.b16 %v106
  %v502 = vunpack.c.h.b16 %v106
  %v503 = vunpack.c.l.b16 %v107
  %v504 = vunpack.c.h.b16 %v107
  %v505 = vunpack.c.l.b16 %v108
  %v506 = vunpack.c.h.b16 %v108
  %v507 = vunpack.c.l.b16 %v109
  %v508 = vunpack.c.h.b16 %v109
  %v509 = vunpack.c.l.b16 %v110
  %v510 = vunpack.c.h.b16 %v110
  %v511 = vunpack.c.l.b16 %v111
  %v512 = vunpack.c.h.b16 %v111
  %v513 = vunpack.c.l.b16 %v112
  %v514 = vunpack.c.h.b16 %v112
  %v515 = vunpack.c.l.b16 %v113
  %v516 = vunpack.c.h.b16 %v113
  %v517 = vunpack.c.l.b16 %v114
  %v518 = vunpack.c.h.b16 %v114
  %v519 = vunpack.c.l.b16 %v115
  %v520 = vunpack.c.h.b16 %v115
  %v521 = vunpack.c.l.b16 %v116
  %v522 = vunpack.c.h.b16 %v116
  %v523 = vunpack.c.l.b16 %v117
  %v524 = vunpack.c.h.b16 %v117
  %v525 = vunpack.c.l.b16 %v118
  %v526 = vunpack.c.h.b16 %v118
  %v527 = vunpack.c.l.b16 %v119
  %v528 = vunpack.c.h.b16 %v119
  %v529 = vunpack.c.l.b16 %v120
  %v530 = vunpack.c.h.b16 %v120
  %v531 = vunpack.c.l.b16 %v121
  %v532 = vunpack.c.h.b16 %v121
  %v533 = vunpack.c.l.b16 %v122
  %v534 = vunpack.c.h.b16 %v122
  %v535 = vunpack.c.l.b16 %v123
  %v536 = vunpack.c.h.b16 %v123
  %v537 = vunpack.c.l.b16 %v124
  %v538 = vunpack.c.h.b16 %v124
  %v539 = vunpack.c.l.b16 %v125
  %v540 = vunpack.c.h.b16 %v125
  %v541 = vunpack.c.l.b16 %v126
  %v542 = vunpack.c.h.b16 %v126
  %v543 = vunpack.c.l.b16 %v127
  %v544 = vunpack.c.h.b16 %v127
  %v545 = vunpack.c.l.b16 %v128
  %v546 = vunpack.c.h.b16 %v128
  %v547 = vunpack.c.l.b16 %v129
  %v548 = vunpack.c.h.b16 %v129
  %v549 = vunpack.c.l.b16 %v130
  %v550 = vunpack.c.h.b16 %v130
  %v551 = vunpack.c.l.b16 %v131
  %v552 = vunpack.c.h.b16 %v131
  %v553 = vunpack.c.l.b16 %v132
  %v554 = vunpack.c.h.b16 %v132
  %v555 = vunpack.c.l.b16 %v133
  %v556 = vunpack.c.h.b16 %v133
  %v557 = vunpack.c.l.b16 %v134
  %v558 = vunpack.c.h.b16 %v134
  %v559 = vunpack.c.l.b16 %v135
  %v560 = vunpack.c.h.b16 %v135
  %v561 = vunpack.c.l.b16 %v136
  %v562 = vunpack.c.h.b16 %v136
  %v563 = vunpack.c.l.b16 %v137
  %v564 = vunpack.c.h.b16 %v137
  %v565 = vunpack.c.l.b16 %v138
  %v566 = vunpack.c.h.b16 %v138
  %v567 = vunpack.c.l.b16 %v139
  %v568 = vunpack.c.h.b16 %v139
  %v569 = vunpack.c.l.b16 %v140
  %v570 = vunpack.c.h.b16 %v140
  %v571 = vunpack.c.l.b16 %v141
  %v572 = vunpack.c.h.b16 %v141
  %v573 = vunpack.c.l.b16 %v142
  %v574 = vunpack.c.h.b16 %v142
  %v575 = vunpack.c.l.b16 %v143
  %v576 = vunpack.c.h.b16 %v143
  %v577 = vunpack.c.l.b16 %v144
  %v578 = vunpack.c.h.b16 %v144
  %v579 = vunpack.c.l.b16 %v145
  %v580 = vunpack.c.h.b16 %v145
  %v581 = vunpack.c.l.b16 %v146
  %v582 = vunpack.c.h.b16 %v146
  %v583 = vunpack.c.l.b16 %v147
  %v584 = vunpack.c.h.b16 %v147
  %v585 = vunpack.c.l.b16 %v148
  %v586 = vunpack.c.h.b16 %v148
  %v587 = vunpack.c.l.b16 %v149
  %v588 = vunpack.c.h.b16 %v149
  %v589 = vunpack.c.l.b16 %v150
  %v590 = vunpack.c.h.b16 %v150
  %v591 = vunpack.c.l.b16 %v151
  %v592 = vunpack.c.h.b16 %v151
  %v593 = vunpack.c.l.b16 %v152
  %v594 = vunpack.c.h.b16 %v152
  %v595 = vunpack.c.l.b16 %v153
  %v596 = vunpack.c.h.b16 %v153
  %v597 = vunpack.c.l.b16 %v154
  %v598 = vunpack.c.h.b16 %v154
  %v599 = vunpack.c.l.b16 %v155
  %v600 = vunpack.c.h.b16 %v155
  %v601 = vunpack.c.l.b16 %v156
  %v602 = vunpack.c.h.b16 %v156
  %v603 = vunpack.c.l.b16 %v157
  %v604 = vunpack.c.h.b16 %v157
  %v605 = vunpack.c.l.b16 %v158
  %v606 = vunpack.c.h.b16 %v158
  %v607 = vunpack.c.l.b16 %v159
  %v608 = vunpack.c.h.b16 %v159
  %v609 = vunpack.c.l.b16 %v160
  %v610 = vunpack.c.h.b16 %v160
  %v611 = vunpack.c.l.b16 %v161
  %v612 = vunpack.c.h.b16 %v161
  %v613 = vunpack.c.l.b16 %v162
  %v614 = vunpack.c.h.b16 %v162
  %v615 = vunpack.c.l.b16 %v163
  %v616 = vunpack.c.h.b16 %v163
  %v617 = vunpack.c.l.b16 %v164
  %v618 = vunpack.c.h.b16 %v164
  %v619 = vunpack.c.l.b16 %v165
  %v620 = vunpack.c.h.b16 %v165
  %v621 = vunpack.c.l.b16 %v166
  %v622 = vunpack.c.h.b16 %v166
  %v623 = vunpack.c.l.b16 %v167
  %v624 = vunpack.c.h.b16 %v167
  %v625 = vunpack.c.l.b16 %v168
  %v626 = vunpack.c.h.b16 %v168
  %v627 = vunpack.c.l.b16 %v169
  %v628 = vunpack.c.h.b16 %v169
  %v629 = vunpack.c.l.b16 %v170
  %v630 = vunpack.c.h.b16 %v170
  %v631 = vunpack.c.l.b16 %v171
  %v632 = vunpack.c.h.b16 %v171
  %v633 = vunpack.c.l.b16 %v172
  %v634 = vunpack.c.h.b16 %v172
  %v635 = vunpack.c.l.b16 %v173
  %v636 = vunpack.c.h.b16 %v173
  %v637 = vunpack.c.l.b16 %v174
  %v638 = vunpack.c.h.b16 %v174
  %v639 = vpack.c.b16 %v353, %v351
  %v640 = vpack.c.b16 %v354, %v352
  %v641 = vpack.c.b16 %v357, %v355
  %v642 = vpack.c.b16 %v358, %v356
  %v643 = vpack.c.b16 %v361, %v359
  %v644 = vpack.c.b16 %v362, %v360
  %v645 = vpack.c.b16 %v365, %v363
  %v646 = vpack.c.b16 %v366, %v364
  %v647 = vpack.c.b16 %v369, %v367
  %v648 = vpack.c.b16 %v370, %v368
  %v649 = vpack.c.b16 %v373, %v371
  %v650 = vpack.c.b16 %v374, %v372
  %v651 = vpack.c.b16 %v377, %v375
  %v652 = vpack.c.b16 %v378, %v376
  %v653 = vpack.c.b16 %v381, %v379
  %v654 = vpack.c.b16 %v382, %v380
  %v655 = vpack.c.b16 %v385, %v383
  %v656 = vpack.c.b16 %v386, %v384
  %v657 = vpack.c.b16 %v389, %v387
  %v658 = vpack.c.b16 %v390, %v388
  %v659 = vpack.c.b16 %v393, %v391
  %v660 = vpack.c.b16 %v394, %v392
  %v661 = vpack.c.b16 %v397, %v395
  %v662 = vpack.c.b16 %v398, %v396
  %v663 = vpack.c.b16 %v401, %v399
  %v664 = vpack.c.b16 %v402, %v400
  %v665 = vpack.c.b16 %v405, %v403
  %v666 = vpack.c.b16 %v406, %v404
  %v667 = vpack.c.b16 %v409, %v407
  %v668 = vpack.c.b16 %v410, %v408
  %v669 = vpack.c.b16 %v413, %v411
  %v670 = vpack.c.b16 %v414, %v412
  %v671 = vpack.c.b16 %v417, %v415
  %v672 = vpack.c.b16 %v418, %v416
  %v673 = vpack.c.b16 %v421, %v419
  %v674 = vpack.c.b16 %v422, %v420
  %v675 = vpack.c.b16 %v425, %v423
  %v676 = vpack.c.b16 %v426, %v424
  %v677 = vpack.c.b16 %v429, %v427
  %v678 = vpack.c.b16 %v430, %v428
  %v679 = vpack.c.b16 %v433, %v431
  %v680 = vpack.c.b16 %v434, %v432
  %v681 = vpack.c.b16 %v437, %v435
  %v682 = vpack.c.b16 %v438, %v436
  %v683 = vpack.c.b16 %v441, %v439
  %v684 = vpack.c.b16 %v442, %v440
  %v685 = vpack.c.b16 %v445, %v443
  %v686 = vpack.c.b16 %v446, %v444
  %v687 = vpack.c.b16 %v449, %v447
  %v688 = vpack.c.b16 %v450, %v448
  %v689 = vpack.c.b16 %v453, %v451
  %v690 = vpack.c.b16 %v454, %v452
  %v691 = vpack.c.b16 %v457, %v455
  %v692 = vpack.c.b16 %v458, %v456
  %v693 = vpack.c.b16 %v461, %v459
  %v694 = vpack.c.b16 %v462, %v460
  %v695 = vpack.c.b16 %v465, %v463
  %v696 = vpack.c.b16 %v466, %v464
  %v697 = vpack.c.b16 %v469, %v467
  %v698 = vpack.c.b16 %v470, %v468
  %v699 = vpack.c.b16 %v473, %v471
  %v700 = vpack.c.b16 %v474, %v472
  %v701 = vpack.c.b16 %v477, %v475
  %v702 = vpack.c.b16 %v478, %v476
  %v703 = vpack.c.b16 %v481, %v479
  %v704 = vpack.c.b16 %v482, %v480
  %v705 = vpack.c.b16 %v485, %v483
  %v706 = vpack.c.b16 %v486, %v484
  %v707 = vpack.c.b16 %v489, %v487
  %v708 = vpack.c.b16 %v490, %v488
  %v709 = vpack.c.b16 %v493, %v491
  %v710 = vpack.c.b16 %v494, %v492
  %v711 = vpack.c.b16 %v497, %v495
  %v712 = vpack.c.b16 %v498, %v496
  %v713 = vpack.c.b16 %v501, %v499
  %v714 = vpack.c.b16 %v502, %v500
  %v715 = vpack.c.b16 %v505, %v503
  %v716 = vpack.c.b16 %v506, %v504
  %v717 = vpack.c.b16 %v509, %v507
  %v718 = vpack.c.b16 %v510, %v508
  %v719 = vpack.c.b16 %v513, %v511
  %v720 = vpack.c.b16 %v514, %v512
  %v721 = vpack.c.b16 %v517, %v515
  %v722 = vpack.c.b16 %v518, %v516
  %v723 = vpack.c.b16 %v521, %v519
  %v724 = vpack.c.b16 %v522, %v520
  %v725 = vpack.c.b16 %v525, %v523
  %v726 = vpack.c.b16 %v526, %v524
  %v727 = vpack.c.b16 %v529, %v527
  %v728 = vpack.c.b16 %v530, %v528
  %v729 = vpack.c.b16 %v533, %v531
  %v730 = vpack.c.b16 %v534, %v532
  %v731 = vpack.c.b16 %v537, %v535
  %v732 = vpack.c.b16 %v538, %v536
  %v733 = vpack.c.b16 %v541, %v539
  %v734 = vpack.c.b16 %v542, %v540
  %v735 = vpack.c.b16 %v545, %v543
  %v736 = vpack.c.b16 %v546, %v544
  %v737 = vpack.c.b16 %v549, %v547
  %v738 = vpack.c.b16 %v550, %v548
  %v739 = vpack.c.b16 %v553, %v551
  %v740 = vpack.c.b16 %v554, %v552
  %v741 = vpack.c.b16 %v557, %v555
  %v742 = vpack.c.b16 %v558, %v556
  %v743 = vpack.c.b16 %v561, %v559
  %v744 = vpack.c.b16 %v562, %v560
  %v745 = vpack.c.b16 %v565, %v563
  %v746 = vpack.c.b16 %v566, %v564
  %v747 = vpack.c.b16 %v569, %v567
  %v748 = vpack.c.b16 %v570, %v568
  %v749 = vpack.c.b16 %v573, %v571
  %v750 = vpack.c.b16 %v574, %v572
  %v751 = vpack.c.b16 %v577, %v575
  %v752 = vpack.c.b16 %v578, %v576
  %v753 = vpack.c.b16 %v581, %v579
  %v754 = vpack.c.b16 %v582, %v580
  %v755 = vpack.c.b16 %v585, %v583
  %v756 = vpack.c.b16 %v586, %v584
  %v757 = vpack.c.b16 %v589, %v587
  %v758 = vpack.c.b16 %v590, %v588
  %v759 = vpack.c.b16 %v593, %v591
  %v760 = vpack.c.b16 %v594, %v592
  %v761 = vpack.c.b16 %v597, %v595
  %v762 = vpack.c.b16 %v598, %v596
  %v763 = vpack.c.b16 %v601, %v599
  %v764 = vpack.c.b16 %v602, %v600
  %v765 = vpack.c.b16 %v605, %v603
  %v766 = vpack.c.b16 %v606, %v604
  %v767 = vpack.c.b16 %v609, %v607
  %v768 = vpack.c.b16 %v610, %v608
  %v769 = vpack.c.b16 %v613, %v611
  %v770 = vpack.c.b16 %v614, %v612
  %v771 = vpack.c.b16 %v617, %v615
  %v772 = vpack.c.b16 %v618, %v616
  %v773 = vpack.c.b16 %v621, %v619
  %v774 = vpack.c.b16 %v622, %v620
  %v775 = vpack.c.b16 %v625, %v623
  %v776 = vpack.c.b16 %v626, %v624
  %v777 = vpack.c.b16 %v629, %v627
  %v778 = vpack.c.b16 %v630, %v628
  %v779 = vpack.c.b16 %v633, %v631
  %v780 = vpack.c.b16 %v634, %v632
  %v781 = vpack.c.b16 %v637, %v635
  %v782 = vpack.c.b16 %v638, %v636
  %927 = vmatprep.subr.bf16.mxu0 %v640
  %928 = vmatpush1.bf16.msra.mxu0 %v639
  %929 = vmatprep.subr.bf16.mxu0 %v642
  %930 = vmatpush1.bf16.msra.mxu0 %v641
  %931 = vmatprep.subr.bf16.mxu0 %v644
  %932 = vmatpush1.bf16.msra.mxu0 %v643
  %933 = vmatprep.subr.bf16.mxu0 %v646
  %934 = vmatpush1.bf16.msra.mxu0 %v645
  %935 = vmatprep.subr.bf16.mxu0 %v648
  %936 = vmatpush1.bf16.msra.mxu0 %v647
  %937 = vmatprep.subr.bf16.mxu0 %v650
  %938 = vmatpush1.bf16.msra.mxu0 %v649
  %939 = vmatprep.subr.bf16.mxu0 %v652
  %940 = vmatpush1.bf16.msra.mxu0 %v651
  %941 = vmatprep.subr.bf16.mxu0 %v654
  %942 = vmatpush1.bf16.msra.mxu0 %v653
  %943 = vmatprep.subr.bf16.mxu0 %v656
  %944 = vmatpush1.bf16.msra.mxu0 %v655
  %945 = vmatprep.subr.bf16.mxu0 %v658
  %946 = vmatpush1.bf16.msra.mxu0 %v657
  %947 = vmatprep.subr.bf16.mxu0 %v660
  %948 = vmatpush1.bf16.msra.mxu0 %v659
  %949 = vmatprep.subr.bf16.mxu0 %v662
  %950 = vmatpush1.bf16.msra.mxu0 %v661
  %951 = vmatprep.subr.bf16.mxu0 %v664
  %952 = vmatpush1.bf16.msra.mxu0 %v663
  %953 = vmatprep.subr.bf16.mxu0 %v666
  %954 = vmatpush1.bf16.msra.mxu0 %v665
  %955 = vmatprep.subr.bf16.mxu0 %v668
  %956 = vmatpush1.bf16.msra.mxu0 %v667
  %957 = vmatprep.subr.bf16.mxu0 %v670
  %958 = vmatpush1.bf16.msra.mxu0 %v669
  %959 = vmatprep.mubr.bf16.mxu0 %v190
  %960 = vmatmul.mubr.bf16.gmra.mrb[0].mxu0 %v189
  %v961 = vpop.f32.mrb[0].mxu0
  %v962 = vadd.f32 0.0, %v961
  %v963 = vpop.f32.mrb[0].mxu0
  %v964 = vadd.f32 0.0, %v963
  %v965 = vpop.f32.mrb[0].mxu0
  %v966 = vpop.f32.mrb[0].mxu0
  %967 = vdwg.mxu0
  %968 = vmatprep.subr.bf16.mxu0 %v672
  %969 = vmatpush1.bf16.msra.mxu0 %v671
  %970 = vmatprep.subr.bf16.mxu0 %v674
  %971 = vmatpush1.bf16.msra.mxu0 %v673
  %972 = vmatprep.subr.bf16.mxu0 %v676
  %973 = vmatpush1.bf16.msra.mxu0 %v675
  %974 = vmatprep.subr.bf16.mxu0 %v678
  %975 = vmatpush1.bf16.msra.mxu0 %v677
  %976 = vmatprep.subr.bf16.mxu0 %v680
  %977 = vmatpush1.bf16.msra.mxu0 %v679
  %978 = vmatprep.subr.bf16.mxu0 %v682
  %979 = vmatpush1.bf16.msra.mxu0 %v681
  %980 = vmatprep.subr.bf16.mxu0 %v684
  %981 = vmatpush1.bf16.msra.mxu0 %v683
  %982 = vmatprep.subr.bf16.mxu0 %v686
  %983 = vmatpush1.bf16.msra.mxu0 %v685
  %984 = vmatprep.subr.bf16.mxu0 %v688
  %985 = vmatpush1.bf16.msra.mxu0 %v687
  %986 = vmatprep.subr.bf16.mxu0 %v690
  %987 = vmatpush1.bf16.msra.mxu0 %v689
  %988 = vmatprep.subr.bf16.mxu0 %v692
  %989 = vmatpush1.bf16.msra.mxu0 %v691
  %990 = vmatprep.subr.bf16.mxu0 %v694
  %991 = vmatpush1.bf16.msra.mxu0 %v693
  %992 = vmatprep.subr.bf16.mxu0 %v696
  %993 = vmatpush1.bf16.msra.mxu0 %v695
  %994 = vmatprep.subr.bf16.mxu0 %v698
  %995 = vmatpush1.bf16.msra.mxu0 %v697
  %996 = vmatprep.subr.bf16.mxu0 %v700
  %997 = vmatpush1.bf16.msra.mxu0 %v699
  %998 = vmatprep.subr.bf16.mxu0 %v702
  %999 = vmatpush1.bf16.msra.mxu0 %v701
  %1000 = vmatprep.mubr.bf16.mxu0 %v192
  %1001 = vmatmul.mubr.bf16.gmra.mrb[0].mxu0 %v191
  %v1002 = vpop.f32.mrb[0].mxu0
  %v1003 = vadd.f32 %v962, %v1002
  %v1004 = vpop.f32.mrb[0].mxu0
  %v1005 = vadd.f32 %v964, %v1004
  %v1006 = vpop.f32.mrb[0].mxu0
  %v1007 = vpop.f32.mrb[0].mxu0
  %1008 = vdwg.mxu0
  %1009 = vmatprep.subr.bf16.mxu0 %v704
  %1010 = vmatpush1.bf16.msra.mxu0 %v703
  %1011 = vmatprep.subr.bf16.mxu0 %v706
  %1012 = vmatpush1.bf16.msra.mxu0 %v705
  %1013 = vmatprep.subr.bf16.mxu0 %v708
  %1014 = vmatpush1.bf16.msra.mxu0 %v707
  %1015 = vmatprep.subr.bf16.mxu0 %v710
  %1016 = vmatpush1.bf16.msra.mxu0 %v709
  %1017 = vmatprep.subr.bf16.mxu0 %v712
  %1018 = vmatpush1.bf16.msra.mxu0 %v711
  %1019 = vmatprep.subr.bf16.mxu0 %v714
  %1020 = vmatpush1.bf16.msra.mxu0 %v713
  %1021 = vmatprep.subr.bf16.mxu0 %v716
  %1022 = vmatpush1.bf16.msra.mxu0 %v715
  %1023 = vmatprep.subr.bf16.mxu0 %v718
  %1024 = vmatpush1.bf16.msra.mxu0 %v717
  %1025 = vmatprep.subr.bf16.mxu0 %v720
  %1026 = vmatpush1.bf16.msra.mxu0 %v719
  %1027 = vmatprep.subr.bf16.mxu0 %v722
  %1028 = vmatpush1.bf16.msra.mxu0 %v721
  %1029 = vmatprep.subr.bf16.mxu0 %v724
  %1030 = vmatpush1.bf16.msra.mxu0 %v723
  %1031 = vmatprep.subr.bf16.mxu0 %v726
  %1032 = vmatpush1.bf16.msra.mxu0 %v725
  %1033 = vmatprep.subr.bf16.mxu0 %v728
  %1034 = vmatpush1.bf16.msra.mxu0 %v727
  %1035 = vmatprep.subr.bf16.mxu0 %v730
  %1036 = vmatpush1.bf16.msra.mxu0 %v729
  %1037 = vmatprep.subr.bf16.mxu0 %v732
  %1038 = vmatpush1.bf16.msra.mxu0 %v731
  %1039 = vmatprep.subr.bf16.mxu0 %v734
  %1040 = vmatpush1.bf16.msra.mxu0 %v733
  %1041 = vmatprep.mubr.bf16.mxu0 %v194
  %1042 = vmatmul.mubr.bf16.gmra.mrb[0].mxu0 %v193
  %v1043 = vpop.f32.mrb[0].mxu0
  %v1044 = vadd.f32 %v1003, %v1043
  %v1045 = vpop.f32.mrb[0].mxu0
  %v1046 = vadd.f32 %v1005, %v1045
  %v1047 = vpop.f32.mrb[0].mxu0
  %v1048 = vpop.f32.mrb[0].mxu0
  %1049 = vdwg.mxu0
  %1050 = vmatprep.subr.bf16.mxu0 %v736
  %1051 = vmatpush1.bf16.msra.mxu0 %v735
  %1052 = vmatprep.subr.bf16.mxu0 %v738
  %1053 = vmatpush1.bf16.msra.mxu0 %v737
  %1054 = vmatprep.subr.bf16.mxu0 %v740
  %1055 = vmatpush1.bf16.msra.mxu0 %v739
  %1056 = vmatprep.subr.bf16.mxu0 %v742
  %1057 = vmatpush1.bf16.msra.mxu0 %v741
  %1058 = vmatprep.subr.bf16.mxu0 %v744
  %1059 = vmatpush1.bf16.msra.mxu0 %v743
  %1060 = vmatprep.subr.bf16.mxu0 %v746
  %1061 = vmatpush1.bf16.msra.mxu0 %v745
  %1062 = vmatprep.subr.bf16.mxu0 %v748
  %1063 = vmatpush1.bf16.msra.mxu0 %v747
  %1064 = vmatprep.subr.bf16.mxu0 %v750
  %1065 = vmatpush1.bf16.msra.mxu0 %v749
  %1066 = vmatprep.subr.bf16.mxu0 %v752
  %1067 = vmatpush1.bf16.msra.mxu0 %v751
  %1068 = vmatprep.subr.bf16.mxu0 %v754
  %1069 = vmatpush1.bf16.msra.mxu0 %v753
  %1070 = vmatprep.subr.bf16.mxu0 %v756
  %1071 = vmatpush1.bf16.msra.mxu0 %v755
  %1072 = vmatprep.subr.bf16.mxu0 %v758
  %1073 = vmatpush1.bf16.msra.mxu0 %v757
  %1074 = vmatprep.subr.bf16.mxu0 %v760
  %1075 = vmatpush1.bf16.msra.mxu0 %v759
  %1076 = vmatprep.subr.bf16.mxu0 %v762
  %1077 = vmatpush1.bf16.msra.mxu0 %v761
  %1078 = vmatprep.subr.bf16.mxu0 %v764
  %1079 = vmatpush1.bf16.msra.mxu0 %v763
  %1080 = vmatprep.subr.bf16.mxu0 %v766
  %1081 = vmatpush1.bf16.msra.mxu0 %v765
  %1082 = vmatprep.mubr.bf16.mxu0 %v196
  %1083 = vmatmul.mubr.bf16.gmra.mrb[0].mxu0 %v195
  %v1084 = vpop.f32.mrb[0].mxu0
  %v1085 = vadd.f32 %v1044, %v1084
  %v1086 = vpop.f32.mrb[0].mxu0
  %v1087 = vadd.f32 %v1046, %v1086
  %v1088 = vpop.f32.mrb[0].mxu0
  %v1089 = vpop.f32.mrb[0].mxu0
  %1090 = vdwg.mxu0
  %1091 = vmatprep.subr.bf16.mxu0 %v768
  %1092 = vmatpush1.bf16.msra.mxu0 %v767
  %1093 = vmatprep.subr.bf16.mxu0 %v770
  %1094 = vmatpush1.bf16.msra.mxu0 %v769
  %1095 = vmatprep.subr.bf16.mxu0 %v772
  %1096 = vmatpush1.bf16.msra.mxu0 %v771
  %1097 = vmatprep.subr.bf16.mxu0 %v774
  %1098 = vmatpush1.bf16.msra.mxu0 %v773
  %1099 = vmatprep.subr.bf16.mxu0 %v776
  %1100 = vmatpush1.bf16.msra.mxu0 %v775
  %1101 = vmatprep.subr.bf16.mxu0 %v778
  %1102 = vmatpush1.bf16.msra.mxu0 %v777
  %1103 = vmatprep.subr.bf16.mxu0 %v780
  %1104 = vmatpush1.bf16.msra.mxu0 %v779
  %1105 = vmatprep.subr.bf16.mxu0 %v782
  %1106 = vmatpush1.bf16.msra.mxu0 %v781
  %1107 = vmatprep.subr.bf16.mxu0 0
  %1108 = vmatpush1.bf16.msra.mxu0 0
  %1109 = vmatprep.subr.bf16.mxu0 0
  %1110 = vmatpush1.bf16.msra.mxu0 0
  %1111 = vmatprep.subr.bf16.mxu0 0
  %1112 = vmatpush1.bf16.msra.mxu0 0
  %1113 = vmatprep.subr.bf16.mxu0 0
  %1114 = vmatpush1.bf16.msra.mxu0 0
  %1115 = vmatprep.subr.bf16.mxu0 0
  %1116 = vmatpush1.bf16.msra.mxu0 0
  %1117 = vmatprep.subr.bf16.mxu0 0
  %1118 = vmatpush1.bf16.msra.mxu0 0
  %1119 = vmatprep.subr.bf16.mxu0 0
  %1120 = vmatpush1.bf16.msra.mxu0 0
  %1121 = vmatprep.subr.bf16.mxu0 0
  %1122 = vmatpush1.bf16.msra.mxu0 0
  %1123 = vmatprep.mubr.bf16.mxu0 0
  %1124 = vmatmul.mubr.bf16.gmra.mrb[0].mxu0 %v197
  %v1125 = vpop.f32.mrb[0].mxu0
  %v1126 = vadd.f32 %v1085, %v1125
  %v1127 = vpop.f32.mrb[0].mxu0
  %v1128 = vadd.f32 %v1087, %v1127
  %v1129 = vpop.f32.mrb[0].mxu0
  %v1130 = vpop.f32.mrb[0].mxu0
  %1131 = vdwg.mxu0
  %v1132 = vadd.f32 %v24, %v1126
  %v1133 = vadd.f32 %v25, %v1128
  %1134 = vst [vmem:[#allocation2] sm:$0xff] %v1132
  %1135 = vst [vmem:[#allocation2 + $0x8] sm:$0xff] %v1133
  // Predicated region
  $region22: #{_lambda_.21} parent=0 // pred_check
    %p1136 = pneg %p18
  $region23: #{_lambda_.21} parent=0 // pred_check_branch
    %1138 = sbr.rel (%p1136) target = $region25
  $region24: #{_lambda_.21} parent=0 // pred_region
    %v1139 = vld [vmem:[#allocation2] sm:$0xff]
    %v1140 = vld [vmem:[#allocation2 + $0x8] sm:$0xff]
    %v1141 = vld [vmem:[%s2] sm:$0x3]
    %v1143 = vlaneseq
    %v1144 = vshrl.u32 %v1143, 7
    %v1145 = vsub.s32 0, %v1144
    %v1146 = vrot.slane %v1141, %v1145
    %v1147 = vlaneseq
    %v1148 = vshrl.u32 %v1147, 7
    %v1149 = vsub.s32 1, %v1148
    %v1150 = vrot.slane %v1141, %v1149
    %v1153 = vmul.f32 %v1139, %v1146
    %v1154 = vmul.f32 %v1140, %v1150
    %v1155 = vld [vmem:[%s3] sm:$0x3]
    %v1157 = vlaneseq
    %v1158 = vshrl.u32 %v1157, 7
    %v1159 = vsub.s32 0, %v1158
    %v1160 = vrot.slane %v1155, %v1159
    %v1161 = vlaneseq
    %v1162 = vshrl.u32 %v1161, 7
    %v1163 = vsub.s32 1, %v1162
    %v1164 = vrot.slane %v1155, %v1163
    %v1167 = vadd.f32 %v1153, %v1160
    %v1168 = vadd.f32 %v1154, %v1164
    %v1169 = vmax.f32 %v1167, 0.0
    %v1170 = vmax.f32 %v1168, 0.0
    %v1171 = vpack.c.bf16 %v1169, %v1169
    %v1172 = vpack.c.bf16 %v1170, %v1170
    %v1175 = vunpack.c.l.b16 %v1171
    %v1176 = vunpack.c.l.b16 %v1172
    %v1177 = vpack.c.b16 %v1176, %v1175
    %1179 = vst [vmem:[%s4] sm:$0xff] %v1177
  $region25: #{_lambda_.21} parent=0 // pred_fallthru
    _
  // Predicated region
  $region26: #{_lambda_.21} parent=0 // pred_check
    _
  $region27: #{_lambda_.21} parent=0 // pred_check_branch
    %1181 = sbr.rel (0) target = $region29
  $region28: #{_lambda_.21} parent=0 // pred_region
    _
  $region29: #{_lambda_.21} parent=0 // pred_fallthru
    _
  // Predicated region
  $region30: #{_lambda_.21} parent=0 // pred_check
    _
  $region31: #{_lambda_.21} parent=0 // pred_check_branch
    %1183 = sbr.rel (0) target = $region33
  $region32: #{_lambda_.21} parent=0 // pred_region
    _
  $region33: #{_lambda_.21} parent=0 // pred_fallthru
    _

// kernel: _lambda_.24
$region0: #{_lambda_.24}
  #allocation0 [shape = 'u32[]', space=smem, size = 0x4, offset = 0x4, fixed_abs, tag = 'smem constant byte address 0x4 - core index']
  #allocation1 [shape = 'u32[144,128]{1,0:T(1,128)}', space=vmem, size = 0x12000, scoped, tag = 'internal scratch']
  #allocation2 [shape = 'f32[8,256]{1,0:T(8,128)}', space=vmem, size = 0x2000, scoped, tag = 'scratch operand']
  %s0 = inlined_call_operand.vmem [shape: bf16[8,2304], index: 0, kind: input, shape index: {}]
  %s1 = inlined_call_operand.vmem [shape: bf16[2304,512], index: 1, kind: input, shape index: {}]
  %s2 = inlined_call_operand.vmem [shape: f32[1,512], index: 2, kind: input, shape index: {}]
  %s3 = inlined_call_operand.vmem [shape: f32[1,512], index: 3, kind: input, shape index: {}]
  %s4 = inlined_call_operand.vmem [shape: bf16[8,512], index: 4, kind: output, shape index: {}]
  %s5 = sld [smem:[#allocation0]]
  $region95: #{_lambda_.24} parent=0
    _
  %s7 = ssub.s32 1, %s5
  %s8 = scalar_select 0, %s7, %s5
  $region1: #{_lambda_.24} parent=0
    #allocation3 [shape = 'u8[393216]{0}', space=vmem, size = 0x60000, scoped, tag = 'input window, operand 1']
    loop: start=0, step=1, limit=14
    $region2: #{_lambda_.24} parent=1 // loop_pre_header
      _
    $region3: #{_lambda_.24} parent=1 // loop_header
      %s10 = sphi 0, %s14
      %p11 = scmp.ge.s32.totalorder %s10, 14
      %s17 = sphi 0, %s36
      %s18 = sphi 0, %s32
      %s19 = sphi 0, %s28
      %s20 = sphi 0, %s17
      %s21 = sphi 0, %s18
      %s22 = sphi 0, %s19
      %s23 = sphi 0, %s20
      %s24 = sphi 0, %s21
      %s25 = sphi 0, %s22
      %s41 = sphi 0, %s43
      %s44 = sphi 0, %s41
      %s45 = sphi 0, %s44
      %s61 = sphi 0, %s45
      %s69 = sphi 0, %s71
      %s72 = sphi 0, %s69
      %s73 = sphi 0, %s72
      %s89 = sphi 0, %s73
      %s95 = sphi 0, %s97
      %s98 = sphi 0, %s95
      %s99 = sphi 0, %s98
      %s115 = sphi 0, %s99
      %s121 = sphi 0, %s123
      %s124 = sphi 0, %s121
      %s125 = sphi 0, %s124
      %s141 = sphi 0, %s125
      %s149 = sphi 0, %s151
      %s152 = sphi 0, %s149
      %s153 = sphi 0, %s152
      %s169 = sphi 0, %s153
    $region4: #{_lambda_.24} parent=1 // loop_header_branch
      %13 = sbr.rel (%p11) target = $region8
    $region5: #{_lambda_.24} parent=1 // loop_body
      %s15 = ssub.s32 %s10, 1
      %s16 = ssub.s32 %s10, 2
      %s26 = sadd.s32 1, %s19
      %p27 = scmp.ge.s32.totalorder %s26, 6
      %s28 = scalar_select %p27, 0, %s26
      %s29 = sadd.s32 1, %s18
      %s30 = scalar_select %p27, %s29, %s18
      %p31 = scmp.ge.s32.totalorder %s30, 2
      %s32 = scalar_select %p31, 0, %s30
      %s33 = sadd.s32 1, %s17
      %s34 = scalar_select %p31, %s33, %s17
      %p35 = scmp.ge.s32.totalorder %s34, 1
      %s36 = scalar_select %p35, 0, %s34
      %s37 = ssub.s32 %s17, %s36
      %s38 = ssub.s32 %s19, %s28
      %s39 = sor.u32 %s37, %s38
      %p40 = scmp.eq.s32.totalorder %s39, 0
      %s42 = sadd.s32 %s41, 1
      %s43 = scalar_select %p40, %s41, %s42
      %p46 = pneg %p40
      %p47 = scmp.eq.s32.totalorder %s10, 11
      %p48 = por %p46, %p47
      %p49 = scmp.ne.s32.totalorder %s41, %s44
      %p50 = scmp.eq.s32.totalorder %s10, 0
      %p51 = por %p49, %p50
      %p52 = scmp.ne.s32.totalorder %s41, %s44
      %p53 = scmp.eq.s32.totalorder %s15, 11
      %p54 = por %p52, %p53
      %p55 = scmp.ne.s32.totalorder %s44, %s45
      %p56 = scmp.eq.s32.totalorder %s15, 0
      %p57 = por %p55, %p56
      %p58 = scmp.ne.s32.totalorder %s44, %s45
      %p59 = scmp.eq.s32.totalorder %s16, 11
      %p60 = por %p58, %p59
      %p62 = scmp.ne.s32.totalorder %s45, %s61
      %p63 = scmp.eq.s32.totalorder %s16, 0
      %p64 = por %p62, %p63
      %s65 = ssub.s32 %s19, %s28
      %s66 = ssub.s32 %s18, %s32
      %s67 = sor.u32 %s65, %s66
      %p68 = scmp.eq.s32.totalorder %s67, 0
      %s70 = sadd.s32 %s69, 1
      %s71 = scalar_select %p68, %s69, %s70
      %p74 = pneg %p68
      %p75 = scmp.eq.s32.totalorder %s10, 11
      %p76 = por %p74, %p75
      %p77 = scmp.ne.s32.totalorder %s69, %s72
      %p78 = scmp.eq.s32.totalorder %s10, 0
      %p79 = por %p77, %p78
      %p80 = scmp.ne.s32.totalorder %s69, %s72
      %p81 = scmp.eq.s32.totalorder %s15, 11
      %p82 = por %p80, %p81
      %p83 = scmp.ne.s32.totalorder %s72, %s73
      %p84 = scmp.eq.s32.totalorder %s15, 0
      %p85 = por %p83, %p84
      %p86 = scmp.ne.s32.totalorder %s72, %s73
      %p87 = scmp.eq.s32.totalorder %s16, 11
      %p88 = por %p86, %p87
      %p90 = scmp.ne.s32.totalorder %s73, %s89
      %p91 = scmp.eq.s32.totalorder %s16, 0
      %p92 = por %p90, %p91
      %s93 = ssub.s32 %s18, %s32
      %p94 = scmp.eq.s32.totalorder %s93, 0
      %s96 = sadd.s32 %s95, 1
      %s97 = scalar_select %p94, %s95, %s96
      %p100 = pneg %p94
      %p101 = scmp.eq.s32.totalorder %s10, 11
      %p102 = por %p100, %p101
      %p103 = scmp.ne.s32.totalorder %s95, %s98
      %p104 = scmp.eq.s32.totalorder %s10, 0
      %p105 = por %p103, %p104
      %p106 = scmp.ne.s32.totalorder %s95, %s98
      %p107 = scmp.eq.s32.totalorder %s15, 11
      %p108 = por %p106, %p107
      %p109 = scmp.ne.s32.totalorder %s98, %s99
      %p110 = scmp.eq.s32.totalorder %s15, 0
      %p111 = por %p109, %p110
      %p112 = scmp.ne.s32.totalorder %s98, %s99
      %p113 = scmp.eq.s32.totalorder %s16, 11
      %p114 = por %p112, %p113
      %p116 = scmp.ne.s32.totalorder %s99, %s115
      %p117 = scmp.eq.s32.totalorder %s16, 0
      %p118 = por %p116, %p117
      %s119 = ssub.s32 %s18, %s32
      %p120 = scmp.eq.s32.totalorder %s119, 0
      %s122 = sadd.s32 %s121, 1
      %s123 = scalar_select %p120, %s121, %s122
      %p126 = pneg %p120
      %p127 = scmp.eq.s32.totalorder %s10, 11
      %p128 = por %p126, %p127
      %p129 = scmp.ne.s32.totalorder %s121, %s124
      %p130 = scmp.eq.s32.totalorder %s10, 0
      %p131 = por %p129, %p130
      %p132 = scmp.ne.s32.totalorder %s121, %s124
      %p133 = scmp.eq.s32.totalorder %s15, 11
      %p134 = por %p132, %p133
      %p135 = scmp.ne.s32.totalorder %s124, %s125
      %p136 = scmp.eq.s32.totalorder %s15, 0
      %p137 = por %p135, %p136
      %p138 = scmp.ne.s32.totalorder %s124, %s125
      %p139 = scmp.eq.s32.totalorder %s16, 11
      %p140 = por %p138, %p139
      %p142 = scmp.ne.s32.totalorder %s125, %s141
      %p143 = scmp.eq.s32.totalorder %s16, 0
      %p144 = por %p142, %p143
      %s145 = ssub.s32 %s17, %s36
      %s146 = ssub.s32 %s18, %s32
      %s147 = sor.u32 %s145, %s146
      %p148 = scmp.eq.s32.totalorder %s147, 0
      %s150 = sadd.s32 %s149, 1
      %s151 = scalar_select %p148, %s149, %s150
      %p154 = pneg %p148
      %p155 = scmp.eq.s32.totalorder %s10, 11
      %p156 = por %p154, %p155
      %p157 = scmp.ne.s32.totalorder %s149, %s152
      %p158 = scmp.eq.s32.totalorder %s10, 0
      %p159 = por %p157, %p158
      %p160 = scmp.ne.s32.totalorder %s149, %s152
      %p161 = scmp.eq.s32.totalorder %s15, 11
      %p162 = por %p160, %p161
      %p163 = scmp.ne.s32.totalorder %s152, %s153
      %p164 = scmp.eq.s32.totalorder %s15, 0
      %p165 = por %p163, %p164
      %p166 = scmp.ne.s32.totalorder %s152, %s153
      %p167 = scmp.eq.s32.totalorder %s16, 11
      %p168 = por %p166, %p167
      %p170 = scmp.ne.s32.totalorder %s153, %s169
      %p171 = scmp.eq.s32.totalorder %s16, 0
      %p172 = por %p170, %p171
      %p173 = scmp.le.s32.totalorder 1, %s10
      %p174 = scmp.lt.s32.totalorder %s10, 13
      %p175 = pnand %p173, %p174
      %p176 = pneg %p175
      // Predicated region
      $region9: #{_lambda_.24} parent=5 // pred_check
        _
      $region10: #{_lambda_.24} parent=5 // pred_check_branch
        %178 = sbr.rel (%p175) target = $region12
      $region11: #{_lambda_.24} parent=5 // pred_region
        %s179 = ssub.s32 %s10, 1
      $region12: #{_lambda_.24} parent=5 // pred_fallthru
        _
      %p180 = scmp.lt.s32.totalorder %s10, 12
      // Predicated region
      $region13: #{_lambda_.24} parent=5 // pred_check
        %p181 = pneg %p180
      $region14: #{_lambda_.24} parent=5 // pred_check_branch
        %183 = sbr.rel (%p181) target = $region16
      $region15: #{_lambda_.24} parent=5 // pred_region
        // Predicated region
        $region17: #{_lambda_.24} parent=15 // pred_check
          %p184 = pneg %p51
        $region18: #{_lambda_.24} parent=15 // pred_check_branch
          %186 = sbr.rel (%p184) target = $region20
        $region19: #{_lambda_.24} parent=15 // pred_region
          %s187 = smul.u32 3, %s19
          %p188 = scmp.lt.s32.totalorder %s17, 0
          %s189 = scalar_select %p188, %s17, 0
          %p190 = scmp.lt.s32.totalorder %s187, 17
          %s191 = scalar_select %p190, %s187, 17
          %s192 = smul.addr %s189, 18
          %s193 = sadd.s32 %s191, %s192
          %s194 = smul.addr %s193, 4
          %s195 = scalar_lea.vmem %s0, %s194
          %s196 = smul.u32 3, %s19
        $region20: #{_lambda_.24} parent=15 // pred_fallthru
          _
        // Predicated region
        $region21: #{_lambda_.24} parent=15 // pred_check
          %p197 = pneg %p79
        $region22: #{_lambda_.24} parent=15 // pred_check_branch
          %199 = sbr.rel (%p197) target = $region24
        $region23: #{_lambda_.24} parent=15 // pred_region
          %s200 = sand.u32 %s69, 1
          %s201 = sand.u32 %s69, 1
          %s202 = smul.addr %s201, 384
          %s203 = scalar_lea.vmem [#allocation3], %s202
          %s204 = smul.u32 48, %s19
          %s205 = smul.u32 2, %s18
          %s206 = smul.addr %s204, 4
          %s207 = sadd.s32 %s205, %s206
          %s208 = smul.addr %s207, 4
          %s209 = scalar_lea.vmem %s1, %s208
          // Predicated region
          $region25: #{_lambda_.24} parent=23 // pred_check
            _
          $region26: #{_lambda_.24} parent=23 // pred_check_branch
            %211 = sbr.rel (0) target = $region28
          $region27: #{_lambda_.24} parent=23 // pred_region
            // Predicated region
            $region29: #{_lambda_.24} parent=27 // pred_check
              _
            $region30: #{_lambda_.24} parent=27 // pred_check_branch
              %213 = sbr.rel (0) target = $region32
            $region31: #{_lambda_.24} parent=27 // pred_region
              // Predicated region
              $region44: #{_lambda_.24} parent=31 // pred_check
                _
              $region45: #{_lambda_.24} parent=31 // pred_check_branch
                %322 = sbr.rel (0) target = $region47
              $region46: #{_lambda_.24} parent=31 // pred_region
                loop: start=0, step=1, limit=1
                $region48: #{_lambda_.24} parent=46 // loop_pre_header
                  _
                $region49: #{_lambda_.24} parent=46 // loop_header
                  %s324 = sphi 0, %s328
                  %p325 = scmp.ge.s32.totalorder %s324, 1
                  %s329 = sphi %s209, %s209
                  %s330 = sphi %s203, %s203
                $region50: #{_lambda_.24} parent=46 // loop_header_branch
                  %327 = sbr.rel (%p325) target = $region54
                $region51: #{_lambda_.24} parent=46 // loop_body
                  %v331 = vld [vmem:[%s329] sm:$0xff]
                  %332 = vst [vmem:[%s330] sm:$0xff] %v331
                  %v333 = vld [vmem:[%s329 + $0x10] sm:$0xff]
                  %334 = vst [vmem:[%s330 + $0x8] sm:$0xff] %v333
                  %v335 = vld [vmem:[%s329 + $0x20] sm:$0xff]
                  %336 = vst [vmem:[%s330 + $0x10] sm:$0xff] %v335
                  %v337 = vld [vmem:[%s329 + $0x30] sm:$0xff]
                  %338 = vst [vmem:[%s330 + $0x18] sm:$0xff] %v337
                  %v339 = vld [vmem:[%s329 + $0x40] sm:$0xff]
                  %340 = vst [vmem:[%s330 + $0x20] sm:$0xff] %v339
                  %v341 = vld [vmem:[%s329 + $0x50] sm:$0xff]
                  %342 = vst [vmem:[%s330 + $0x28] sm:$0xff] %v341
                  %v343 = vld [vmem:[%s329 + $0x60] sm:$0xff]
                  %344 = vst [vmem:[%s330 + $0x30] sm:$0xff] %v343
                  %v345 = vld [vmem:[%s329 + $0x70] sm:$0xff]
                  %346 = vst [vmem:[%s330 + $0x38] sm:$0xff] %v345
                  %v347 = vld [vmem:[%s329 + $0x80] sm:$0xff]
                  %348 = vst [vmem:[%s330 + $0x40] sm:$0xff] %v347
                  %v349 = vld [vmem:[%s329 + $0x90] sm:$0xff]
                  %350 = vst [vmem:[%s330 + $0x48] sm:$0xff] %v349
                  %v351 = vld [vmem:[%s329 + $0xa0] sm:$0xff]
                  %352 = vst [vmem:[%s330 + $0x50] sm:$0xff] %v351
                  %v353 = vld [vmem:[%s329 + $0xb0] sm:$0xff]
                  %354 = vst [vmem:[%s330 + $0x58] sm:$0xff] %v353
                  %v355 = vld [vmem:[%s329 + $0xc0] sm:$0xff]
                  %356 = vst [vmem:[%s330 + $0x60] sm:$0xff] %v355
                  %v357 = vld [vmem:[%s329 + $0xd0] sm:$0xff]
                  %358 = vst [vmem:[%s330 + $0x68] sm:$0xff] %v357
                  %v359 = vld [vmem:[%s329 + $0xe0] sm:$0xff]
                  %360 = vst [vmem:[%s330 + $0x70] sm:$0xff] %v359
                  %v361 = vld [vmem:[%s329 + $0xf0] sm:$0xff]
                  %362 = vst [vmem:[%s330 + $0x78] sm:$0xff] %v361
                  %v363 = vld [vmem:[%s329 + $0x100] sm:$0xff]
                  %364 = vst [vmem:[%s330 + $0x80] sm:$0xff] %v363
                  %v365 = vld [vmem:[%s329 + $0x110] sm:$0xff]
                  %366 = vst [vmem:[%s330 + $0x88] sm:$0xff] %v365
                  %v367 = vld [vmem:[%s329 + $0x120] sm:$0xff]
                  %368 = vst [vmem:[%s330 + $0x90] sm:$0xff] %v367
                  %v369 = vld [vmem:[%s329 + $0x130] sm:$0xff]
                  %370 = vst [vmem:[%s330 + $0x98] sm:$0xff] %v369
                  %v371 = vld [vmem:[%s329 + $0x140] sm:$0xff]
                  %372 = vst [vmem:[%s330 + $0xa0] sm:$0xff] %v371
                  %v373 = vld [vmem:[%s329 + $0x150] sm:$0xff]
                  %374 = vst [vmem:[%s330 + $0xa8] sm:$0xff] %v373
                  %v375 = vld [vmem:[%s329 + $0x160] sm:$0xff]
                  %376 = vst [vmem:[%s330 + $0xb0] sm:$0xff] %v375
                  %v377 = vld [vmem:[%s329 + $0x170] sm:$0xff]
                  %378 = vst [vmem:[%s330 + $0xb8] sm:$0xff] %v377
                  %v379 = vld [vmem:[%s329 + $0x180] sm:$0xff]
                  %380 = vst [vmem:[%s330 + $0xc0] sm:$0xff] %v379
                  %v381 = vld [vmem:[%s329 + $0x190] sm:$0xff]
                  %382 = vst [vmem:[%s330 + $0xc8] sm:$0xff] %v381
                  %v383 = vld [vmem:[%s329 + $0x1a0] sm:$0xff]
                  %384 = vst [vmem:[%s330 + $0xd0] sm:$0xff] %v383
                  %v385 = vld [vmem:[%s329 + $0x1b0] sm:$0xff]
                  %386 = vst [vmem:[%s330 + $0xd8] sm:$0xff] %v385
                  %v387 = vld [vmem:[%s329 + $0x1c0] sm:$0xff]
                  %388 = vst [vmem:[%s330 + $0xe0] sm:$0xff] %v387
                  %v389 = vld [vmem:[%s329 + $0x1d0] sm:$0xff]
                  %390 = vst [vmem:[%s330 + $0xe8] sm:$0xff] %v389
                  %v391 = vld [vmem:[%s329 + $0x1e0] sm:$0xff]
                  %392 = vst [vmem:[%s330 + $0xf0] sm:$0xff] %v391
                  %v393 = vld [vmem:[%s329 + $0x1f0] sm:$0xff]
                  %394 = vst [vmem:[%s330 + $0xf8] sm:$0xff] %v393
                  %v395 = vld [vmem:[%s329 + $0x200] sm:$0xff]
                  %396 = vst [vmem:[%s330 + $0x100] sm:$0xff] %v395
                  %v397 = vld [vmem:[%s329 + $0x210] sm:$0xff]
                  %398 = vst [vmem:[%s330 + $0x108] sm:$0xff] %v397
                  %v399 = vld [vmem:[%s329 + $0x220] sm:$0xff]
                  %400 = vst [vmem:[%s330 + $0x110] sm:$0xff] %v399
                  %v401 = vld [vmem:[%s329 + $0x230] sm:$0xff]
                  %402 = vst [vmem:[%s330 + $0x118] sm:$0xff] %v401
                  %v403 = vld [vmem:[%s329 + $0x240] sm:$0xff]
                  %404 = vst [vmem:[%s330 + $0x120] sm:$0xff] %v403
                  %v405 = vld [vmem:[%s329 + $0x250] sm:$0xff]
                  %406 = vst [vmem:[%s330 + $0x128] sm:$0xff] %v405
                  %v407 = vld [vmem:[%s329 + $0x260] sm:$0xff]
                  %408 = vst [vmem:[%s330 + $0x130] sm:$0xff] %v407
                  %v409 = vld [vmem:[%s329 + $0x270] sm:$0xff]
                  %410 = vst [vmem:[%s330 + $0x138] sm:$0xff] %v409
                  %v411 = vld [vmem:[%s329 + $0x280] sm:$0xff]
                  %412 = vst [vmem:[%s330 + $0x140] sm:$0xff] %v411
                  %v413 = vld [vmem:[%s329 + $0x290] sm:$0xff]
                  %414 = vst [vmem:[%s330 + $0x148] sm:$0xff] %v413
                  %v415 = vld [vmem:[%s329 + $0x2a0] sm:$0xff]
                  %416 = vst [vmem:[%s330 + $0x150] sm:$0xff] %v415
                  %v417 = vld [vmem:[%s329 + $0x2b0] sm:$0xff]
                  %418 = vst [vmem:[%s330 + $0x158] sm:$0xff] %v417
                  %v419 = vld [vmem:[%s329 + $0x2c0] sm:$0xff]
                  %420 = vst [vmem:[%s330 + $0x160] sm:$0xff] %v419
                  %v421 = vld [vmem:[%s329 + $0x2d0] sm:$0xff]
                  %422 = vst [vmem:[%s330 + $0x168] sm:$0xff] %v421
                  %v423 = vld [vmem:[%s329 + $0x2e0] sm:$0xff]
                  %424 = vst [vmem:[%s330 + $0x170] sm:$0xff] %v423
                  %v425 = vld [vmem:[%s329 + $0x2f0] sm:$0xff]
                  %426 = vst [vmem:[%s330 + $0x178] sm:$0xff] %v425
                $region52: #{_lambda_.24} parent=46 // loop_footer
                  %s328 = sadd.s32 1, %s324
                $region53: #{_lambda_.24} parent=46 // loop_footer_branch
                  %323 = sbr.rel target = $region49
                $region54: #{_lambda_.24} parent=46 // loop_exit
                  _
              $region47: #{_lambda_.24} parent=31 // pred_fallthru
                _
              // Predicated region
              $region55: #{_lambda_.24} parent=31 // pred_check
                _
              $region56: #{_lambda_.24} parent=31 // pred_check_branch
                %428 = sbr.rel target = $region58
              $region57: #{_lambda_.24} parent=31 // pred_region
                _
              $region58: #{_lambda_.24} parent=31 // pred_fallthru
                _
            $region32: #{_lambda_.24} parent=27 // pred_fallthru
              _
            // Predicated region
            $region33: #{_lambda_.24} parent=27 // pred_check
              _
            $region34: #{_lambda_.24} parent=27 // pred_check_branch
              %215 = sbr.rel target = $region36
            $region35: #{_lambda_.24} parent=27 // pred_region
              loop: start=0, step=1, limit=1
              $region37: #{_lambda_.24} parent=35 // loop_pre_header
                _
              $region38: #{_lambda_.24} parent=35 // loop_header
                %s218 = sphi 0, %s222
                %p219 = scmp.ge.s32.totalorder %s218, 1
                %s223 = sphi %s209, %s209
                %s224 = sphi %s203, %s203
              $region39: #{_lambda_.24} parent=35 // loop_header_branch
                %221 = sbr.rel (%p219) target = $region43
              $region40: #{_lambda_.24} parent=35 // loop_body
                %v225 = vld [vmem:[%s223] sm:$0xff]
                %226 = vst [vmem:[%s224] sm:$0xff] %v225
                %v227 = vld [vmem:[%s223 + $0x10] sm:$0xff]
                %228 = vst [vmem:[%s224 + $0x8] sm:$0xff] %v227
                %v229 = vld [vmem:[%s223 + $0x20] sm:$0xff]
                %230 = vst [vmem:[%s224 + $0x10] sm:$0xff] %v229
                %v231 = vld [vmem:[%s223 + $0x30] sm:$0xff]
                %232 = vst [vmem:[%s224 + $0x18] sm:$0xff] %v231
                %v233 = vld [vmem:[%s223 + $0x40] sm:$0xff]
                %234 = vst [vmem:[%s224 + $0x20] sm:$0xff] %v233
                %v235 = vld [vmem:[%s223 + $0x50] sm:$0xff]
                %236 = vst [vmem:[%s224 + $0x28] sm:$0xff] %v235
                %v237 = vld [vmem:[%s223 + $0x60] sm:$0xff]
                %238 = vst [vmem:[%s224 + $0x30] sm:$0xff] %v237
                %v239 = vld [vmem:[%s223 + $0x70] sm:$0xff]
                %240 = vst [vmem:[%s224 + $0x38] sm:$0xff] %v239
                %v241 = vld [vmem:[%s223 + $0x80] sm:$0xff]
                %242 = vst [vmem:[%s224 + $0x40] sm:$0xff] %v241
                %v243 = vld [vmem:[%s223 + $0x90] sm:$0xff]
                %244 = vst [vmem:[%s224 + $0x48] sm:$0xff] %v243
                %v245 = vld [vmem:[%s223 + $0xa0] sm:$0xff]
                %246 = vst [vmem:[%s224 + $0x50] sm:$0xff] %v245
                %v247 = vld [vmem:[%s223 + $0xb0] sm:$0xff]
                %248 = vst [vmem:[%s224 + $0x58] sm:$0xff] %v247
                %v249 = vld [vmem:[%s223 + $0xc0] sm:$0xff]
                %250 = vst [vmem:[%s224 + $0x60] sm:$0xff] %v249
                %v251 = vld [vmem:[%s223 + $0xd0] sm:$0xff]
                %252 = vst [vmem:[%s224 + $0x68] sm:$0xff] %v251
                %v253 = vld [vmem:[%s223 + $0xe0] sm:$0xff]
                %254 = vst [vmem:[%s224 + $0x70] sm:$0xff] %v253
                %v255 = vld [vmem:[%s223 + $0xf0] sm:$0xff]
                %256 = vst [vmem:[%s224 + $0x78] sm:$0xff] %v255
                %v257 = vld [vmem:[%s223 + $0x100] sm:$0xff]
                %258 = vst [vmem:[%s224 + $0x80] sm:$0xff] %v257
                %v259 = vld [vmem:[%s223 + $0x110] sm:$0xff]
                %260 = vst [vmem:[%s224 + $0x88] sm:$0xff] %v259
                %v261 = vld [vmem:[%s223 + $0x120] sm:$0xff]
                %262 = vst [vmem:[%s224 + $0x90] sm:$0xff] %v261
                %v263 = vld [vmem:[%s223 + $0x130] sm:$0xff]
                %264 = vst [vmem:[%s224 + $0x98] sm:$0xff] %v263
                %v265 = vld [vmem:[%s223 + $0x140] sm:$0xff]
                %266 = vst [vmem:[%s224 + $0xa0] sm:$0xff] %v265
                %v267 = vld [vmem:[%s223 + $0x150] sm:$0xff]
                %268 = vst [vmem:[%s224 + $0xa8] sm:$0xff] %v267
                %v269 = vld [vmem:[%s223 + $0x160] sm:$0xff]
                %270 = vst [vmem:[%s224 + $0xb0] sm:$0xff] %v269
                %v271 = vld [vmem:[%s223 + $0x170] sm:$0xff]
                %272 = vst [vmem:[%s224 + $0xb8] sm:$0xff] %v271
                %v273 = vld [vmem:[%s223 + $0x180] sm:$0xff]
                %274 = vst [vmem:[%s224 + $0xc0] sm:$0xff] %v273
                %v275 = vld [vmem:[%s223 + $0x190] sm:$0xff]
                %276 = vst [vmem:[%s224 + $0xc8] sm:$0xff] %v275
                %v277 = vld [vmem:[%s223 + $0x1a0] sm:$0xff]
                %278 = vst [vmem:[%s224 + $0xd0] sm:$0xff] %v277
                %v279 = vld [vmem:[%s223 + $0x1b0] sm:$0xff]
                %280 = vst [vmem:[%s224 + $0xd8] sm:$0xff] %v279
                %v281 = vld [vmem:[%s223 + $0x1c0] sm:$0xff]
                %282 = vst [vmem:[%s224 + $0xe0] sm:$0xff] %v281
                %v283 = vld [vmem:[%s223 + $0x1d0] sm:$0xff]
                %284 = vst [vmem:[%s224 + $0xe8] sm:$0xff] %v283
                %v285 = vld [vmem:[%s223 + $0x1e0] sm:$0xff]
                %286 = vst [vmem:[%s224 + $0xf0] sm:$0xff] %v285
                %v287 = vld [vmem:[%s223 + $0x1f0] sm:$0xff]
                %288 = vst [vmem:[%s224 + $0xf8] sm:$0xff] %v287
                %v289 = vld [vmem:[%s223 + $0x200] sm:$0xff]
                %290 = vst [vmem:[%s224 + $0x100] sm:$0xff] %v289
                %v291 = vld [vmem:[%s223 + $0x210] sm:$0xff]
                %292 = vst [vmem:[%s224 + $0x108] sm:$0xff] %v291
                %v293 = vld [vmem:[%s223 + $0x220] sm:$0xff]
                %294 = vst [vmem:[%s224 + $0x110] sm:$0xff] %v293
                %v295 = vld [vmem:[%s223 + $0x230] sm:$0xff]
                %296 = vst [vmem:[%s224 + $0x118] sm:$0xff] %v295
                %v297 = vld [vmem:[%s223 + $0x240] sm:$0xff]
                %298 = vst [vmem:[%s224 + $0x120] sm:$0xff] %v297
                %v299 = vld [vmem:[%s223 + $0x250] sm:$0xff]
                %300 = vst [vmem:[%s224 + $0x128] sm:$0xff] %v299
                %v301 = vld [vmem:[%s223 + $0x260] sm:$0xff]
                %302 = vst [vmem:[%s224 + $0x130] sm:$0xff] %v301
                %v303 = vld [vmem:[%s223 + $0x270] sm:$0xff]
                %304 = vst [vmem:[%s224 + $0x138] sm:$0xff] %v303
                %v305 = vld [vmem:[%s223 + $0x280] sm:$0xff]
                %306 = vst [vmem:[%s224 + $0x140] sm:$0xff] %v305
                %v307 = vld [vmem:[%s223 + $0x290] sm:$0xff]
                %308 = vst [vmem:[%s224 + $0x148] sm:$0xff] %v307
                %v309 = vld [vmem:[%s223 + $0x2a0] sm:$0xff]
                %310 = vst [vmem:[%s224 + $0x150] sm:$0xff] %v309
                %v311 = vld [vmem:[%s223 + $0x2b0] sm:$0xff]
                %312 = vst [vmem:[%s224 + $0x158] sm:$0xff] %v311
                %v313 = vld [vmem:[%s223 + $0x2c0] sm:$0xff]
                %314 = vst [vmem:[%s224 + $0x160] sm:$0xff] %v313
                %v315 = vld [vmem:[%s223 + $0x2d0] sm:$0xff]
                %316 = vst [vmem:[%s224 + $0x168] sm:$0xff] %v315
                %v317 = vld [vmem:[%s223 + $0x2e0] sm:$0xff]
                %318 = vst [vmem:[%s224 + $0x170] sm:$0xff] %v317
                %v319 = vld [vmem:[%s223 + $0x2f0] sm:$0xff]
                %320 = vst [vmem:[%s224 + $0x178] sm:$0xff] %v319
              $region41: #{_lambda_.24} parent=35 // loop_footer
                %s222 = sadd.s32 1, %s218
              $region42: #{_lambda_.24} parent=35 // loop_footer_branch
                %217 = sbr.rel target = $region38
              $region43: #{_lambda_.24} parent=35 // loop_exit
                _
            $region36: #{_lambda_.24} parent=27 // pred_fallthru
              _
          $region28: #{_lambda_.24} parent=23 // pred_fallthru
            _
          %429 = vnop
        $region24: #{_lambda_.24} parent=15 // pred_fallthru
          _
        // Predicated region
        $region59: #{_lambda_.24} parent=15 // pred_check
          %p430 = pneg %p105
        $region60: #{_lambda_.24} parent=15 // pred_check_branch
          %432 = sbr.rel (%p430) target = $region62
        $region61: #{_lambda_.24} parent=15 // pred_region
          %s433 = smul.u32 2, %s18
          %p434 = scmp.lt.s32.totalorder %s433, 3
          %s435 = scalar_select %p434, %s433, 3
          %s436 = scalar_lea.vmem %s2, %s435
          %s437 = smul.u32 2, %s18
        $region62: #{_lambda_.24} parent=15 // pred_fallthru
          _
        // Predicated region
        $region63: #{_lambda_.24} parent=15 // pred_check
          %p438 = pneg %p131
        $region64: #{_lambda_.24} parent=15 // pred_check_branch
          %440 = sbr.rel (%p438) target = $region66
        $region65: #{_lambda_.24} parent=15 // pred_region
          %s441 = smul.u32 2, %s18
          %p442 = scmp.lt.s32.totalorder %s441, 3
          %s443 = scalar_select %p442, %s441, 3
          %s444 = scalar_lea.vmem %s3, %s443
          %s445 = smul.u32 2, %s18
        $region66: #{_lambda_.24} parent=15 // pred_fallthru
          _
      $region16: #{_lambda_.24} parent=5 // pred_fallthru
        _
      %p446 = scmp.le.s32.totalorder 1, %s10
      %p447 = scmp.lt.s32.totalorder %s10, 13
      %p448 = pnand %p446, %p447
      %p449 = pneg %p448
      // Predicated region
      $region67: #{_lambda_.24} parent=5 // pred_check
        _
      $region68: #{_lambda_.24} parent=5 // pred_check_branch
        %451 = sbr.rel (%p448) target = $region70
      $region69: #{_lambda_.24} parent=5 // pred_region
        %s452 = ssub.s32 %s10, 1
        %s453 = sand.u32 %s72, 1
        %s454 = sand.u32 %s72, 1
        %s455 = smul.addr %s454, 384
        %s456 = scalar_lea.vmem [#allocation3], %s455
        // Predicated region
        $region71: #{_lambda_.24} parent=69 // pred_check
          %p457 = pneg %p85
        $region72: #{_lambda_.24} parent=69 // pred_check_branch
          %459 = sbr.rel (%p457) target = $region74
        $region73: #{_lambda_.24} parent=69 // pred_region
          _
        $region74: #{_lambda_.24} parent=69 // pred_fallthru
          _
        %s460 = smul.u32 3, %s22
        %p461 = scmp.lt.s32.totalorder %s20, 0
        %s462 = scalar_select %p461, %s20, 0
        %p463 = scmp.lt.s32.totalorder %s460, 17
        %s464 = scalar_select %p463, %s460, 17
        %s465 = smul.addr %s462, 18
        %s466 = sadd.s32 %s464, %s465
        %s467 = smul.addr %s466, 4
        %s468 = scalar_lea.vmem %s0, %s467
        %p469 = pneg %p57
        %p470 = pneg %p54
        %s471 = sand.u32 %s72, 1
        %s472 = sand.u32 %s72, 1
        %s473 = smul.addr %s472, 384
        %s474 = scalar_lea.vmem [#allocation3], %s473
        %p475 = pneg %p85
        %p476 = pneg %p82
        %s477 = smul.u32 2, %s21
        %p478 = scmp.lt.s32.totalorder %s477, 3
        %s479 = scalar_select %p478, %s477, 3
        %s480 = scalar_lea.vmem %s2, %s479
        %p481 = pneg %p111
        %p482 = pneg %p108
        %s483 = smul.u32 2, %s21
        %p484 = scmp.lt.s32.totalorder %s483, 3
        %s485 = scalar_select %p484, %s483, 3
        %s486 = scalar_lea.vmem %s3, %s485
        %p487 = pneg %p137
        %p488 = pneg %p134
        %p489 = pneg %p165
        %p490 = pneg %p162
        %s491 = smul.u32 2, %s21
        %p492 = scmp.lt.s32.totalorder %s20, 0
        %s493 = scalar_select %p492, %s20, 0
        %p494 = scmp.lt.s32.totalorder %s491, 3
        %s495 = scalar_select %p494, %s491, 3
        %s496 = smul.addr %s493, 4
        %s497 = sadd.s32 %s495, %s496
        %s498 = smul.addr %s497, 4
        %s499 = scalar_lea.vmem %s4, %s498
        %s500 = smul.u32 3, %s22
        %p501 = scmp.lt.s32.totalorder %s20, 0
        %s502 = scalar_select %p501, %s20, 0
        %p503 = scmp.lt.s32.totalorder %s500, 17
        %s504 = scalar_select %p503, %s500, 17
        %s505 = smul.addr %s502, 18
        %s506 = sadd.s32 %s504, %s505
        %s507 = smul.addr %s506, 4
        %s508 = scalar_lea.vmem %s0, %s507
        %s509 = smul.u32 3, %s22
        %s510 = smul.u32 48, %s22
        %s511 = smul.u32 2, %s21
        %s512 = smul.u32 2, %s21
        %p513 = scmp.lt.s32.totalorder %s512, 3
        %s514 = scalar_select %p513, %s512, 3
        %s515 = scalar_lea.vmem %s2, %s514
        %s516 = smul.u32 2, %s21
        %s517 = smul.u32 2, %s21
        %p518 = scmp.lt.s32.totalorder %s517, 3
        %s519 = scalar_select %p518, %s517, 3
        %s520 = scalar_lea.vmem %s3, %s519
        %s521 = smul.u32 2, %s21
        %s522 = smul.u32 2, %s21
        %p523 = scmp.lt.s32.totalorder %s20, 0
        %s524 = scalar_select %p523, %s20, 0
        %p525 = scmp.lt.s32.totalorder %s522, 3
        %s526 = scalar_select %p525, %s522, 3
        %s527 = smul.addr %s524, 4
        %s528 = sadd.s32 %s526, %s527
        %s529 = smul.addr %s528, 4
        %s530 = scalar_lea.vmem %s4, %s529
        %s531 = smul.u32 2, %s21
        %p533 = scmp.eq.s32.totalorder %s22, 0
        // Predicated region
        $region75: #{_lambda_.24} parent=69 // pred_check
          %p534 = pneg %p533
        $region76: #{_lambda_.24} parent=69 // pred_check_branch
          %536 = sbr.rel (%p534) target = $region78
        $region77: #{_lambda_.24} parent=69 // pred_region
          %537 = vst [vmem:[#allocation2] sm:$0xff] 0.0
          %538 = vst [vmem:[#allocation2 + $0x8] sm:$0xff] 0.0
        $region78: #{_lambda_.24} parent=69 // pred_fallthru
          _
        %v539 = vld [vmem:[#allocation2] sm:$0xff]
        %v540 = vld [vmem:[#allocation2 + $0x8] sm:$0xff]
        %v541 = vld [vmem:[%s508] sm:$0xff]
        %v542 = vld [vmem:[%s508 + $0x8] sm:$0xf]
        %v543 = vld [vmem:[%s456] sm:$0xff]
        %v544 = vld [vmem:[%s456 + $0x8] sm:$0xff]
        %v545 = vld [vmem:[%s456 + $0x10] sm:$0xff]
        %v546 = vld [vmem:[%s456 + $0x18] sm:$0xff]
        %v547 = vld [vmem:[%s456 + $0x20] sm:$0xff]
        %v548 = vld [vmem:[%s456 + $0x28] sm:$0xff]
        %v549 = vld [vmem:[%s456 + $0x30] sm:$0xff]
        %v550 = vld [vmem:[%s456 + $0x38] sm:$0xff]
        %v551 = vld [vmem:[%s456 + $0x40] sm:$0xff]
        %v552 = vld [vmem:[%s456 + $0x48] sm:$0xff]
        %v553 = vld [vmem:[%s456 + $0x50] sm:$0xff]
        %v554 = vld [vmem:[%s456 + $0x58] sm:$0xff]
        %v555 = vld [vmem:[%s456 + $0x60] sm:$0xff]
        %v556 = vld [vmem:[%s456 + $0x68] sm:$0xff]
        %v557 = vld [vmem:[%s456 + $0x70] sm:$0xff]
        %v558 = vld [vmem:[%s456 + $0x78] sm:$0xff]
        %v559 = vld [vmem:[%s456 + $0x80] sm:$0xff]
        %v560 = vld [vmem:[%s456 + $0x88] sm:$0xff]
        %v561 = vld [vmem:[%s456 + $0x90] sm:$0xff]
        %v562 = vld [vmem:[%s456 + $0x98] sm:$0xff]
        %v563 = vld [vmem:[%s456 + $0xa0] sm:$0xff]
        %v564 = vld [vmem:[%s456 + $0xa8] sm:$0xff]
        %v565 = vld [vmem:[%s456 + $0xb0] sm:$0xff]
        %v566 = vld [vmem:[%s456 + $0xb8] sm:$0xff]
        %v567 = vld [vmem:[%s456 + $0xc0] sm:$0xff]
        %v568 = vld [vmem:[%s456 + $0xc8] sm:$0xff]
        %v569 = vld [vmem:[%s456 + $0xd0] sm:$0xff]
        %v570 = vld [vmem:[%s456 + $0xd8] sm:$0xff]
        %v571 = vld [vmem:[%s456 + $0xe0] sm:$0xff]
        %v572 = vld [vmem:[%s456 + $0xe8] sm:$0xff]
        %v573 = vld [vmem:[%s456 + $0xf0] sm:$0xff]
        %v574 = vld [vmem:[%s456 + $0xf8] sm:$0xff]
        %v575 = vld [vmem:[%s456 + $0x100] sm:$0xff]
        %v576 = vld [vmem:[%s456 + $0x108] sm:$0xff]
        %v577 = vld [vmem:[%s456 + $0x110] sm:$0xff]
        %v578 = vld [vmem:[%s456 + $0x118] sm:$0xff]
        %v579 = vld [vmem:[%s456 + $0x120] sm:$0xff]
        %v580 = vld [vmem:[%s456 + $0x128] sm:$0xff]
        %v581 = vld [vmem:[%s456 + $0x130] sm:$0xff]
        %v582 = vld [vmem:[%s456 + $0x138] sm:$0xff]
        %v583 = vld [vmem:[%s456 + $0x140] sm:$0xff]
        %v584 = vld [vmem:[%s456 + $0x148] sm:$0xff]
        %v585 = vld [vmem:[%s456 + $0x150] sm:$0xff]
        %v586 = vld [vmem:[%s456 + $0x158] sm:$0xff]
        %v587 = vld [vmem:[%s456 + $0x160] sm:$0xff]
        %v588 = vld [vmem:[%s456 + $0x168] sm:$0xff]
        %v589 = vld [vmem:[%s456 + $0x170] sm:$0xff]
        %v590 = vld [vmem:[%s456 + $0x178] sm:$0xff]
        %v593 = vunpack.c.l.b16 %v541
        %v594 = vunpack.c.h.b16 %v541
        %v595 = vunpack.c.l.b16 %v542
        %v596 = vpack.c.b16 %v593, %v593
        %v597 = vpack.c.b16 %v594, %v594
        %v598 = vpack.c.b16 %v595, %v595
        %v650 = vunpack.c.l.b16 %v543
        %v651 = vunpack.c.h.b16 %v543
        %v652 = vunpack.c.l.b16 %v544
        %v653 = vunpack.c.h.b16 %v544
        %v654 = vunpack.c.l.b16 %v545
        %v655 = vunpack.c.h.b16 %v545
        %v656 = vunpack.c.l.b16 %v546
        %v657 = vunpack.c.h.b16 %v546
        %v658 = vunpack.c.l.b16 %v547
        %v659 = vunpack.c.h.b16 %v547
        %v660 = vunpack.c.l.b16 %v548
        %v661 = vunpack.c.h.b16 %v548
        %v662 = vunpack.c.l.b16 %v549
        %v663 = vunpack.c.h.b16 %v549
        %v664 = vunpack.c.l.b16 %v550
        %v665 = vunpack.c.h.b16 %v550
        %v666 = vunpack.c.l.b16 %v551
        %v667 = vunpack.c.h.b16 %v551
        %v668 = vunpack.c.l.b16 %v552
        %v669 = vunpack.c.h.b16 %v552
        %v670 = vunpack.c.l.b16 %v553
        %v671 = vunpack.c.h.b16 %v553
        %v672 = vunpack.c.l.b16 %v554
        %v673 = vunpack.c.h.b16 %v554
        %v674 = vunpack.c.l.b16 %v555
        %v675 = vunpack.c.h.b16 %v555
        %v676 = vunpack.c.l.b16 %v556
        %v677 = vunpack.c.h.b16 %v556
        %v678 = vunpack.c.l.b16 %v557
        %v679 = vunpack.c.h.b16 %v557
        %v680 = vunpack.c.l.b16 %v558
        %v681 = vunpack.c.h.b16 %v558
        %v682 = vunpack.c.l.b16 %v559
        %v683 = vunpack.c.h.b16 %v559
        %v684 = vunpack.c.l.b16 %v560
        %v685 = vunpack.c.h.b16 %v560
        %v686 = vunpack.c.l.b16 %v561
        %v687 = vunpack.c.h.b16 %v561
        %v688 = vunpack.c.l.b16 %v562
        %v689 = vunpack.c.h.b16 %v562
        %v690 = vunpack.c.l.b16 %v563
        %v691 = vunpack.c.h.b16 %v563
        %v692 = vunpack.c.l.b16 %v564
        %v693 = vunpack.c.h.b16 %v564
        %v694 = vunpack.c.l.b16 %v565
        %v695 = vunpack.c.h.b16 %v565
        %v696 = vunpack.c.l.b16 %v566
        %v697 = vunpack.c.h.b16 %v566
        %v698 = vunpack.c.l.b16 %v567
        %v699 = vunpack.c.h.b16 %v567
        %v700 = vunpack.c.l.b16 %v568
        %v701 = vunpack.c.h.b16 %v568
        %v702 = vunpack.c.l.b16 %v569
        %v703 = vunpack.c.h.b16 %v569
        %v704 = vunpack.c.l.b16 %v570
        %v705 = vunpack.c.h.b16 %v570
        %v706 = vunpack.c.l.b16 %v571
        %v707 = vunpack.c.h.b16 %v571
        %v708 = vunpack.c.l.b16 %v572
        %v709 = vunpack.c.h.b16 %v572
        %v710 = vunpack.c.l.b16 %v573
        %v711 = vunpack.c.h.b16 %v573
        %v712 = vunpack.c.l.b16 %v574
        %v713 = vunpack.c.h.b16 %v574
        %v714 = vunpack.c.l.b16 %v575
        %v715 = vunpack.c.h.b16 %v575
        %v716 = vunpack.c.l.b16 %v576
        %v717 = vunpack.c.h.b16 %v576
        %v718 = vunpack.c.l.b16 %v577
        %v719 = vunpack.c.h.b16 %v577
        %v720 = vunpack.c.l.b16 %v578
        %v721 = vunpack.c.h.b16 %v578
        %v722 = vunpack.c.l.b16 %v579
        %v723 = vunpack.c.h.b16 %v579
        %v724 = vunpack.c.l.b16 %v580
        %v725 = vunpack.c.h.b16 %v580
        %v726 = vunpack.c.l.b16 %v581
        %v727 = vunpack.c.h.b16 %v581
        %v728 = vunpack.c.l.b16 %v582
        %v729 = vunpack.c.h.b16 %v582
        %v730 = vunpack.c.l.b16 %v583
        %v731 = vunpack.c.h.b16 %v583
        %v732 = vunpack.c.l.b16 %v584
        %v733 = vunpack.c.h.b16 %v584
        %v734 = vunpack.c.l.b16 %v585
        %v735 = vunpack.c.h.b16 %v585
        %v736 = vunpack.c.l.b16 %v586
        %v737 = vunpack.c.h.b16 %v586
        %v738 = vunpack.c.l.b16 %v587
        %v739 = vunpack.c.h.b16 %v587
        %v740 = vunpack.c.l.b16 %v588
        %v741 = vunpack.c.h.b16 %v588
        %v742 = vunpack.c.l.b16 %v589
        %v743 = vunpack.c.h.b16 %v589
        %v744 = vunpack.c.l.b16 %v590
        %v745 = vunpack.c.h.b16 %v590
        %v746 = vpack.c.b16 %v652, %v650
        %v747 = vpack.c.b16 %v653, %v651
        %v748 = vpack.c.b16 %v656, %v654
        %v749 = vpack.c.b16 %v657, %v655
        %v750 = vpack.c.b16 %v660, %v658
        %v751 = vpack.c.b16 %v661, %v659
        %v752 = vpack.c.b16 %v664, %v662
        %v753 = vpack.c.b16 %v665, %v663
        %v754 = vpack.c.b16 %v668, %v666
        %v755 = vpack.c.b16 %v669, %v667
        %v756 = vpack.c.b16 %v672, %v670
        %v757 = vpack.c.b16 %v673, %v671
        %v758 = vpack.c.b16 %v676, %v674
        %v759 = vpack.c.b16 %v677, %v675
        %v760 = vpack.c.b16 %v680, %v678
        %v761 = vpack.c.b16 %v681, %v679
        %v762 = vpack.c.b16 %v684, %v682
        %v763 = vpack.c.b16 %v685, %v683
        %v764 = vpack.c.b16 %v688, %v686
        %v765 = vpack.c.b16 %v689, %v687
        %v766 = vpack.c.b16 %v692, %v690
        %v767 = vpack.c.b16 %v693, %v691
        %v768 = vpack.c.b16 %v696, %v694
        %v769 = vpack.c.b16 %v697, %v695
        %v770 = vpack.c.b16 %v700, %v698
        %v771 = vpack.c.b16 %v701, %v699
        %v772 = vpack.c.b16 %v704, %v702
        %v773 = vpack.c.b16 %v705, %v703
        %v774 = vpack.c.b16 %v708, %v706
        %v775 = vpack.c.b16 %v709, %v707
        %v776 = vpack.c.b16 %v712, %v710
        %v777 = vpack.c.b16 %v713, %v711
        %v778 = vpack.c.b16 %v716, %v714
        %v779 = vpack.c.b16 %v717, %v715
        %v780 = vpack.c.b16 %v720, %v718
        %v781 = vpack.c.b16 %v721, %v719
        %v782 = vpack.c.b16 %v724, %v722
        %v783 = vpack.c.b16 %v725, %v723
        %v784 = vpack.c.b16 %v728, %v726
        %v785 = vpack.c.b16 %v729, %v727
        %v786 = vpack.c.b16 %v732, %v730
        %v787 = vpack.c.b16 %v733, %v731
        %v788 = vpack.c.b16 %v736, %v734
        %v789 = vpack.c.b16 %v737, %v735
        %v790 = vpack.c.b16 %v740, %v738
        %v791 = vpack.c.b16 %v741, %v739
        %v792 = vpack.c.b16 %v744, %v742
        %v793 = vpack.c.b16 %v745, %v743
        %842 = vmatprep.subr.bf16.mxu0 %v747
        %843 = vmatpush1.bf16.msra.mxu0 %v746
        %844 = vmatprep.subr.bf16.mxu0 %v749
        %845 = vmatpush1.bf16.msra.mxu0 %v748
        %846 = vmatprep.subr.bf16.mxu0 %v751
        %847 = vmatpush1.bf16.msra.mxu0 %v750
        %848 = vmatprep.subr.bf16.mxu0 %v753
        %849 = vmatpush1.bf16.msra.mxu0 %v752
        %850 = vmatprep.subr.bf16.mxu0 %v755
        %851 = vmatpush1.bf16.msra.mxu0 %v754
        %852 = vmatprep.subr.bf16.mxu0 %v757
        %853 = vmatpush1.bf16.msra.mxu0 %v756
        %854 = vmatprep.subr.bf16.mxu0 %v759
        %855 = vmatpush1.bf16.msra.mxu0 %v758
        %856 = vmatprep.subr.bf16.mxu0 %v761
        %857 = vmatpush1.bf16.msra.mxu0 %v760
        %858 = vmatprep.subr.bf16.mxu0 %v763
        %859 = vmatpush1.bf16.msra.mxu0 %v762
        %860 = vmatprep.subr.bf16.mxu0 %v765
        %861 = vmatpush1.bf16.msra.mxu0 %v764
        %862 = vmatprep.subr.bf16.mxu0 %v767
        %863 = vmatpush1.bf16.msra.mxu0 %v766
        %864 = vmatprep.subr.bf16.mxu0 %v769
        %865 = vmatpush1.bf16.msra.mxu0 %v768
        %866 = vmatprep.subr.bf16.mxu0 %v771
        %867 = vmatpush1.bf16.msra.mxu0 %v770
        %868 = vmatprep.subr.bf16.mxu0 %v773
        %869 = vmatpush1.bf16.msra.mxu0 %v772
        %870 = vmatprep.subr.bf16.mxu0 %v775
        %871 = vmatpush1.bf16.msra.mxu0 %v774
        %872 = vmatprep.subr.bf16.mxu0 %v777
        %873 = vmatpush1.bf16.msra.mxu0 %v776
        %874 = vmatprep.mubr.bf16.mxu0 %v597
        %875 = vmatmul.mubr.bf16.gmra.mrb[0].mxu0 %v596
        %v876 = vpop.f32.mrb[0].mxu0
        %v877 = vadd.f32 0.0, %v876
        %v878 = vpop.f32.mrb[0].mxu0
        %v879 = vadd.f32 0.0, %v878
        %v880 = vpop.f32.mrb[0].mxu0
        %v881 = vpop.f32.mrb[0].mxu0
        %882 = vdwg.mxu0
        %883 = vmatprep.subr.bf16.mxu0 %v779
        %884 = vmatpush1.bf16.msra.mxu0 %v778
        %885 = vmatprep.subr.bf16.mxu0 %v781
        %886 = vmatpush1.bf16.msra.mxu0 %v780
        %887 = vmatprep.subr.bf16.mxu0 %v783
        %888 = vmatpush1.bf16.msra.mxu0 %v782
        %889 = vmatprep.subr.bf16.mxu0 %v785
        %890 = vmatpush1.bf16.msra.mxu0 %v784
        %891 = vmatprep.subr.bf16.mxu0 %v787
        %892 = vmatpush1.bf16.msra.mxu0 %v786
        %893 = vmatprep.subr.bf16.mxu0 %v789
        %894 = vmatpush1.bf16.msra.mxu0 %v788
        %895 = vmatprep.subr.bf16.mxu0 %v791
        %896 = vmatpush1.bf16.msra.mxu0 %v790
        %897 = vmatprep.subr.bf16.mxu0 %v793
        %898 = vmatpush1.bf16.msra.mxu0 %v792
        %899 = vmatprep.subr.bf16.mxu0 0
        %900 = vmatpush1.bf16.msra.mxu0 0
        %901 = vmatprep.subr.bf16.mxu0 0
        %902 = vmatpush1.bf16.msra.mxu0 0
        %903 = vmatprep.subr.bf16.mxu0 0
        %904 = vmatpush1.bf16.msra.mxu0 0
        %905 = vmatprep.subr.bf16.mxu0 0
        %906 = vmatpush1.bf16.msra.mxu0 0
        %907 = vmatprep.subr.bf16.mxu0 0
        %908 = vmatpush1.bf16.msra.mxu0 0
        %909 = vmatprep.subr.bf16.mxu0 0
        %910 = vmatpush1.bf16.msra.mxu0 0
        %911 = vmatprep.subr.bf16.mxu0 0
        %912 = vmatpush1.bf16.msra.mxu0 0
        %913 = vmatprep.subr.bf16.mxu0 0
        %914 = vmatpush1.bf16.msra.mxu0 0
        %915 = vmatprep.mubr.bf16.mxu0 0
        %916 = vmatmul.mubr.bf16.gmra.mrb[0].mxu0 %v598
        %v917 = vpop.f32.mrb[0].mxu0
        %v918 = vadd.f32 %v877, %v917
        %v919 = vpop.f32.mrb[0].mxu0
        %v920 = vadd.f32 %v879, %v919
        %v921 = vpop.f32.mrb[0].mxu0
        %v922 = vpop.f32.mrb[0].mxu0
        %923 = vdwg.mxu0
        %v924 = vadd.f32 %v539, %v918
        %v925 = vadd.f32 %v540, %v920
        %926 = vst [vmem:[#allocation2] sm:$0xff] %v924
        %927 = vst [vmem:[#allocation2 + $0x8] sm:$0xff] %v925
        %p928 = scmp.eq.s32.totalorder %s22, 5
        // Predicated region
        $region79: #{_lambda_.24} parent=69 // pred_check
          %p929 = pneg %p928
        $region80: #{_lambda_.24} parent=69 // pred_check_branch
          %931 = sbr.rel (%p929) target = $region82
        $region81: #{_lambda_.24} parent=69 // pred_region
          %v932 = vld [vmem:[#allocation2] sm:$0xff]
          %v933 = vld [vmem:[#allocation2 + $0x8] sm:$0xff]
          %v934 = vld [vmem:[%s515] sm:$0x3]
          %v936 = vlaneseq
          %v937 = vshrl.u32 %v936, 7
          %v938 = vsub.s32 0, %v937
          %v939 = vrot.slane %v934, %v938
          %v940 = vlaneseq
          %v941 = vshrl.u32 %v940, 7
          %v942 = vsub.s32 1, %v941
          %v943 = vrot.slane %v934, %v942
          %v946 = vmul.f32 %v932, %v939
          %v947 = vmul.f32 %v933, %v943
          %v948 = vld [vmem:[%s520] sm:$0x3]
          %v950 = vlaneseq
          %v951 = vshrl.u32 %v950, 7
          %v952 = vsub.s32 0, %v951
          %v953 = vrot.slane %v948, %v952
          %v954 = vlaneseq
          %v955 = vshrl.u32 %v954, 7
          %v956 = vsub.s32 1, %v955
          %v957 = vrot.slane %v948, %v956
          %v960 = vadd.f32 %v946, %v953
          %v961 = vadd.f32 %v947, %v957
          %v962 = vmax.f32 %v960, 0.0
          %v963 = vmax.f32 %v961, 0.0
          %v964 = vpack.c.bf16 %v962, %v962
          %v965 = vpack.c.bf16 %v963, %v963
          %v968 = vunpack.c.l.b16 %v964
          %v969 = vunpack.c.l.b16 %v965
          %v970 = vpack.c.b16 %v969, %v968
          %972 = vst [vmem:[%s530] sm:$0xff] %v970
        $region82: #{_lambda_.24} parent=69 // pred_fallthru
          _
        %s973 = smul.u32 2, %s21
        %p974 = scmp.lt.s32.totalorder %s20, 0
        %s975 = scalar_select %p974, %s20, 0
        %p976 = scmp.lt.s32.totalorder %s973, 3
        %s977 = scalar_select %p976, %s973, 3
        %s978 = smul.addr %s975, 4
        %s979 = sadd.s32 %s977, %s978
        %s980 = smul.addr %s979, 4
        %s981 = scalar_lea.vmem %s4, %s980
        // Predicated region
        $region83: #{_lambda_.24} parent=69 // pred_check
          %p982 = pneg %p162
        $region84: #{_lambda_.24} parent=69 // pred_check_branch
          %984 = sbr.rel (%p982) target = $region86
        $region85: #{_lambda_.24} parent=69 // pred_region
          %s985 = smul.u32 2, %s21
        $region86: #{_lambda_.24} parent=69 // pred_fallthru
          _
      $region70: #{_lambda_.24} parent=5 // pred_fallthru
        _
      %p986 = scmp.le.s32.totalorder 2, %s10
      // Predicated region
      $region87: #{_lambda_.24} parent=5 // pred_check
        %p987 = pneg %p986
      $region88: #{_lambda_.24} parent=5 // pred_check_branch
        %989 = sbr.rel (%p987) target = $region90
      $region89: #{_lambda_.24} parent=5 // pred_region
        %s990 = ssub.s32 %s10, 2
        // Predicated region
        $region91: #{_lambda_.24} parent=89 // pred_check
          %p991 = pneg %p168
        $region92: #{_lambda_.24} parent=89 // pred_check_branch
          %993 = sbr.rel (%p991) target = $region94
        $region93: #{_lambda_.24} parent=89 // pred_region
          %s994 = smul.u32 2, %s24
          %p995 = scmp.lt.s32.totalorder %s23, 0
          %s996 = scalar_select %p995, %s23, 0
          %p997 = scmp.lt.s32.totalorder %s994, 3
          %s998 = scalar_select %p997, %s994, 3
          %s999 = smul.addr %s996, 4
          %s1000 = sadd.s32 %s998, %s999
          %s1001 = smul.addr %s1000, 4
          %s1002 = scalar_lea.vmem %s4, %s1001
        $region94: #{_lambda_.24} parent=89 // pred_fallthru
          _
      $region90: #{_lambda_.24} parent=5 // pred_fallthru
        _
    $region6: #{_lambda_.24} parent=1 // loop_footer
      %s14 = sadd.s32 1, %s10
    $region7: #{_lambda_.24} parent=1 // loop_footer_branch
      %9 = sbr.rel target = $region3
    $region8: #{_lambda_.24} parent=1 // loop_exit
      _

// kernel: _lambda_.25
$region0: #{_lambda_.25}
  #allocation0 [shape = 'u32[]', space=smem, size = 0x4, offset = 0x4, fixed_abs, tag = 'smem constant byte address 0x4 - core index']
  #allocation1 [shape = 'u32[144,128]{1,0:T(1,128)}', space=vmem, size = 0x12000, scoped, tag = 'internal scratch']
  #allocation2 [shape = 'f32[8,256]{1,0:T(8,128)}', space=vmem, size = 0x2000, scoped, tag = 'scratch operand']
  %s0 = inlined_call_operand.vmem [shape: bf16[8,256], index: 0, kind: input, shape index: {}]
  %s1 = inlined_call_operand.vmem [shape: bf16[256,512], index: 1, kind: input, shape index: {}]
  %s2 = inlined_call_operand.vmem [shape: f32[1,512], index: 2, kind: input, shape index: {}]
  %s3 = inlined_call_operand.vmem [shape: f32[1,512], index: 3, kind: input, shape index: {}]
  %s4 = inlined_call_operand.vmem [shape: bf16[8,512], index: 4, kind: output, shape index: {}]
  %s5 = sld [smem:[#allocation0]]
  $region95: #{_lambda_.25} parent=0
    _
  %s7 = ssub.s32 1, %s5
  %s8 = scalar_select 0, %s7, %s5
  $region1: #{_lambda_.25} parent=0
    #allocation3 [shape = 'u8[262144]{0}', space=vmem, size = 0x40000, scoped, tag = 'input window, operand 1']
    loop: start=0, step=1, limit=4
    $region2: #{_lambda_.25} parent=1 // loop_pre_header
      _
    $region3: #{_lambda_.25} parent=1 // loop_header
      %s10 = sphi 0, %s14
      %p11 = scmp.ge.s32.totalorder %s10, 4
      %s17 = sphi 0, %s36
      %s18 = sphi 0, %s32
      %s19 = sphi 0, %s28
      %s20 = sphi 0, %s17
      %s21 = sphi 0, %s18
      %s22 = sphi 0, %s19
      %s23 = sphi 0, %s20
      %s24 = sphi 0, %s21
      %s25 = sphi 0, %s22
      %s41 = sphi 0, %s43
      %s44 = sphi 0, %s41
      %s45 = sphi 0, %s44
      %s61 = sphi 0, %s45
      %s69 = sphi 0, %s71
      %s72 = sphi 0, %s69
      %s73 = sphi 0, %s72
      %s89 = sphi 0, %s73
      %s95 = sphi 0, %s97
      %s98 = sphi 0, %s95
      %s99 = sphi 0, %s98
      %s115 = sphi 0, %s99
      %s121 = sphi 0, %s123
      %s124 = sphi 0, %s121
      %s125 = sphi 0, %s124
      %s141 = sphi 0, %s125
      %s149 = sphi 0, %s151
      %s152 = sphi 0, %s149
      %s153 = sphi 0, %s152
      %s169 = sphi 0, %s153
    $region4: #{_lambda_.25} parent=1 // loop_header_branch
      %13 = sbr.rel (%p11) target = $region8
    $region5: #{_lambda_.25} parent=1 // loop_body
      %s15 = ssub.s32 %s10, 1
      %s16 = ssub.s32 %s10, 2
      %s26 = sadd.s32 1, %s19
      %p27 = scmp.ge.s32.totalorder %s26, 1
      %s28 = scalar_select %p27, 0, %s26
      %s29 = sadd.s32 1, %s18
      %s30 = scalar_select %p27, %s29, %s18
      %p31 = scmp.ge.s32.totalorder %s30, 2
      %s32 = scalar_select %p31, 0, %s30
      %s33 = sadd.s32 1, %s17
      %s34 = scalar_select %p31, %s33, %s17
      %p35 = scmp.ge.s32.totalorder %s34, 1
      %s36 = scalar_select %p35, 0, %s34
      %s37 = ssub.s32 %s17, %s36
      %s38 = ssub.s32 %s19, %s28
      %s39 = sor.u32 %s37, %s38
      %p40 = scmp.eq.s32.totalorder %s39, 0
      %s42 = sadd.s32 %s41, 1
      %s43 = scalar_select %p40, %s41, %s42
      %p46 = pneg %p40
      %p47 = scmp.eq.s32.totalorder %s10, 1
      %p48 = por %p46, %p47
      %p49 = scmp.ne.s32.totalorder %s41, %s44
      %p50 = scmp.eq.s32.totalorder %s10, 0
      %p51 = por %p49, %p50
      %p52 = scmp.ne.s32.totalorder %s41, %s44
      %p53 = scmp.eq.s32.totalorder %s15, 1
      %p54 = por %p52, %p53
      %p55 = scmp.ne.s32.totalorder %s44, %s45
      %p56 = scmp.eq.s32.totalorder %s15, 0
      %p57 = por %p55, %p56
      %p58 = scmp.ne.s32.totalorder %s44, %s45
      %p59 = scmp.eq.s32.totalorder %s16, 1
      %p60 = por %p58, %p59
      %p62 = scmp.ne.s32.totalorder %s45, %s61
      %p63 = scmp.eq.s32.totalorder %s16, 0
      %p64 = por %p62, %p63
      %s65 = ssub.s32 %s19, %s28
      %s66 = ssub.s32 %s18, %s32
      %s67 = sor.u32 %s65, %s66
      %p68 = scmp.eq.s32.totalorder %s67, 0
      %s70 = sadd.s32 %s69, 1
      %s71 = scalar_select %p68, %s69, %s70
      %p74 = pneg %p68
      %p75 = scmp.eq.s32.totalorder %s10, 1
      %p76 = por %p74, %p75
      %p77 = scmp.ne.s32.totalorder %s69, %s72
      %p78 = scmp.eq.s32.totalorder %s10, 0
      %p79 = por %p77, %p78
      %p80 = scmp.ne.s32.totalorder %s69, %s72
      %p81 = scmp.eq.s32.totalorder %s15, 1
      %p82 = por %p80, %p81
      %p83 = scmp.ne.s32.totalorder %s72, %s73
      %p84 = scmp.eq.s32.totalorder %s15, 0
      %p85 = por %p83, %p84
      %p86 = scmp.ne.s32.totalorder %s72, %s73
      %p87 = scmp.eq.s32.totalorder %s16, 1
      %p88 = por %p86, %p87
      %p90 = scmp.ne.s32.totalorder %s73, %s89
      %p91 = scmp.eq.s32.totalorder %s16, 0
      %p92 = por %p90, %p91
      %s93 = ssub.s32 %s18, %s32
      %p94 = scmp.eq.s32.totalorder %s93, 0
      %s96 = sadd.s32 %s95, 1
      %s97 = scalar_select %p94, %s95, %s96
      %p100 = pneg %p94
      %p101 = scmp.eq.s32.totalorder %s10, 1
      %p102 = por %p100, %p101
      %p103 = scmp.ne.s32.totalorder %s95, %s98
      %p104 = scmp.eq.s32.totalorder %s10, 0
      %p105 = por %p103, %p104
      %p106 = scmp.ne.s32.totalorder %s95, %s98
      %p107 = scmp.eq.s32.totalorder %s15, 1
      %p108 = por %p106, %p107
      %p109 = scmp.ne.s32.totalorder %s98, %s99
      %p110 = scmp.eq.s32.totalorder %s15, 0
      %p111 = por %p109, %p110
      %p112 = scmp.ne.s32.totalorder %s98, %s99
      %p113 = scmp.eq.s32.totalorder %s16, 1
      %p114 = por %p112, %p113
      %p116 = scmp.ne.s32.totalorder %s99, %s115
      %p117 = scmp.eq.s32.totalorder %s16, 0
      %p118 = por %p116, %p117
      %s119 = ssub.s32 %s18, %s32
      %p120 = scmp.eq.s32.totalorder %s119, 0
      %s122 = sadd.s32 %s121, 1
      %s123 = scalar_select %p120, %s121, %s122
      %p126 = pneg %p120
      %p127 = scmp.eq.s32.totalorder %s10, 1
      %p128 = por %p126, %p127
      %p129 = scmp.ne.s32.totalorder %s121, %s124
      %p130 = scmp.eq.s32.totalorder %s10, 0
      %p131 = por %p129, %p130
      %p132 = scmp.ne.s32.totalorder %s121, %s124
      %p133 = scmp.eq.s32.totalorder %s15, 1
      %p134 = por %p132, %p133
      %p135 = scmp.ne.s32.totalorder %s124, %s125
      %p136 = scmp.eq.s32.totalorder %s15, 0
      %p137 = por %p135, %p136
      %p138 = scmp.ne.s32.totalorder %s124, %s125
      %p139 = scmp.eq.s32.totalorder %s16, 1
      %p140 = por %p138, %p139
      %p142 = scmp.ne.s32.totalorder %s125, %s141
      %p143 = scmp.eq.s32.totalorder %s16, 0
      %p144 = por %p142, %p143
      %s145 = ssub.s32 %s17, %s36
      %s146 = ssub.s32 %s18, %s32
      %s147 = sor.u32 %s145, %s146
      %p148 = scmp.eq.s32.totalorder %s147, 0
      %s150 = sadd.s32 %s149, 1
      %s151 = scalar_select %p148, %s149, %s150
      %p154 = pneg %p148
      %p155 = scmp.eq.s32.totalorder %s10, 1
      %p156 = por %p154, %p155
      %p157 = scmp.ne.s32.totalorder %s149, %s152
      %p158 = scmp.eq.s32.totalorder %s10, 0
      %p159 = por %p157, %p158
      %p160 = scmp.ne.s32.totalorder %s149, %s152
      %p161 = scmp.eq.s32.totalorder %s15, 1
      %p162 = por %p160, %p161
      %p163 = scmp.ne.s32.totalorder %s152, %s153
      %p164 = scmp.eq.s32.totalorder %s15, 0
      %p165 = por %p163, %p164
      %p166 = scmp.ne.s32.totalorder %s152, %s153
      %p167 = scmp.eq.s32.totalorder %s16, 1
      %p168 = por %p166, %p167
      %p170 = scmp.ne.s32.totalorder %s153, %s169
      %p171 = scmp.eq.s32.totalorder %s16, 0
      %p172 = por %p170, %p171
      %p173 = scmp.le.s32.totalorder 1, %s10
      %p174 = scmp.lt.s32.totalorder %s10, 3
      %p175 = pnand %p173, %p174
      %p176 = pneg %p175
      // Predicated region
      $region9: #{_lambda_.25} parent=5 // pred_check
        _
      $region10: #{_lambda_.25} parent=5 // pred_check_branch
        %178 = sbr.rel (%p175) target = $region12
      $region11: #{_lambda_.25} parent=5 // pred_region
        %s179 = ssub.s32 %s10, 1
        // Predicated region
        $region13: #{_lambda_.25} parent=11 // pred_check
          %p180 = pneg %p57
        $region14: #{_lambda_.25} parent=11 // pred_check_branch
          %182 = sbr.rel (%p180) target = $region16
        $region15: #{_lambda_.25} parent=11 // pred_region
          %s183 = smul.u32 2, %s22
          %p184 = scmp.lt.s32.totalorder %s20, 0
          %s185 = scalar_select %p184, %s20, 0
          %p186 = scmp.lt.s32.totalorder %s183, 1
          %s187 = scalar_select %p186, %s183, 1
          %s188 = smul.addr %s185, 2
          %s189 = sadd.s32 %s187, %s188
          %s190 = smul.addr %s189, 4
          %s191 = scalar_lea.vmem %s0, %s190
          %s192 = smul.u32 2, %s22
        $region16: #{_lambda_.25} parent=11 // pred_fallthru
          _
      $region12: #{_lambda_.25} parent=5 // pred_fallthru
        _
      %p193 = scmp.lt.s32.totalorder %s10, 2
      // Predicated region
      $region17: #{_lambda_.25} parent=5 // pred_check
        %p194 = pneg %p193
      $region18: #{_lambda_.25} parent=5 // pred_check_branch
        %196 = sbr.rel (%p194) target = $region20
      $region19: #{_lambda_.25} parent=5 // pred_region
        // Predicated region
        $region21: #{_lambda_.25} parent=19 // pred_check
          %p197 = pneg %p79
        $region22: #{_lambda_.25} parent=19 // pred_check_branch
          %199 = sbr.rel (%p197) target = $region24
        $region23: #{_lambda_.25} parent=19 // pred_region
          %s200 = sand.u32 %s69, 1
          %s201 = sand.u32 %s69, 1
          %s202 = smul.addr %s201, 256
          %s203 = scalar_lea.vmem [#allocation3], %s202
          %s204 = smul.u32 32, %s19
          %s205 = smul.u32 2, %s18
          %s206 = smul.addr %s204, 4
          %s207 = sadd.s32 %s205, %s206
          %s208 = smul.addr %s207, 4
          %s209 = scalar_lea.vmem %s1, %s208
          // Predicated region
          $region25: #{_lambda_.25} parent=23 // pred_check
            _
          $region26: #{_lambda_.25} parent=23 // pred_check_branch
            %211 = sbr.rel (0) target = $region28
          $region27: #{_lambda_.25} parent=23 // pred_region
            // Predicated region
            $region29: #{_lambda_.25} parent=27 // pred_check
              _
            $region30: #{_lambda_.25} parent=27 // pred_check_branch
              %213 = sbr.rel (0) target = $region32
            $region31: #{_lambda_.25} parent=27 // pred_region
              // Predicated region
              $region44: #{_lambda_.25} parent=31 // pred_check
                _
              $region45: #{_lambda_.25} parent=31 // pred_check_branch
                %290 = sbr.rel (0) target = $region47
              $region46: #{_lambda_.25} parent=31 // pred_region
                loop: start=0, step=1, limit=1
                $region48: #{_lambda_.25} parent=46 // loop_pre_header
                  _
                $region49: #{_lambda_.25} parent=46 // loop_header
                  %s292 = sphi 0, %s296
                  %p293 = scmp.ge.s32.totalorder %s292, 1
                  %s297 = sphi %s209, %s209
                  %s298 = sphi %s203, %s203
                $region50: #{_lambda_.25} parent=46 // loop_header_branch
                  %295 = sbr.rel (%p293) target = $region54
                $region51: #{_lambda_.25} parent=46 // loop_body
                  %v299 = vld [vmem:[%s297] sm:$0xff]
                  %300 = vst [vmem:[%s298] sm:$0xff] %v299
                  %v301 = vld [vmem:[%s297 + $0x10] sm:$0xff]
                  %302 = vst [vmem:[%s298 + $0x8] sm:$0xff] %v301
                  %v303 = vld [vmem:[%s297 + $0x20] sm:$0xff]
                  %304 = vst [vmem:[%s298 + $0x10] sm:$0xff] %v303
                  %v305 = vld [vmem:[%s297 + $0x30] sm:$0xff]
                  %306 = vst [vmem:[%s298 + $0x18] sm:$0xff] %v305
                  %v307 = vld [vmem:[%s297 + $0x40] sm:$0xff]
                  %308 = vst [vmem:[%s298 + $0x20] sm:$0xff] %v307
                  %v309 = vld [vmem:[%s297 + $0x50] sm:$0xff]
                  %310 = vst [vmem:[%s298 + $0x28] sm:$0xff] %v309
                  %v311 = vld [vmem:[%s297 + $0x60] sm:$0xff]
                  %312 = vst [vmem:[%s298 + $0x30] sm:$0xff] %v311
                  %v313 = vld [vmem:[%s297 + $0x70] sm:$0xff]
                  %314 = vst [vmem:[%s298 + $0x38] sm:$0xff] %v313
                  %v315 = vld [vmem:[%s297 + $0x80] sm:$0xff]
                  %316 = vst [vmem:[%s298 + $0x40] sm:$0xff] %v315
                  %v317 = vld [vmem:[%s297 + $0x90] sm:$0xff]
                  %318 = vst [vmem:[%s298 + $0x48] sm:$0xff] %v317
                  %v319 = vld [vmem:[%s297 + $0xa0] sm:$0xff]
                  %320 = vst [vmem:[%s298 + $0x50] sm:$0xff] %v319
                  %v321 = vld [vmem:[%s297 + $0xb0] sm:$0xff]
                  %322 = vst [vmem:[%s298 + $0x58] sm:$0xff] %v321
                  %v323 = vld [vmem:[%s297 + $0xc0] sm:$0xff]
                  %324 = vst [vmem:[%s298 + $0x60] sm:$0xff] %v323
                  %v325 = vld [vmem:[%s297 + $0xd0] sm:$0xff]
                  %326 = vst [vmem:[%s298 + $0x68] sm:$0xff] %v325
                  %v327 = vld [vmem:[%s297 + $0xe0] sm:$0xff]
                  %328 = vst [vmem:[%s298 + $0x70] sm:$0xff] %v327
                  %v329 = vld [vmem:[%s297 + $0xf0] sm:$0xff]
                  %330 = vst [vmem:[%s298 + $0x78] sm:$0xff] %v329
                  %v331 = vld [vmem:[%s297 + $0x100] sm:$0xff]
                  %332 = vst [vmem:[%s298 + $0x80] sm:$0xff] %v331
                  %v333 = vld [vmem:[%s297 + $0x110] sm:$0xff]
                  %334 = vst [vmem:[%s298 + $0x88] sm:$0xff] %v333
                  %v335 = vld [vmem:[%s297 + $0x120] sm:$0xff]
                  %336 = vst [vmem:[%s298 + $0x90] sm:$0xff] %v335
                  %v337 = vld [vmem:[%s297 + $0x130] sm:$0xff]
                  %338 = vst [vmem:[%s298 + $0x98] sm:$0xff] %v337
                  %v339 = vld [vmem:[%s297 + $0x140] sm:$0xff]
                  %340 = vst [vmem:[%s298 + $0xa0] sm:$0xff] %v339
                  %v341 = vld [vmem:[%s297 + $0x150] sm:$0xff]
                  %342 = vst [vmem:[%s298 + $0xa8] sm:$0xff] %v341
                  %v343 = vld [vmem:[%s297 + $0x160] sm:$0xff]
                  %344 = vst [vmem:[%s298 + $0xb0] sm:$0xff] %v343
                  %v345 = vld [vmem:[%s297 + $0x170] sm:$0xff]
                  %346 = vst [vmem:[%s298 + $0xb8] sm:$0xff] %v345
                  %v347 = vld [vmem:[%s297 + $0x180] sm:$0xff]
                  %348 = vst [vmem:[%s298 + $0xc0] sm:$0xff] %v347
                  %v349 = vld [vmem:[%s297 + $0x190] sm:$0xff]
                  %350 = vst [vmem:[%s298 + $0xc8] sm:$0xff] %v349
                  %v351 = vld [vmem:[%s297 + $0x1a0] sm:$0xff]
                  %352 = vst [vmem:[%s298 + $0xd0] sm:$0xff] %v351
                  %v353 = vld [vmem:[%s297 + $0x1b0] sm:$0xff]
                  %354 = vst [vmem:[%s298 + $0xd8] sm:$0xff] %v353
                  %v355 = vld [vmem:[%s297 + $0x1c0] sm:$0xff]
                  %356 = vst [vmem:[%s298 + $0xe0] sm:$0xff] %v355
                  %v357 = vld [vmem:[%s297 + $0x1d0] sm:$0xff]
                  %358 = vst [vmem:[%s298 + $0xe8] sm:$0xff] %v357
                  %v359 = vld [vmem:[%s297 + $0x1e0] sm:$0xff]
                  %360 = vst [vmem:[%s298 + $0xf0] sm:$0xff] %v359
                  %v361 = vld [vmem:[%s297 + $0x1f0] sm:$0xff]
                  %362 = vst [vmem:[%s298 + $0xf8] sm:$0xff] %v361
                $region52: #{_lambda_.25} parent=46 // loop_footer
                  %s296 = sadd.s32 1, %s292
                $region53: #{_lambda_.25} parent=46 // loop_footer_branch
                  %291 = sbr.rel target = $region49
                $region54: #{_lambda_.25} parent=46 // loop_exit
                  _
              $region47: #{_lambda_.25} parent=31 // pred_fallthru
                _
              // Predicated region
              $region55: #{_lambda_.25} parent=31 // pred_check
                _
              $region56: #{_lambda_.25} parent=31 // pred_check_branch
                %364 = sbr.rel target = $region58
              $region57: #{_lambda_.25} parent=31 // pred_region
                _
              $region58: #{_lambda_.25} parent=31 // pred_fallthru
                _
            $region32: #{_lambda_.25} parent=27 // pred_fallthru
              _
            // Predicated region
            $region33: #{_lambda_.25} parent=27 // pred_check
              _
            $region34: #{_lambda_.25} parent=27 // pred_check_branch
              %215 = sbr.rel target = $region36
            $region35: #{_lambda_.25} parent=27 // pred_region
              loop: start=0, step=1, limit=1
              $region37: #{_lambda_.25} parent=35 // loop_pre_header
                _
              $region38: #{_lambda_.25} parent=35 // loop_header
                %s218 = sphi 0, %s222
                %p219 = scmp.ge.s32.totalorder %s218, 1
                %s223 = sphi %s209, %s209
                %s224 = sphi %s203, %s203
              $region39: #{_lambda_.25} parent=35 // loop_header_branch
                %221 = sbr.rel (%p219) target = $region43
              $region40: #{_lambda_.25} parent=35 // loop_body
                %v225 = vld [vmem:[%s223] sm:$0xff]
                %226 = vst [vmem:[%s224] sm:$0xff] %v225
                %v227 = vld [vmem:[%s223 + $0x10] sm:$0xff]
                %228 = vst [vmem:[%s224 + $0x8] sm:$0xff] %v227
                %v229 = vld [vmem:[%s223 + $0x20] sm:$0xff]
                %230 = vst [vmem:[%s224 + $0x10] sm:$0xff] %v229
                %v231 = vld [vmem:[%s223 + $0x30] sm:$0xff]
                %232 = vst [vmem:[%s224 + $0x18] sm:$0xff] %v231
                %v233 = vld [vmem:[%s223 + $0x40] sm:$0xff]
                %234 = vst [vmem:[%s224 + $0x20] sm:$0xff] %v233
                %v235 = vld [vmem:[%s223 + $0x50] sm:$0xff]
                %236 = vst [vmem:[%s224 + $0x28] sm:$0xff] %v235
                %v237 = vld [vmem:[%s223 + $0x60] sm:$0xff]
                %238 = vst [vmem:[%s224 + $0x30] sm:$0xff] %v237
                %v239 = vld [vmem:[%s223 + $0x70] sm:$0xff]
                %240 = vst [vmem:[%s224 + $0x38] sm:$0xff] %v239
                %v241 = vld [vmem:[%s223 + $0x80] sm:$0xff]
                %242 = vst [vmem:[%s224 + $0x40] sm:$0xff] %v241
                %v243 = vld [vmem:[%s223 + $0x90] sm:$0xff]
                %244 = vst [vmem:[%s224 + $0x48] sm:$0xff] %v243
                %v245 = vld [vmem:[%s223 + $0xa0] sm:$0xff]
                %246 = vst [vmem:[%s224 + $0x50] sm:$0xff] %v245
                %v247 = vld [vmem:[%s223 + $0xb0] sm:$0xff]
                %248 = vst [vmem:[%s224 + $0x58] sm:$0xff] %v247
                %v249 = vld [vmem:[%s223 + $0xc0] sm:$0xff]
                %250 = vst [vmem:[%s224 + $0x60] sm:$0xff] %v249
                %v251 = vld [vmem:[%s223 + $0xd0] sm:$0xff]
                %252 = vst [vmem:[%s224 + $0x68] sm:$0xff] %v251
                %v253 = vld [vmem:[%s223 + $0xe0] sm:$0xff]
                %254 = vst [vmem:[%s224 + $0x70] sm:$0xff] %v253
                %v255 = vld [vmem:[%s223 + $0xf0] sm:$0xff]
                %256 = vst [vmem:[%s224 + $0x78] sm:$0xff] %v255
                %v257 = vld [vmem:[%s223 + $0x100] sm:$0xff]
                %258 = vst [vmem:[%s224 + $0x80] sm:$0xff] %v257
                %v259 = vld [vmem:[%s223 + $0x110] sm:$0xff]
                %260 = vst [vmem:[%s224 + $0x88] sm:$0xff] %v259
                %v261 = vld [vmem:[%s223 + $0x120] sm:$0xff]
                %262 = vst [vmem:[%s224 + $0x90] sm:$0xff] %v261
                %v263 = vld [vmem:[%s223 + $0x130] sm:$0xff]
                %264 = vst [vmem:[%s224 + $0x98] sm:$0xff] %v263
                %v265 = vld [vmem:[%s223 + $0x140] sm:$0xff]
                %266 = vst [vmem:[%s224 + $0xa0] sm:$0xff] %v265
                %v267 = vld [vmem:[%s223 + $0x150] sm:$0xff]
                %268 = vst [vmem:[%s224 + $0xa8] sm:$0xff] %v267
                %v269 = vld [vmem:[%s223 + $0x160] sm:$0xff]
                %270 = vst [vmem:[%s224 + $0xb0] sm:$0xff] %v269
                %v271 = vld [vmem:[%s223 + $0x170] sm:$0xff]
                %272 = vst [vmem:[%s224 + $0xb8] sm:$0xff] %v271
                %v273 = vld [vmem:[%s223 + $0x180] sm:$0xff]
                %274 = vst [vmem:[%s224 + $0xc0] sm:$0xff] %v273
                %v275 = vld [vmem:[%s223 + $0x190] sm:$0xff]
                %276 = vst [vmem:[%s224 + $0xc8] sm:$0xff] %v275
                %v277 = vld [vmem:[%s223 + $0x1a0] sm:$0xff]
                %278 = vst [vmem:[%s224 + $0xd0] sm:$0xff] %v277
                %v279 = vld [vmem:[%s223 + $0x1b0] sm:$0xff]
                %280 = vst [vmem:[%s224 + $0xd8] sm:$0xff] %v279
                %v281 = vld [vmem:[%s223 + $0x1c0] sm:$0xff]
                %282 = vst [vmem:[%s224 + $0xe0] sm:$0xff] %v281
                %v283 = vld [vmem:[%s223 + $0x1d0] sm:$0xff]
                %284 = vst [vmem:[%s224 + $0xe8] sm:$0xff] %v283
                %v285 = vld [vmem:[%s223 + $0x1e0] sm:$0xff]
                %286 = vst [vmem:[%s224 + $0xf0] sm:$0xff] %v285
                %v287 = vld [vmem:[%s223 + $0x1f0] sm:$0xff]
                %288 = vst [vmem:[%s224 + $0xf8] sm:$0xff] %v287
              $region41: #{_lambda_.25} parent=35 // loop_footer
                %s222 = sadd.s32 1, %s218
              $region42: #{_lambda_.25} parent=35 // loop_footer_branch
                %217 = sbr.rel target = $region38
              $region43: #{_lambda_.25} parent=35 // loop_exit
                _
            $region36: #{_lambda_.25} parent=27 // pred_fallthru
              _
          $region28: #{_lambda_.25} parent=23 // pred_fallthru
            _
          %365 = vnop
        $region24: #{_lambda_.25} parent=19 // pred_fallthru
          _
        // Predicated region
        $region59: #{_lambda_.25} parent=19 // pred_check
          %p366 = pneg %p105
        $region60: #{_lambda_.25} parent=19 // pred_check_branch
          %368 = sbr.rel (%p366) target = $region62
        $region61: #{_lambda_.25} parent=19 // pred_region
          %s369 = smul.u32 2, %s18
          %p370 = scmp.lt.s32.totalorder %s369, 3
          %s371 = scalar_select %p370, %s369, 3
          %s372 = scalar_lea.vmem %s2, %s371
          %s373 = smul.u32 2, %s18
        $region62: #{_lambda_.25} parent=19 // pred_fallthru
          _
        // Predicated region
        $region63: #{_lambda_.25} parent=19 // pred_check
          %p374 = pneg %p131
        $region64: #{_lambda_.25} parent=19 // pred_check_branch
          %376 = sbr.rel (%p374) target = $region66
        $region65: #{_lambda_.25} parent=19 // pred_region
          %s377 = smul.u32 2, %s18
          %p378 = scmp.lt.s32.totalorder %s377, 3
          %s379 = scalar_select %p378, %s377, 3
          %s380 = scalar_lea.vmem %s3, %s379
          %s381 = smul.u32 2, %s18
        $region66: #{_lambda_.25} parent=19 // pred_fallthru
          _
      $region20: #{_lambda_.25} parent=5 // pred_fallthru
        _
      %p382 = scmp.le.s32.totalorder 1, %s10
      %p383 = scmp.lt.s32.totalorder %s10, 3
      %p384 = pnand %p382, %p383
      %p385 = pneg %p384
      // Predicated region
      $region67: #{_lambda_.25} parent=5 // pred_check
        _
      $region68: #{_lambda_.25} parent=5 // pred_check_branch
        %387 = sbr.rel (%p384) target = $region70
      $region69: #{_lambda_.25} parent=5 // pred_region
        %s388 = ssub.s32 %s10, 1
        %s389 = sand.u32 %s72, 1
        %s390 = sand.u32 %s72, 1
        %s391 = smul.addr %s390, 256
        %s392 = scalar_lea.vmem [#allocation3], %s391
        // Predicated region
        $region71: #{_lambda_.25} parent=69 // pred_check
          %p393 = pneg %p85
        $region72: #{_lambda_.25} parent=69 // pred_check_branch
          %395 = sbr.rel (%p393) target = $region74
        $region73: #{_lambda_.25} parent=69 // pred_region
          _
        $region74: #{_lambda_.25} parent=69 // pred_fallthru
          _
        %s396 = smul.u32 2, %s22
        %p397 = scmp.lt.s32.totalorder %s20, 0
        %s398 = scalar_select %p397, %s20, 0
        %p399 = scmp.lt.s32.totalorder %s396, 1
        %s400 = scalar_select %p399, %s396, 1
        %s401 = smul.addr %s398, 2
        %s402 = sadd.s32 %s400, %s401
        %s403 = smul.addr %s402, 4
        %s404 = scalar_lea.vmem %s0, %s403
        %p405 = pneg %p57
        %p406 = pneg %p54
        %s407 = sand.u32 %s72, 1
        %s408 = sand.u32 %s72, 1
        %s409 = smul.addr %s408, 256
        %s410 = scalar_lea.vmem [#allocation3], %s409
        %p411 = pneg %p85
        %p412 = pneg %p82
        %s413 = smul.u32 2, %s21
        %p414 = scmp.lt.s32.totalorder %s413, 3
        %s415 = scalar_select %p414, %s413, 3
        %s416 = scalar_lea.vmem %s2, %s415
        %p417 = pneg %p111
        %p418 = pneg %p108
        %s419 = smul.u32 2, %s21
        %p420 = scmp.lt.s32.totalorder %s419, 3
        %s421 = scalar_select %p420, %s419, 3
        %s422 = scalar_lea.vmem %s3, %s421
        %p423 = pneg %p137
        %p424 = pneg %p134
        %p425 = pneg %p165
        %p426 = pneg %p162
        %s427 = smul.u32 2, %s21
        %p428 = scmp.lt.s32.totalorder %s20, 0
        %s429 = scalar_select %p428, %s20, 0
        %p430 = scmp.lt.s32.totalorder %s427, 3
        %s431 = scalar_select %p430, %s427, 3
        %s432 = smul.addr %s429, 4
        %s433 = sadd.s32 %s431, %s432
        %s434 = smul.addr %s433, 4
        %s435 = scalar_lea.vmem %s4, %s434
        %s436 = smul.u32 2, %s22
        %p437 = scmp.lt.s32.totalorder %s20, 0
        %s438 = scalar_select %p437, %s20, 0
        %p439 = scmp.lt.s32.totalorder %s436, 1
        %s440 = scalar_select %p439, %s436, 1
        %s441 = smul.addr %s438, 2
        %s442 = sadd.s32 %s440, %s441
        %s443 = smul.addr %s442, 4
        %s444 = scalar_lea.vmem %s0, %s443
        %s445 = smul.u32 2, %s22
        %s446 = smul.u32 32, %s22
        %s447 = smul.u32 2, %s21
        %s448 = smul.u32 2, %s21
        %p449 = scmp.lt.s32.totalorder %s448, 3
        %s450 = scalar_select %p449, %s448, 3
        %s451 = scalar_lea.vmem %s2, %s450
        %s452 = smul.u32 2, %s21
        %s453 = smul.u32 2, %s21
        %p454 = scmp.lt.s32.totalorder %s453, 3
        %s455 = scalar_select %p454, %s453, 3
        %s456 = scalar_lea.vmem %s3, %s455
        %s457 = smul.u32 2, %s21
        %s458 = smul.u32 2, %s21
        %p459 = scmp.lt.s32.totalorder %s20, 0
        %s460 = scalar_select %p459, %s20, 0
        %p461 = scmp.lt.s32.totalorder %s458, 3
        %s462 = scalar_select %p461, %s458, 3
        %s463 = smul.addr %s460, 4
        %s464 = sadd.s32 %s462, %s463
        %s465 = smul.addr %s464, 4
        %s466 = scalar_lea.vmem %s4, %s465
        %s467 = smul.u32 2, %s21
        %p468 = scmp.eq.s32.totalorder %s22, 0
        // Predicated region
        $region75: #{_lambda_.25} parent=69 // pred_check
          %p469 = pneg %p468
        $region76: #{_lambda_.25} parent=69 // pred_check_branch
          %471 = sbr.rel (%p469) target = $region78
        $region77: #{_lambda_.25} parent=69 // pred_region
          %472 = vst [vmem:[#allocation2] sm:$0xff] 0.0
          %473 = vst [vmem:[#allocation2 + $0x8] sm:$0xff] 0.0
        $region78: #{_lambda_.25} parent=69 // pred_fallthru
          _
        %v474 = vld [vmem:[#allocation2] sm:$0xff]
        %v475 = vld [vmem:[#allocation2 + $0x8] sm:$0xff]
        %v476 = vld [vmem:[%s444] sm:$0xff]
        %v477 = vld [vmem:[%s392] sm:$0xff]
        %v478 = vld [vmem:[%s392 + $0x8] sm:$0xff]
        %v479 = vld [vmem:[%s392 + $0x10] sm:$0xff]
        %v480 = vld [vmem:[%s392 + $0x18] sm:$0xff]
        %v481 = vld [vmem:[%s392 + $0x20] sm:$0xff]
        %v482 = vld [vmem:[%s392 + $0x28] sm:$0xff]
        %v483 = vld [vmem:[%s392 + $0x30] sm:$0xff]
        %v484 = vld [vmem:[%s392 + $0x38] sm:$0xff]
        %v485 = vld [vmem:[%s392 + $0x40] sm:$0xff]
        %v486 = vld [vmem:[%s392 + $0x48] sm:$0xff]
        %v487 = vld [vmem:[%s392 + $0x50] sm:$0xff]
        %v488 = vld [vmem:[%s392 + $0x58] sm:$0xff]
        %v489 = vld [vmem:[%s392 + $0x60] sm:$0xff]
        %v490 = vld [vmem:[%s392 + $0x68] sm:$0xff]
        %v491 = vld [vmem:[%s392 + $0x70] sm:$0xff]
        %v492 = vld [vmem:[%s392 + $0x78] sm:$0xff]
        %v493 = vld [vmem:[%s392 + $0x80] sm:$0xff]
        %v494 = vld [vmem:[%s392 + $0x88] sm:$0xff]
        %v495 = vld [vmem:[%s392 + $0x90] sm:$0xff]
        %v496 = vld [vmem:[%s392 + $0x98] sm:$0xff]
        %v497 = vld [vmem:[%s392 + $0xa0] sm:$0xff]
        %v498 = vld [vmem:[%s392 + $0xa8] sm:$0xff]
        %v499 = vld [vmem:[%s392 + $0xb0] sm:$0xff]
        %v500 = vld [vmem:[%s392 + $0xb8] sm:$0xff]
        %v501 = vld [vmem:[%s392 + $0xc0] sm:$0xff]
        %v502 = vld [vmem:[%s392 + $0xc8] sm:$0xff]
        %v503 = vld [vmem:[%s392 + $0xd0] sm:$0xff]
        %v504 = vld [vmem:[%s392 + $0xd8] sm:$0xff]
        %v505 = vld [vmem:[%s392 + $0xe0] sm:$0xff]
        %v506 = vld [vmem:[%s392 + $0xe8] sm:$0xff]
        %v507 = vld [vmem:[%s392 + $0xf0] sm:$0xff]
        %v508 = vld [vmem:[%s392 + $0xf8] sm:$0xff]
        %v510 = vunpack.c.l.b16 %v476
        %v511 = vunpack.c.h.b16 %v476
        %v512 = vpack.c.b16 %v510, %v510
        %v513 = vpack.c.b16 %v511, %v511
        %v548 = vunpack.c.l.b16 %v477
        %v549 = vunpack.c.h.b16 %v477
        %v550 = vunpack.c.l.b16 %v478
        %v551 = vunpack.c.h.b16 %v478
        %v552 = vunpack.c.l.b16 %v479
        %v553 = vunpack.c.h.b16 %v479
        %v554 = vunpack.c.l.b16 %v480
        %v555 = vunpack.c.h.b16 %v480
        %v556 = vunpack.c.l.b16 %v481
        %v557 = vunpack.c.h.b16 %v481
        %v558 = vunpack.c.l.b16 %v482
        %v559 = vunpack.c.h.b16 %v482
        %v560 = vunpack.c.l.b16 %v483
        %v561 = vunpack.c.h.b16 %v483
        %v562 = vunpack.c.l.b16 %v484
        %v563 = vunpack.c.h.b16 %v484
        %v564 = vunpack.c.l.b16 %v485
        %v565 = vunpack.c.h.b16 %v485
        %v566 = vunpack.c.l.b16 %v486
        %v567 = vunpack.c.h.b16 %v486
        %v568 = vunpack.c.l.b16 %v487
        %v569 = vunpack.c.h.b16 %v487
        %v570 = vunpack.c.l.b16 %v488
        %v571 = vunpack.c.h.b16 %v488
        %v572 = vunpack.c.l.b16 %v489
        %v573 = vunpack.c.h.b16 %v489
        %v574 = vunpack.c.l.b16 %v490
        %v575 = vunpack.c.h.b16 %v490
        %v576 = vunpack.c.l.b16 %v491
        %v577 = vunpack.c.h.b16 %v491
        %v578 = vunpack.c.l.b16 %v492
        %v579 = vunpack.c.h.b16 %v492
        %v580 = vunpack.c.l.b16 %v493
        %v581 = vunpack.c.h.b16 %v493
        %v582 = vunpack.c.l.b16 %v494
        %v583 = vunpack.c.h.b16 %v494
        %v584 = vunpack.c.l.b16 %v495
        %v585 = vunpack.c.h.b16 %v495
        %v586 = vunpack.c.l.b16 %v496
        %v587 = vunpack.c.h.b16 %v496
        %v588 = vunpack.c.l.b16 %v497
        %v589 = vunpack.c.h.b16 %v497
        %v590 = vunpack.c.l.b16 %v498
        %v591 = vunpack.c.h.b16 %v498
        %v592 = vunpack.c.l.b16 %v499
        %v593 = vunpack.c.h.b16 %v499
        %v594 = vunpack.c.l.b16 %v500
        %v595 = vunpack.c.h.b16 %v500
        %v596 = vunpack.c.l.b16 %v501
        %v597 = vunpack.c.h.b16 %v501
        %v598 = vunpack.c.l.b16 %v502
        %v599 = vunpack.c.h.b16 %v502
        %v600 = vunpack.c.l.b16 %v503
        %v601 = vunpack.c.h.b16 %v503
        %v602 = vunpack.c.l.b16 %v504
        %v603 = vunpack.c.h.b16 %v504
        %v604 = vunpack.c.l.b16 %v505
        %v605 = vunpack.c.h.b16 %v505
        %v606 = vunpack.c.l.b16 %v506
        %v607 = vunpack.c.h.b16 %v506
        %v608 = vunpack.c.l.b16 %v507
        %v609 = vunpack.c.h.b16 %v507
        %v610 = vunpack.c.l.b16 %v508
        %v611 = vunpack.c.h.b16 %v508
        %v612 = vpack.c.b16 %v550, %v548
        %v613 = vpack.c.b16 %v551, %v549
        %v614 = vpack.c.b16 %v554, %v552
        %v615 = vpack.c.b16 %v555, %v553
        %v616 = vpack.c.b16 %v558, %v556
        %v617 = vpack.c.b16 %v559, %v557
        %v618 = vpack.c.b16 %v562, %v560
        %v619 = vpack.c.b16 %v563, %v561
        %v620 = vpack.c.b16 %v566, %v564
        %v621 = vpack.c.b16 %v567, %v565
        %v622 = vpack.c.b16 %v570, %v568
        %v623 = vpack.c.b16 %v571, %v569
        %v624 = vpack.c.b16 %v574, %v572
        %v625 = vpack.c.b16 %v575, %v573
        %v626 = vpack.c.b16 %v578, %v576
        %v627 = vpack.c.b16 %v579, %v577
        %v628 = vpack.c.b16 %v582, %v580
        %v629 = vpack.c.b16 %v583, %v581
        %v630 = vpack.c.b16 %v586, %v584
        %v631 = vpack.c.b16 %v587, %v585
        %v632 = vpack.c.b16 %v590, %v588
        %v633 = vpack.c.b16 %v591, %v589
        %v634 = vpack.c.b16 %v594, %v592
        %v635 = vpack.c.b16 %v595, %v593
        %v636 = vpack.c.b16 %v598, %v596
        %v637 = vpack.c.b16 %v599, %v597
        %v638 = vpack.c.b16 %v602, %v600
        %v639 = vpack.c.b16 %v603, %v601
        %v640 = vpack.c.b16 %v606, %v604
        %v641 = vpack.c.b16 %v607, %v605
        %v642 = vpack.c.b16 %v610, %v608
        %v643 = vpack.c.b16 %v611, %v609
        %676 = vmatprep.subr.bf16.mxu0 %v613
        %677 = vmatpush1.bf16.msra.mxu0 %v612
        %678 = vmatprep.subr.bf16.mxu0 %v615
        %679 = vmatpush1.bf16.msra.mxu0 %v614
        %680 = vmatprep.subr.bf16.mxu0 %v617
        %681 = vmatpush1.bf16.msra.mxu0 %v616
        %682 = vmatprep.subr.bf16.mxu0 %v619
        %683 = vmatpush1.bf16.msra.mxu0 %v618
        %684 = vmatprep.subr.bf16.mxu0 %v621
        %685 = vmatpush1.bf16.msra.mxu0 %v620
        %686 = vmatprep.subr.bf16.mxu0 %v623
        %687 = vmatpush1.bf16.msra.mxu0 %v622
        %688 = vmatprep.subr.bf16.mxu0 %v625
        %689 = vmatpush1.bf16.msra.mxu0 %v624
        %690 = vmatprep.subr.bf16.mxu0 %v627
        %691 = vmatpush1.bf16.msra.mxu0 %v626
        %692 = vmatprep.subr.bf16.mxu0 %v629
        %693 = vmatpush1.bf16.msra.mxu0 %v628
        %694 = vmatprep.subr.bf16.mxu0 %v631
        %695 = vmatpush1.bf16.msra.mxu0 %v630
        %696 = vmatprep.subr.bf16.mxu0 %v633
        %697 = vmatpush1.bf16.msra.mxu0 %v632
        %698 = vmatprep.subr.bf16.mxu0 %v635
        %699 = vmatpush1.bf16.msra.mxu0 %v634
        %700 = vmatprep.subr.bf16.mxu0 %v637
        %701 = vmatpush1.bf16.msra.mxu0 %v636
        %702 = vmatprep.subr.bf16.mxu0 %v639
        %703 = vmatpush1.bf16.msra.mxu0 %v638
        %704 = vmatprep.subr.bf16.mxu0 %v641
        %705 = vmatpush1.bf16.msra.mxu0 %v640
        %706 = vmatprep.subr.bf16.mxu0 %v643
        %707 = vmatpush1.bf16.msra.mxu0 %v642
        %708 = vmatprep.mubr.bf16.mxu0 %v513
        %709 = vmatmul.mubr.bf16.gmra.mrb[0].mxu0 %v512
        %v710 = vpop.f32.mrb[0].mxu0
        %v711 = vadd.f32 0.0, %v710
        %v712 = vpop.f32.mrb[0].mxu0
        %v713 = vadd.f32 0.0, %v712
        %v714 = vpop.f32.mrb[0].mxu0
        %v715 = vpop.f32.mrb[0].mxu0
        %716 = vdwg.mxu0
        %v717 = vadd.f32 %v474, %v711
        %v718 = vadd.f32 %v475, %v713
        %719 = vst [vmem:[#allocation2] sm:$0xff] %v717
        %720 = vst [vmem:[#allocation2 + $0x8] sm:$0xff] %v718
        // Predicated region
        $region79: #{_lambda_.25} parent=69 // pred_check
          %p721 = pneg %p468
        $region80: #{_lambda_.25} parent=69 // pred_check_branch
          %723 = sbr.rel (%p721) target = $region82
        $region81: #{_lambda_.25} parent=69 // pred_region
          %v724 = vld [vmem:[#allocation2] sm:$0xff]
          %v725 = vld [vmem:[#allocation2 + $0x8] sm:$0xff]
          %v726 = vld [vmem:[%s451] sm:$0x3]
          %v728 = vlaneseq
          %v729 = vshrl.u32 %v728, 7
          %v730 = vsub.s32 0, %v729
          %v731 = vrot.slane %v726, %v730
          %v732 = vlaneseq
          %v733 = vshrl.u32 %v732, 7
          %v734 = vsub.s32 1, %v733
          %v735 = vrot.slane %v726, %v734
          %v738 = vmul.f32 %v724, %v731
          %v739 = vmul.f32 %v725, %v735
          %v740 = vld [vmem:[%s456] sm:$0x3]
          %v742 = vlaneseq
          %v743 = vshrl.u32 %v742, 7
          %v744 = vsub.s32 0, %v743
          %v745 = vrot.slane %v740, %v744
          %v746 = vlaneseq
          %v747 = vshrl.u32 %v746, 7
          %v748 = vsub.s32 1, %v747
          %v749 = vrot.slane %v740, %v748
          %v752 = vadd.f32 %v738, %v745
          %v753 = vadd.f32 %v739, %v749
          %v754 = vpack.c.bf16 %v752, %v752
          %v755 = vpack.c.bf16 %v753, %v753
          %v758 = vunpack.c.l.b16 %v754
          %v759 = vunpack.c.l.b16 %v755
          %v760 = vpack.c.b16 %v759, %v758
          %762 = vst [vmem:[%s466] sm:$0xff] %v760
        $region82: #{_lambda_.25} parent=69 // pred_fallthru
          _
        %s763 = smul.u32 2, %s21
        %p764 = scmp.lt.s32.totalorder %s20, 0
        %s765 = scalar_select %p764, %s20, 0
        %p766 = scmp.lt.s32.totalorder %s763, 3
        %s767 = scalar_select %p766, %s763, 3
        %s768 = smul.addr %s765, 4
        %s769 = sadd.s32 %s767, %s768
        %s770 = smul.addr %s769, 4
        %s771 = scalar_lea.vmem %s4, %s770
        // Predicated region
        $region83: #{_lambda_.25} parent=69 // pred_check
          %p772 = pneg %p162
        $region84: #{_lambda_.25} parent=69 // pred_check_branch
          %774 = sbr.rel (%p772) target = $region86
        $region85: #{_lambda_.25} parent=69 // pred_region
          %s775 = smul.u32 2, %s21
        $region86: #{_lambda_.25} parent=69 // pred_fallthru
          _
      $region70: #{_lambda_.25} parent=5 // pred_fallthru
        _
      %p776 = scmp.le.s32.totalorder 2, %s10
      // Predicated region
      $region87: #{_lambda_.25} parent=5 // pred_check
        %p777 = pneg %p776
      $region88: #{_lambda_.25} parent=5 // pred_check_branch
        %779 = sbr.rel (%p777) target = $region90
      $region89: #{_lambda_.25} parent=5 // pred_region
        %s780 = ssub.s32 %s10, 2
        // Predicated region
        $region91: #{_lambda_.25} parent=89 // pred_check
          %p781 = pneg %p168
        $region92: #{_lambda_.25} parent=89 // pred_check_branch
          %783 = sbr.rel (%p781) target = $region94
        $region93: #{_lambda_.25} parent=89 // pred_region
          %s784 = smul.u32 2, %s24
          %p785 = scmp.lt.s32.totalorder %s23, 0
          %s786 = scalar_select %p785, %s23, 0
          %p787 = scmp.lt.s32.totalorder %s784, 3
          %s788 = scalar_select %p787, %s784, 3
          %s789 = smul.addr %s786, 4
          %s790 = sadd.s32 %s788, %s789
          %s791 = smul.addr %s790, 4
          %s792 = scalar_lea.vmem %s4, %s791
        $region94: #{_lambda_.25} parent=89 // pred_fallthru
          _
      $region90: #{_lambda_.25} parent=5 // pred_fallthru
        _
    $region6: #{_lambda_.25} parent=1 // loop_footer
      %s14 = sadd.s32 1, %s10
    $region7: #{_lambda_.25} parent=1 // loop_footer_branch
      %9 = sbr.rel target = $region3
    $region8: #{_lambda_.25} parent=1 // loop_exit
      _

// kernel: _lambda_.27
$region0: #{_lambda_.27}
  #allocation0 [shape = 'u32[]', space=smem, size = 0x4, offset = 0x4, fixed_abs, tag = 'smem constant byte address 0x4 - core index']
  #allocation1 [shape = 'u32[144,128]{1,0:T(1,128)}', space=vmem, size = 0x12000, scoped, tag = 'internal scratch']
  #allocation2 [shape = 'f32[2,512]{1,0:T(2,128)}', space=vmem, size = 0x1000, scoped, tag = 'scratch operand']
  %s0 = inlined_call_operand.vmem [shape: bf16[2,1,512], index: 0, kind: input, shape index: {}]
  %s1 = inlined_call_operand.vmem [shape: f32[512,3], index: 1, kind: input, shape index: {}]
  %s2 = inlined_call_operand.vmem [shape: f32[1,3], index: 2, kind: input, shape index: {}]
  %s3 = inlined_call_operand.hbm [shape: f32[2,3], index: 3, kind: output, shape index: {0}]
  %s4 = inlined_call_operand.hbm [shape: f32[2,512], index: 4, kind: output, shape index: {1}]
  %5 = xla_tuple %s3, %s4
  %s6 = sld [smem:[#allocation0]]
  $region38: #{_lambda_.27} parent=0
    _
  %s8 = ssub.s32 1, %s6
  %s9 = scalar_select 0, %s8, %s6
  $region1: #{_lambda_.27} parent=0
    #allocation3 [shape = 'u8[1024]{0}', space=vmem, size = 0x400, scoped, tag = 'output window, operand 0, single buffered']
    #allocation4 [shape = 's32[1]{0}', space=sflag, size = 0x4, scoped, tag = 'scoped memory for _lambda_.27']
    #allocation5 [shape = 'u8[4096]{0}', space=vmem, size = 0x1000, scoped, tag = 'output window, operand 1, single buffered']
    #allocation6 [shape = 's32[1]{0}', space=sflag, size = 0x4, scoped, tag = 'scoped memory for _lambda_.27']
    %10 = vsyncpa [#allocation4], 0
    %11 = vsyncpa [#allocation6], 0
    // Predicated region
    $region2: #{_lambda_.27} parent=1 // pred_check
      _
    $region3: #{_lambda_.27} parent=1 // pred_check_branch
      %13 = sbr.rel (0) target = $region5
    $region4: #{_lambda_.27} parent=1 // pred_region
      _
    $region5: #{_lambda_.27} parent=1 // pred_fallthru
      _
    // Predicated region
    $region6: #{_lambda_.27} parent=1 // pred_check
      _
    $region7: #{_lambda_.27} parent=1 // pred_check_branch
      %15 = sbr.rel (0) target = $region9
    $region8: #{_lambda_.27} parent=1 // pred_region
      _
    $region9: #{_lambda_.27} parent=1 // pred_fallthru
      _
    // Predicated region
    $region10: #{_lambda_.27} parent=1 // pred_check
      _
    $region11: #{_lambda_.27} parent=1 // pred_check_branch
      %17 = sbr.rel (0) target = $region13
    $region12: #{_lambda_.27} parent=1 // pred_region
      _
    $region13: #{_lambda_.27} parent=1 // pred_fallthru
      _
    %p18 = scmp.eq.s32.totalorder 0, 0
    // Predicated region
    $region14: #{_lambda_.27} parent=1 // pred_check
      %p19 = pneg %p18
    $region15: #{_lambda_.27} parent=1 // pred_check_branch
      %21 = sbr.rel (%p19) target = $region17
    $region16: #{_lambda_.27} parent=1 // pred_region
      %22 = vst [vmem:[#allocation2] sm:$0xff] 0.0
    $region17: #{_lambda_.27} parent=1 // pred_fallthru
      _
    %v23 = vld [vmem:[#allocation2] sm:$0xff]
    %v24 = vld [vmem:[%s0] sm:$0xf]
    %v25 = vld [vmem:[%s0 + $0x4] sm:$0xf]
    %v26 = vunpack.c.l.bf16 %v24
    %v27 = vunpack.c.l.bf16 %v25
    %v28 = vadd.f32 %v26, 0.0
    %v29 = vadd.f32 %v27, 0.0
    %vm32 = vcmask 1044484
    %v33 = vsel %vm32, %v28, %v28
    %vm34 = vcmask 1046534
    %v35 = vsel %vm34, %v28, %v33
    %v36 = vrot.slane %v29, 7
    %vm37 = vcmask 1041409
    %v38 = vsel %vm37, %v36, %v35
    %vm39 = vcmask 1043459
    %v40 = vsel %vm39, %v36, %v38
    %vm41 = vcmask 1045509
    %v42 = vsel %vm41, %v36, %v40
    %vm43 = vcmask 1047559
    %v44 = vsel %vm43, %v36, %v42
    %v46 = vadd.f32 %v23, %v44
    %47 = vst [vmem:[#allocation2] sm:$0xff] %v46
    // Predicated region
    $region18: #{_lambda_.27} parent=1 // pred_check
      %p48 = pneg %p18
    $region19: #{_lambda_.27} parent=1 // pred_check_branch
      %50 = sbr.rel (%p48) target = $region21
    $region20: #{_lambda_.27} parent=1 // pred_region
      %v51 = vld [vmem:[#allocation2] sm:$0xff]
      %52 = vst [vmem:[#allocation5] sm:$0xff] %v51
      %v53 = vld [vmem:[%s1] sm:$0xff]
      %v54 = vld [vmem:[%s1 + $0x8] sm:$0xff]
      %v55 = vld [vmem:[%s1 + $0x10] sm:$0xff]
      %v56 = vld [vmem:[%s1 + $0x18] sm:$0xff]
      %v57 = vld [vmem:[%s1 + $0x20] sm:$0xff]
      %v58 = vld [vmem:[%s1 + $0x28] sm:$0xff]
      %v59 = vld [vmem:[%s1 + $0x30] sm:$0xff]
      %v60 = vld [vmem:[%s1 + $0x38] sm:$0xff]
      %v61 = vld [vmem:[%s1 + $0x40] sm:$0xff]
      %v62 = vld [vmem:[%s1 + $0x48] sm:$0xff]
      %v63 = vld [vmem:[%s1 + $0x50] sm:$0xff]
      %v64 = vld [vmem:[%s1 + $0x58] sm:$0xff]
      %v65 = vld [vmem:[%s1 + $0x60] sm:$0xff]
      %v66 = vld [vmem:[%s1 + $0x68] sm:$0xff]
      %v67 = vld [vmem:[%s1 + $0x70] sm:$0xff]
      %v68 = vld [vmem:[%s1 + $0x78] sm:$0xff]
      %v69 = vld [vmem:[%s1 + $0x80] sm:$0xff]
      %v70 = vld [vmem:[%s1 + $0x88] sm:$0xff]
      %v71 = vld [vmem:[%s1 + $0x90] sm:$0xff]
      %v72 = vld [vmem:[%s1 + $0x98] sm:$0xff]
      %v73 = vld [vmem:[%s1 + $0xa0] sm:$0xff]
      %v74 = vld [vmem:[%s1 + $0xa8] sm:$0xff]
      %v75 = vld [vmem:[%s1 + $0xb0] sm:$0xff]
      %v76 = vld [vmem:[%s1 + $0xb8] sm:$0xff]
      %v77 = vld [vmem:[%s1 + $0xc0] sm:$0xff]
      %v78 = vld [vmem:[%s1 + $0xc8] sm:$0xff]
      %v79 = vld [vmem:[%s1 + $0xd0] sm:$0xff]
      %v80 = vld [vmem:[%s1 + $0xd8] sm:$0xff]
      %v81 = vld [vmem:[%s1 + $0xe0] sm:$0xff]
      %v82 = vld [vmem:[%s1 + $0xe8] sm:$0xff]
      %v83 = vld [vmem:[%s1 + $0xf0] sm:$0xff]
      %v84 = vld [vmem:[%s1 + $0xf8] sm:$0xff]
      %v85 = vld [vmem:[%s1 + $0x100] sm:$0xff]
      %v86 = vld [vmem:[%s1 + $0x108] sm:$0xff]
      %v87 = vld [vmem:[%s1 + $0x110] sm:$0xff]
      %v88 = vld [vmem:[%s1 + $0x118] sm:$0xff]
      %v89 = vld [vmem:[%s1 + $0x120] sm:$0xff]
      %v90 = vld [vmem:[%s1 + $0x128] sm:$0xff]
      %v91 = vld [vmem:[%s1 + $0x130] sm:$0xff]
      %v92 = vld [vmem:[%s1 + $0x138] sm:$0xff]
      %v93 = vld [vmem:[%s1 + $0x140] sm:$0xff]
      %v94 = vld [vmem:[%s1 + $0x148] sm:$0xff]
      %v95 = vld [vmem:[%s1 + $0x150] sm:$0xff]
      %v96 = vld [vmem:[%s1 + $0x158] sm:$0xff]
      %v97 = vld [vmem:[%s1 + $0x160] sm:$0xff]
      %v98 = vld [vmem:[%s1 + $0x168] sm:$0xff]
      %v99 = vld [vmem:[%s1 + $0x170] sm:$0xff]
      %v100 = vld [vmem:[%s1 + $0x178] sm:$0xff]
      %v101 = vld [vmem:[%s1 + $0x180] sm:$0xff]
      %v102 = vld [vmem:[%s1 + $0x188] sm:$0xff]
      %v103 = vld [vmem:[%s1 + $0x190] sm:$0xff]
      %v104 = vld [vmem:[%s1 + $0x198] sm:$0xff]
      %v105 = vld [vmem:[%s1 + $0x1a0] sm:$0xff]
      %v106 = vld [vmem:[%s1 + $0x1a8] sm:$0xff]
      %v107 = vld [vmem:[%s1 + $0x1b0] sm:$0xff]
      %v108 = vld [vmem:[%s1 + $0x1b8] sm:$0xff]
      %v109 = vld [vmem:[%s1 + $0x1c0] sm:$0xff]
      %v110 = vld [vmem:[%s1 + $0x1c8] sm:$0xff]
      %v111 = vld [vmem:[%s1 + $0x1d0] sm:$0xff]
      %v112 = vld [vmem:[%s1 + $0x1d8] sm:$0xff]
      %v113 = vld [vmem:[%s1 + $0x1e0] sm:$0xff]
      %v114 = vld [vmem:[%s1 + $0x1e8] sm:$0xff]
      %v115 = vld [vmem:[%s1 + $0x1f0] sm:$0xff]
      %v116 = vld [vmem:[%s1 + $0x1f8] sm:$0xff]
      %v117 = vld [vmem:[%s2] sm:$0x1]
      %v119 = vlaneseq
      %v120 = vshrl.u32 %v119, 7
      %v121 = vsub.s32 0, %v120
      %v122 = vrot.slane %v117, %v121
      %v125 = vcombine.high %v51, %v51
      %v127 = vunpack.c.l.s4 1983009808
      %v128 = vunpack.c.0.s8 %v127
      %v129 = vlaneseq
      %v130 = vshrl.u32 %v129, 7
      %v131 = vsub.s32 %v128, %v130
      %v132 = vrot.slane %v51, %v131
      %v134 = vunpack.c.l.s4 1983009808
      %v135 = vunpack.c.0.s8 %v134
      %v136 = vlaneseq
      %v137 = vshrl.u32 %v136, 7
      %v138 = vsub.s32 %v135, %v137
      %v139 = vrot.slane %v125, %v138
      %v140 = vcombine.high %v132, %v132
      %v141 = vcombine.high %v139, %v139
      %146 = vmatprep.subr.mxu0 0.0
      %147 = vmatpush1.msra.mxu0 %v53
      %148 = vmatprep.subr.mxu0 0.0
      %149 = vmatpush1.msra.mxu0 %v54
      %150 = vmatprep.subr.mxu0 0.0
      %151 = vmatpush1.msra.mxu0 %v55
      %152 = vmatprep.subr.mxu0 0.0
      %153 = vmatpush1.msra.mxu0 %v56
      %154 = vmatprep.subr.mxu0 0.0
      %155 = vmatpush1.msra.mxu0 %v57
      %156 = vmatprep.subr.mxu0 0.0
      %157 = vmatpush1.msra.mxu0 %v58
      %158 = vmatprep.subr.mxu0 0.0
      %159 = vmatpush1.msra.mxu0 %v59
      %160 = vmatprep.subr.mxu0 0.0
      %161 = vmatpush1.msra.mxu0 %v60
      %162 = vmatprep.subr.mxu0 0.0
      %163 = vmatpush1.msra.mxu0 %v61
      %164 = vmatprep.subr.mxu0 0.0
      %165 = vmatpush1.msra.mxu0 %v62
      %166 = vmatprep.subr.mxu0 0.0
      %167 = vmatpush1.msra.mxu0 %v63
      %168 = vmatprep.subr.mxu0 0.0
      %169 = vmatpush1.msra.mxu0 %v64
      %170 = vmatprep.subr.mxu0 0.0
      %171 = vmatpush1.msra.mxu0 %v65
      %172 = vmatprep.subr.mxu0 0.0
      %173 = vmatpush1.msra.mxu0 %v66
      %174 = vmatprep.subr.mxu0 0.0
      %175 = vmatpush1.msra.mxu0 %v67
      %176 = vmatprep.subr.mxu0 0.0
      %177 = vmatpush1.msra.mxu0 %v68
      %178 = vmatprep.subr.mxu0 0.0
      %179 = vmatpush1.msra.mxu0 %v69
      %180 = vmatprep.subr.mxu0 0.0
      %181 = vmatpush1.msra.mxu0 %v70
      %182 = vmatprep.subr.mxu0 0.0
      %183 = vmatpush1.msra.mxu0 %v71
      %184 = vmatprep.subr.mxu0 0.0
      %185 = vmatpush1.msra.mxu0 %v72
      %186 = vmatprep.subr.mxu0 0.0
      %187 = vmatpush1.msra.mxu0 %v73
      %188 = vmatprep.subr.mxu0 0.0
      %189 = vmatpush1.msra.mxu0 %v74
      %190 = vmatprep.subr.mxu0 0.0
      %191 = vmatpush1.msra.mxu0 %v75
      %192 = vmatprep.subr.mxu0 0.0
      %193 = vmatpush1.msra.mxu0 %v76
      %194 = vmatprep.subr.mxu0 0.0
      %195 = vmatpush1.msra.mxu0 %v77
      %196 = vmatprep.subr.mxu0 0.0
      %197 = vmatpush1.msra.mxu0 %v78
      %198 = vmatprep.subr.mxu0 0.0
      %199 = vmatpush1.msra.mxu0 %v79
      %200 = vmatprep.subr.mxu0 0.0
      %201 = vmatpush1.msra.mxu0 %v80
      %202 = vmatprep.subr.mxu0 0.0
      %203 = vmatpush1.msra.mxu0 %v81
      %204 = vmatprep.subr.mxu0 0.0
      %205 = vmatpush1.msra.mxu0 %v82
      %206 = vmatprep.subr.mxu0 0.0
      %207 = vmatpush1.msra.mxu0 %v83
      %208 = vmatprep.subr.mxu0 0.0
      %209 = vmatpush1.msra.mxu0 %v84
      %210 = vmatprep.mubr.f32.mxu0 %v140
      %211 = vmatmul.mubr.f32.gmra.mrb[0].mxu0 %v132
      %v212 = vpop.f32.mrb[0].mxu0
      %v213 = vadd.f32 %v122, %v212
      %v214 = vpop.f32.mrb[0].mxu0
      %215 = vdwg.mxu0
      %216 = vmatprep.subr.mxu0 0.0
      %217 = vmatpush1.msra.mxu0 %v85
      %218 = vmatprep.subr.mxu0 0.0
      %219 = vmatpush1.msra.mxu0 %v86
      %220 = vmatprep.subr.mxu0 0.0
      %221 = vmatpush1.msra.mxu0 %v87
      %222 = vmatprep.subr.mxu0 0.0
      %223 = vmatpush1.msra.mxu0 %v88
      %224 = vmatprep.subr.mxu0 0.0
      %225 = vmatpush1.msra.mxu0 %v89
      %226 = vmatprep.subr.mxu0 0.0
      %227 = vmatpush1.msra.mxu0 %v90
      %228 = vmatprep.subr.mxu0 0.0
      %229 = vmatpush1.msra.mxu0 %v91
      %230 = vmatprep.subr.mxu0 0.0
      %231 = vmatpush1.msra.mxu0 %v92
      %232 = vmatprep.subr.mxu0 0.0
      %233 = vmatpush1.msra.mxu0 %v93
      %234 = vmatprep.subr.mxu0 0.0
      %235 = vmatpush1.msra.mxu0 %v94
      %236 = vmatprep.subr.mxu0 0.0
      %237 = vmatpush1.msra.mxu0 %v95
      %238 = vmatprep.subr.mxu0 0.0
      %239 = vmatpush1.msra.mxu0 %v96
      %240 = vmatprep.subr.mxu0 0.0
      %241 = vmatpush1.msra.mxu0 %v97
      %242 = vmatprep.subr.mxu0 0.0
      %243 = vmatpush1.msra.mxu0 %v98
      %244 = vmatprep.subr.mxu0 0.0
      %245 = vmatpush1.msra.mxu0 %v99
      %246 = vmatprep.subr.mxu0 0.0
      %247 = vmatpush1.msra.mxu0 %v100
      %248 = vmatprep.subr.mxu0 0.0
      %249 = vmatpush1.msra.mxu0 %v101
      %250 = vmatprep.subr.mxu0 0.0
      %251 = vmatpush1.msra.mxu0 %v102
      %252 = vmatprep.subr.mxu0 0.0
      %253 = vmatpush1.msra.mxu0 %v103
      %254 = vmatprep.subr.mxu0 0.0
      %255 = vmatpush1.msra.mxu0 %v104
      %256 = vmatprep.subr.mxu0 0.0
      %257 = vmatpush1.msra.mxu0 %v105
      %258 = vmatprep.subr.mxu0 0.0
      %259 = vmatpush1.msra.mxu0 %v106
      %260 = vmatprep.subr.mxu0 0.0
      %261 = vmatpush1.msra.mxu0 %v107
      %262 = vmatprep.subr.mxu0 0.0
      %263 = vmatpush1.msra.mxu0 %v108
      %264 = vmatprep.subr.mxu0 0.0
      %265 = vmatpush1.msra.mxu0 %v109
      %266 = vmatprep.subr.mxu0 0.0
      %267 = vmatpush1.msra.mxu0 %v110
      %268 = vmatprep.subr.mxu0 0.0
      %269 = vmatpush1.msra.mxu0 %v111
      %270 = vmatprep.subr.mxu0 0.0
      %271 = vmatpush1.msra.mxu0 %v112
      %272 = vmatprep.subr.mxu0 0.0
      %273 = vmatpush1.msra.mxu0 %v113
      %274 = vmatprep.subr.mxu0 0.0
      %275 = vmatpush1.msra.mxu0 %v114
      %276 = vmatprep.subr.mxu0 0.0
      %277 = vmatpush1.msra.mxu0 %v115
      %278 = vmatprep.subr.mxu0 0.0
      %279 = vmatpush1.msra.mxu0 %v116
      %280 = vmatprep.mubr.f32.mxu0 %v141
      %281 = vmatmul.mubr.f32.gmra.mrb[0].mxu0 %v139
      %v282 = vpop.f32.mrb[0].mxu0
      %v283 = vadd.f32 %v213, %v282
      %v284 = vpop.f32.mrb[0].mxu0
      %285 = vdwg.mxu0
      %vm286 = vcmask 17408
      %287 = vst.msk [vmem:[#allocation3] sm:$0x3] %vm286, %v283
    $region21: #{_lambda_.27} parent=1 // pred_fallthru
      _
    // Predicated region
    $region22: #{_lambda_.27} parent=1 // pred_check
      _
    $region23: #{_lambda_.27} parent=1 // pred_check_branch
      %289 = sbr.rel (0) target = $region25
    $region24: #{_lambda_.27} parent=1 // pred_region
      %s291 = ssub.s32 32, 32
      %292 = vsyncadd [#allocation4], %s291
      %s294 = sshll.u32 [#allocation3], 4
      %s295 = int_to_ptr.vmem [resolvable:$true] %s294
      %297 = dma.vmem_to_hbm [thread:$0]  %s295, 32, %s3, [#allocation4]
    $region25: #{_lambda_.27} parent=1 // pred_fallthru
      _
    // Predicated region
    $region26: #{_lambda_.27} parent=1 // pred_check
      _
    $region27: #{_lambda_.27} parent=1 // pred_check_branch
      %299 = sbr.rel (0) target = $region29
    $region28: #{_lambda_.27} parent=1 // pred_region
      %s301 = ssub.s32 128, 128
      %302 = vsyncadd [#allocation6], %s301
      %s304 = sshll.u32 [#allocation5], 4
      %s305 = int_to_ptr.vmem [resolvable:$true] %s304
      %307 = dma.vmem_to_hbm [thread:$0]  %s305, 128, %s4, [#allocation6]
    $region29: #{_lambda_.27} parent=1 // pred_fallthru
      _
    // Predicated region
    $region30: #{_lambda_.27} parent=1 // pred_check
      _
    $region31: #{_lambda_.27} parent=1 // pred_check_branch
      %309 = sbr.rel (0) target = $region33
    $region32: #{_lambda_.27} parent=1 // pred_region
      %310 = dma.done [#allocation4], 32
    $region33: #{_lambda_.27} parent=1 // pred_fallthru
      _
    // Predicated region
    $region34: #{_lambda_.27} parent=1 // pred_check
      _
    $region35: #{_lambda_.27} parent=1 // pred_check_branch
      %312 = sbr.rel (0) target = $region37
    $region36: #{_lambda_.27} parent=1 // pred_region
      %313 = dma.done [#allocation6], 128
    $region37: #{_lambda_.27} parent=1 // pred_fallthru
      _
    %314 = vsyncpa [#allocation4], 1
    %315 = vsyncpa [#allocation6], 1

// kernel: _lambda_.26
$region0: #{_lambda_.26}
  #allocation0 [shape = 'u32[]', space=smem, size = 0x4, offset = 0x4, fixed_abs, tag = 'smem constant byte address 0x4 - core index']
  #allocation1 [shape = 'u32[144,128]{1,0:T(1,128)}', space=vmem, size = 0x12000, scoped, tag = 'internal scratch']
  #allocation2 [shape = 'f32[8,256]{1,0:T(8,128)}', space=vmem, size = 0x2000, scoped, tag = 'scratch operand']
  %s0 = inlined_call_operand.vmem [shape: bf16[8,4608], index: 0, kind: input, shape index: {}]
  %s1 = inlined_call_operand.vmem [shape: bf16[4608,512], index: 1, kind: input, shape index: {}]
  %s2 = inlined_call_operand.vmem [shape: f32[1,512], index: 2, kind: input, shape index: {}]
  %s3 = inlined_call_operand.vmem [shape: f32[1,512], index: 3, kind: input, shape index: {}]
  %s4 = inlined_call_operand.vmem [shape: bf16[8,512], index: 4, kind: input, shape index: {}]
  %s5 = inlined_call_operand.vmem [shape: bf16[8,512], index: 5, kind: output, shape index: {}]
  %s6 = sld [smem:[#allocation0]]
  $region99: #{_lambda_.26} parent=0
    _
  %s8 = ssub.s32 1, %s6
  %s9 = scalar_select 0, %s8, %s6
  $region1: #{_lambda_.26} parent=0
    #allocation3 [shape = 'u8[524288]{0}', space=vmem, size = 0x80000, scoped, tag = 'input window, operand 1']
    loop: start=0, step=1, limit=20
    $region2: #{_lambda_.26} parent=1 // loop_pre_header
      _
    $region3: #{_lambda_.26} parent=1 // loop_header
      %s11 = sphi 0, %s15
      %p12 = scmp.ge.s32.totalorder %s11, 20
      %s18 = sphi 0, %s37
      %s19 = sphi 0, %s33
      %s20 = sphi 0, %s29
      %s21 = sphi 0, %s18
      %s22 = sphi 0, %s19
      %s23 = sphi 0, %s20
      %s24 = sphi 0, %s21
      %s25 = sphi 0, %s22
      %s26 = sphi 0, %s23
      %s42 = sphi 0, %s44
      %s45 = sphi 0, %s42
      %s46 = sphi 0, %s45
      %s62 = sphi 0, %s46
      %s70 = sphi 0, %s72
      %s73 = sphi 0, %s70
      %s74 = sphi 0, %s73
      %s90 = sphi 0, %s74
      %s96 = sphi 0, %s98
      %s99 = sphi 0, %s96
      %s100 = sphi 0, %s99
      %s116 = sphi 0, %s100
      %s122 = sphi 0, %s124
      %s125 = sphi 0, %s122
      %s126 = sphi 0, %s125
      %s142 = sphi 0, %s126
      %s150 = sphi 0, %s152
      %s153 = sphi 0, %s150
      %s154 = sphi 0, %s153
      %s170 = sphi 0, %s154
      %s178 = sphi 0, %s180
      %s181 = sphi 0, %s178
      %s182 = sphi 0, %s181
      %s198 = sphi 0, %s182
    $region4: #{_lambda_.26} parent=1 // loop_header_branch
      %14 = sbr.rel (%p12) target = $region8
    $region5: #{_lambda_.26} parent=1 // loop_body
      %s16 = ssub.s32 %s11, 1
      %s17 = ssub.s32 %s11, 2
      %s27 = sadd.s32 1, %s20
      %p28 = scmp.ge.s32.totalorder %s27, 9
      %s29 = scalar_select %p28, 0, %s27
      %s30 = sadd.s32 1, %s19
      %s31 = scalar_select %p28, %s30, %s19
      %p32 = scmp.ge.s32.totalorder %s31, 2
      %s33 = scalar_select %p32, 0, %s31
      %s34 = sadd.s32 1, %s18
      %s35 = scalar_select %p32, %s34, %s18
      %p36 = scmp.ge.s32.totalorder %s35, 1
      %s37 = scalar_select %p36, 0, %s35
      %s38 = ssub.s32 %s18, %s37
      %s39 = ssub.s32 %s20, %s29
      %s40 = sor.u32 %s38, %s39
      %p41 = scmp.eq.s32.totalorder %s40, 0
      %s43 = sadd.s32 %s42, 1
      %s44 = scalar_select %p41, %s42, %s43
      %p47 = pneg %p41
      %p48 = scmp.eq.s32.totalorder %s11, 17
      %p49 = por %p47, %p48
      %p50 = scmp.ne.s32.totalorder %s42, %s45
      %p51 = scmp.eq.s32.totalorder %s11, 0
      %p52 = por %p50, %p51
      %p53 = scmp.ne.s32.totalorder %s42, %s45
      %p54 = scmp.eq.s32.totalorder %s16, 17
      %p55 = por %p53, %p54
      %p56 = scmp.ne.s32.totalorder %s45, %s46
      %p57 = scmp.eq.s32.totalorder %s16, 0
      %p58 = por %p56, %p57
      %p59 = scmp.ne.s32.totalorder %s45, %s46
      %p60 = scmp.eq.s32.totalorder %s17, 17
      %p61 = por %p59, %p60
      %p63 = scmp.ne.s32.totalorder %s46, %s62
      %p64 = scmp.eq.s32.totalorder %s17, 0
      %p65 = por %p63, %p64
      %s66 = ssub.s32 %s20, %s29
      %s67 = ssub.s32 %s19, %s33
      %s68 = sor.u32 %s66, %s67
      %p69 = scmp.eq.s32.totalorder %s68, 0
      %s71 = sadd.s32 %s70, 1
      %s72 = scalar_select %p69, %s70, %s71
      %p75 = pneg %p69
      %p76 = scmp.eq.s32.totalorder %s11, 17
      %p77 = por %p75, %p76
      %p78 = scmp.ne.s32.totalorder %s70, %s73
      %p79 = scmp.eq.s32.totalorder %s11, 0
      %p80 = por %p78, %p79
      %p81 = scmp.ne.s32.totalorder %s70, %s73
      %p82 = scmp.eq.s32.totalorder %s16, 17
      %p83 = por %p81, %p82
      %p84 = scmp.ne.s32.totalorder %s73, %s74
      %p85 = scmp.eq.s32.totalorder %s16, 0
      %p86 = por %p84, %p85
      %p87 = scmp.ne.s32.totalorder %s73, %s74
      %p88 = scmp.eq.s32.totalorder %s17, 17
      %p89 = por %p87, %p88
      %p91 = scmp.ne.s32.totalorder %s74, %s90
      %p92 = scmp.eq.s32.totalorder %s17, 0
      %p93 = por %p91, %p92
      %s94 = ssub.s32 %s19, %s33
      %p95 = scmp.eq.s32.totalorder %s94, 0
      %s97 = sadd.s32 %s96, 1
      %s98 = scalar_select %p95, %s96, %s97
      %p101 = pneg %p95
      %p102 = scmp.eq.s32.totalorder %s11, 17
      %p103 = por %p101, %p102
      %p104 = scmp.ne.s32.totalorder %s96, %s99
      %p105 = scmp.eq.s32.totalorder %s11, 0
      %p106 = por %p104, %p105
      %p107 = scmp.ne.s32.totalorder %s96, %s99
      %p108 = scmp.eq.s32.totalorder %s16, 17
      %p109 = por %p107, %p108
      %p110 = scmp.ne.s32.totalorder %s99, %s100
      %p111 = scmp.eq.s32.totalorder %s16, 0
      %p112 = por %p110, %p111
      %p113 = scmp.ne.s32.totalorder %s99, %s100
      %p114 = scmp.eq.s32.totalorder %s17, 17
      %p115 = por %p113, %p114
      %p117 = scmp.ne.s32.totalorder %s100, %s116
      %p118 = scmp.eq.s32.totalorder %s17, 0
      %p119 = por %p117, %p118
      %s120 = ssub.s32 %s19, %s33
      %p121 = scmp.eq.s32.totalorder %s120, 0
      %s123 = sadd.s32 %s122, 1
      %s124 = scalar_select %p121, %s122, %s123
      %p127 = pneg %p121
      %p128 = scmp.eq.s32.totalorder %s11, 17
      %p129 = por %p127, %p128
      %p130 = scmp.ne.s32.totalorder %s122, %s125
      %p131 = scmp.eq.s32.totalorder %s11, 0
      %p132 = por %p130, %p131
      %p133 = scmp.ne.s32.totalorder %s122, %s125
      %p134 = scmp.eq.s32.totalorder %s16, 17
      %p135 = por %p133, %p134
      %p136 = scmp.ne.s32.totalorder %s125, %s126
      %p137 = scmp.eq.s32.totalorder %s16, 0
      %p138 = por %p136, %p137
      %p139 = scmp.ne.s32.totalorder %s125, %s126
      %p140 = scmp.eq.s32.totalorder %s17, 17
      %p141 = por %p139, %p140
      %p143 = scmp.ne.s32.totalorder %s126, %s142
      %p144 = scmp.eq.s32.totalorder %s17, 0
      %p145 = por %p143, %p144
      %s146 = ssub.s32 %s18, %s37
      %s147 = ssub.s32 %s19, %s33
      %s148 = sor.u32 %s146, %s147
      %p149 = scmp.eq.s32.totalorder %s148, 0
      %s151 = sadd.s32 %s150, 1
      %s152 = scalar_select %p149, %s150, %s151
      %p155 = pneg %p149
      %p156 = scmp.eq.s32.totalorder %s11, 17
      %p157 = por %p155, %p156
      %p158 = scmp.ne.s32.totalorder %s150, %s153
      %p159 = scmp.eq.s32.totalorder %s11, 0
      %p160 = por %p158, %p159
      %p161 = scmp.ne.s32.totalorder %s150, %s153
      %p162 = scmp.eq.s32.totalorder %s16, 17
      %p163 = por %p161, %p162
      %p164 = scmp.ne.s32.totalorder %s153, %s154
      %p165 = scmp.eq.s32.totalorder %s16, 0
      %p166 = por %p164, %p165
      %p167 = scmp.ne.s32.totalorder %s153, %s154
      %p168 = scmp.eq.s32.totalorder %s17, 17
      %p169 = por %p167, %p168
      %p171 = scmp.ne.s32.totalorder %s154, %s170
      %p172 = scmp.eq.s32.totalorder %s17, 0
      %p173 = por %p171, %p172
      %s174 = ssub.s32 %s18, %s37
      %s175 = ssub.s32 %s19, %s33
      %s176 = sor.u32 %s174, %s175
      %p177 = scmp.eq.s32.totalorder %s176, 0
      %s179 = sadd.s32 %s178, 1
      %s180 = scalar_select %p177, %s178, %s179
      %p183 = pneg %p177
      %p184 = scmp.eq.s32.totalorder %s11, 17
      %p185 = por %p183, %p184
      %p186 = scmp.ne.s32.totalorder %s178, %s181
      %p187 = scmp.eq.s32.totalorder %s11, 0
      %p188 = por %p186, %p187
      %p189 = scmp.ne.s32.totalorder %s178, %s181
      %p190 = scmp.eq.s32.totalorder %s16, 17
      %p191 = por %p189, %p190
      %p192 = scmp.ne.s32.totalorder %s181, %s182
      %p193 = scmp.eq.s32.totalorder %s16, 0
      %p194 = por %p192, %p193
      %p195 = scmp.ne.s32.totalorder %s181, %s182
      %p196 = scmp.eq.s32.totalorder %s17, 17
      %p197 = por %p195, %p196
      %p199 = scmp.ne.s32.totalorder %s182, %s198
      %p200 = scmp.eq.s32.totalorder %s17, 0
      %p201 = por %p199, %p200
      %p202 = scmp.le.s32.totalorder 1, %s11
      %p203 = scmp.lt.s32.totalorder %s11, 19
      %p204 = pnand %p202, %p203
      %p205 = pneg %p204
      // Predicated region
      $region9: #{_lambda_.26} parent=5 // pred_check
        _
      $region10: #{_lambda_.26} parent=5 // pred_check_branch
        %207 = sbr.rel (%p204) target = $region12
      $region11: #{_lambda_.26} parent=5 // pred_region
        %s208 = ssub.s32 %s11, 1
      $region12: #{_lambda_.26} parent=5 // pred_fallthru
        _
      %p209 = scmp.lt.s32.totalorder %s11, 18
      // Predicated region
      $region13: #{_lambda_.26} parent=5 // pred_check
        %p210 = pneg %p209
      $region14: #{_lambda_.26} parent=5 // pred_check_branch
        %212 = sbr.rel (%p210) target = $region16
      $region15: #{_lambda_.26} parent=5 // pred_region
        // Predicated region
        $region17: #{_lambda_.26} parent=15 // pred_check
          %p213 = pneg %p52
        $region18: #{_lambda_.26} parent=15 // pred_check_branch
          %215 = sbr.rel (%p213) target = $region20
        $region19: #{_lambda_.26} parent=15 // pred_region
          %s216 = smul.u32 4, %s20
          %p217 = scmp.lt.s32.totalorder %s18, 0
          %s218 = scalar_select %p217, %s18, 0
          %p219 = scmp.lt.s32.totalorder %s216, 35
          %s220 = scalar_select %p219, %s216, 35
          %s221 = smul.addr %s218, 36
          %s222 = sadd.s32 %s220, %s221
          %s223 = smul.addr %s222, 4
          %s224 = scalar_lea.vmem %s0, %s223
          %s225 = smul.u32 4, %s20
        $region20: #{_lambda_.26} parent=15 // pred_fallthru
          _
        // Predicated region
        $region21: #{_lambda_.26} parent=15 // pred_check
          %p226 = pneg %p80
        $region22: #{_lambda_.26} parent=15 // pred_check_branch
          %228 = sbr.rel (%p226) target = $region24
        $region23: #{_lambda_.26} parent=15 // pred_region
          %s229 = sand.u32 %s70, 1
          %s230 = sand.u32 %s70, 1
          %s231 = smul.addr %s230, 512
          %s232 = scalar_lea.vmem [#allocation3], %s231
          %s233 = smul.u32 64, %s20
          %s234 = smul.u32 2, %s19
          %s235 = smul.addr %s233, 4
          %s236 = sadd.s32 %s234, %s235
          %s237 = smul.addr %s236, 4
          %s238 = scalar_lea.vmem %s1, %s237
          // Predicated region
          $region25: #{_lambda_.26} parent=23 // pred_check
            _
          $region26: #{_lambda_.26} parent=23 // pred_check_branch
            %240 = sbr.rel (0) target = $region28
          $region27: #{_lambda_.26} parent=23 // pred_region
            // Predicated region
            $region29: #{_lambda_.26} parent=27 // pred_check
              _
            $region30: #{_lambda_.26} parent=27 // pred_check_branch
              %242 = sbr.rel (0) target = $region32
            $region31: #{_lambda_.26} parent=27 // pred_region
              // Predicated region
              $region44: #{_lambda_.26} parent=31 // pred_check
                _
              $region45: #{_lambda_.26} parent=31 // pred_check_branch
                %383 = sbr.rel (0) target = $region47
              $region46: #{_lambda_.26} parent=31 // pred_region
                loop: start=0, step=1, limit=1
                $region48: #{_lambda_.26} parent=46 // loop_pre_header
                  _
                $region49: #{_lambda_.26} parent=46 // loop_header
                  %s385 = sphi 0, %s389
                  %p386 = scmp.ge.s32.totalorder %s385, 1
                  %s390 = sphi %s238, %s238
                  %s391 = sphi %s232, %s232
                $region50: #{_lambda_.26} parent=46 // loop_header_branch
                  %388 = sbr.rel (%p386) target = $region54
                $region51: #{_lambda_.26} parent=46 // loop_body
                  %v392 = vld [vmem:[%s390] sm:$0xff]
                  %393 = vst [vmem:[%s391] sm:$0xff] %v392
                  %v394 = vld [vmem:[%s390 + $0x10] sm:$0xff]
                  %395 = vst [vmem:[%s391 + $0x8] sm:$0xff] %v394
                  %v396 = vld [vmem:[%s390 + $0x20] sm:$0xff]
                  %397 = vst [vmem:[%s391 + $0x10] sm:$0xff] %v396
                  %v398 = vld [vmem:[%s390 + $0x30] sm:$0xff]
                  %399 = vst [vmem:[%s391 + $0x18] sm:$0xff] %v398
                  %v400 = vld [vmem:[%s390 + $0x40] sm:$0xff]
                  %401 = vst [vmem:[%s391 + $0x20] sm:$0xff] %v400
                  %v402 = vld [vmem:[%s390 + $0x50] sm:$0xff]
                  %403 = vst [vmem:[%s391 + $0x28] sm:$0xff] %v402
                  %v404 = vld [vmem:[%s390 + $0x60] sm:$0xff]
                  %405 = vst [vmem:[%s391 + $0x30] sm:$0xff] %v404
                  %v406 = vld [vmem:[%s390 + $0x70] sm:$0xff]
                  %407 = vst [vmem:[%s391 + $0x38] sm:$0xff] %v406
                  %v408 = vld [vmem:[%s390 + $0x80] sm:$0xff]
                  %409 = vst [vmem:[%s391 + $0x40] sm:$0xff] %v408
                  %v410 = vld [vmem:[%s390 + $0x90] sm:$0xff]
                  %411 = vst [vmem:[%s391 + $0x48] sm:$0xff] %v410
                  %v412 = vld [vmem:[%s390 + $0xa0] sm:$0xff]
                  %413 = vst [vmem:[%s391 + $0x50] sm:$0xff] %v412
                  %v414 = vld [vmem:[%s390 + $0xb0] sm:$0xff]
                  %415 = vst [vmem:[%s391 + $0x58] sm:$0xff] %v414
                  %v416 = vld [vmem:[%s390 + $0xc0] sm:$0xff]
                  %417 = vst [vmem:[%s391 + $0x60] sm:$0xff] %v416
                  %v418 = vld [vmem:[%s390 + $0xd0] sm:$0xff]
                  %419 = vst [vmem:[%s391 + $0x68] sm:$0xff] %v418
                  %v420 = vld [vmem:[%s390 + $0xe0] sm:$0xff]
                  %421 = vst [vmem:[%s391 + $0x70] sm:$0xff] %v420
                  %v422 = vld [vmem:[%s390 + $0xf0] sm:$0xff]
                  %423 = vst [vmem:[%s391 + $0x78] sm:$0xff] %v422
                  %v424 = vld [vmem:[%s390 + $0x100] sm:$0xff]
                  %425 = vst [vmem:[%s391 + $0x80] sm:$0xff] %v424
                  %v426 = vld [vmem:[%s390 + $0x110] sm:$0xff]
                  %427 = vst [vmem:[%s391 + $0x88] sm:$0xff] %v426
                  %v428 = vld [vmem:[%s390 + $0x120] sm:$0xff]
                  %429 = vst [vmem:[%s391 + $0x90] sm:$0xff] %v428
                  %v430 = vld [vmem:[%s390 + $0x130] sm:$0xff]
                  %431 = vst [vmem:[%s391 + $0x98] sm:$0xff] %v430
                  %v432 = vld [vmem:[%s390 + $0x140] sm:$0xff]
                  %433 = vst [vmem:[%s391 + $0xa0] sm:$0xff] %v432
                  %v434 = vld [vmem:[%s390 + $0x150] sm:$0xff]
                  %435 = vst [vmem:[%s391 + $0xa8] sm:$0xff] %v434
                  %v436 = vld [vmem:[%s390 + $0x160] sm:$0xff]
                  %437 = vst [vmem:[%s391 + $0xb0] sm:$0xff] %v436
                  %v438 = vld [vmem:[%s390 + $0x170] sm:$0xff]
                  %439 = vst [vmem:[%s391 + $0xb8] sm:$0xff] %v438
                  %v440 = vld [vmem:[%s390 + $0x180] sm:$0xff]
                  %441 = vst [vmem:[%s391 + $0xc0] sm:$0xff] %v440
                  %v442 = vld [vmem:[%s390 + $0x190] sm:$0xff]
                  %443 = vst [vmem:[%s391 + $0xc8] sm:$0xff] %v442
                  %v444 = vld [vmem:[%s390 + $0x1a0] sm:$0xff]
                  %445 = vst [vmem:[%s391 + $0xd0] sm:$0xff] %v444
                  %v446 = vld [vmem:[%s390 + $0x1b0] sm:$0xff]
                  %447 = vst [vmem:[%s391 + $0xd8] sm:$0xff] %v446
                  %v448 = vld [vmem:[%s390 + $0x1c0] sm:$0xff]
                  %449 = vst [vmem:[%s391 + $0xe0] sm:$0xff] %v448
                  %v450 = vld [vmem:[%s390 + $0x1d0] sm:$0xff]
                  %451 = vst [vmem:[%s391 + $0xe8] sm:$0xff] %v450
                  %v452 = vld [vmem:[%s390 + $0x1e0] sm:$0xff]
                  %453 = vst [vmem:[%s391 + $0xf0] sm:$0xff] %v452
                  %v454 = vld [vmem:[%s390 + $0x1f0] sm:$0xff]
                  %455 = vst [vmem:[%s391 + $0xf8] sm:$0xff] %v454
                  %v456 = vld [vmem:[%s390 + $0x200] sm:$0xff]
                  %457 = vst [vmem:[%s391 + $0x100] sm:$0xff] %v456
                  %v458 = vld [vmem:[%s390 + $0x210] sm:$0xff]
                  %459 = vst [vmem:[%s391 + $0x108] sm:$0xff] %v458
                  %v460 = vld [vmem:[%s390 + $0x220] sm:$0xff]
                  %461 = vst [vmem:[%s391 + $0x110] sm:$0xff] %v460
                  %v462 = vld [vmem:[%s390 + $0x230] sm:$0xff]
                  %463 = vst [vmem:[%s391 + $0x118] sm:$0xff] %v462
                  %v464 = vld [vmem:[%s390 + $0x240] sm:$0xff]
                  %465 = vst [vmem:[%s391 + $0x120] sm:$0xff] %v464
                  %v466 = vld [vmem:[%s390 + $0x250] sm:$0xff]
                  %467 = vst [vmem:[%s391 + $0x128] sm:$0xff] %v466
                  %v468 = vld [vmem:[%s390 + $0x260] sm:$0xff]
                  %469 = vst [vmem:[%s391 + $0x130] sm:$0xff] %v468
                  %v470 = vld [vmem:[%s390 + $0x270] sm:$0xff]
                  %471 = vst [vmem:[%s391 + $0x138] sm:$0xff] %v470
                  %v472 = vld [vmem:[%s390 + $0x280] sm:$0xff]
                  %473 = vst [vmem:[%s391 + $0x140] sm:$0xff] %v472
                  %v474 = vld [vmem:[%s390 + $0x290] sm:$0xff]
                  %475 = vst [vmem:[%s391 + $0x148] sm:$0xff] %v474
                  %v476 = vld [vmem:[%s390 + $0x2a0] sm:$0xff]
                  %477 = vst [vmem:[%s391 + $0x150] sm:$0xff] %v476
                  %v478 = vld [vmem:[%s390 + $0x2b0] sm:$0xff]
                  %479 = vst [vmem:[%s391 + $0x158] sm:$0xff] %v478
                  %v480 = vld [vmem:[%s390 + $0x2c0] sm:$0xff]
                  %481 = vst [vmem:[%s391 + $0x160] sm:$0xff] %v480
                  %v482 = vld [vmem:[%s390 + $0x2d0] sm:$0xff]
                  %483 = vst [vmem:[%s391 + $0x168] sm:$0xff] %v482
                  %v484 = vld [vmem:[%s390 + $0x2e0] sm:$0xff]
                  %485 = vst [vmem:[%s391 + $0x170] sm:$0xff] %v484
                  %v486 = vld [vmem:[%s390 + $0x2f0] sm:$0xff]
                  %487 = vst [vmem:[%s391 + $0x178] sm:$0xff] %v486
                  %v488 = vld [vmem:[%s390 + $0x300] sm:$0xff]
                  %489 = vst [vmem:[%s391 + $0x180] sm:$0xff] %v488
                  %v490 = vld [vmem:[%s390 + $0x310] sm:$0xff]
                  %491 = vst [vmem:[%s391 + $0x188] sm:$0xff] %v490
                  %v492 = vld [vmem:[%s390 + $0x320] sm:$0xff]
                  %493 = vst [vmem:[%s391 + $0x190] sm:$0xff] %v492
                  %v494 = vld [vmem:[%s390 + $0x330] sm:$0xff]
                  %495 = vst [vmem:[%s391 + $0x198] sm:$0xff] %v494
                  %v496 = vld [vmem:[%s390 + $0x340] sm:$0xff]
                  %497 = vst [vmem:[%s391 + $0x1a0] sm:$0xff] %v496
                  %v498 = vld [vmem:[%s390 + $0x350] sm:$0xff]
                  %499 = vst [vmem:[%s391 + $0x1a8] sm:$0xff] %v498
                  %v500 = vld [vmem:[%s390 + $0x360] sm:$0xff]
                  %501 = vst [vmem:[%s391 + $0x1b0] sm:$0xff] %v500
                  %v502 = vld [vmem:[%s390 + $0x370] sm:$0xff]
                  %503 = vst [vmem:[%s391 + $0x1b8] sm:$0xff] %v502
                  %v504 = vld [vmem:[%s390 + $0x380] sm:$0xff]
                  %505 = vst [vmem:[%s391 + $0x1c0] sm:$0xff] %v504
                  %v506 = vld [vmem:[%s390 + $0x390] sm:$0xff]
                  %507 = vst [vmem:[%s391 + $0x1c8] sm:$0xff] %v506
                  %v508 = vld [vmem:[%s390 + $0x3a0] sm:$0xff]
                  %509 = vst [vmem:[%s391 + $0x1d0] sm:$0xff] %v508
                  %v510 = vld [vmem:[%s390 + $0x3b0] sm:$0xff]
                  %511 = vst [vmem:[%s391 + $0x1d8] sm:$0xff] %v510
                  %v512 = vld [vmem:[%s390 + $0x3c0] sm:$0xff]
                  %513 = vst [vmem:[%s391 + $0x1e0] sm:$0xff] %v512
                  %v514 = vld [vmem:[%s390 + $0x3d0] sm:$0xff]
                  %515 = vst [vmem:[%s391 + $0x1e8] sm:$0xff] %v514
                  %v516 = vld [vmem:[%s390 + $0x3e0] sm:$0xff]
                  %517 = vst [vmem:[%s391 + $0x1f0] sm:$0xff] %v516
                  %v518 = vld [vmem:[%s390 + $0x3f0] sm:$0xff]
                  %519 = vst [vmem:[%s391 + $0x1f8] sm:$0xff] %v518
                $region52: #{_lambda_.26} parent=46 // loop_footer
                  %s389 = sadd.s32 1, %s385
                $region53: #{_lambda_.26} parent=46 // loop_footer_branch
                  %384 = sbr.rel target = $region49
                $region54: #{_lambda_.26} parent=46 // loop_exit
                  _
              $region47: #{_lambda_.26} parent=31 // pred_fallthru
                _
              // Predicated region
              $region55: #{_lambda_.26} parent=31 // pred_check
                _
              $region56: #{_lambda_.26} parent=31 // pred_check_branch
                %521 = sbr.rel target = $region58
              $region57: #{_lambda_.26} parent=31 // pred_region
                _
              $region58: #{_lambda_.26} parent=31 // pred_fallthru
                _
            $region32: #{_lambda_.26} parent=27 // pred_fallthru
              _
            // Predicated region
            $region33: #{_lambda_.26} parent=27 // pred_check
              _
            $region34: #{_lambda_.26} parent=27 // pred_check_branch
              %244 = sbr.rel target = $region36
            $region35: #{_lambda_.26} parent=27 // pred_region
              loop: start=0, step=1, limit=1
              $region37: #{_lambda_.26} parent=35 // loop_pre_header
                _
              $region38: #{_lambda_.26} parent=35 // loop_header
                %s247 = sphi 0, %s251
                %p248 = scmp.ge.s32.totalorder %s247, 1
                %s252 = sphi %s238, %s238
                %s253 = sphi %s232, %s232
              $region39: #{_lambda_.26} parent=35 // loop_header_branch
                %250 = sbr.rel (%p248) target = $region43
              $region40: #{_lambda_.26} parent=35 // loop_body
                %v254 = vld [vmem:[%s252] sm:$0xff]
                %255 = vst [vmem:[%s253] sm:$0xff] %v254
                %v256 = vld [vmem:[%s252 + $0x10] sm:$0xff]
                %257 = vst [vmem:[%s253 + $0x8] sm:$0xff] %v256
                %v258 = vld [vmem:[%s252 + $0x20] sm:$0xff]
                %259 = vst [vmem:[%s253 + $0x10] sm:$0xff] %v258
                %v260 = vld [vmem:[%s252 + $0x30] sm:$0xff]
                %261 = vst [vmem:[%s253 + $0x18] sm:$0xff] %v260
                %v262 = vld [vmem:[%s252 + $0x40] sm:$0xff]
                %263 = vst [vmem:[%s253 + $0x20] sm:$0xff] %v262
                %v264 = vld [vmem:[%s252 + $0x50] sm:$0xff]
                %265 = vst [vmem:[%s253 + $0x28] sm:$0xff] %v264
                %v266 = vld [vmem:[%s252 + $0x60] sm:$0xff]
                %267 = vst [vmem:[%s253 + $0x30] sm:$0xff] %v266
                %v268 = vld [vmem:[%s252 + $0x70] sm:$0xff]
                %269 = vst [vmem:[%s253 + $0x38] sm:$0xff] %v268
                %v270 = vld [vmem:[%s252 + $0x80] sm:$0xff]
                %271 = vst [vmem:[%s253 + $0x40] sm:$0xff] %v270
                %v272 = vld [vmem:[%s252 + $0x90] sm:$0xff]
                %273 = vst [vmem:[%s253 + $0x48] sm:$0xff] %v272
                %v274 = vld [vmem:[%s252 + $0xa0] sm:$0xff]
                %275 = vst [vmem:[%s253 + $0x50] sm:$0xff] %v274
                %v276 = vld [vmem:[%s252 + $0xb0] sm:$0xff]
                %277 = vst [vmem:[%s253 + $0x58] sm:$0xff] %v276
                %v278 = vld [vmem:[%s252 + $0xc0] sm:$0xff]
                %279 = vst [vmem:[%s253 + $0x60] sm:$0xff] %v278
                %v280 = vld [vmem:[%s252 + $0xd0] sm:$0xff]
                %281 = vst [vmem:[%s253 + $0x68] sm:$0xff] %v280
                %v282 = vld [vmem:[%s252 + $0xe0] sm:$0xff]
                %283 = vst [vmem:[%s253 + $0x70] sm:$0xff] %v282
                %v284 = vld [vmem:[%s252 + $0xf0] sm:$0xff]
                %285 = vst [vmem:[%s253 + $0x78] sm:$0xff] %v284
                %v286 = vld [vmem:[%s252 + $0x100] sm:$0xff]
                %287 = vst [vmem:[%s253 + $0x80] sm:$0xff] %v286
                %v288 = vld [vmem:[%s252 + $0x110] sm:$0xff]
                %289 = vst [vmem:[%s253 + $0x88] sm:$0xff] %v288
                %v290 = vld [vmem:[%s252 + $0x120] sm:$0xff]
                %291 = vst [vmem:[%s253 + $0x90] sm:$0xff] %v290
                %v292 = vld [vmem:[%s252 + $0x130] sm:$0xff]
                %293 = vst [vmem:[%s253 + $0x98] sm:$0xff] %v292
                %v294 = vld [vmem:[%s252 + $0x140] sm:$0xff]
                %295 = vst [vmem:[%s253 + $0xa0] sm:$0xff] %v294
                %v296 = vld [vmem:[%s252 + $0x150] sm:$0xff]
                %297 = vst [vmem:[%s253 + $0xa8] sm:$0xff] %v296
                %v298 = vld [vmem:[%s252 + $0x160] sm:$0xff]
                %299 = vst [vmem:[%s253 + $0xb0] sm:$0xff] %v298
                %v300 = vld [vmem:[%s252 + $0x170] sm:$0xff]
                %301 = vst [vmem:[%s253 + $0xb8] sm:$0xff] %v300
                %v302 = vld [vmem:[%s252 + $0x180] sm:$0xff]
                %303 = vst [vmem:[%s253 + $0xc0] sm:$0xff] %v302
                %v304 = vld [vmem:[%s252 + $0x190] sm:$0xff]
                %305 = vst [vmem:[%s253 + $0xc8] sm:$0xff] %v304
                %v306 = vld [vmem:[%s252 + $0x1a0] sm:$0xff]
                %307 = vst [vmem:[%s253 + $0xd0] sm:$0xff] %v306
                %v308 = vld [vmem:[%s252 + $0x1b0] sm:$0xff]
                %309 = vst [vmem:[%s253 + $0xd8] sm:$0xff] %v308
                %v310 = vld [vmem:[%s252 + $0x1c0] sm:$0xff]
                %311 = vst [vmem:[%s253 + $0xe0] sm:$0xff] %v310
                %v312 = vld [vmem:[%s252 + $0x1d0] sm:$0xff]
                %313 = vst [vmem:[%s253 + $0xe8] sm:$0xff] %v312
                %v314 = vld [vmem:[%s252 + $0x1e0] sm:$0xff]
                %315 = vst [vmem:[%s253 + $0xf0] sm:$0xff] %v314
                %v316 = vld [vmem:[%s252 + $0x1f0] sm:$0xff]
                %317 = vst [vmem:[%s253 + $0xf8] sm:$0xff] %v316
                %v318 = vld [vmem:[%s252 + $0x200] sm:$0xff]
                %319 = vst [vmem:[%s253 + $0x100] sm:$0xff] %v318
                %v320 = vld [vmem:[%s252 + $0x210] sm:$0xff]
                %321 = vst [vmem:[%s253 + $0x108] sm:$0xff] %v320
                %v322 = vld [vmem:[%s252 + $0x220] sm:$0xff]
                %323 = vst [vmem:[%s253 + $0x110] sm:$0xff] %v322
                %v324 = vld [vmem:[%s252 + $0x230] sm:$0xff]
                %325 = vst [vmem:[%s253 + $0x118] sm:$0xff] %v324
                %v326 = vld [vmem:[%s252 + $0x240] sm:$0xff]
                %327 = vst [vmem:[%s253 + $0x120] sm:$0xff] %v326
                %v328 = vld [vmem:[%s252 + $0x250] sm:$0xff]
                %329 = vst [vmem:[%s253 + $0x128] sm:$0xff] %v328
                %v330 = vld [vmem:[%s252 + $0x260] sm:$0xff]
                %331 = vst [vmem:[%s253 + $0x130] sm:$0xff] %v330
                %v332 = vld [vmem:[%s252 + $0x270] sm:$0xff]
                %333 = vst [vmem:[%s253 + $0x138] sm:$0xff] %v332
                %v334 = vld [vmem:[%s252 + $0x280] sm:$0xff]
                %335 = vst [vmem:[%s253 + $0x140] sm:$0xff] %v334
                %v336 = vld [vmem:[%s252 + $0x290] sm:$0xff]
                %337 = vst [vmem:[%s253 + $0x148] sm:$0xff] %v336
                %v338 = vld [vmem:[%s252 + $0x2a0] sm:$0xff]
                %339 = vst [vmem:[%s253 + $0x150] sm:$0xff] %v338
                %v340 = vld [vmem:[%s252 + $0x2b0] sm:$0xff]
                %341 = vst [vmem:[%s253 + $0x158] sm:$0xff] %v340
                %v342 = vld [vmem:[%s252 + $0x2c0] sm:$0xff]
                %343 = vst [vmem:[%s253 + $0x160] sm:$0xff] %v342
                %v344 = vld [vmem:[%s252 + $0x2d0] sm:$0xff]
                %345 = vst [vmem:[%s253 + $0x168] sm:$0xff] %v344
                %v346 = vld [vmem:[%s252 + $0x2e0] sm:$0xff]
                %347 = vst [vmem:[%s253 + $0x170] sm:$0xff] %v346
                %v348 = vld [vmem:[%s252 + $0x2f0] sm:$0xff]
                %349 = vst [vmem:[%s253 + $0x178] sm:$0xff] %v348
                %v350 = vld [vmem:[%s252 + $0x300] sm:$0xff]
                %351 = vst [vmem:[%s253 + $0x180] sm:$0xff] %v350
                %v352 = vld [vmem:[%s252 + $0x310] sm:$0xff]
                %353 = vst [vmem:[%s253 + $0x188] sm:$0xff] %v352
                %v354 = vld [vmem:[%s252 + $0x320] sm:$0xff]
                %355 = vst [vmem:[%s253 + $0x190] sm:$0xff] %v354
                %v356 = vld [vmem:[%s252 + $0x330] sm:$0xff]
                %357 = vst [vmem:[%s253 + $0x198] sm:$0xff] %v356
                %v358 = vld [vmem:[%s252 + $0x340] sm:$0xff]
                %359 = vst [vmem:[%s253 + $0x1a0] sm:$0xff] %v358
                %v360 = vld [vmem:[%s252 + $0x350] sm:$0xff]
                %361 = vst [vmem:[%s253 + $0x1a8] sm:$0xff] %v360
                %v362 = vld [vmem:[%s252 + $0x360] sm:$0xff]
                %363 = vst [vmem:[%s253 + $0x1b0] sm:$0xff] %v362
                %v364 = vld [vmem:[%s252 + $0x370] sm:$0xff]
                %365 = vst [vmem:[%s253 + $0x1b8] sm:$0xff] %v364
                %v366 = vld [vmem:[%s252 + $0x380] sm:$0xff]
                %367 = vst [vmem:[%s253 + $0x1c0] sm:$0xff] %v366
                %v368 = vld [vmem:[%s252 + $0x390] sm:$0xff]
                %369 = vst [vmem:[%s253 + $0x1c8] sm:$0xff] %v368
                %v370 = vld [vmem:[%s252 + $0x3a0] sm:$0xff]
                %371 = vst [vmem:[%s253 + $0x1d0] sm:$0xff] %v370
                %v372 = vld [vmem:[%s252 + $0x3b0] sm:$0xff]
                %373 = vst [vmem:[%s253 + $0x1d8] sm:$0xff] %v372
                %v374 = vld [vmem:[%s252 + $0x3c0] sm:$0xff]
                %375 = vst [vmem:[%s253 + $0x1e0] sm:$0xff] %v374
                %v376 = vld [vmem:[%s252 + $0x3d0] sm:$0xff]
                %377 = vst [vmem:[%s253 + $0x1e8] sm:$0xff] %v376
                %v378 = vld [vmem:[%s252 + $0x3e0] sm:$0xff]
                %379 = vst [vmem:[%s253 + $0x1f0] sm:$0xff] %v378
                %v380 = vld [vmem:[%s252 + $0x3f0] sm:$0xff]
                %381 = vst [vmem:[%s253 + $0x1f8] sm:$0xff] %v380
              $region41: #{_lambda_.26} parent=35 // loop_footer
                %s251 = sadd.s32 1, %s247
              $region42: #{_lambda_.26} parent=35 // loop_footer_branch
                %246 = sbr.rel target = $region38
              $region43: #{_lambda_.26} parent=35 // loop_exit
                _
            $region36: #{_lambda_.26} parent=27 // pred_fallthru
              _
          $region28: #{_lambda_.26} parent=23 // pred_fallthru
            _
          %522 = vnop
        $region24: #{_lambda_.26} parent=15 // pred_fallthru
          _
        // Predicated region
        $region59: #{_lambda_.26} parent=15 // pred_check
          %p523 = pneg %p106
        $region60: #{_lambda_.26} parent=15 // pred_check_branch
          %525 = sbr.rel (%p523) target = $region62
        $region61: #{_lambda_.26} parent=15 // pred_region
          %s526 = smul.u32 2, %s19
          %p527 = scmp.lt.s32.totalorder %s526, 3
          %s528 = scalar_select %p527, %s526, 3
          %s529 = scalar_lea.vmem %s2, %s528
          %s530 = smul.u32 2, %s19
        $region62: #{_lambda_.26} parent=15 // pred_fallthru
          _
        // Predicated region
        $region63: #{_lambda_.26} parent=15 // pred_check
          %p531 = pneg %p132
        $region64: #{_lambda_.26} parent=15 // pred_check_branch
          %533 = sbr.rel (%p531) target = $region66
        $region65: #{_lambda_.26} parent=15 // pred_region
          %s534 = smul.u32 2, %s19
          %p535 = scmp.lt.s32.totalorder %s534, 3
          %s536 = scalar_select %p535, %s534, 3
          %s537 = scalar_lea.vmem %s3, %s536
          %s538 = smul.u32 2, %s19
        $region66: #{_lambda_.26} parent=15 // pred_fallthru
          _
        // Predicated region
        $region67: #{_lambda_.26} parent=15 // pred_check
          %p539 = pneg %p160
        $region68: #{_lambda_.26} parent=15 // pred_check_branch
          %541 = sbr.rel (%p539) target = $region70
        $region69: #{_lambda_.26} parent=15 // pred_region
          %s542 = smul.u32 2, %s19
          %p543 = scmp.lt.s32.totalorder %s18, 0
          %s544 = scalar_select %p543, %s18, 0
          %p545 = scmp.lt.s32.totalorder %s542, 3
          %s546 = scalar_select %p545, %s542, 3
          %s547 = smul.addr %s544, 4
          %s548 = sadd.s32 %s546, %s547
          %s549 = smul.addr %s548, 4
          %s550 = scalar_lea.vmem %s4, %s549
          %s551 = smul.u32 2, %s19
        $region70: #{_lambda_.26} parent=15 // pred_fallthru
          _
      $region16: #{_lambda_.26} parent=5 // pred_fallthru
        _
      %p552 = scmp.le.s32.totalorder 1, %s11
      %p553 = scmp.lt.s32.totalorder %s11, 19
      %p554 = pnand %p552, %p553
      %p555 = pneg %p554
      // Predicated region
      $region71: #{_lambda_.26} parent=5 // pred_check
        _
      $region72: #{_lambda_.26} parent=5 // pred_check_branch
        %557 = sbr.rel (%p554) target = $region74
      $region73: #{_lambda_.26} parent=5 // pred_region
        %s558 = ssub.s32 %s11, 1
        %s559 = sand.u32 %s73, 1
        %s560 = sand.u32 %s73, 1
        %s561 = smul.addr %s560, 512
        %s562 = scalar_lea.vmem [#allocation3], %s561
        // Predicated region
        $region75: #{_lambda_.26} parent=73 // pred_check
          %p563 = pneg %p86
        $region76: #{_lambda_.26} parent=73 // pred_check_branch
          %565 = sbr.rel (%p563) target = $region78
        $region77: #{_lambda_.26} parent=73 // pred_region
          _
        $region78: #{_lambda_.26} parent=73 // pred_fallthru
          _
        %s566 = smul.u32 4, %s23
        %p567 = scmp.lt.s32.totalorder %s21, 0
        %s568 = scalar_select %p567, %s21, 0
        %p569 = scmp.lt.s32.totalorder %s566, 35
        %s570 = scalar_select %p569, %s566, 35
        %s571 = smul.addr %s568, 36
        %s572 = sadd.s32 %s570, %s571
        %s573 = smul.addr %s572, 4
        %s574 = scalar_lea.vmem %s0, %s573
        %p575 = pneg %p58
        %p576 = pneg %p55
        %s577 = sand.u32 %s73, 1
        %s578 = sand.u32 %s73, 1
        %s579 = smul.addr %s578, 512
        %s580 = scalar_lea.vmem [#allocation3], %s579
        %p581 = pneg %p86
        %p582 = pneg %p83
        %s583 = smul.u32 2, %s22
        %p584 = scmp.lt.s32.totalorder %s583, 3
        %s585 = scalar_select %p584, %s583, 3
        %s586 = scalar_lea.vmem %s2, %s585
        %p587 = pneg %p112
        %p588 = pneg %p109
        %s589 = smul.u32 2, %s22
        %p590 = scmp.lt.s32.totalorder %s589, 3
        %s591 = scalar_select %p590, %s589, 3
        %s592 = scalar_lea.vmem %s3, %s591
        %p593 = pneg %p138
        %p594 = pneg %p135
        %s595 = smul.u32 2, %s22
        %p596 = scmp.lt.s32.totalorder %s21, 0
        %s597 = scalar_select %p596, %s21, 0
        %p598 = scmp.lt.s32.totalorder %s595, 3
        %s599 = scalar_select %p598, %s595, 3
        %s600 = smul.addr %s597, 4
        %s601 = sadd.s32 %s599, %s600
        %s602 = smul.addr %s601, 4
        %s603 = scalar_lea.vmem %s4, %s602
        %p604 = pneg %p166
        %p605 = pneg %p163
        %p606 = pneg %p194
        %p607 = pneg %p191
        %s608 = smul.u32 2, %s22
        %p609 = scmp.lt.s32.totalorder %s21, 0
        %s610 = scalar_select %p609, %s21, 0
        %p611 = scmp.lt.s32.totalorder %s608, 3
        %s612 = scalar_select %p611, %s608, 3
        %s613 = smul.addr %s610, 4
        %s614 = sadd.s32 %s612, %s613
        %s615 = smul.addr %s614, 4
        %s616 = scalar_lea.vmem %s5, %s615
        %s617 = smul.u32 4, %s23
        %p618 = scmp.lt.s32.totalorder %s21, 0
        %s619 = scalar_select %p618, %s21, 0
        %p620 = scmp.lt.s32.totalorder %s617, 35
        %s621 = scalar_select %p620, %s617, 35
        %s622 = smul.addr %s619, 36
        %s623 = sadd.s32 %s621, %s622
        %s624 = smul.addr %s623, 4
        %s625 = scalar_lea.vmem %s0, %s624
        %s626 = smul.u32 4, %s23
        %s627 = smul.u32 64, %s23
        %s628 = smul.u32 2, %s22
        %s629 = smul.u32 2, %s22
        %p630 = scmp.lt.s32.totalorder %s629, 3
        %s631 = scalar_select %p630, %s629, 3
        %s632 = scalar_lea.vmem %s2, %s631
        %s633 = smul.u32 2, %s22
        %s634 = smul.u32 2, %s22
        %p635 = scmp.lt.s32.totalorder %s634, 3
        %s636 = scalar_select %p635, %s634, 3
        %s637 = scalar_lea.vmem %s3, %s636
        %s638 = smul.u32 2, %s22
        %s639 = smul.u32 2, %s22
        %p640 = scmp.lt.s32.totalorder %s21, 0
        %s641 = scalar_select %p640, %s21, 0
        %p642 = scmp.lt.s32.totalorder %s639, 3
        %s643 = scalar_select %p642, %s639, 3
        %s644 = smul.addr %s641, 4
        %s645 = sadd.s32 %s643, %s644
        %s646 = smul.addr %s645, 4
        %s647 = scalar_lea.vmem %s4, %s646
        %s648 = smul.u32 2, %s22
        %s649 = smul.u32 2, %s22
        %p650 = scmp.lt.s32.totalorder %s21, 0
        %s651 = scalar_select %p650, %s21, 0
        %p652 = scmp.lt.s32.totalorder %s649, 3
        %s653 = scalar_select %p652, %s649, 3
        %s654 = smul.addr %s651, 4
        %s655 = sadd.s32 %s653, %s654
        %s656 = smul.addr %s655, 4
        %s657 = scalar_lea.vmem %s5, %s656
        %s658 = smul.u32 2, %s22
        %p659 = scmp.eq.s32.totalorder %s23, 0
        // Predicated region
        $region79: #{_lambda_.26} parent=73 // pred_check
          %p660 = pneg %p659
        $region80: #{_lambda_.26} parent=73 // pred_check_branch
          %662 = sbr.rel (%p660) target = $region82
        $region81: #{_lambda_.26} parent=73 // pred_region
          %663 = vst [vmem:[#allocation2] sm:$0xff] 0.0
          %664 = vst [vmem:[#allocation2 + $0x8] sm:$0xff] 0.0
        $region82: #{_lambda_.26} parent=73 // pred_fallthru
          _
        %v665 = vld [vmem:[#allocation2] sm:$0xff]
        %v666 = vld [vmem:[#allocation2 + $0x8] sm:$0xff]
        %v667 = vld [vmem:[%s625] sm:$0xff]
        %v668 = vld [vmem:[%s625 + $0x8] sm:$0xff]
        %v669 = vld [vmem:[%s562] sm:$0xff]
        %v670 = vld [vmem:[%s562 + $0x8] sm:$0xff]
        %v671 = vld [vmem:[%s562 + $0x10] sm:$0xff]
        %v672 = vld [vmem:[%s562 + $0x18] sm:$0xff]
        %v673 = vld [vmem:[%s562 + $0x20] sm:$0xff]
        %v674 = vld [vmem:[%s562 + $0x28] sm:$0xff]
        %v675 = vld [vmem:[%s562 + $0x30] sm:$0xff]
        %v676 = vld [vmem:[%s562 + $0x38] sm:$0xff]
        %v677 = vld [vmem:[%s562 + $0x40] sm:$0xff]
        %v678 = vld [vmem:[%s562 + $0x48] sm:$0xff]
        %v679 = vld [vmem:[%s562 + $0x50] sm:$0xff]
        %v680 = vld [vmem:[%s562 + $0x58] sm:$0xff]
        %v681 = vld [vmem:[%s562 + $0x60] sm:$0xff]
        %v682 = vld [vmem:[%s562 + $0x68] sm:$0xff]
        %v683 = vld [vmem:[%s562 + $0x70] sm:$0xff]
        %v684 = vld [vmem:[%s562 + $0x78] sm:$0xff]
        %v685 = vld [vmem:[%s562 + $0x80] sm:$0xff]
        %v686 = vld [vmem:[%s562 + $0x88] sm:$0xff]
        %v687 = vld [vmem:[%s562 + $0x90] sm:$0xff]
        %v688 = vld [vmem:[%s562 + $0x98] sm:$0xff]
        %v689 = vld [vmem:[%s562 + $0xa0] sm:$0xff]
        %v690 = vld [vmem:[%s562 + $0xa8] sm:$0xff]
        %v691 = vld [vmem:[%s562 + $0xb0] sm:$0xff]
        %v692 = vld [vmem:[%s562 + $0xb8] sm:$0xff]
        %v693 = vld [vmem:[%s562 + $0xc0] sm:$0xff]
        %v694 = vld [vmem:[%s562 + $0xc8] sm:$0xff]
        %v695 = vld [vmem:[%s562 + $0xd0] sm:$0xff]
        %v696 = vld [vmem:[%s562 + $0xd8] sm:$0xff]
        %v697 = vld [vmem:[%s562 + $0xe0] sm:$0xff]
        %v698 = vld [vmem:[%s562 + $0xe8] sm:$0xff]
        %v699 = vld [vmem:[%s562 + $0xf0] sm:$0xff]
        %v700 = vld [vmem:[%s562 + $0xf8] sm:$0xff]
        %v701 = vld [vmem:[%s562 + $0x100] sm:$0xff]
        %v702 = vld [vmem:[%s562 + $0x108] sm:$0xff]
        %v703 = vld [vmem:[%s562 + $0x110] sm:$0xff]
        %v704 = vld [vmem:[%s562 + $0x118] sm:$0xff]
        %v705 = vld [vmem:[%s562 + $0x120] sm:$0xff]
        %v706 = vld [vmem:[%s562 + $0x128] sm:$0xff]
        %v707 = vld [vmem:[%s562 + $0x130] sm:$0xff]
        %v708 = vld [vmem:[%s562 + $0x138] sm:$0xff]
        %v709 = vld [vmem:[%s562 + $0x140] sm:$0xff]
        %v710 = vld [vmem:[%s562 + $0x148] sm:$0xff]
        %v711 = vld [vmem:[%s562 + $0x150] sm:$0xff]
        %v712 = vld [vmem:[%s562 + $0x158] sm:$0xff]
        %v713 = vld [vmem:[%s562 + $0x160] sm:$0xff]
        %v714 = vld [vmem:[%s562 + $0x168] sm:$0xff]
        %v715 = vld [vmem:[%s562 + $0x170] sm:$0xff]
        %v716 = vld [vmem:[%s562 + $0x178] sm:$0xff]
        %v717 = vld [vmem:[%s562 + $0x180] sm:$0xff]
        %v718 = vld [vmem:[%s562 + $0x188] sm:$0xff]
        %v719 = vld [vmem:[%s562 + $0x190] sm:$0xff]
        %v720 = vld [vmem:[%s562 + $0x198] sm:$0xff]
        %v721 = vld [vmem:[%s562 + $0x1a0] sm:$0xff]
        %v722 = vld [vmem:[%s562 + $0x1a8] sm:$0xff]
        %v723 = vld [vmem:[%s562 + $0x1b0] sm:$0xff]
        %v724 = vld [vmem:[%s562 + $0x1b8] sm:$0xff]
        %v725 = vld [vmem:[%s562 + $0x1c0] sm:$0xff]
        %v726 = vld [vmem:[%s562 + $0x1c8] sm:$0xff]
        %v727 = vld [vmem:[%s562 + $0x1d0] sm:$0xff]
        %v728 = vld [vmem:[%s562 + $0x1d8] sm:$0xff]
        %v729 = vld [vmem:[%s562 + $0x1e0] sm:$0xff]
        %v730 = vld [vmem:[%s562 + $0x1e8] sm:$0xff]
        %v731 = vld [vmem:[%s562 + $0x1f0] sm:$0xff]
        %v732 = vld [vmem:[%s562 + $0x1f8] sm:$0xff]
        %v735 = vunpack.c.l.b16 %v667
        %v736 = vunpack.c.h.b16 %v667
        %v737 = vunpack.c.l.b16 %v668
        %v738 = vunpack.c.h.b16 %v668
        %v739 = vpack.c.b16 %v735, %v735
        %v740 = vpack.c.b16 %v736, %v736
        %v741 = vpack.c.b16 %v737, %v737
        %v742 = vpack.c.b16 %v738, %v738
        %v811 = vunpack.c.l.b16 %v669
        %v812 = vunpack.c.h.b16 %v669
        %v813 = vunpack.c.l.b16 %v670
        %v814 = vunpack.c.h.b16 %v670
        %v815 = vunpack.c.l.b16 %v671
        %v816 = vunpack.c.h.b16 %v671
        %v817 = vunpack.c.l.b16 %v672
        %v818 = vunpack.c.h.b16 %v672
        %v819 = vunpack.c.l.b16 %v673
        %v820 = vunpack.c.h.b16 %v673
        %v821 = vunpack.c.l.b16 %v674
        %v822 = vunpack.c.h.b16 %v674
        %v823 = vunpack.c.l.b16 %v675
        %v824 = vunpack.c.h.b16 %v675
        %v825 = vunpack.c.l.b16 %v676
        %v826 = vunpack.c.h.b16 %v676
        %v827 = vunpack.c.l.b16 %v677
        %v828 = vunpack.c.h.b16 %v677
        %v829 = vunpack.c.l.b16 %v678
        %v830 = vunpack.c.h.b16 %v678
        %v831 = vunpack.c.l.b16 %v679
        %v832 = vunpack.c.h.b16 %v679
        %v833 = vunpack.c.l.b16 %v680
        %v834 = vunpack.c.h.b16 %v680
        %v835 = vunpack.c.l.b16 %v681
        %v836 = vunpack.c.h.b16 %v681
        %v837 = vunpack.c.l.b16 %v682
        %v838 = vunpack.c.h.b16 %v682
        %v839 = vunpack.c.l.b16 %v683
        %v840 = vunpack.c.h.b16 %v683
        %v841 = vunpack.c.l.b16 %v684
        %v842 = vunpack.c.h.b16 %v684
        %v843 = vunpack.c.l.b16 %v685
        %v844 = vunpack.c.h.b16 %v685
        %v845 = vunpack.c.l.b16 %v686
        %v846 = vunpack.c.h.b16 %v686
        %v847 = vunpack.c.l.b16 %v687
        %v848 = vunpack.c.h.b16 %v687
        %v849 = vunpack.c.l.b16 %v688
        %v850 = vunpack.c.h.b16 %v688
        %v851 = vunpack.c.l.b16 %v689
        %v852 = vunpack.c.h.b16 %v689
        %v853 = vunpack.c.l.b16 %v690
        %v854 = vunpack.c.h.b16 %v690
        %v855 = vunpack.c.l.b16 %v691
        %v856 = vunpack.c.h.b16 %v691
        %v857 = vunpack.c.l.b16 %v692
        %v858 = vunpack.c.h.b16 %v692
        %v859 = vunpack.c.l.b16 %v693
        %v860 = vunpack.c.h.b16 %v693
        %v861 = vunpack.c.l.b16 %v694
        %v862 = vunpack.c.h.b16 %v694
        %v863 = vunpack.c.l.b16 %v695
        %v864 = vunpack.c.h.b16 %v695
        %v865 = vunpack.c.l.b16 %v696
        %v866 = vunpack.c.h.b16 %v696
        %v867 = vunpack.c.l.b16 %v697
        %v868 = vunpack.c.h.b16 %v697
        %v869 = vunpack.c.l.b16 %v698
        %v870 = vunpack.c.h.b16 %v698
        %v871 = vunpack.c.l.b16 %v699
        %v872 = vunpack.c.h.b16 %v699
        %v873 = vunpack.c.l.b16 %v700
        %v874 = vunpack.c.h.b16 %v700
        %v875 = vunpack.c.l.b16 %v701
        %v876 = vunpack.c.h.b16 %v701
        %v877 = vunpack.c.l.b16 %v702
        %v878 = vunpack.c.h.b16 %v702
        %v879 = vunpack.c.l.b16 %v703
        %v880 = vunpack.c.h.b16 %v703
        %v881 = vunpack.c.l.b16 %v704
        %v882 = vunpack.c.h.b16 %v704
        %v883 = vunpack.c.l.b16 %v705
        %v884 = vunpack.c.h.b16 %v705
        %v885 = vunpack.c.l.b16 %v706
        %v886 = vunpack.c.h.b16 %v706
        %v887 = vunpack.c.l.b16 %v707
        %v888 = vunpack.c.h.b16 %v707
        %v889 = vunpack.c.l.b16 %v708
        %v890 = vunpack.c.h.b16 %v708
        %v891 = vunpack.c.l.b16 %v709
        %v892 = vunpack.c.h.b16 %v709
        %v893 = vunpack.c.l.b16 %v710
        %v894 = vunpack.c.h.b16 %v710
        %v895 = vunpack.c.l.b16 %v711
        %v896 = vunpack.c.h.b16 %v711
        %v897 = vunpack.c.l.b16 %v712
        %v898 = vunpack.c.h.b16 %v712
        %v899 = vunpack.c.l.b16 %v713
        %v900 = vunpack.c.h.b16 %v713
        %v901 = vunpack.c.l.b16 %v714
        %v902 = vunpack.c.h.b16 %v714
        %v903 = vunpack.c.l.b16 %v715
        %v904 = vunpack.c.h.b16 %v715
        %v905 = vunpack.c.l.b16 %v716
        %v906 = vunpack.c.h.b16 %v716
        %v907 = vunpack.c.l.b16 %v717
        %v908 = vunpack.c.h.b16 %v717
        %v909 = vunpack.c.l.b16 %v718
        %v910 = vunpack.c.h.b16 %v718
        %v911 = vunpack.c.l.b16 %v719
        %v912 = vunpack.c.h.b16 %v719
        %v913 = vunpack.c.l.b16 %v720
        %v914 = vunpack.c.h.b16 %v720
        %v915 = vunpack.c.l.b16 %v721
        %v916 = vunpack.c.h.b16 %v721
        %v917 = vunpack.c.l.b16 %v722
        %v918 = vunpack.c.h.b16 %v722
        %v919 = vunpack.c.l.b16 %v723
        %v920 = vunpack.c.h.b16 %v723
        %v921 = vunpack.c.l.b16 %v724
        %v922 = vunpack.c.h.b16 %v724
        %v923 = vunpack.c.l.b16 %v725
        %v924 = vunpack.c.h.b16 %v725
        %v925 = vunpack.c.l.b16 %v726
        %v926 = vunpack.c.h.b16 %v726
        %v927 = vunpack.c.l.b16 %v727
        %v928 = vunpack.c.h.b16 %v727
        %v929 = vunpack.c.l.b16 %v728
        %v930 = vunpack.c.h.b16 %v728
        %v931 = vunpack.c.l.b16 %v729
        %v932 = vunpack.c.h.b16 %v729
        %v933 = vunpack.c.l.b16 %v730
        %v934 = vunpack.c.h.b16 %v730
        %v935 = vunpack.c.l.b16 %v731
        %v936 = vunpack.c.h.b16 %v731
        %v937 = vunpack.c.l.b16 %v732
        %v938 = vunpack.c.h.b16 %v732
        %v939 = vpack.c.b16 %v813, %v811
        %v940 = vpack.c.b16 %v814, %v812
        %v941 = vpack.c.b16 %v817, %v815
        %v942 = vpack.c.b16 %v818, %v816
        %v943 = vpack.c.b16 %v821, %v819
        %v944 = vpack.c.b16 %v822, %v820
        %v945 = vpack.c.b16 %v825, %v823
        %v946 = vpack.c.b16 %v826, %v824
        %v947 = vpack.c.b16 %v829, %v827
        %v948 = vpack.c.b16 %v830, %v828
        %v949 = vpack.c.b16 %v833, %v831
        %v950 = vpack.c.b16 %v834, %v832
        %v951 = vpack.c.b16 %v837, %v835
        %v952 = vpack.c.b16 %v838, %v836
        %v953 = vpack.c.b16 %v841, %v839
        %v954 = vpack.c.b16 %v842, %v840
        %v955 = vpack.c.b16 %v845, %v843
        %v956 = vpack.c.b16 %v846, %v844
        %v957 = vpack.c.b16 %v849, %v847
        %v958 = vpack.c.b16 %v850, %v848
        %v959 = vpack.c.b16 %v853, %v851
        %v960 = vpack.c.b16 %v854, %v852
        %v961 = vpack.c.b16 %v857, %v855
        %v962 = vpack.c.b16 %v858, %v856
        %v963 = vpack.c.b16 %v861, %v859
        %v964 = vpack.c.b16 %v862, %v860
        %v965 = vpack.c.b16 %v865, %v863
        %v966 = vpack.c.b16 %v866, %v864
        %v967 = vpack.c.b16 %v869, %v867
        %v968 = vpack.c.b16 %v870, %v868
        %v969 = vpack.c.b16 %v873, %v871
        %v970 = vpack.c.b16 %v874, %v872
        %v971 = vpack.c.b16 %v877, %v875
        %v972 = vpack.c.b16 %v878, %v876
        %v973 = vpack.c.b16 %v881, %v879
        %v974 = vpack.c.b16 %v882, %v880
        %v975 = vpack.c.b16 %v885, %v883
        %v976 = vpack.c.b16 %v886, %v884
        %v977 = vpack.c.b16 %v889, %v887
        %v978 = vpack.c.b16 %v890, %v888
        %v979 = vpack.c.b16 %v893, %v891
        %v980 = vpack.c.b16 %v894, %v892
        %v981 = vpack.c.b16 %v897, %v895
        %v982 = vpack.c.b16 %v898, %v896
        %v983 = vpack.c.b16 %v901, %v899
        %v984 = vpack.c.b16 %v902, %v900
        %v985 = vpack.c.b16 %v905, %v903
        %v986 = vpack.c.b16 %v906, %v904
        %v987 = vpack.c.b16 %v909, %v907
        %v988 = vpack.c.b16 %v910, %v908
        %v989 = vpack.c.b16 %v913, %v911
        %v990 = vpack.c.b16 %v914, %v912
        %v991 = vpack.c.b16 %v917, %v915
        %v992 = vpack.c.b16 %v918, %v916
        %v993 = vpack.c.b16 %v921, %v919
        %v994 = vpack.c.b16 %v922, %v920
        %v995 = vpack.c.b16 %v925, %v923
        %v996 = vpack.c.b16 %v926, %v924
        %v997 = vpack.c.b16 %v929, %v927
        %v998 = vpack.c.b16 %v930, %v928
        %v999 = vpack.c.b16 %v933, %v931
        %v1000 = vpack.c.b16 %v934, %v932
        %v1001 = vpack.c.b16 %v937, %v935
        %v1002 = vpack.c.b16 %v938, %v936
        %1067 = vmatprep.subr.bf16.mxu0 %v940
        %1068 = vmatpush1.bf16.msra.mxu0 %v939
        %1069 = vmatprep.subr.bf16.mxu0 %v942
        %1070 = vmatpush1.bf16.msra.mxu0 %v941
        %1071 = vmatprep.subr.bf16.mxu0 %v944
        %1072 = vmatpush1.bf16.msra.mxu0 %v943
        %1073 = vmatprep.subr.bf16.mxu0 %v946
        %1074 = vmatpush1.bf16.msra.mxu0 %v945
        %1075 = vmatprep.subr.bf16.mxu0 %v948
        %1076 = vmatpush1.bf16.msra.mxu0 %v947
        %1077 = vmatprep.subr.bf16.mxu0 %v950
        %1078 = vmatpush1.bf16.msra.mxu0 %v949
        %1079 = vmatprep.subr.bf16.mxu0 %v952
        %1080 = vmatpush1.bf16.msra.mxu0 %v951
        %1081 = vmatprep.subr.bf16.mxu0 %v954
        %1082 = vmatpush1.bf16.msra.mxu0 %v953
        %1083 = vmatprep.subr.bf16.mxu0 %v956
        %1084 = vmatpush1.bf16.msra.mxu0 %v955
        %1085 = vmatprep.subr.bf16.mxu0 %v958
        %1086 = vmatpush1.bf16.msra.mxu0 %v957
        %1087 = vmatprep.subr.bf16.mxu0 %v960
        %1088 = vmatpush1.bf16.msra.mxu0 %v959
        %1089 = vmatprep.subr.bf16.mxu0 %v962
        %1090 = vmatpush1.bf16.msra.mxu0 %v961
        %1091 = vmatprep.subr.bf16.mxu0 %v964
        %1092 = vmatpush1.bf16.msra.mxu0 %v963
        %1093 = vmatprep.subr.bf16.mxu0 %v966
        %1094 = vmatpush1.bf16.msra.mxu0 %v965
        %1095 = vmatprep.subr.bf16.mxu0 %v968
        %1096 = vmatpush1.bf16.msra.mxu0 %v967
        %1097 = vmatprep.subr.bf16.mxu0 %v970
        %1098 = vmatpush1.bf16.msra.mxu0 %v969
        %1099 = vmatprep.mubr.bf16.mxu0 %v740
        %1100 = vmatmul.mubr.bf16.gmra.mrb[0].mxu0 %v739
        %v1101 = vpop.f32.mrb[0].mxu0
        %v1102 = vadd.f32 0.0, %v1101
        %v1103 = vpop.f32.mrb[0].mxu0
        %v1104 = vadd.f32 0.0, %v1103
        %v1105 = vpop.f32.mrb[0].mxu0
        %v1106 = vpop.f32.mrb[0].mxu0
        %1107 = vdwg.mxu0
        %1108 = vmatprep.subr.bf16.mxu0 %v972
        %1109 = vmatpush1.bf16.msra.mxu0 %v971
        %1110 = vmatprep.subr.bf16.mxu0 %v974
        %1111 = vmatpush1.bf16.msra.mxu0 %v973
        %1112 = vmatprep.subr.bf16.mxu0 %v976
        %1113 = vmatpush1.bf16.msra.mxu0 %v975
        %1114 = vmatprep.subr.bf16.mxu0 %v978
        %1115 = vmatpush1.bf16.msra.mxu0 %v977
        %1116 = vmatprep.subr.bf16.mxu0 %v980
        %1117 = vmatpush1.bf16.msra.mxu0 %v979
        %1118 = vmatprep.subr.bf16.mxu0 %v982
        %1119 = vmatpush1.bf16.msra.mxu0 %v981
        %1120 = vmatprep.subr.bf16.mxu0 %v984
        %1121 = vmatpush1.bf16.msra.mxu0 %v983
        %1122 = vmatprep.subr.bf16.mxu0 %v986
        %1123 = vmatpush1.bf16.msra.mxu0 %v985
        %1124 = vmatprep.subr.bf16.mxu0 %v988
        %1125 = vmatpush1.bf16.msra.mxu0 %v987
        %1126 = vmatprep.subr.bf16.mxu0 %v990
        %1127 = vmatpush1.bf16.msra.mxu0 %v989
        %1128 = vmatprep.subr.bf16.mxu0 %v992
        %1129 = vmatpush1.bf16.msra.mxu0 %v991
        %1130 = vmatprep.subr.bf16.mxu0 %v994
        %1131 = vmatpush1.bf16.msra.mxu0 %v993
        %1132 = vmatprep.subr.bf16.mxu0 %v996
        %1133 = vmatpush1.bf16.msra.mxu0 %v995
        %1134 = vmatprep.subr.bf16.mxu0 %v998
        %1135 = vmatpush1.bf16.msra.mxu0 %v997
        %1136 = vmatprep.subr.bf16.mxu0 %v1000
        %1137 = vmatpush1.bf16.msra.mxu0 %v999
        %1138 = vmatprep.subr.bf16.mxu0 %v1002
        %1139 = vmatpush1.bf16.msra.mxu0 %v1001
        %1140 = vmatprep.mubr.bf16.mxu0 %v742
        %1141 = vmatmul.mubr.bf16.gmra.mrb[0].mxu0 %v741
        %v1142 = vpop.f32.mrb[0].mxu0
        %v1143 = vadd.f32 %v1102, %v1142
        %v1144 = vpop.f32.mrb[0].mxu0
        %v1145 = vadd.f32 %v1104, %v1144
        %v1146 = vpop.f32.mrb[0].mxu0
        %v1147 = vpop.f32.mrb[0].mxu0
        %1148 = vdwg.mxu0
        %v1149 = vadd.f32 %v665, %v1143
        %v1150 = vadd.f32 %v666, %v1145
        %1151 = vst [vmem:[#allocation2] sm:$0xff] %v1149
        %1152 = vst [vmem:[#allocation2 + $0x8] sm:$0xff] %v1150
        %p1153 = scmp.eq.s32.totalorder %s23, 8
        // Predicated region
        $region83: #{_lambda_.26} parent=73 // pred_check
          %p1154 = pneg %p1153
        $region84: #{_lambda_.26} parent=73 // pred_check_branch
          %1156 = sbr.rel (%p1154) target = $region86
        $region85: #{_lambda_.26} parent=73 // pred_region
          %v1157 = vld [vmem:[#allocation2] sm:$0xff]
          %v1158 = vld [vmem:[#allocation2 + $0x8] sm:$0xff]
          %v1159 = vld [vmem:[%s632] sm:$0x3]
          %v1161 = vlaneseq
          %v1162 = vshrl.u32 %v1161, 7
          %v1163 = vsub.s32 0, %v1162
          %v1164 = vrot.slane %v1159, %v1163
          %v1165 = vlaneseq
          %v1166 = vshrl.u32 %v1165, 7
          %v1167 = vsub.s32 1, %v1166
          %v1168 = vrot.slane %v1159, %v1167
          %v1171 = vmul.f32 %v1157, %v1164
          %v1172 = vmul.f32 %v1158, %v1168
          %v1173 = vld [vmem:[%s637] sm:$0x3]
          %v1175 = vlaneseq
          %v1176 = vshrl.u32 %v1175, 7
          %v1177 = vsub.s32 0, %v1176
          %v1178 = vrot.slane %v1173, %v1177
          %v1179 = vlaneseq
          %v1180 = vshrl.u32 %v1179, 7
          %v1181 = vsub.s32 1, %v1180
          %v1182 = vrot.slane %v1173, %v1181
          %v1185 = vadd.f32 %v1171, %v1178
          %v1186 = vadd.f32 %v1172, %v1182
          %v1187 = vld [vmem:[%s647] sm:$0xff]
          %v1188 = vunpack.c.l.bf16 %v1187
          %v1189 = vunpack.c.h.bf16 %v1187
          %v1190 = vadd.f32 %v1185, %v1188
          %v1191 = vadd.f32 %v1186, %v1189
          %v1192 = vmax.f32 %v1190, 0.0
          %v1193 = vmax.f32 %v1191, 0.0
          %v1194 = vpack.c.bf16 %v1192, %v1192
          %v1195 = vpack.c.bf16 %v1193, %v1193
          %v1198 = vunpack.c.l.b16 %v1194
          %v1199 = vunpack.c.l.b16 %v1195
          %v1200 = vpack.c.b16 %v1199, %v1198
          %1202 = vst [vmem:[%s657] sm:$0xff] %v1200
        $region86: #{_lambda_.26} parent=73 // pred_fallthru
          _
        %s1203 = smul.u32 2, %s22
        %p1204 = scmp.lt.s32.totalorder %s21, 0
        %s1205 = scalar_select %p1204, %s21, 0
        %p1206 = scmp.lt.s32.totalorder %s1203, 3
        %s1207 = scalar_select %p1206, %s1203, 3
        %s1208 = smul.addr %s1205, 4
        %s1209 = sadd.s32 %s1207, %s1208
        %s1210 = smul.addr %s1209, 4
        %s1211 = scalar_lea.vmem %s5, %s1210
        // Predicated region
        $region87: #{_lambda_.26} parent=73 // pred_check
          %p1212 = pneg %p191
        $region88: #{_lambda_.26} parent=73 // pred_check_branch
          %1214 = sbr.rel (%p1212) target = $region90
        $region89: #{_lambda_.26} parent=73 // pred_region
          %s1215 = smul.u32 2, %s22
        $region90: #{_lambda_.26} parent=73 // pred_fallthru
          _
      $region74: #{_lambda_.26} parent=5 // pred_fallthru
        _
      %p1216 = scmp.le.s32.totalorder 2, %s11
      // Predicated region
      $region91: #{_lambda_.26} parent=5 // pred_check
        %p1217 = pneg %p1216
      $region92: #{_lambda_.26} parent=5 // pred_check_branch
        %1219 = sbr.rel (%p1217) target = $region94
      $region93: #{_lambda_.26} parent=5 // pred_region
        %s1220 = ssub.s32 %s11, 2
        // Predicated region
        $region95: #{_lambda_.26} parent=93 // pred_check
          %p1221 = pneg %p197
        $region96: #{_lambda_.26} parent=93 // pred_check_branch
          %1223 = sbr.rel (%p1221) target = $region98
        $region97: #{_lambda_.26} parent=93 // pred_region
          %s1224 = smul.u32 2, %s25
          %p1225 = scmp.lt.s32.totalorder %s24, 0
          %s1226 = scalar_select %p1225, %s24, 0
          %p1227 = scmp.lt.s32.totalorder %s1224, 3
          %s1228 = scalar_select %p1227, %s1224, 3
          %s1229 = smul.addr %s1226, 4
          %s1230 = sadd.s32 %s1228, %s1229
          %s1231 = smul.addr %s1230, 4
          %s1232 = scalar_lea.vmem %s5, %s1231
        $region98: #{_lambda_.26} parent=93 // pred_fallthru
          _
      $region94: #{_lambda_.26} parent=5 // pred_fallthru
        _
    $region6: #{_lambda_.26} parent=1 // loop_footer
      %s15 = sadd.s32 1, %s11
    $region7: #{_lambda_.26} parent=1 // loop_footer_branch
      %10 = sbr.rel target = $region3
    $region8: #{_lambda_.26} parent=1 // loop_exit
      _

</llo_original>
